<compile_context>
chip_gen: v7x
topology: tpu7x:2x2x1
jax: 0.10.0
libtpu: 0.0.40
codegen_flags: <defaults>
</compile_context>

<pallas_src>
import jax
import jax.numpy as jnp
from jax.experimental import pallas as pl
from jax.experimental.pallas import tpu as pltpu

LANE = 128


def _round_up(x, m):
    return ((x + m - 1) // m) * m


# --------------------------------------------------------------------------
# Fused kernel: conv3x3+BN+ReLU -> conv3x3+BN+ReLU -> MaxPool2d(3, 2, 1)
# --------------------------------------------------------------------------
def _downsample_fused_kernel(x_ref, w1_ref, b1_ref, w2_ref, b2_ref,
                             feat_ref, down_ref,
                             xpad_ref, hpad_ref, fpad_ref):
    # x_ref:    (1, H, W, CinP)         input tile (one batch element), NHWC, lane-padded
    # w1_ref:   (9*CinP, C1P)           conv1 weights (BN scale pre-folded, zero-padded)
    # b1_ref:   (1, C1P)                conv1 folded BN bias (f32, zero-padded)
    # w2_ref:   (9*C1P, C2P)            conv2 weights
    # b2_ref:   (1, C2P)                conv2 folded BN bias
    # feat_ref: (1, H, W, C2P)          DoubleConv output (lane-padded)
    # down_ref: (1, Ho, Wo, C2P)        MaxPool2d(3, 2, 1) output (lane-padded)
    # xpad_ref: (H+2, W+2, CinP)        VMEM scratch: zero-halo padded input
    # hpad_ref: (H+2, W+2, C1P)         VMEM scratch: zero-halo padded conv1 output
    # fpad_ref: (2*Ho+2, 2*Wo+2, C2P)   VMEM scratch: zero-halo padded feature
    H, W = feat_ref.shape[1], feat_ref.shape[2]
    Ho, Wo = down_ref.shape[1], down_ref.shape[2]
    CinP = x_ref.shape[3]
    C1P = b1_ref.shape[1]
    C2P = b2_ref.shape[1]
    Hp, Wp = fpad_ref.shape[0], fpad_ref.shape[1]

    def zero_halo(ref):
        # Zero only the halo ring (plus odd-size spill rows/cols); the interior
        # [1:H+1, 1:W+1, :] is fully overwritten every grid step.
        rows, cols, ch = ref.shape
        dt = ref.dtype
        ref[0:1, :, :] = jnp.zeros((1, cols, ch), dt)
        ref[H + 1:rows, :, :] = jnp.zeros((rows - (H + 1), cols, ch), dt)
        ref[:, 0:1, :] = jnp.zeros((rows, 1, ch), dt)
        ref[:, W + 1:cols, :] = jnp.zeros((rows, cols - (W + 1), ch), dt)

    def conv3x3(pad_ref, w_ref, cp):
        # Three dy row-tap matmuls, K = 3*cp each, accumulated in f32.
        acc = None
        for dy in range(3):
            taps = [pad_ref[dy:dy + H, dx:dx + W, :] for dx in range(3)]
            patch = jnp.concatenate(taps, axis=-1).reshape(H * W, 3 * cp)
            part = jnp.dot(patch, w_ref[dy * 3 * cp:(dy + 1) * 3 * cp, :],
                           preferred_element_type=jnp.float32)
            acc = part if acc is None else acc + part
        return acc

    # ---- conv1: 3x3, stride 1, zero pad 1, folded BN + ReLU ---------------
    zero_halo(xpad_ref)
    xpad_ref[1:H + 1, 1:W + 1, :] = x_ref[0]
    h = jnp.maximum(conv3x3(xpad_ref, w1_ref, CinP) + b1_ref[...], 0.0)

    # ---- conv2: same structure, input stays in VMEM ------------------------
    zero_halo(hpad_ref)
    hpad_ref[1:H + 1, 1:W + 1, :] = h.reshape(H, W, C1P).astype(hpad_ref.dtype)
    f = jnp.maximum(conv3x3(hpad_ref, w2_ref, C1P) + b2_ref[...], 0.0)
    f3 = f.reshape(H, W, C2P).astype(feat_ref.dtype)
    feat_ref[0] = f3

    # ---- MaxPool2d(kernel=3, stride=2, padding=1) epilogue -----------------
    # feat >= 0 (post-ReLU), so zero padding is equivalent to -inf padding.
    zero_halo(fpad_ref)
    fpad_ref[1:H + 1, 1:W + 1, :] = f3
    fp = fpad_ref[...]
    # row-direction 3-way max, then immediately drop to the even rows
    rmax = jnp.maximum(jnp.maximum(fp[0:Hp - 2], fp[1:Hp - 1]), fp[2:Hp])   # (2*Ho, Wp, C)
    rmax = rmax.reshape(Ho, 2, Wp, C2P)[:, 0]                               # (Ho, Wp, C)
    # column-direction 3-way max on the halved row count, then even cols
    cmax = jnp.maximum(jnp.maximum(rmax[:, 0:Wp - 2], rmax[:, 1:Wp - 1]),
                       rmax[:, 2:Wp])                                       # (Ho, 2*Wo, C)
    down_ref[0] = cmax.reshape(Ho, Wo, 2, C2P)[:, :, 0, :]


# --------------------------------------------------------------------------
# Wrapper
# --------------------------------------------------------------------------
def downsample_fused(x_nhwc, w1_hwio, b1, w2_hwio, b2,
                     *, compute_dtype=jnp.bfloat16):
    """Fused DoubleConv + MaxPool2d(3,2,1).

    x_nhwc:  (N, H, W, Cin)
    w*_hwio: (3, 3, Cin, Cout) conv weights with the BN scale already folded in
    b*:      (Cout,) folded BN bias
    Returns (feature, downsample) in NHWC (real, un-padded channel counts).
    """
    N, H, W, Cin = x_nhwc.shape
    C1 = w1_hwio.shape[-1]
    C2 = w2_hwio.shape[-1]
    Ho = (H + 2 - 3) // 2 + 1
    Wo = (W + 2 - 3) // 2 + 1
    Hp, Wp = 2 * Ho + 2, 2 * Wo + 2
    cdt = jnp.dtype(compute_dtype)

    # Lane-dense channel padding (multiples of 128).
    CinP = _round_up(max(Cin, LANE), LANE)
    C1P = _round_up(max(C1, LANE), LANE)
    C2P = _round_up(max(C2, LANE), LANE)

    x_p = jnp.pad(x_nhwc.astype(cdt),
                  ((0, 0), (0, 0), (0, 0), (0, CinP - Cin)))

    def pad_w(w, cinp, coutp):
        wz = jnp.zeros((3, 3, cinp, coutp), jnp.float32)
        wz = wz.at[:, :, :w.shape[2], :w.shape[3]].set(w)
        return wz.reshape(9 * cinp, coutp).astype(cdt)

    def pad_b(b, coutp):
        return jnp.zeros((1, coutp), jnp.float32).at[0, :b.shape[0]].set(
            b.astype(jnp.float32))

    w1f = pad_w(w1_hwio, CinP, C1P)
    w2f = pad_w(w2_hwio, C1P, C2P)
    b1r = pad_b(b1, C1P)
    b2r = pad_b(b2, C2P)

    # ---- VMEM budget: double-buffered I/O tiles + weights, persistent scratch,
    # im2col patches, f32 accumulators, pool temporaries. ---------------------
    its = jnp.dtype(cdt).itemsize
    tiles = H * W * CinP + H * W * C2P + Ho * Wo * C2P
    weights = 9 * CinP * C1P + 9 * C1P * C2P
    scratch = (H + 2) * (W + 2) * (CinP + C1P) + Hp * Wp * C2P
    temps_cdt = H * W * 3 * max(CinP, C1P) + 2 * Hp * Wp * C2P
    temps_f32 = H * W * (C1P + C2P)
    need = its * (2 * tiles + 2 * weights + scratch + temps_cdt) \
        + 4 * (temps_f32 + 2 * (C1P + C2P))
    try:
        cap = int(0.85 * pltpu.get_tpu_info().vmem_capacity_bytes)
    except Exception:
        cap = 48 << 20
    vmem_limit = int(min(cap, max(2 * need + (4 << 20), 16 << 20)))

    # Advisory cost estimate (real, un-padded arithmetic).
    flops = 2 * N * H * W * 9 * (Cin * C1 + C1 * C2)
    bytes_accessed = its * (N * H * W * (CinP + C2P) + N * Ho * Wo * C2P + weights)
    cost = pl.CostEstimate(flops=flops, transcendentals=0,
                           bytes_accessed=bytes_accessed)

    feat_p, down_p = pl.pallas_call(
        _downsample_fused_kernel,
        out_shape=(jax.ShapeDtypeStruct((N, H, W, C2P), cdt),
                   jax.ShapeDtypeStruct((N, Ho, Wo, C2P), cdt)),
        grid=(N,),
        in_specs=[
            pl.BlockSpec((1, H, W, CinP), lambda n: (n, 0, 0, 0)),
            pl.BlockSpec((9 * CinP, C1P), lambda n: (0, 0)),
            pl.BlockSpec((1, C1P), lambda n: (0, 0)),
            pl.BlockSpec((9 * C1P, C2P), lambda n: (0, 0)),
            pl.BlockSpec((1, C2P), lambda n: (0, 0)),
        ],
        out_specs=(
            pl.BlockSpec((1, H, W, C2P), lambda n: (n, 0, 0, 0)),
            pl.BlockSpec((1, Ho, Wo, C2P), lambda n: (n, 0, 0, 0)),
        ),
        scratch_shapes=[
            pltpu.VMEM((H + 2, W + 2, CinP), cdt),
            pltpu.VMEM((H + 2, W + 2, C1P), cdt),
            pltpu.VMEM((Hp, Wp, C2P), cdt),
        ],
        compiler_params=pltpu.CompilerParams(
            dimension_semantics=("parallel",),
            vmem_limit_bytes=vmem_limit),
        cost_estimate=cost,
    )(x_p, w1f, b1r, w2f, b2r)

    # Drop the zero padded channels (single fused XLA slice).
    return feat_p[..., :C2], down_p[..., :C2]


# --------------------------------------------------------------------------
# Parameter init (deterministic, synthetic) + Downsample forward
# --------------------------------------------------------------------------
def _init_conv_bn(key, cin, cout):
    kw, kg, kb, km, kv = jax.random.split(key, 5)
    fan_in = 9 * cin
    w = jax.random.normal(kw, (3, 3, cin, cout), jnp.float32) / jnp.sqrt(fan_in)
    gamma = 1.0 + 0.1 * jax.random.normal(kg, (cout,), jnp.float32)
    beta = 0.1 * jax.random.normal(kb, (cout,), jnp.float32)
    mean = 0.1 * jax.random.normal(km, (cout,), jnp.float32)
    var = jnp.abs(jax.random.normal(kv, (cout,), jnp.float32)) + 0.5
    eps = 1e-5
    scale = gamma / jnp.sqrt(var + eps)          # inference-mode BN fold
    bias = beta - mean * scale
    w_folded = w * scale[None, None, None, :]    # fold BN scale into conv weights
    return {"w": w_folded, "bias": bias}


def init_downsample_params(key, in_ch, out_ch, expansion=1.0):
    expansion_out = int(round(out_ch * expansion))
    k1, k2 = jax.random.split(key, 2)
    return {
        "conv1": _init_conv_bn(k1, in_ch, expansion_out),
        "conv2": _init_conv_bn(k2, expansion_out, out_ch),
    }


def downsample_forward_nhwc(params, x_nhwc, *, compute_dtype=jnp.bfloat16):
    """NHWC end-to-end path (no wrapper transposes). Returns (feature, down)."""
    return downsample_fused(
        x_nhwc,
        params["conv1"]["w"], params["conv1"]["bias"],
        params["conv2"]["w"], params["conv2"]["bias"],
        compute_dtype=compute_dtype)


def downsample_forward(params, x_nchw, *, compute_dtype=jnp.bfloat16):
    """Matches Downsample.forward: returns (feature, downsample) in NCHW."""
    x = jnp.transpose(x_nchw, (0, 2, 3, 1))                    # NCHW -> NHWC
    feat, down = downsample_forward_nhwc(params, x, compute_dtype=compute_dtype)
    feature_nchw = jnp.transpose(feat, (0, 3, 1, 2)).astype(x_nchw.dtype)
    down_nchw = jnp.transpose(down, (0, 3, 1, 2)).astype(x_nchw.dtype)
    return feature_nchw, down_nchw


if __name__ == "__main__":
    key = jax.random.PRNGKey(0)
    kx, kp = jax.random.split(key)

    N, in_ch, out_ch, H, W = 2, 4, 8, 16, 16
    x = jax.random.normal(kx, (N, in_ch, H, W), jnp.float32)
    params = init_downsample_params(kp, in_ch, out_ch, expansion=1.0)

    feature, downsample = jax.jit(downsample_forward)(params, x)
    jax.block_until_ready((feature, downsample))

    assert feature.shape == (N, out_ch, H, W), feature.shape
    assert downsample.shape == (N, out_ch, H // 2, W // 2), downsample.shape
    assert bool(jnp.all(jnp.isfinite(feature))) and bool(jnp.all(jnp.isfinite(downsample)))
    print("KERNEL_OK")
</pallas_src>

<mosaic_0001>
module attributes {stable_mosaic.version = 11 : i64} {
  func.func @_downsample_fused_kernel(%arg0: i32, %arg1: memref<1x16x16x128xbf16, #tpu.memory_space<vmem>>, %arg2: memref<1152x128xbf16, #tpu.memory_space<vmem>>, %arg3: memref<1x128xf32, #tpu.memory_space<vmem>>, %arg4: memref<1152x128xbf16, #tpu.memory_space<vmem>>, %arg5: memref<1x128xf32, #tpu.memory_space<vmem>>, %arg6: memref<1x16x16x128xbf16, #tpu.memory_space<vmem>>, %arg7: memref<1x8x8x128xbf16, #tpu.memory_space<vmem>>, %arg8: memref<18x18x128xbf16, #tpu.memory_space<vmem>>, %arg9: memref<18x18x128xbf16, #tpu.memory_space<vmem>>, %arg10: memref<18x18x128xbf16, #tpu.memory_space<vmem>>) attributes {dimension_semantics = [#tpu.dimension_semantics<parallel>], iteration_bounds = array<i64: 2>, scalar_prefetch = 0 : i64, scratch_operands = 3 : i64, tpu.core_type = #tpu.core_type<tc>, window_params = [{transform_indices = @transform_0, window_bounds = array<i64: 1, 16, 16, 128>}, {pipeline_mode = #tpu.pipeline_mode<synchronous>, transform_indices = @transform_1, window_bounds = array<i64: 1152, 128>}, {pipeline_mode = #tpu.pipeline_mode<synchronous>, transform_indices = @transform_2, window_bounds = array<i64: 1, 128>}, {pipeline_mode = #tpu.pipeline_mode<synchronous>, transform_indices = @transform_3, window_bounds = array<i64: 1152, 128>}, {pipeline_mode = #tpu.pipeline_mode<synchronous>, transform_indices = @transform_4, window_bounds = array<i64: 1, 128>}, {transform_indices = @transform_5, window_bounds = array<i64: 1, 16, 16, 128>}, {transform_indices = @transform_6, window_bounds = array<i64: 1, 8, 8, 128>}]} {
    %cst = arith.constant 0.000000e+00 : bf16
    %0 = vector.broadcast %cst : bf16 to vector<1x18x128xbf16>
    %c0 = arith.constant 0 : index
    %c0_0 = arith.constant 0 : index
    %c0_1 = arith.constant 0 : index
    %1 = vector.load %arg8[%c0, %c0_0, %c0_1] : memref<18x18x128xbf16, #tpu.memory_space<vmem>>, vector<1x18x128xbf16>
    tpu.vector_store %arg8[%c0, %c0_0, %c0_1], %0 {strides = array<i32>} : memref<18x18x128xbf16, #tpu.memory_space<vmem>>, vector<1x18x128xbf16>,
    %cst_2 = arith.constant 0.000000e+00 : bf16
    %2 = vector.broadcast %cst_2 : bf16 to vector<1x18x128xbf16>
    %c17 = arith.constant 17 : index
    %c0_3 = arith.constant 0 : index
    %c0_4 = arith.constant 0 : index
    %3 = vector.load %arg8[%c17, %c0_3, %c0_4] : memref<18x18x128xbf16, #tpu.memory_space<vmem>>, vector<1x18x128xbf16>
    tpu.vector_store %arg8[%c17, %c0_3, %c0_4], %2 {strides = array<i32>} : memref<18x18x128xbf16, #tpu.memory_space<vmem>>, vector<1x18x128xbf16>,
    %cst_5 = arith.constant 0.000000e+00 : bf16
    %4 = vector.broadcast %cst_5 : bf16 to vector<18x1x128xbf16>
    %c0_6 = arith.constant 0 : index
    %c0_7 = arith.constant 0 : index
    %c0_8 = arith.constant 0 : index
    %5 = vector.load %arg8[%c0_6, %c0_7, %c0_8] : memref<18x18x128xbf16, #tpu.memory_space<vmem>>, vector<18x1x128xbf16>
    tpu.vector_store %arg8[%c0_6, %c0_7, %c0_8], %4 {strides = array<i32>} : memref<18x18x128xbf16, #tpu.memory_space<vmem>>, vector<18x1x128xbf16>,
    %cst_9 = arith.constant 0.000000e+00 : bf16
    %6 = vector.broadcast %cst_9 : bf16 to vector<18x1x128xbf16>
    %c0_10 = arith.constant 0 : index
    %c17_11 = arith.constant 17 : index
    %c0_12 = arith.constant 0 : index
    %7 = vector.load %arg8[%c0_10, %c17_11, %c0_12] : memref<18x18x128xbf16, #tpu.memory_space<vmem>>, vector<18x1x128xbf16>
    tpu.vector_store %arg8[%c0_10, %c17_11, %c0_12], %6 {strides = array<i32>} : memref<18x18x128xbf16, #tpu.memory_space<vmem>>, vector<18x1x128xbf16>,
    %c0_13 = arith.constant 0 : index
    %c0_14 = arith.constant 0 : index
    %c0_15 = arith.constant 0 : index
    %c0_16 = arith.constant 0 : index
    %8 = vector.load %arg1[%c0_13, %c0_14, %c0_15, %c0_16] : memref<1x16x16x128xbf16, #tpu.memory_space<vmem>>, vector<1x16x16x128xbf16>
    %9 = vector.shape_cast %8 : vector<1x16x16x128xbf16> to vector<16x16x128xbf16>
    %c1 = arith.constant 1 : index
    %c1_17 = arith.constant 1 : index
    %c0_18 = arith.constant 0 : index
    %10 = vector.load %arg8[%c1, %c1_17, %c0_18] : memref<18x18x128xbf16, #tpu.memory_space<vmem>>, vector<16x16x128xbf16>
    tpu.vector_store %arg8[%c1, %c1_17, %c0_18], %9 {strides = array<i32>} : memref<18x18x128xbf16, #tpu.memory_space<vmem>>, vector<16x16x128xbf16>,
    %c0_19 = arith.constant 0 : index
    %c0_20 = arith.constant 0 : index
    %c0_21 = arith.constant 0 : index
    %11 = vector.load %arg8[%c0_19, %c0_20, %c0_21] : memref<18x18x128xbf16, #tpu.memory_space<vmem>>, vector<16x16x128xbf16>
    %c0_22 = arith.constant 0 : index
    %c1_23 = arith.constant 1 : index
    %c0_24 = arith.constant 0 : index
    %12 = vector.load %arg8[%c0_22, %c1_23, %c0_24] : memref<18x18x128xbf16, #tpu.memory_space<vmem>>, vector<16x16x128xbf16>
    %c0_25 = arith.constant 0 : index
    %c2 = arith.constant 2 : index
    %c0_26 = arith.constant 0 : index
    %13 = vector.load %arg8[%c0_25, %c2, %c0_26] : memref<18x18x128xbf16, #tpu.memory_space<vmem>>, vector<16x16x128xbf16>
    %14 = tpu.concatenate %11, %12, %13 in 2 : vector<16x16x128xbf16>, vector<16x16x128xbf16>, vector<16x16x128xbf16> -> vector<16x16x384xbf16>
    %15 = vector.shape_cast %14 : vector<16x16x384xbf16> to vector<256x384xbf16>
    %c0_27 = arith.constant 0 : index
    %c0_28 = arith.constant 0 : index
    %16 = vector.load %arg2[%c0_27, %c0_28] : memref<1152x128xbf16, #tpu.memory_space<vmem>>, vector<384x128xbf16>
    %cst_29 = arith.constant dense<0.000000e+00> : vector<256x128xf32>
    %17 = tpu.matmul %15, %16, %cst_29 {dimension_numbers = #tpu.dot_dimension_numbers<[1], [0], [0], [1], [0, 0, 1, 1], [], []>} : vector<256x384xbf16>, vector<384x128xbf16>, vector<256x128xf32> -> vector<256x128xf32>
    %c1_30 = arith.constant 1 : index
    %c0_31 = arith.constant 0 : index
    %c0_32 = arith.constant 0 : index
    %18 = vector.load %arg8[%c1_30, %c0_31, %c0_32] : memref<18x18x128xbf16, #tpu.memory_space<vmem>>, vector<16x16x128xbf16>
    %c1_33 = arith.constant 1 : index
    %c1_34 = arith.constant 1 : index
    %c0_35 = arith.constant 0 : index
    %19 = vector.load %arg8[%c1_33, %c1_34, %c0_35] : memref<18x18x128xbf16, #tpu.memory_space<vmem>>, vector<16x16x128xbf16>
    %c1_36 = arith.constant 1 : index
    %c2_37 = arith.constant 2 : index
    %c0_38 = arith.constant 0 : index
    %20 = vector.load %arg8[%c1_36, %c2_37, %c0_38] : memref<18x18x128xbf16, #tpu.memory_space<vmem>>, vector<16x16x128xbf16>
    %21 = tpu.concatenate %18, %19, %20 in 2 : vector<16x16x128xbf16>, vector<16x16x128xbf16>, vector<16x16x128xbf16> -> vector<16x16x384xbf16>
    %22 = vector.shape_cast %21 : vector<16x16x384xbf16> to vector<256x384xbf16>
    %c384 = arith.constant 384 : index
    %c0_39 = arith.constant 0 : index
    %23 = vector.load %arg2[%c384, %c0_39] : memref<1152x128xbf16, #tpu.memory_space<vmem>>, vector<384x128xbf16>
    %cst_40 = arith.constant dense<0.000000e+00> : vector<256x128xf32>
    %24 = tpu.matmul %22, %23, %cst_40 {dimension_numbers = #tpu.dot_dimension_numbers<[1], [0], [0], [1], [0, 0, 1, 1], [], []>} : vector<256x384xbf16>, vector<384x128xbf16>, vector<256x128xf32> -> vector<256x128xf32>
    %25 = arith.addf %17, %24 : vector<256x128xf32>
    %c2_41 = arith.constant 2 : index
    %c0_42 = arith.constant 0 : index
    %c0_43 = arith.constant 0 : index
    %26 = vector.load %arg8[%c2_41, %c0_42, %c0_43] : memref<18x18x128xbf16, #tpu.memory_space<vmem>>, vector<16x16x128xbf16>
    %c2_44 = arith.constant 2 : index
    %c1_45 = arith.constant 1 : index
    %c0_46 = arith.constant 0 : index
    %27 = vector.load %arg8[%c2_44, %c1_45, %c0_46] : memref<18x18x128xbf16, #tpu.memory_space<vmem>>, vector<16x16x128xbf16>
    %c2_47 = arith.constant 2 : index
    %c2_48 = arith.constant 2 : index
    %c0_49 = arith.constant 0 : index
    %28 = vector.load %arg8[%c2_47, %c2_48, %c0_49] : memref<18x18x128xbf16, #tpu.memory_space<vmem>>, vector<16x16x128xbf16>
    %29 = tpu.concatenate %26, %27, %28 in 2 : vector<16x16x128xbf16>, vector<16x16x128xbf16>, vector<16x16x128xbf16> -> vector<16x16x384xbf16>
    %30 = vector.shape_cast %29 : vector<16x16x384xbf16> to vector<256x384xbf16>
    %c768 = arith.constant 768 : index
    %c0_50 = arith.constant 0 : index
    %31 = vector.load %arg2[%c768, %c0_50] : memref<1152x128xbf16, #tpu.memory_space<vmem>>, vector<384x128xbf16>
    %cst_51 = arith.constant dense<0.000000e+00> : vector<256x128xf32>
    %32 = tpu.matmul %30, %31, %cst_51 {dimension_numbers = #tpu.dot_dimension_numbers<[1], [0], [0], [1], [0, 0, 1, 1], [], []>} : vector<256x384xbf16>, vector<384x128xbf16>, vector<256x128xf32> -> vector<256x128xf32>
    %33 = arith.addf %25, %32 : vector<256x128xf32>
    %c0_52 = arith.constant 0 : index
    %c0_53 = arith.constant 0 : index
    %34 = vector.load %arg3[%c0_52, %c0_53] : memref<1x128xf32, #tpu.memory_space<vmem>>, vector<1x128xf32>
    %35 = vector.broadcast %34 : vector<1x128xf32> to vector<256x128xf32>
    %36 = arith.addf %33, %35 : vector<256x128xf32>
    %cst_54 = arith.constant 0.000000e+00 : f32
    %37 = vector.broadcast %cst_54 : f32 to vector<256x128xf32>
    %38 = arith.maximumf %36, %37 : vector<256x128xf32>
    %cst_55 = arith.constant 0.000000e+00 : bf16
    %39 = vector.broadcast %cst_55 : bf16 to vector<1x18x128xbf16>
    %c0_56 = arith.constant 0 : index
    %c0_57 = arith.constant 0 : index
    %c0_58 = arith.constant 0 : index
    %40 = vector.load %arg9[%c0_56, %c0_57, %c0_58] : memref<18x18x128xbf16, #tpu.memory_space<vmem>>, vector<1x18x128xbf16>
    tpu.vector_store %arg9[%c0_56, %c0_57, %c0_58], %39 {strides = array<i32>} : memref<18x18x128xbf16, #tpu.memory_space<vmem>>, vector<1x18x128xbf16>,
    %cst_59 = arith.constant 0.000000e+00 : bf16
    %41 = vector.broadcast %cst_59 : bf16 to vector<1x18x128xbf16>
    %c17_60 = arith.constant 17 : index
    %c0_61 = arith.constant 0 : index
    %c0_62 = arith.constant 0 : index
    %42 = vector.load %arg9[%c17_60, %c0_61, %c0_62] : memref<18x18x128xbf16, #tpu.memory_space<vmem>>, vector<1x18x128xbf16>
    tpu.vector_store %arg9[%c17_60, %c0_61, %c0_62], %41 {strides = array<i32>} : memref<18x18x128xbf16, #tpu.memory_space<vmem>>, vector<1x18x128xbf16>,
    %cst_63 = arith.constant 0.000000e+00 : bf16
    %43 = vector.broadcast %cst_63 : bf16 to vector<18x1x128xbf16>
    %c0_64 = arith.constant 0 : index
    %c0_65 = arith.constant 0 : index
    %c0_66 = arith.constant 0 : index
    %44 = vector.load %arg9[%c0_64, %c0_65, %c0_66] : memref<18x18x128xbf16, #tpu.memory_space<vmem>>, vector<18x1x128xbf16>
    tpu.vector_store %arg9[%c0_64, %c0_65, %c0_66], %43 {strides = array<i32>} : memref<18x18x128xbf16, #tpu.memory_space<vmem>>, vector<18x1x128xbf16>,
    %cst_67 = arith.constant 0.000000e+00 : bf16
    %45 = vector.broadcast %cst_67 : bf16 to vector<18x1x128xbf16>
    %c0_68 = arith.constant 0 : index
    %c17_69 = arith.constant 17 : index
    %c0_70 = arith.constant 0 : index
    %46 = vector.load %arg9[%c0_68, %c17_69, %c0_70] : memref<18x18x128xbf16, #tpu.memory_space<vmem>>, vector<18x1x128xbf16>
    tpu.vector_store %arg9[%c0_68, %c17_69, %c0_70], %45 {strides = array<i32>} : memref<18x18x128xbf16, #tpu.memory_space<vmem>>, vector<18x1x128xbf16>,
    %47 = vector.shape_cast %38 : vector<256x128xf32> to vector<16x16x128xf32>
    %48 = arith.truncf %47 : vector<16x16x128xf32> to vector<16x16x128xbf16>
    %c1_71 = arith.constant 1 : index
    %c1_72 = arith.constant 1 : index
    %c0_73 = arith.constant 0 : index
    %49 = vector.load %arg9[%c1_71, %c1_72, %c0_73] : memref<18x18x128xbf16, #tpu.memory_space<vmem>>, vector<16x16x128xbf16>
    tpu.vector_store %arg9[%c1_71, %c1_72, %c0_73], %48 {strides = array<i32>} : memref<18x18x128xbf16, #tpu.memory_space<vmem>>, vector<16x16x128xbf16>,
    %c0_74 = arith.constant 0 : index
    %c0_75 = arith.constant 0 : index
    %c0_76 = arith.constant 0 : index
    %50 = vector.load %arg9[%c0_74, %c0_75, %c0_76] : memref<18x18x128xbf16, #tpu.memory_space<vmem>>, vector<16x16x128xbf16>
    %c0_77 = arith.constant 0 : index
    %c1_78 = arith.constant 1 : index
    %c0_79 = arith.constant 0 : index
    %51 = vector.load %arg9[%c0_77, %c1_78, %c0_79] : memref<18x18x128xbf16, #tpu.memory_space<vmem>>, vector<16x16x128xbf16>
    %c0_80 = arith.constant 0 : index
    %c2_81 = arith.constant 2 : index
    %c0_82 = arith.constant 0 : index
    %52 = vector.load %arg9[%c0_80, %c2_81, %c0_82] : memref<18x18x128xbf16, #tpu.memory_space<vmem>>, vector<16x16x128xbf16>
    %53 = tpu.concatenate %50, %51, %52 in 2 : vector<16x16x128xbf16>, vector<16x16x128xbf16>, vector<16x16x128xbf16> -> vector<16x16x384xbf16>
    %54 = vector.shape_cast %53 : vector<16x16x384xbf16> to vector<256x384xbf16>
    %c0_83 = arith.constant 0 : index
    %c0_84 = arith.constant 0 : index
    %55 = vector.load %arg4[%c0_83, %c0_84] : memref<1152x128xbf16, #tpu.memory_space<vmem>>, vector<384x128xbf16>
    %cst_85 = arith.constant dense<0.000000e+00> : vector<256x128xf32>
    %56 = tpu.matmul %54, %55, %cst_85 {dimension_numbers = #tpu.dot_dimension_numbers<[1], [0], [0], [1], [0, 0, 1, 1], [], []>} : vector<256x384xbf16>, vector<384x128xbf16>, vector<256x128xf32> -> vector<256x128xf32>
    %c1_86 = arith.constant 1 : index
    %c0_87 = arith.constant 0 : index
    %c0_88 = arith.constant 0 : index
    %57 = vector.load %arg9[%c1_86, %c0_87, %c0_88] : memref<18x18x128xbf16, #tpu.memory_space<vmem>>, vector<16x16x128xbf16>
    %c1_89 = arith.constant 1 : index
    %c1_90 = arith.constant 1 : index
    %c0_91 = arith.constant 0 : index
    %58 = vector.load %arg9[%c1_89, %c1_90, %c0_91] : memref<18x18x128xbf16, #tpu.memory_space<vmem>>, vector<16x16x128xbf16>
    %c1_92 = arith.constant 1 : index
    %c2_93 = arith.constant 2 : index
    %c0_94 = arith.constant 0 : index
    %59 = vector.load %arg9[%c1_92, %c2_93, %c0_94] : memref<18x18x128xbf16, #tpu.memory_space<vmem>>, vector<16x16x128xbf16>
    %60 = tpu.concatenate %57, %58, %59 in 2 : vector<16x16x128xbf16>, vector<16x16x128xbf16>, vector<16x16x128xbf16> -> vector<16x16x384xbf16>
    %61 = vector.shape_cast %60 : vector<16x16x384xbf16> to vector<256x384xbf16>
    %c384_95 = arith.constant 384 : index
    %c0_96 = arith.constant 0 : index
    %62 = vector.load %arg4[%c384_95, %c0_96] : memref<1152x128xbf16, #tpu.memory_space<vmem>>, vector<384x128xbf16>
    %cst_97 = arith.constant dense<0.000000e+00> : vector<256x128xf32>
    %63 = tpu.matmul %61, %62, %cst_97 {dimension_numbers = #tpu.dot_dimension_numbers<[1], [0], [0], [1], [0, 0, 1, 1], [], []>} : vector<256x384xbf16>, vector<384x128xbf16>, vector<256x128xf32> -> vector<256x128xf32>
    %64 = arith.addf %56, %63 : vector<256x128xf32>
    %c2_98 = arith.constant 2 : index
    %c0_99 = arith.constant 0 : index
    %c0_100 = arith.constant 0 : index
    %65 = vector.load %arg9[%c2_98, %c0_99, %c0_100] : memref<18x18x128xbf16, #tpu.memory_space<vmem>>, vector<16x16x128xbf16>
    %c2_101 = arith.constant 2 : index
    %c1_102 = arith.constant 1 : index
    %c0_103 = arith.constant 0 : index
    %66 = vector.load %arg9[%c2_101, %c1_102, %c0_103] : memref<18x18x128xbf16, #tpu.memory_space<vmem>>, vector<16x16x128xbf16>
    %c2_104 = arith.constant 2 : index
    %c2_105 = arith.constant 2 : index
    %c0_106 = arith.constant 0 : index
    %67 = vector.load %arg9[%c2_104, %c2_105, %c0_106] : memref<18x18x128xbf16, #tpu.memory_space<vmem>>, vector<16x16x128xbf16>
    %68 = tpu.concatenate %65, %66, %67 in 2 : vector<16x16x128xbf16>, vector<16x16x128xbf16>, vector<16x16x128xbf16> -> vector<16x16x384xbf16>
    %69 = vector.shape_cast %68 : vector<16x16x384xbf16> to vector<256x384xbf16>
    %c768_107 = arith.constant 768 : index
    %c0_108 = arith.constant 0 : index
    %70 = vector.load %arg4[%c768_107, %c0_108] : memref<1152x128xbf16, #tpu.memory_space<vmem>>, vector<384x128xbf16>
    %cst_109 = arith.constant dense<0.000000e+00> : vector<256x128xf32>
    %71 = tpu.matmul %69, %70, %cst_109 {dimension_numbers = #tpu.dot_dimension_numbers<[1], [0], [0], [1], [0, 0, 1, 1], [], []>} : vector<256x384xbf16>, vector<384x128xbf16>, vector<256x128xf32> -> vector<256x128xf32>
    %72 = arith.addf %64, %71 : vector<256x128xf32>
    %c0_110 = arith.constant 0 : index
    %c0_111 = arith.constant 0 : index
    %73 = vector.load %arg5[%c0_110, %c0_111] : memref<1x128xf32, #tpu.memory_space<vmem>>, vector<1x128xf32>
    %74 = vector.broadcast %73 : vector<1x128xf32> to vector<256x128xf32>
    %75 = arith.addf %72, %74 : vector<256x128xf32>
    %cst_112 = arith.constant 0.000000e+00 : f32
    %76 = vector.broadcast %cst_112 : f32 to vector<256x128xf32>
    %77 = arith.maximumf %75, %76 : vector<256x128xf32>
    %78 = vector.shape_cast %77 : vector<256x128xf32> to vector<16x16x128xf32>
    %79 = arith.truncf %78 : vector<16x16x128xf32> to vector<16x16x128xbf16>
    %c0_113 = arith.constant 0 : index
    %c0_114 = arith.constant 0 : index
    %c0_115 = arith.constant 0 : index
    %c0_116 = arith.constant 0 : index
    %80 = vector.load %arg6[%c0_113, %c0_114, %c0_115, %c0_116] : memref<1x16x16x128xbf16, #tpu.memory_space<vmem>>, vector<1x16x16x128xbf16>
    %81 = vector.shape_cast %80 : vector<1x16x16x128xbf16> to vector<16x16x128xbf16>
    %82 = vector.shape_cast %79 : vector<16x16x128xbf16> to vector<1x16x16x128xbf16>
    tpu.vector_store %arg6[%c0_113, %c0_114, %c0_115, %c0_116], %82 {strides = array<i32>} : memref<1x16x16x128xbf16, #tpu.memory_space<vmem>>, vector<1x16x16x128xbf16>,
    %cst_117 = arith.constant 0.000000e+00 : bf16
    %83 = vector.broadcast %cst_117 : bf16 to vector<1x18x128xbf16>
    %c0_118 = arith.constant 0 : index
    %c0_119 = arith.constant 0 : index
    %c0_120 = arith.constant 0 : index
    %84 = vector.load %arg10[%c0_118, %c0_119, %c0_120] : memref<18x18x128xbf16, #tpu.memory_space<vmem>>, vector<1x18x128xbf16>
    tpu.vector_store %arg10[%c0_118, %c0_119, %c0_120], %83 {strides = array<i32>} : memref<18x18x128xbf16, #tpu.memory_space<vmem>>, vector<1x18x128xbf16>,
    %cst_121 = arith.constant 0.000000e+00 : bf16
    %85 = vector.broadcast %cst_121 : bf16 to vector<1x18x128xbf16>
    %c17_122 = arith.constant 17 : index
    %c0_123 = arith.constant 0 : index
    %c0_124 = arith.constant 0 : index
    %86 = vector.load %arg10[%c17_122, %c0_123, %c0_124] : memref<18x18x128xbf16, #tpu.memory_space<vmem>>, vector<1x18x128xbf16>
    tpu.vector_store %arg10[%c17_122, %c0_123, %c0_124], %85 {strides = array<i32>} : memref<18x18x128xbf16, #tpu.memory_space<vmem>>, vector<1x18x128xbf16>,
    %cst_125 = arith.constant 0.000000e+00 : bf16
    %87 = vector.broadcast %cst_125 : bf16 to vector<18x1x128xbf16>
    %c0_126 = arith.constant 0 : index
    %c0_127 = arith.constant 0 : index
    %c0_128 = arith.constant 0 : index
    %88 = vector.load %arg10[%c0_126, %c0_127, %c0_128] : memref<18x18x128xbf16, #tpu.memory_space<vmem>>, vector<18x1x128xbf16>
    tpu.vector_store %arg10[%c0_126, %c0_127, %c0_128], %87 {strides = array<i32>} : memref<18x18x128xbf16, #tpu.memory_space<vmem>>, vector<18x1x128xbf16>,
    %cst_129 = arith.constant 0.000000e+00 : bf16
    %89 = vector.broadcast %cst_129 : bf16 to vector<18x1x128xbf16>
    %c0_130 = arith.constant 0 : index
    %c17_131 = arith.constant 17 : index
    %c0_132 = arith.constant 0 : index
    %90 = vector.load %arg10[%c0_130, %c17_131, %c0_132] : memref<18x18x128xbf16, #tpu.memory_space<vmem>>, vector<18x1x128xbf16>
    tpu.vector_store %arg10[%c0_130, %c17_131, %c0_132], %89 {strides = array<i32>} : memref<18x18x128xbf16, #tpu.memory_space<vmem>>, vector<18x1x128xbf16>,
    %c1_133 = arith.constant 1 : index
    %c1_134 = arith.constant 1 : index
    %c0_135 = arith.constant 0 : index
    %91 = vector.load %arg10[%c1_133, %c1_134, %c0_135] : memref<18x18x128xbf16, #tpu.memory_space<vmem>>, vector<16x16x128xbf16>
    tpu.vector_store %arg10[%c1_133, %c1_134, %c0_135], %79 {strides = array<i32>} : memref<18x18x128xbf16, #tpu.memory_space<vmem>>, vector<16x16x128xbf16>,
    %c0_136 = arith.constant 0 : index
    %c0_137 = arith.constant 0 : index
    %c0_138 = arith.constant 0 : index
    %92 = vector.load %arg10[%c0_136, %c0_137, %c0_138] : memref<18x18x128xbf16, #tpu.memory_space<vmem>>, vector<18x18x128xbf16>
    %93 = vector.extract_strided_slice %92 {offsets = [0, 0, 0], sizes = [16, 18, 128], strides = [1, 1, 1]} : vector<18x18x128xbf16> to vector<16x18x128xbf16>
    %94 = vector.extract_strided_slice %92 {offsets = [1, 0, 0], sizes = [16, 18, 128], strides = [1, 1, 1]} : vector<18x18x128xbf16> to vector<16x18x128xbf16>
    %95 = arith.maximumf %93, %94 : vector<16x18x128xbf16>
    %96 = vector.extract_strided_slice %92 {offsets = [2, 0, 0], sizes = [16, 18, 128], strides = [1, 1, 1]} : vector<18x18x128xbf16> to vector<16x18x128xbf16>
    %97 = arith.maximumf %95, %96 : vector<16x18x128xbf16>
    %98 = vector.shape_cast %97 : vector<16x18x128xbf16> to vector<8x2x18x128xbf16>
    %99 = vector.extract_strided_slice %98 {offsets = [0, 0, 0, 0], sizes = [8, 1, 18, 128], strides = [1, 1, 1, 1]} : vector<8x2x18x128xbf16> to vector<8x1x18x128xbf16>
    %100 = vector.shape_cast %99 : vector<8x1x18x128xbf16> to vector<8x18x128xbf16>
    %101 = vector.extract_strided_slice %100 {offsets = [0, 0, 0], sizes = [8, 16, 128], strides = [1, 1, 1]} : vector<8x18x128xbf16> to vector<8x16x128xbf16>
    %102 = vector.extract_strided_slice %100 {offsets = [0, 1, 0], sizes = [8, 16, 128], strides = [1, 1, 1]} : vector<8x18x128xbf16> to vector<8x16x128xbf16>
    %103 = arith.maximumf %101, %102 : vector<8x16x128xbf16>
    %104 = vector.extract_strided_slice %100 {offsets = [0, 2, 0], sizes = [8, 16, 128], strides = [1, 1, 1]} : vector<8x18x128xbf16> to vector<8x16x128xbf16>
    %105 = arith.maximumf %103, %104 : vector<8x16x128xbf16>
    %106 = vector.shape_cast %105 : vector<8x16x128xbf16> to vector<8x8x2x128xbf16>
    %107 = vector.extract_strided_slice %106 {offsets = [0, 0, 0, 0], sizes = [8, 8, 1, 128], strides = [1, 1, 1, 1]} : vector<8x8x2x128xbf16> to vector<8x8x1x128xbf16>
    %108 = vector.shape_cast %107 : vector<8x8x1x128xbf16> to vector<8x8x128xbf16>
    %c0_139 = arith.constant 0 : index
    %c0_140 = arith.constant 0 : index
    %c0_141 = arith.constant 0 : index
    %c0_142 = arith.constant 0 : index
    %109 = vector.load %arg7[%c0_139, %c0_140, %c0_141, %c0_142] : memref<1x8x8x128xbf16, #tpu.memory_space<vmem>>, vector<1x8x8x128xbf16>
    %110 = vector.shape_cast %109 : vector<1x8x8x128xbf16> to vector<8x8x128xbf16>
    %111 = vector.shape_cast %108 : vector<8x8x128xbf16> to vector<1x8x8x128xbf16>
    tpu.vector_store %arg7[%c0_139, %c0_140, %c0_141, %c0_142], %111 {strides = array<i32>} : memref<1x8x8x128xbf16, #tpu.memory_space<vmem>>, vector<1x8x8x128xbf16>,
    return
  }
  func.func @transform_0(%arg0: i32) -> (i32, i32, i32, i32) {
    %c0_i32 = arith.constant 0 : i32
    %c0_i32_0 = arith.constant 0 : i32
    %c0_i32_1 = arith.constant 0 : i32
    %c0_i32_2 = arith.constant 0 : i32
    return %arg0, %c0_i32, %c0_i32_0, %c0_i32_1 : i32, i32, i32, i32
  }
  func.func @transform_1(%arg0: i32) -> (i32, i32) {
    %c0_i32 = arith.constant 0 : i32
    %c0_i32_0 = arith.constant 0 : i32
    %c0_i32_1 = arith.constant 0 : i32
    return %c0_i32, %c0_i32_0 : i32, i32
  }
  func.func @transform_2(%arg0: i32) -> (i32, i32) {
    %c0_i32 = arith.constant 0 : i32
    %c0_i32_0 = arith.constant 0 : i32
    %c0_i32_1 = arith.constant 0 : i32
    return %c0_i32, %c0_i32_0 : i32, i32
  }
  func.func @transform_3(%arg0: i32) -> (i32, i32) {
    %c0_i32 = arith.constant 0 : i32
    %c0_i32_0 = arith.constant 0 : i32
    %c0_i32_1 = arith.constant 0 : i32
    return %c0_i32, %c0_i32_0 : i32, i32
  }
  func.func @transform_4(%arg0: i32) -> (i32, i32) {
    %c0_i32 = arith.constant 0 : i32
    %c0_i32_0 = arith.constant 0 : i32
    %c0_i32_1 = arith.constant 0 : i32
    return %c0_i32, %c0_i32_0 : i32, i32
  }
  func.func @transform_5(%arg0: i32) -> (i32, i32, i32, i32) {
    %c0_i32 = arith.constant 0 : i32
    %c0_i32_0 = arith.constant 0 : i32
    %c0_i32_1 = arith.constant 0 : i32
    %c0_i32_2 = arith.constant 0 : i32
    return %arg0, %c0_i32, %c0_i32_0, %c0_i32_1 : i32, i32, i32, i32
  }
  func.func @transform_6(%arg0: i32) -> (i32, i32, i32, i32) {
    %c0_i32 = arith.constant 0 : i32
    %c0_i32_0 = arith.constant 0 : i32
    %c0_i32_1 = arith.constant 0 : i32
    %c0_i32_2 = arith.constant 0 : i32
    return %arg0, %c0_i32, %c0_i32_0, %c0_i32_1 : i32, i32, i32, i32
  }
}

</mosaic_0001>

<llo_original>
// kernel: downsample_forward.1
$region0: #{downsample_forward.1}
  #allocation0 [shape = 'u32[]', space=smem, size = 0x4, offset = 0x4, fixed_abs, tag = 'smem constant byte address 0x4 - core index']
  #allocation1 [shape = 'u32[144,128]{1,0:T(1,128)}', space=vmem, size = 0x12000, scoped, tag = 'internal scratch']
  #allocation2 [shape = 'bf16[18,18,128]{2,1,0:T(8,128)(2,1)}', space=vmem, size = 0x1b000, scoped, tag = 'scratch operand']
  #allocation3 [shape = 'bf16[18,18,128]{2,1,0:T(8,128)(2,1)}', space=vmem, size = 0x1b000, scoped, tag = 'scratch operand']
  #allocation4 [shape = 'bf16[18,18,128]{2,1,0:T(8,128)(2,1)}', space=vmem, size = 0x1b000, scoped, tag = 'scratch operand']
  %s0 = inlined_call_operand.vmem [shape: bf16[2,16,16,128], index: 0, kind: input, shape index: {}]
  %s1 = inlined_call_operand.vmem [shape: bf16[1152,128], index: 1, kind: input, shape index: {}]
  %s2 = inlined_call_operand.vmem [shape: f32[1,128], index: 2, kind: input, shape index: {}]
  %s3 = inlined_call_operand.vmem [shape: bf16[1152,128], index: 3, kind: input, shape index: {}]
  %s4 = inlined_call_operand.vmem [shape: f32[1,128], index: 4, kind: input, shape index: {}]
  %s5 = inlined_call_operand.vmem [shape: bf16[2,16,16,128], index: 5, kind: output, shape index: {0}]
  %s6 = inlined_call_operand.vmem [shape: bf16[2,8,8,128], index: 6, kind: output, shape index: {1}]
  %7 = xla_tuple %s5, %s6
  %s8 = sld [smem:[#allocation0]]
  $region61: #{downsample_forward.1} parent=0
    _
  %s10 = ssub.s32 1, %s8
  %s11 = scalar_select 0, %s10, %s8
  loop: start=0, step=1, limit=4
  $region2: #{downsample_forward.1} parent=0 // loop_pre_header
    _
  $region3: #{downsample_forward.1} parent=0 // loop_header
    %s13 = sphi 0, %s17
    %p14 = scmp.ge.s32.totalorder %s13, 4
    %s23 = sphi 0, %s25
    %s26 = sphi 0, %s23
    %s27 = sphi 0, %s26
    %s43 = sphi 0, %s27
    %s47 = sphi 0, %s47
    %s49 = sphi 0, %s47
    %s50 = sphi 0, %s49
    %s64 = sphi 0, %s50
    %s68 = sphi 0, %s68
    %s70 = sphi 0, %s68
    %s71 = sphi 0, %s70
    %s85 = sphi 0, %s71
    %s89 = sphi 0, %s89
    %s91 = sphi 0, %s89
    %s92 = sphi 0, %s91
    %s106 = sphi 0, %s92
    %s110 = sphi 0, %s110
    %s112 = sphi 0, %s110
    %s113 = sphi 0, %s112
    %s127 = sphi 0, %s113
    %s133 = sphi 0, %s135
    %s136 = sphi 0, %s133
    %s137 = sphi 0, %s136
    %s153 = sphi 0, %s137
    %s159 = sphi 0, %s161
    %s162 = sphi 0, %s159
    %s163 = sphi 0, %s162
    %s179 = sphi 0, %s163
  $region4: #{downsample_forward.1} parent=0 // loop_header_branch
    %16 = sbr.rel (%p14) target = $region8
  $region5: #{downsample_forward.1} parent=0 // loop_body
    %s18 = ssub.s32 %s13, 1
    %s19 = ssub.s32 %s13, 2
    %s20 = sadd.s32 %s13, 1
    %s21 = ssub.s32 %s13, %s20
    %p22 = scmp.eq.s32.totalorder %s21, 0
    %s24 = sadd.s32 %s23, 1
    %s25 = scalar_select %p22, %s23, %s24
    %p28 = pneg %p22
    %p29 = scmp.eq.s32.totalorder %s13, 1
    %p30 = por %p28, %p29
    %p31 = scmp.ne.s32.totalorder %s23, %s26
    %p32 = scmp.eq.s32.totalorder %s13, 0
    %p33 = por %p31, %p32
    %p34 = scmp.ne.s32.totalorder %s23, %s26
    %p35 = scmp.eq.s32.totalorder %s18, 1
    %p36 = por %p34, %p35
    %p37 = scmp.ne.s32.totalorder %s26, %s27
    %p38 = scmp.eq.s32.totalorder %s18, 0
    %p39 = por %p37, %p38
    %p40 = scmp.ne.s32.totalorder %s26, %s27
    %p41 = scmp.eq.s32.totalorder %s19, 1
    %p42 = por %p40, %p41
    %p44 = scmp.ne.s32.totalorder %s27, %s43
    %p45 = scmp.eq.s32.totalorder %s19, 0
    %p46 = por %p44, %p45
    %s48 = sadd.s32 %s47, 1
    %p51 = scmp.eq.s32.totalorder %s13, 1
    %p52 = scmp.ne.s32.totalorder %s47, %s49
    %p53 = scmp.eq.s32.totalorder %s13, 0
    %p54 = por %p52, %p53
    %p55 = scmp.ne.s32.totalorder %s47, %s49
    %p56 = scmp.eq.s32.totalorder %s18, 1
    %p57 = por %p55, %p56
    %p58 = scmp.ne.s32.totalorder %s49, %s50
    %p59 = scmp.eq.s32.totalorder %s18, 0
    %p60 = por %p58, %p59
    %p61 = scmp.ne.s32.totalorder %s49, %s50
    %p62 = scmp.eq.s32.totalorder %s19, 1
    %p63 = por %p61, %p62
    %p65 = scmp.ne.s32.totalorder %s50, %s64
    %p66 = scmp.eq.s32.totalorder %s19, 0
    %p67 = por %p65, %p66
    %s69 = sadd.s32 %s68, 1
    %p72 = scmp.eq.s32.totalorder %s13, 1
    %p73 = scmp.ne.s32.totalorder %s68, %s70
    %p74 = scmp.eq.s32.totalorder %s13, 0
    %p75 = por %p73, %p74
    %p76 = scmp.ne.s32.totalorder %s68, %s70
    %p77 = scmp.eq.s32.totalorder %s18, 1
    %p78 = por %p76, %p77
    %p79 = scmp.ne.s32.totalorder %s70, %s71
    %p80 = scmp.eq.s32.totalorder %s18, 0
    %p81 = por %p79, %p80
    %p82 = scmp.ne.s32.totalorder %s70, %s71
    %p83 = scmp.eq.s32.totalorder %s19, 1
    %p84 = por %p82, %p83
    %p86 = scmp.ne.s32.totalorder %s71, %s85
    %p87 = scmp.eq.s32.totalorder %s19, 0
    %p88 = por %p86, %p87
    %s90 = sadd.s32 %s89, 1
    %p93 = scmp.eq.s32.totalorder %s13, 1
    %p94 = scmp.ne.s32.totalorder %s89, %s91
    %p95 = scmp.eq.s32.totalorder %s13, 0
    %p96 = por %p94, %p95
    %p97 = scmp.ne.s32.totalorder %s89, %s91
    %p98 = scmp.eq.s32.totalorder %s18, 1
    %p99 = por %p97, %p98
    %p100 = scmp.ne.s32.totalorder %s91, %s92
    %p101 = scmp.eq.s32.totalorder %s18, 0
    %p102 = por %p100, %p101
    %p103 = scmp.ne.s32.totalorder %s91, %s92
    %p104 = scmp.eq.s32.totalorder %s19, 1
    %p105 = por %p103, %p104
    %p107 = scmp.ne.s32.totalorder %s92, %s106
    %p108 = scmp.eq.s32.totalorder %s19, 0
    %p109 = por %p107, %p108
    %s111 = sadd.s32 %s110, 1
    %p114 = scmp.eq.s32.totalorder %s13, 1
    %p115 = scmp.ne.s32.totalorder %s110, %s112
    %p116 = scmp.eq.s32.totalorder %s13, 0
    %p117 = por %p115, %p116
    %p118 = scmp.ne.s32.totalorder %s110, %s112
    %p119 = scmp.eq.s32.totalorder %s18, 1
    %p120 = por %p118, %p119
    %p121 = scmp.ne.s32.totalorder %s112, %s113
    %p122 = scmp.eq.s32.totalorder %s18, 0
    %p123 = por %p121, %p122
    %p124 = scmp.ne.s32.totalorder %s112, %s113
    %p125 = scmp.eq.s32.totalorder %s19, 1
    %p126 = por %p124, %p125
    %p128 = scmp.ne.s32.totalorder %s113, %s127
    %p129 = scmp.eq.s32.totalorder %s19, 0
    %p130 = por %p128, %p129
    %s131 = ssub.s32 %s13, %s20
    %p132 = scmp.eq.s32.totalorder %s131, 0
    %s134 = sadd.s32 %s133, 1
    %s135 = scalar_select %p132, %s133, %s134
    %p138 = pneg %p132
    %p139 = scmp.eq.s32.totalorder %s13, 1
    %p140 = por %p138, %p139
    %p141 = scmp.ne.s32.totalorder %s133, %s136
    %p142 = scmp.eq.s32.totalorder %s13, 0
    %p143 = por %p141, %p142
    %p144 = scmp.ne.s32.totalorder %s133, %s136
    %p145 = scmp.eq.s32.totalorder %s18, 1
    %p146 = por %p144, %p145
    %p147 = scmp.ne.s32.totalorder %s136, %s137
    %p148 = scmp.eq.s32.totalorder %s18, 0
    %p149 = por %p147, %p148
    %p150 = scmp.ne.s32.totalorder %s136, %s137
    %p151 = scmp.eq.s32.totalorder %s19, 1
    %p152 = por %p150, %p151
    %p154 = scmp.ne.s32.totalorder %s137, %s153
    %p155 = scmp.eq.s32.totalorder %s19, 0
    %p156 = por %p154, %p155
    %s157 = ssub.s32 %s13, %s20
    %p158 = scmp.eq.s32.totalorder %s157, 0
    %s160 = sadd.s32 %s159, 1
    %s161 = scalar_select %p158, %s159, %s160
    %p164 = pneg %p158
    %p165 = scmp.eq.s32.totalorder %s13, 1
    %p166 = por %p164, %p165
    %p167 = scmp.ne.s32.totalorder %s159, %s162
    %p168 = scmp.eq.s32.totalorder %s13, 0
    %p169 = por %p167, %p168
    %p170 = scmp.ne.s32.totalorder %s159, %s162
    %p171 = scmp.eq.s32.totalorder %s18, 1
    %p172 = por %p170, %p171
    %p173 = scmp.ne.s32.totalorder %s162, %s163
    %p174 = scmp.eq.s32.totalorder %s18, 0
    %p175 = por %p173, %p174
    %p176 = scmp.ne.s32.totalorder %s162, %s163
    %p177 = scmp.eq.s32.totalorder %s19, 1
    %p178 = por %p176, %p177
    %p180 = scmp.ne.s32.totalorder %s163, %s179
    %p181 = scmp.eq.s32.totalorder %s19, 0
    %p182 = por %p180, %p181
    %p183 = scmp.le.s32.totalorder 1, %s13
    %p184 = scmp.lt.s32.totalorder %s13, 3
    %p185 = pnand %p183, %p184
    %p186 = pneg %p185
    // Predicated region
    $region9: #{downsample_forward.1} parent=5 // pred_check
      _
    $region10: #{downsample_forward.1} parent=5 // pred_check_branch
      %188 = sbr.rel (%p185) target = $region12
    $region11: #{downsample_forward.1} parent=5 // pred_region
      %s189 = ssub.s32 %s13, 1
      // Predicated region
      $region13: #{downsample_forward.1} parent=11 // pred_check
        %p190 = pneg %p60
      $region14: #{downsample_forward.1} parent=11 // pred_check_branch
        %192 = sbr.rel (%p190) target = $region16
      $region15: #{downsample_forward.1} parent=11 // pred_region
        _
      $region16: #{downsample_forward.1} parent=11 // pred_fallthru
        _
      // Predicated region
      $region17: #{downsample_forward.1} parent=11 // pred_check
        %p193 = pneg %p81
      $region18: #{downsample_forward.1} parent=11 // pred_check_branch
        %195 = sbr.rel (%p193) target = $region20
      $region19: #{downsample_forward.1} parent=11 // pred_region
        _
      $region20: #{downsample_forward.1} parent=11 // pred_fallthru
        _
      // Predicated region
      $region21: #{downsample_forward.1} parent=11 // pred_check
        %p196 = pneg %p102
      $region22: #{downsample_forward.1} parent=11 // pred_check_branch
        %198 = sbr.rel (%p196) target = $region24
      $region23: #{downsample_forward.1} parent=11 // pred_region
        _
      $region24: #{downsample_forward.1} parent=11 // pred_fallthru
        _
      // Predicated region
      $region25: #{downsample_forward.1} parent=11 // pred_check
        %p199 = pneg %p123
      $region26: #{downsample_forward.1} parent=11 // pred_check_branch
        %201 = sbr.rel (%p199) target = $region28
      $region27: #{downsample_forward.1} parent=11 // pred_region
        _
      $region28: #{downsample_forward.1} parent=11 // pred_fallthru
        _
    $region12: #{downsample_forward.1} parent=5 // pred_fallthru
      _
    %p202 = scmp.lt.s32.totalorder %s13, 2
    // Predicated region
    $region29: #{downsample_forward.1} parent=5 // pred_check
      %p203 = pneg %p202
    $region30: #{downsample_forward.1} parent=5 // pred_check_branch
      %205 = sbr.rel (%p203) target = $region32
    $region31: #{downsample_forward.1} parent=5 // pred_region
      // Predicated region
      $region33: #{downsample_forward.1} parent=31 // pred_check
        %p206 = pneg %p33
      $region34: #{downsample_forward.1} parent=31 // pred_check_branch
        %208 = sbr.rel (%p206) target = $region36
      $region35: #{downsample_forward.1} parent=31 // pred_region
        %p209 = scmp.lt.s32.totalorder %s13, 1
        %s210 = scalar_select %p209, %s13, 1
        %s211 = smul.addr %s210, 32
        %s212 = smul.addr %s211, 4
        %s213 = scalar_lea.vmem %s0, %s212
      $region36: #{downsample_forward.1} parent=31 // pred_fallthru
        _
    $region32: #{downsample_forward.1} parent=5 // pred_fallthru
      _
    %p214 = scmp.le.s32.totalorder 1, %s13
    %p215 = scmp.lt.s32.totalorder %s13, 3
    %p216 = pnand %p214, %p215
    %p217 = pneg %p216
    // Predicated region
    $region37: #{downsample_forward.1} parent=5 // pred_check
      _
    $region38: #{downsample_forward.1} parent=5 // pred_check_branch
      %219 = sbr.rel (%p216) target = $region40
    $region39: #{downsample_forward.1} parent=5 // pred_region
      %s220 = ssub.s32 %s13, 1
      %p221 = scmp.lt.s32.totalorder %s18, 1
      %s222 = scalar_select %p221, %s18, 1
      %s223 = smul.addr %s222, 32
      %s224 = smul.addr %s223, 4
      %s225 = scalar_lea.vmem %s0, %s224
      %p226 = pneg %p39
      %p227 = pneg %p36
      %p228 = pneg %p60
      %p229 = pneg %p57
      %p230 = pneg %p81
      %p231 = pneg %p78
      %p232 = pneg %p102
      %p233 = pneg %p99
      %p234 = pneg %p123
      %p235 = pneg %p120
      %p236 = pneg %p149
      %p237 = pneg %p146
      %p238 = scmp.lt.s32.totalorder %s18, 1
      %s239 = scalar_select %p238, %s18, 1
      %s240 = smul.addr %s239, 32
      %s241 = smul.addr %s240, 4
      %s242 = scalar_lea.vmem %s5, %s241
      %p243 = pneg %p175
      %p244 = pneg %p172
      %p245 = scmp.lt.s32.totalorder %s18, 1
      %s246 = scalar_select %p245, %s18, 1
      %s247 = smul.addr %s246, 8
      %s248 = smul.addr %s247, 4
      %s249 = scalar_lea.vmem %s6, %s248
      %p250 = scmp.lt.s32.totalorder %s18, 1
      %s251 = scalar_select %p250, %s18, 1
      %s252 = smul.addr %s251, 32
      %s253 = smul.addr %s252, 4
      %s254 = scalar_lea.vmem %s0, %s253
      %p255 = scmp.lt.s32.totalorder %s18, 1
      %s256 = scalar_select %p255, %s18, 1
      %s257 = smul.addr %s256, 32
      %s258 = smul.addr %s257, 4
      %s259 = scalar_lea.vmem %s5, %s258
      %p260 = scmp.lt.s32.totalorder %s18, 1
      %s261 = scalar_select %p260, %s18, 1
      %s262 = smul.addr %s261, 8
      %s263 = smul.addr %s262, 4
      %s264 = scalar_lea.vmem %s6, %s263
      %266 = vst [vmem:[#allocation2] sm:$0xf] 0
      %267 = vst [vmem:[#allocation2 + $0x4] sm:$0xf] 0
      %268 = vst [vmem:[#allocation2 + $0x8] sm:$0x1] 0
      %s269 = scalar_lea.vmem [#allocation2], 204
      %270 = vst [vmem:[%s269] sm:$0xf] 0
      %271 = vst [vmem:[%s269 + $0x4] sm:$0xf] 0
      %272 = vst [vmem:[%s269 + $0x8] sm:$0x1] 0
      %vm273 = vcmask 1040384
      %vm274 = vsmask.f32 256
      %vm275 = vmand %vm273, %vm274
      %v276 = vld [vmem:[#allocation2] sm:$0x1]
      %v277 = vsel %vm275, 0, %v276
      %278 = vst [vmem:[#allocation2] sm:$0x1] %v277
      %v279 = vld [vmem:[#allocation2 + $0xc] sm:$0x1]
      %v280 = vsel %vm275, 0, %v279
      %281 = vst [vmem:[#allocation2 + $0xc] sm:$0x1] %v280
      %v282 = vld [vmem:[#allocation2 + $0x18] sm:$0x1]
      %v283 = vsel %vm275, 0, %v282
      %284 = vst [vmem:[#allocation2 + $0x18] sm:$0x1] %v283
      %v285 = vld [vmem:[#allocation2 + $0x24] sm:$0x1]
      %v286 = vsel %vm275, 0, %v285
      %287 = vst [vmem:[#allocation2 + $0x24] sm:$0x1] %v286
      %v288 = vld [vmem:[#allocation2 + $0x30] sm:$0x1]
      %v289 = vsel %vm275, 0, %v288
      %290 = vst [vmem:[#allocation2 + $0x30] sm:$0x1] %v289
      %v291 = vld [vmem:[#allocation2 + $0x3c] sm:$0x1]
      %v292 = vsel %vm275, 0, %v291
      %293 = vst [vmem:[#allocation2 + $0x3c] sm:$0x1] %v292
      %v294 = vld [vmem:[#allocation2 + $0x48] sm:$0x1]
      %v295 = vsel %vm275, 0, %v294
      %296 = vst [vmem:[#allocation2 + $0x48] sm:$0x1] %v295
      %v297 = vld [vmem:[#allocation2 + $0x54] sm:$0x1]
      %v298 = vsel %vm275, 0, %v297
      %299 = vst [vmem:[#allocation2 + $0x54] sm:$0x1] %v298
      %v300 = vld [vmem:[#allocation2 + $0x60] sm:$0x1]
      %v301 = vsel %vm275, 0, %v300
      %302 = vst [vmem:[#allocation2 + $0x60] sm:$0x1] %v301
      %v303 = vld [vmem:[#allocation2 + $0x6c] sm:$0x1]
      %v304 = vsel %vm275, 0, %v303
      %305 = vst [vmem:[#allocation2 + $0x6c] sm:$0x1] %v304
      %v306 = vld [vmem:[#allocation2 + $0x78] sm:$0x1]
      %v307 = vsel %vm275, 0, %v306
      %308 = vst [vmem:[#allocation2 + $0x78] sm:$0x1] %v307
      %v309 = vld [vmem:[#allocation2 + $0x84] sm:$0x1]
      %v310 = vsel %vm275, 0, %v309
      %311 = vst [vmem:[#allocation2 + $0x84] sm:$0x1] %v310
      %v312 = vld [vmem:[#allocation2 + $0x90] sm:$0x1]
      %v313 = vsel %vm275, 0, %v312
      %314 = vst [vmem:[#allocation2 + $0x90] sm:$0x1] %v313
      %v315 = vld [vmem:[#allocation2 + $0x9c] sm:$0x1]
      %v316 = vsel %vm275, 0, %v315
      %317 = vst [vmem:[#allocation2 + $0x9c] sm:$0x1] %v316
      %v318 = vld [vmem:[#allocation2 + $0xa8] sm:$0x1]
      %v319 = vsel %vm275, 0, %v318
      %320 = vst [vmem:[#allocation2 + $0xa8] sm:$0x1] %v319
      %v321 = vld [vmem:[#allocation2 + $0xb4] sm:$0x1]
      %v322 = vsel %vm275, 0, %v321
      %323 = vst [vmem:[#allocation2 + $0xb4] sm:$0x1] %v322
      %v324 = vld [vmem:[#allocation2 + $0xc0] sm:$0x1]
      %v325 = vsel %vm275, 0, %v324
      %326 = vst [vmem:[#allocation2 + $0xc0] sm:$0x1] %v325
      %v327 = vld [vmem:[#allocation2 + $0xcc] sm:$0x1]
      %v328 = vsel %vm275, 0, %v327
      %329 = vst [vmem:[#allocation2 + $0xcc] sm:$0x1] %v328
      %vm330 = vsmask.f32 7938
      %vm331 = vmand %vm273, %vm330
      %v332 = vld [vmem:[#allocation2 + $0x8] sm:$0x1]
      %v333 = vsel %vm331, 0, %v332
      %334 = vst [vmem:[#allocation2 + $0x8] sm:$0x1] %v333
      %v335 = vld [vmem:[#allocation2 + $0x14] sm:$0x1]
      %v336 = vsel %vm331, 0, %v335
      %337 = vst [vmem:[#allocation2 + $0x14] sm:$0x1] %v336
      %v338 = vld [vmem:[#allocation2 + $0x20] sm:$0x1]
      %v339 = vsel %vm331, 0, %v338
      %340 = vst [vmem:[#allocation2 + $0x20] sm:$0x1] %v339
      %v341 = vld [vmem:[#allocation2 + $0x2c] sm:$0x1]
      %v342 = vsel %vm331, 0, %v341
      %343 = vst [vmem:[#allocation2 + $0x2c] sm:$0x1] %v342
      %v344 = vld [vmem:[#allocation2 + $0x38] sm:$0x1]
      %v345 = vsel %vm331, 0, %v344
      %346 = vst [vmem:[#allocation2 + $0x38] sm:$0x1] %v345
      %v347 = vld [vmem:[#allocation2 + $0x44] sm:$0x1]
      %v348 = vsel %vm331, 0, %v347
      %349 = vst [vmem:[#allocation2 + $0x44] sm:$0x1] %v348
      %v350 = vld [vmem:[#allocation2 + $0x50] sm:$0x1]
      %v351 = vsel %vm331, 0, %v350
      %352 = vst [vmem:[#allocation2 + $0x50] sm:$0x1] %v351
      %v353 = vld [vmem:[#allocation2 + $0x5c] sm:$0x1]
      %v354 = vsel %vm331, 0, %v353
      %355 = vst [vmem:[#allocation2 + $0x5c] sm:$0x1] %v354
      %v356 = vld [vmem:[#allocation2 + $0x68] sm:$0x1]
      %v357 = vsel %vm331, 0, %v356
      %358 = vst [vmem:[#allocation2 + $0x68] sm:$0x1] %v357
      %v359 = vld [vmem:[#allocation2 + $0x74] sm:$0x1]
      %v360 = vsel %vm331, 0, %v359
      %361 = vst [vmem:[#allocation2 + $0x74] sm:$0x1] %v360
      %v362 = vld [vmem:[#allocation2 + $0x80] sm:$0x1]
      %v363 = vsel %vm331, 0, %v362
      %364 = vst [vmem:[#allocation2 + $0x80] sm:$0x1] %v363
      %v365 = vld [vmem:[#allocation2 + $0x8c] sm:$0x1]
      %v366 = vsel %vm331, 0, %v365
      %367 = vst [vmem:[#allocation2 + $0x8c] sm:$0x1] %v366
      %v368 = vld [vmem:[#allocation2 + $0x98] sm:$0x1]
      %v369 = vsel %vm331, 0, %v368
      %370 = vst [vmem:[#allocation2 + $0x98] sm:$0x1] %v369
      %v371 = vld [vmem:[#allocation2 + $0xa4] sm:$0x1]
      %v372 = vsel %vm331, 0, %v371
      %373 = vst [vmem:[#allocation2 + $0xa4] sm:$0x1] %v372
      %v374 = vld [vmem:[#allocation2 + $0xb0] sm:$0x1]
      %v375 = vsel %vm331, 0, %v374
      %376 = vst [vmem:[#allocation2 + $0xb0] sm:$0x1] %v375
      %v377 = vld [vmem:[#allocation2 + $0xbc] sm:$0x1]
      %v378 = vsel %vm331, 0, %v377
      %379 = vst [vmem:[#allocation2 + $0xbc] sm:$0x1] %v378
      %v380 = vld [vmem:[#allocation2 + $0xc8] sm:$0x1]
      %v381 = vsel %vm331, 0, %v380
      %382 = vst [vmem:[#allocation2 + $0xc8] sm:$0x1] %v381
      %v383 = vld [vmem:[#allocation2 + $0xd4] sm:$0x1]
      %v384 = vsel %vm331, 0, %v383
      %385 = vst [vmem:[#allocation2 + $0xd4] sm:$0x1] %v384
      %v386 = vld [vmem:[%s254] sm:$0xf]
      %v387 = vld [vmem:[%s254 + $0x4] sm:$0xf]
      %v388 = vld [vmem:[%s254 + $0x8] sm:$0xf]
      %v389 = vld [vmem:[%s254 + $0xc] sm:$0xf]
      %v390 = vld [vmem:[%s254 + $0x10] sm:$0xf]
      %v391 = vld [vmem:[%s254 + $0x14] sm:$0xf]
      %v392 = vld [vmem:[%s254 + $0x18] sm:$0xf]
      %v393 = vld [vmem:[%s254 + $0x1c] sm:$0xf]
      %v394 = vld [vmem:[%s254 + $0x20] sm:$0xf]
      %v395 = vld [vmem:[%s254 + $0x24] sm:$0xf]
      %v396 = vld [vmem:[%s254 + $0x28] sm:$0xf]
      %v397 = vld [vmem:[%s254 + $0x2c] sm:$0xf]
      %v398 = vld [vmem:[%s254 + $0x30] sm:$0xf]
      %v399 = vld [vmem:[%s254 + $0x34] sm:$0xf]
      %v400 = vld [vmem:[%s254 + $0x38] sm:$0xf]
      %v401 = vld [vmem:[%s254 + $0x3c] sm:$0xf]
      %v402 = vld [vmem:[%s254 + $0x40] sm:$0xf]
      %v403 = vld [vmem:[%s254 + $0x44] sm:$0xf]
      %v404 = vld [vmem:[%s254 + $0x48] sm:$0xf]
      %v405 = vld [vmem:[%s254 + $0x4c] sm:$0xf]
      %v406 = vld [vmem:[%s254 + $0x50] sm:$0xf]
      %v407 = vld [vmem:[%s254 + $0x54] sm:$0xf]
      %v408 = vld [vmem:[%s254 + $0x58] sm:$0xf]
      %v409 = vld [vmem:[%s254 + $0x5c] sm:$0xf]
      %v410 = vld [vmem:[%s254 + $0x60] sm:$0xf]
      %v411 = vld [vmem:[%s254 + $0x64] sm:$0xf]
      %v412 = vld [vmem:[%s254 + $0x68] sm:$0xf]
      %v413 = vld [vmem:[%s254 + $0x6c] sm:$0xf]
      %v414 = vld [vmem:[%s254 + $0x70] sm:$0xf]
      %v415 = vld [vmem:[%s254 + $0x74] sm:$0xf]
      %v416 = vld [vmem:[%s254 + $0x78] sm:$0xf]
      %v417 = vld [vmem:[%s254 + $0x7c] sm:$0xf]
      %vm418 = vsmask.f32 4368
      %vm419 = vmor %vm274, %vm418
      %v421 = vshrl.u32 %v386, 16
      %v423 = vrot.slane %v421, 7
      %v424 = vshll.u32 %v386, 16
      %v426 = vor.u32 %v423, %v424
      %v427 = vrot.slane %v423, 4
      %v429 = vshrl.u32 %v387, 16
      %v431 = vrot.slane %v429, 7
      %v432 = vshll.u32 %v387, 16
      %v434 = vor.u32 %v431, %v432
      %v435 = vsel %vm419, %v427, %v434
      %v436 = vrot.slane %v431, 4
      %v438 = vshrl.u32 %v388, 16
      %v440 = vrot.slane %v438, 7
      %v441 = vshll.u32 %v388, 16
      %v443 = vor.u32 %v440, %v441
      %v444 = vrot.slane %v440, 4
      %v446 = vshrl.u32 %v389, 16
      %v448 = vrot.slane %v446, 7
      %v449 = vshll.u32 %v389, 16
      %v451 = vor.u32 %v448, %v449
      %v452 = vsel %vm419, %v444, %v451
      %v453 = vrot.slane %v448, 4
      %v455 = vshrl.u32 %v390, 16
      %v457 = vrot.slane %v455, 7
      %v458 = vshll.u32 %v390, 16
      %v460 = vor.u32 %v457, %v458
      %v461 = vrot.slane %v457, 4
      %v463 = vshrl.u32 %v391, 16
      %v465 = vrot.slane %v463, 7
      %v466 = vshll.u32 %v391, 16
      %v468 = vor.u32 %v465, %v466
      %v469 = vsel %vm419, %v461, %v468
      %v470 = vrot.slane %v465, 4
      %v472 = vshrl.u32 %v392, 16
      %v474 = vrot.slane %v472, 7
      %v475 = vshll.u32 %v392, 16
      %v477 = vor.u32 %v474, %v475
      %v478 = vrot.slane %v474, 4
      %v480 = vshrl.u32 %v393, 16
      %v482 = vrot.slane %v480, 7
      %v483 = vshll.u32 %v393, 16
      %v485 = vor.u32 %v482, %v483
      %v486 = vsel %vm419, %v478, %v485
      %v487 = vrot.slane %v482, 4
      %v489 = vshrl.u32 %v394, 16
      %v491 = vrot.slane %v489, 7
      %v492 = vshll.u32 %v394, 16
      %v494 = vor.u32 %v491, %v492
      %v495 = vrot.slane %v491, 4
      %v497 = vshrl.u32 %v395, 16
      %v499 = vrot.slane %v497, 7
      %v500 = vshll.u32 %v395, 16
      %v502 = vor.u32 %v499, %v500
      %v503 = vsel %vm419, %v495, %v502
      %v504 = vrot.slane %v499, 4
      %v506 = vshrl.u32 %v396, 16
      %v508 = vrot.slane %v506, 7
      %v509 = vshll.u32 %v396, 16
      %v511 = vor.u32 %v508, %v509
      %v512 = vrot.slane %v508, 4
      %v514 = vshrl.u32 %v397, 16
      %v516 = vrot.slane %v514, 7
      %v517 = vshll.u32 %v397, 16
      %v519 = vor.u32 %v516, %v517
      %v520 = vsel %vm419, %v512, %v519
      %v521 = vrot.slane %v516, 4
      %v523 = vshrl.u32 %v398, 16
      %v525 = vrot.slane %v523, 7
      %v526 = vshll.u32 %v398, 16
      %v528 = vor.u32 %v525, %v526
      %v529 = vrot.slane %v525, 4
      %v531 = vshrl.u32 %v399, 16
      %v533 = vrot.slane %v531, 7
      %v534 = vshll.u32 %v399, 16
      %v536 = vor.u32 %v533, %v534
      %v537 = vsel %vm419, %v529, %v536
      %v538 = vrot.slane %v533, 4
      %v540 = vshrl.u32 %v400, 16
      %v542 = vrot.slane %v540, 7
      %v543 = vshll.u32 %v400, 16
      %v545 = vor.u32 %v542, %v543
      %v546 = vrot.slane %v542, 4
      %v548 = vshrl.u32 %v401, 16
      %v550 = vrot.slane %v548, 7
      %v551 = vshll.u32 %v401, 16
      %v553 = vor.u32 %v550, %v551
      %v554 = vsel %vm419, %v546, %v553
      %v555 = vrot.slane %v550, 4
      %v557 = vshrl.u32 %v402, 16
      %v559 = vrot.slane %v557, 7
      %v560 = vshll.u32 %v402, 16
      %v562 = vor.u32 %v559, %v560
      %v563 = vrot.slane %v559, 4
      %v565 = vshrl.u32 %v403, 16
      %v567 = vrot.slane %v565, 7
      %v568 = vshll.u32 %v403, 16
      %v570 = vor.u32 %v567, %v568
      %v571 = vsel %vm419, %v563, %v570
      %v572 = vrot.slane %v567, 4
      %v574 = vshrl.u32 %v404, 16
      %v576 = vrot.slane %v574, 7
      %v577 = vshll.u32 %v404, 16
      %v579 = vor.u32 %v576, %v577
      %v580 = vrot.slane %v576, 4
      %v582 = vshrl.u32 %v405, 16
      %v584 = vrot.slane %v582, 7
      %v585 = vshll.u32 %v405, 16
      %v587 = vor.u32 %v584, %v585
      %v588 = vsel %vm419, %v580, %v587
      %v589 = vrot.slane %v584, 4
      %v591 = vshrl.u32 %v406, 16
      %v593 = vrot.slane %v591, 7
      %v594 = vshll.u32 %v406, 16
      %v596 = vor.u32 %v593, %v594
      %v597 = vrot.slane %v593, 4
      %v599 = vshrl.u32 %v407, 16
      %v601 = vrot.slane %v599, 7
      %v602 = vshll.u32 %v407, 16
      %v604 = vor.u32 %v601, %v602
      %v605 = vsel %vm419, %v597, %v604
      %v606 = vrot.slane %v601, 4
      %v608 = vshrl.u32 %v408, 16
      %v610 = vrot.slane %v608, 7
      %v611 = vshll.u32 %v408, 16
      %v613 = vor.u32 %v610, %v611
      %v614 = vrot.slane %v610, 4
      %v616 = vshrl.u32 %v409, 16
      %v618 = vrot.slane %v616, 7
      %v619 = vshll.u32 %v409, 16
      %v621 = vor.u32 %v618, %v619
      %v622 = vsel %vm419, %v614, %v621
      %v623 = vrot.slane %v618, 4
      %v625 = vshrl.u32 %v410, 16
      %v627 = vrot.slane %v625, 7
      %v628 = vshll.u32 %v410, 16
      %v630 = vor.u32 %v627, %v628
      %v631 = vrot.slane %v627, 4
      %v633 = vshrl.u32 %v411, 16
      %v635 = vrot.slane %v633, 7
      %v636 = vshll.u32 %v411, 16
      %v638 = vor.u32 %v635, %v636
      %v639 = vsel %vm419, %v631, %v638
      %v640 = vrot.slane %v635, 4
      %v642 = vshrl.u32 %v412, 16
      %v644 = vrot.slane %v642, 7
      %v645 = vshll.u32 %v412, 16
      %v647 = vor.u32 %v644, %v645
      %v648 = vrot.slane %v644, 4
      %v650 = vshrl.u32 %v413, 16
      %v652 = vrot.slane %v650, 7
      %v653 = vshll.u32 %v413, 16
      %v655 = vor.u32 %v652, %v653
      %v656 = vsel %vm419, %v648, %v655
      %v657 = vrot.slane %v652, 4
      %v659 = vshrl.u32 %v414, 16
      %v661 = vrot.slane %v659, 7
      %v662 = vshll.u32 %v414, 16
      %v664 = vor.u32 %v661, %v662
      %v665 = vrot.slane %v661, 4
      %v667 = vshrl.u32 %v415, 16
      %v669 = vrot.slane %v667, 7
      %v670 = vshll.u32 %v415, 16
      %v672 = vor.u32 %v669, %v670
      %v673 = vsel %vm419, %v665, %v672
      %v674 = vrot.slane %v669, 4
      %v676 = vshrl.u32 %v416, 16
      %v678 = vrot.slane %v676, 7
      %v679 = vshll.u32 %v416, 16
      %v681 = vor.u32 %v678, %v679
      %v682 = vrot.slane %v678, 4
      %v684 = vshrl.u32 %v417, 16
      %v686 = vrot.slane %v684, 7
      %v687 = vshll.u32 %v417, 16
      %v689 = vor.u32 %v686, %v687
      %v690 = vsel %vm419, %v682, %v689
      %v691 = vrot.slane %v686, 4
      %s740 = scalar_lea.vmem [#allocation2], 12
      %vm741 = vcmask 1043456
      %vm742 = vmand %vm741, %vm330
      %v743 = vld [vmem:[%s740] sm:$0xf]
      %v744 = vsel %vm742, %v426, %v743
      %745 = vst [vmem:[%s740] sm:$0xf] %v744
      %746 = vst [vmem:[%s740 + $0x4] sm:$0xf] %v435
      %v747 = vld [vmem:[%s740 + $0x8] sm:$0x1]
      %v748 = vsel %vm275, %v436, %v747
      %749 = vst [vmem:[%s740 + $0x8] sm:$0x1] %v748
      %v750 = vld [vmem:[%s740 + $0xc] sm:$0xf]
      %v751 = vsel %vm742, %v443, %v750
      %752 = vst [vmem:[%s740 + $0xc] sm:$0xf] %v751
      %753 = vst [vmem:[%s740 + $0x10] sm:$0xf] %v452
      %v754 = vld [vmem:[%s740 + $0x14] sm:$0x1]
      %v755 = vsel %vm275, %v453, %v754
      %756 = vst [vmem:[%s740 + $0x14] sm:$0x1] %v755
      %v757 = vld [vmem:[%s740 + $0x18] sm:$0xf]
      %v758 = vsel %vm742, %v460, %v757
      %759 = vst [vmem:[%s740 + $0x18] sm:$0xf] %v758
      %760 = vst [vmem:[%s740 + $0x1c] sm:$0xf] %v469
      %v761 = vld [vmem:[%s740 + $0x20] sm:$0x1]
      %v762 = vsel %vm275, %v470, %v761
      %763 = vst [vmem:[%s740 + $0x20] sm:$0x1] %v762
      %v764 = vld [vmem:[%s740 + $0x24] sm:$0xf]
      %v765 = vsel %vm742, %v477, %v764
      %766 = vst [vmem:[%s740 + $0x24] sm:$0xf] %v765
      %767 = vst [vmem:[%s740 + $0x28] sm:$0xf] %v486
      %v768 = vld [vmem:[%s740 + $0x2c] sm:$0x1]
      %v769 = vsel %vm275, %v487, %v768
      %770 = vst [vmem:[%s740 + $0x2c] sm:$0x1] %v769
      %v771 = vld [vmem:[%s740 + $0x30] sm:$0xf]
      %v772 = vsel %vm742, %v494, %v771
      %773 = vst [vmem:[%s740 + $0x30] sm:$0xf] %v772
      %774 = vst [vmem:[%s740 + $0x34] sm:$0xf] %v503
      %v775 = vld [vmem:[%s740 + $0x38] sm:$0x1]
      %v776 = vsel %vm275, %v504, %v775
      %777 = vst [vmem:[%s740 + $0x38] sm:$0x1] %v776
      %v778 = vld [vmem:[%s740 + $0x3c] sm:$0xf]
      %v779 = vsel %vm742, %v511, %v778
      %780 = vst [vmem:[%s740 + $0x3c] sm:$0xf] %v779
      %781 = vst [vmem:[%s740 + $0x40] sm:$0xf] %v520
      %v782 = vld [vmem:[%s740 + $0x44] sm:$0x1]
      %v783 = vsel %vm275, %v521, %v782
      %784 = vst [vmem:[%s740 + $0x44] sm:$0x1] %v783
      %v785 = vld [vmem:[%s740 + $0x48] sm:$0xf]
      %v786 = vsel %vm742, %v528, %v785
      %787 = vst [vmem:[%s740 + $0x48] sm:$0xf] %v786
      %788 = vst [vmem:[%s740 + $0x4c] sm:$0xf] %v537
      %v789 = vld [vmem:[%s740 + $0x50] sm:$0x1]
      %v790 = vsel %vm275, %v538, %v789
      %791 = vst [vmem:[%s740 + $0x50] sm:$0x1] %v790
      %v792 = vld [vmem:[%s740 + $0x54] sm:$0xf]
      %v793 = vsel %vm742, %v545, %v792
      %794 = vst [vmem:[%s740 + $0x54] sm:$0xf] %v793
      %795 = vst [vmem:[%s740 + $0x58] sm:$0xf] %v554
      %v796 = vld [vmem:[%s740 + $0x5c] sm:$0x1]
      %v797 = vsel %vm275, %v555, %v796
      %798 = vst [vmem:[%s740 + $0x5c] sm:$0x1] %v797
      %v799 = vld [vmem:[%s740 + $0x60] sm:$0xf]
      %v800 = vsel %vm742, %v562, %v799
      %801 = vst [vmem:[%s740 + $0x60] sm:$0xf] %v800
      %802 = vst [vmem:[%s740 + $0x64] sm:$0xf] %v571
      %v803 = vld [vmem:[%s740 + $0x68] sm:$0x1]
      %v804 = vsel %vm275, %v572, %v803
      %805 = vst [vmem:[%s740 + $0x68] sm:$0x1] %v804
      %v806 = vld [vmem:[%s740 + $0x6c] sm:$0xf]
      %v807 = vsel %vm742, %v579, %v806
      %808 = vst [vmem:[%s740 + $0x6c] sm:$0xf] %v807
      %809 = vst [vmem:[%s740 + $0x70] sm:$0xf] %v588
      %v810 = vld [vmem:[%s740 + $0x74] sm:$0x1]
      %v811 = vsel %vm275, %v589, %v810
      %812 = vst [vmem:[%s740 + $0x74] sm:$0x1] %v811
      %v813 = vld [vmem:[%s740 + $0x78] sm:$0xf]
      %v814 = vsel %vm742, %v596, %v813
      %815 = vst [vmem:[%s740 + $0x78] sm:$0xf] %v814
      %816 = vst [vmem:[%s740 + $0x7c] sm:$0xf] %v605
      %v817 = vld [vmem:[%s740 + $0x80] sm:$0x1]
      %v818 = vsel %vm275, %v606, %v817
      %819 = vst [vmem:[%s740 + $0x80] sm:$0x1] %v818
      %v820 = vld [vmem:[%s740 + $0x84] sm:$0xf]
      %v821 = vsel %vm742, %v613, %v820
      %822 = vst [vmem:[%s740 + $0x84] sm:$0xf] %v821
      %823 = vst [vmem:[%s740 + $0x88] sm:$0xf] %v622
      %v824 = vld [vmem:[%s740 + $0x8c] sm:$0x1]
      %v825 = vsel %vm275, %v623, %v824
      %826 = vst [vmem:[%s740 + $0x8c] sm:$0x1] %v825
      %v827 = vld [vmem:[%s740 + $0x90] sm:$0xf]
      %v828 = vsel %vm742, %v630, %v827
      %829 = vst [vmem:[%s740 + $0x90] sm:$0xf] %v828
      %830 = vst [vmem:[%s740 + $0x94] sm:$0xf] %v639
      %v831 = vld [vmem:[%s740 + $0x98] sm:$0x1]
      %v832 = vsel %vm275, %v640, %v831
      %833 = vst [vmem:[%s740 + $0x98] sm:$0x1] %v832
      %v834 = vld [vmem:[%s740 + $0x9c] sm:$0xf]
      %v835 = vsel %vm742, %v647, %v834
      %836 = vst [vmem:[%s740 + $0x9c] sm:$0xf] %v835
      %837 = vst [vmem:[%s740 + $0xa0] sm:$0xf] %v656
      %v838 = vld [vmem:[%s740 + $0xa4] sm:$0x1]
      %v839 = vsel %vm275, %v657, %v838
      %840 = vst [vmem:[%s740 + $0xa4] sm:$0x1] %v839
      %v841 = vld [vmem:[%s740 + $0xa8] sm:$0xf]
      %v842 = vsel %vm742, %v664, %v841
      %843 = vst [vmem:[%s740 + $0xa8] sm:$0xf] %v842
      %844 = vst [vmem:[%s740 + $0xac] sm:$0xf] %v673
      %v845 = vld [vmem:[%s740 + $0xb0] sm:$0x1]
      %v846 = vsel %vm275, %v674, %v845
      %847 = vst [vmem:[%s740 + $0xb0] sm:$0x1] %v846
      %v848 = vld [vmem:[%s740 + $0xb4] sm:$0xf]
      %v849 = vsel %vm742, %v681, %v848
      %850 = vst [vmem:[%s740 + $0xb4] sm:$0xf] %v849
      %851 = vst [vmem:[%s740 + $0xb8] sm:$0xf] %v690
      %v852 = vld [vmem:[%s740 + $0xbc] sm:$0x1]
      %v853 = vsel %vm275, %v691, %v852
      %854 = vst [vmem:[%s740 + $0xbc] sm:$0x1] %v853
      %v855 = vld [vmem:[#allocation2] sm:$0xf]
      %v856 = vld [vmem:[#allocation2 + $0x4] sm:$0xf]
      %v857 = vld [vmem:[#allocation2 + $0xc] sm:$0xf]
      %v858 = vld [vmem:[#allocation2 + $0x10] sm:$0xf]
      %v859 = vld [vmem:[#allocation2 + $0x18] sm:$0xf]
      %v860 = vld [vmem:[#allocation2 + $0x1c] sm:$0xf]
      %v861 = vld [vmem:[#allocation2 + $0x24] sm:$0xf]
      %v862 = vld [vmem:[#allocation2 + $0x28] sm:$0xf]
      %v863 = vld [vmem:[#allocation2 + $0x30] sm:$0xf]
      %v864 = vld [vmem:[#allocation2 + $0x34] sm:$0xf]
      %v865 = vld [vmem:[#allocation2 + $0x3c] sm:$0xf]
      %v866 = vld [vmem:[#allocation2 + $0x40] sm:$0xf]
      %v867 = vld [vmem:[#allocation2 + $0x48] sm:$0xf]
      %v868 = vld [vmem:[#allocation2 + $0x4c] sm:$0xf]
      %v869 = vld [vmem:[#allocation2 + $0x54] sm:$0xf]
      %v870 = vld [vmem:[#allocation2 + $0x58] sm:$0xf]
      %v871 = vld [vmem:[#allocation2 + $0x60] sm:$0xf]
      %v872 = vld [vmem:[#allocation2 + $0x64] sm:$0xf]
      %v873 = vld [vmem:[#allocation2 + $0x6c] sm:$0xf]
      %v874 = vld [vmem:[#allocation2 + $0x70] sm:$0xf]
      %v875 = vld [vmem:[#allocation2 + $0x78] sm:$0xf]
      %v876 = vld [vmem:[#allocation2 + $0x7c] sm:$0xf]
      %v877 = vld [vmem:[#allocation2 + $0x84] sm:$0xf]
      %v878 = vld [vmem:[#allocation2 + $0x88] sm:$0xf]
      %v879 = vld [vmem:[#allocation2 + $0x90] sm:$0xf]
      %v880 = vld [vmem:[#allocation2 + $0x94] sm:$0xf]
      %v881 = vld [vmem:[#allocation2 + $0x9c] sm:$0xf]
      %v882 = vld [vmem:[#allocation2 + $0xa0] sm:$0xf]
      %v883 = vld [vmem:[#allocation2 + $0xa8] sm:$0xf]
      %v884 = vld [vmem:[#allocation2 + $0xac] sm:$0xf]
      %v885 = vld [vmem:[#allocation2 + $0xb4] sm:$0xf]
      %v886 = vld [vmem:[#allocation2 + $0xb8] sm:$0xf]
      %v887 = vld [vmem:[#allocation2 + $0x8] sm:$0x1]
      %v888 = vld [vmem:[#allocation2 + $0x14] sm:$0x1]
      %v889 = vld [vmem:[#allocation2 + $0x20] sm:$0x1]
      %v890 = vld [vmem:[#allocation2 + $0x2c] sm:$0x1]
      %v891 = vld [vmem:[#allocation2 + $0x38] sm:$0x1]
      %v892 = vld [vmem:[#allocation2 + $0x44] sm:$0x1]
      %v893 = vld [vmem:[#allocation2 + $0x50] sm:$0x1]
      %v894 = vld [vmem:[#allocation2 + $0x5c] sm:$0x1]
      %v895 = vld [vmem:[#allocation2 + $0x68] sm:$0x1]
      %v896 = vld [vmem:[#allocation2 + $0x74] sm:$0x1]
      %v897 = vld [vmem:[#allocation2 + $0x80] sm:$0x1]
      %v898 = vld [vmem:[#allocation2 + $0x8c] sm:$0x1]
      %v899 = vld [vmem:[#allocation2 + $0x98] sm:$0x1]
      %v900 = vld [vmem:[#allocation2 + $0xa4] sm:$0x1]
      %v901 = vld [vmem:[#allocation2 + $0xb0] sm:$0x1]
      %v902 = vld [vmem:[#allocation2 + $0xbc] sm:$0x1]
      %v903 = vld [vmem:[#allocation2] sm:$0xe]
      %v904 = vld [vmem:[#allocation2 + $0xc] sm:$0xe]
      %v905 = vld [vmem:[#allocation2 + $0x18] sm:$0xe]
      %v906 = vld [vmem:[#allocation2 + $0x24] sm:$0xe]
      %v907 = vld [vmem:[#allocation2 + $0x30] sm:$0xe]
      %v908 = vld [vmem:[#allocation2 + $0x3c] sm:$0xe]
      %v909 = vld [vmem:[#allocation2 + $0x48] sm:$0xe]
      %v910 = vld [vmem:[#allocation2 + $0x54] sm:$0xe]
      %v911 = vld [vmem:[#allocation2 + $0x60] sm:$0xe]
      %v912 = vld [vmem:[#allocation2 + $0x6c] sm:$0xe]
      %v913 = vld [vmem:[#allocation2 + $0x78] sm:$0xe]
      %v914 = vld [vmem:[#allocation2 + $0x84] sm:$0xe]
      %v915 = vld [vmem:[#allocation2 + $0x90] sm:$0xe]
      %v916 = vld [vmem:[#allocation2 + $0x9c] sm:$0xe]
      %v917 = vld [vmem:[#allocation2 + $0xa8] sm:$0xe]
      %v918 = vld [vmem:[#allocation2 + $0xb4] sm:$0xe]
      %v951 = vunpack.c.l.b16 %v855
      %v952 = vunpack.c.l.b16 %v856
      %v953 = vunpack.c.l.b16 %v857
      %v954 = vunpack.c.l.b16 %v858
      %v955 = vunpack.c.l.b16 %v859
      %v956 = vunpack.c.l.b16 %v860
      %v957 = vunpack.c.l.b16 %v861
      %v958 = vunpack.c.l.b16 %v862
      %v959 = vunpack.c.l.b16 %v863
      %v960 = vunpack.c.l.b16 %v864
      %v961 = vunpack.c.l.b16 %v865
      %v962 = vunpack.c.l.b16 %v866
      %v963 = vunpack.c.l.b16 %v867
      %v964 = vunpack.c.l.b16 %v868
      %v965 = vunpack.c.l.b16 %v869
      %v966 = vunpack.c.l.b16 %v870
      %v967 = vunpack.c.l.b16 %v871
      %v968 = vunpack.c.l.b16 %v872
      %v969 = vunpack.c.l.b16 %v873
      %v970 = vunpack.c.l.b16 %v874
      %v971 = vunpack.c.l.b16 %v875
      %v972 = vunpack.c.l.b16 %v876
      %v973 = vunpack.c.l.b16 %v877
      %v974 = vunpack.c.l.b16 %v878
      %v975 = vunpack.c.l.b16 %v879
      %v976 = vunpack.c.l.b16 %v880
      %v977 = vunpack.c.l.b16 %v881
      %v978 = vunpack.c.l.b16 %v882
      %v979 = vunpack.c.l.b16 %v883
      %v980 = vunpack.c.l.b16 %v884
      %v981 = vunpack.c.l.b16 %v885
      %v982 = vunpack.c.l.b16 %v886
      %v983 = vpack.c.b16 %v952, %v951
      %v984 = vpack.c.b16 %v954, %v953
      %v985 = vpack.c.b16 %v956, %v955
      %v986 = vpack.c.b16 %v958, %v957
      %v987 = vpack.c.b16 %v960, %v959
      %v988 = vpack.c.b16 %v962, %v961
      %v989 = vpack.c.b16 %v964, %v963
      %v990 = vpack.c.b16 %v966, %v965
      %v991 = vpack.c.b16 %v968, %v967
      %v992 = vpack.c.b16 %v970, %v969
      %v993 = vpack.c.b16 %v972, %v971
      %v994 = vpack.c.b16 %v974, %v973
      %v995 = vpack.c.b16 %v976, %v975
      %v996 = vpack.c.b16 %v978, %v977
      %v997 = vpack.c.b16 %v980, %v979
      %v998 = vpack.c.b16 %v982, %v981
      %v1031 = vunpack.c.l.b16 %v887
      %v1032 = vunpack.c.l.b16 %v888
      %v1033 = vunpack.c.l.b16 %v889
      %v1034 = vunpack.c.l.b16 %v890
      %v1035 = vunpack.c.l.b16 %v891
      %v1036 = vunpack.c.l.b16 %v892
      %v1037 = vunpack.c.l.b16 %v893
      %v1038 = vunpack.c.l.b16 %v894
      %v1039 = vunpack.c.l.b16 %v895
      %v1040 = vunpack.c.l.b16 %v896
      %v1041 = vunpack.c.l.b16 %v897
      %v1042 = vunpack.c.l.b16 %v898
      %v1043 = vunpack.c.l.b16 %v899
      %v1044 = vunpack.c.l.b16 %v900
      %v1045 = vunpack.c.l.b16 %v901
      %v1046 = vunpack.c.l.b16 %v902
      %v1047 = vpack.c.b16 %v1031, %v1031
      %v1048 = vpack.c.b16 %v1032, %v1032
      %v1049 = vpack.c.b16 %v1033, %v1033
      %v1050 = vpack.c.b16 %v1034, %v1034
      %v1051 = vpack.c.b16 %v1035, %v1035
      %v1052 = vpack.c.b16 %v1036, %v1036
      %v1053 = vpack.c.b16 %v1037, %v1037
      %v1054 = vpack.c.b16 %v1038, %v1038
      %v1055 = vpack.c.b16 %v1039, %v1039
      %v1056 = vpack.c.b16 %v1040, %v1040
      %v1057 = vpack.c.b16 %v1041, %v1041
      %v1058 = vpack.c.b16 %v1042, %v1042
      %v1059 = vpack.c.b16 %v1043, %v1043
      %v1060 = vpack.c.b16 %v1044, %v1044
      %v1061 = vpack.c.b16 %v1045, %v1045
      %v1062 = vpack.c.b16 %v1046, %v1046
      %vm1063 = vsmask.f32 7424
      %v1065 = vshrl.u32 %v983, 16
      %v1067 = vshll.u32 %v983, 16
      %v1069 = vrot.slane %v1067, 1
      %v1070 = vor.u32 %v1065, %v1069
      %v1072 = vshll.u32 %v1047, 16
      %v1074 = vrot.slane %v1072, 1
      %v1075 = vsel %vm1063, %v1070, %v1074
      %v1077 = vshrl.u32 %v984, 16
      %v1079 = vshll.u32 %v984, 16
      %v1081 = vrot.slane %v1079, 1
      %v1082 = vor.u32 %v1077, %v1081
      %v1084 = vshll.u32 %v1048, 16
      %v1086 = vrot.slane %v1084, 1
      %v1087 = vsel %vm1063, %v1082, %v1086
      %v1089 = vshrl.u32 %v985, 16
      %v1091 = vshll.u32 %v985, 16
      %v1093 = vrot.slane %v1091, 1
      %v1094 = vor.u32 %v1089, %v1093
      %v1096 = vshll.u32 %v1049, 16
      %v1098 = vrot.slane %v1096, 1
      %v1099 = vsel %vm1063, %v1094, %v1098
      %v1101 = vshrl.u32 %v986, 16
      %v1103 = vshll.u32 %v986, 16
      %v1105 = vrot.slane %v1103, 1
      %v1106 = vor.u32 %v1101, %v1105
      %v1108 = vshll.u32 %v1050, 16
      %v1110 = vrot.slane %v1108, 1
      %v1111 = vsel %vm1063, %v1106, %v1110
      %v1113 = vshrl.u32 %v987, 16
      %v1115 = vshll.u32 %v987, 16
      %v1117 = vrot.slane %v1115, 1
      %v1118 = vor.u32 %v1113, %v1117
      %v1120 = vshll.u32 %v1051, 16
      %v1122 = vrot.slane %v1120, 1
      %v1123 = vsel %vm1063, %v1118, %v1122
      %v1125 = vshrl.u32 %v988, 16
      %v1127 = vshll.u32 %v988, 16
      %v1129 = vrot.slane %v1127, 1
      %v1130 = vor.u32 %v1125, %v1129
      %v1132 = vshll.u32 %v1052, 16
      %v1134 = vrot.slane %v1132, 1
      %v1135 = vsel %vm1063, %v1130, %v1134
      %v1137 = vshrl.u32 %v989, 16
      %v1139 = vshll.u32 %v989, 16
      %v1141 = vrot.slane %v1139, 1
      %v1142 = vor.u32 %v1137, %v1141
      %v1144 = vshll.u32 %v1053, 16
      %v1146 = vrot.slane %v1144, 1
      %v1147 = vsel %vm1063, %v1142, %v1146
      %v1149 = vshrl.u32 %v990, 16
      %v1151 = vshll.u32 %v990, 16
      %v1153 = vrot.slane %v1151, 1
      %v1154 = vor.u32 %v1149, %v1153
      %v1156 = vshll.u32 %v1054, 16
      %v1158 = vrot.slane %v1156, 1
      %v1159 = vsel %vm1063, %v1154, %v1158
      %v1161 = vshrl.u32 %v991, 16
      %v1163 = vshll.u32 %v991, 16
      %v1165 = vrot.slane %v1163, 1
      %v1166 = vor.u32 %v1161, %v1165
      %v1168 = vshll.u32 %v1055, 16
      %v1170 = vrot.slane %v1168, 1
      %v1171 = vsel %vm1063, %v1166, %v1170
      %v1173 = vshrl.u32 %v992, 16
      %v1175 = vshll.u32 %v992, 16
      %v1177 = vrot.slane %v1175, 1
      %v1178 = vor.u32 %v1173, %v1177
      %v1180 = vshll.u32 %v1056, 16
      %v1182 = vrot.slane %v1180, 1
      %v1183 = vsel %vm1063, %v1178, %v1182
      %v1185 = vshrl.u32 %v993, 16
      %v1187 = vshll.u32 %v993, 16
      %v1189 = vrot.slane %v1187, 1
      %v1190 = vor.u32 %v1185, %v1189
      %v1192 = vshll.u32 %v1057, 16
      %v1194 = vrot.slane %v1192, 1
      %v1195 = vsel %vm1063, %v1190, %v1194
      %v1197 = vshrl.u32 %v994, 16
      %v1199 = vshll.u32 %v994, 16
      %v1201 = vrot.slane %v1199, 1
      %v1202 = vor.u32 %v1197, %v1201
      %v1204 = vshll.u32 %v1058, 16
      %v1206 = vrot.slane %v1204, 1
      %v1207 = vsel %vm1063, %v1202, %v1206
      %v1209 = vshrl.u32 %v995, 16
      %v1211 = vshll.u32 %v995, 16
      %v1213 = vrot.slane %v1211, 1
      %v1214 = vor.u32 %v1209, %v1213
      %v1216 = vshll.u32 %v1059, 16
      %v1218 = vrot.slane %v1216, 1
      %v1219 = vsel %vm1063, %v1214, %v1218
      %v1221 = vshrl.u32 %v996, 16
      %v1223 = vshll.u32 %v996, 16
      %v1225 = vrot.slane %v1223, 1
      %v1226 = vor.u32 %v1221, %v1225
      %v1228 = vshll.u32 %v1060, 16
      %v1230 = vrot.slane %v1228, 1
      %v1231 = vsel %vm1063, %v1226, %v1230
      %v1233 = vshrl.u32 %v997, 16
      %v1235 = vshll.u32 %v997, 16
      %v1237 = vrot.slane %v1235, 1
      %v1238 = vor.u32 %v1233, %v1237
      %v1240 = vshll.u32 %v1061, 16
      %v1242 = vrot.slane %v1240, 1
      %v1243 = vsel %vm1063, %v1238, %v1242
      %v1245 = vshrl.u32 %v998, 16
      %v1247 = vshll.u32 %v998, 16
      %v1249 = vrot.slane %v1247, 1
      %v1250 = vor.u32 %v1245, %v1249
      %v1252 = vshll.u32 %v1062, 16
      %v1254 = vrot.slane %v1252, 1
      %v1255 = vsel %vm1063, %v1250, %v1254
      %v1288 = vunpack.c.l.b16 %v903
      %v1289 = vunpack.c.l.b16 %v904
      %v1290 = vunpack.c.l.b16 %v905
      %v1291 = vunpack.c.l.b16 %v906
      %v1292 = vunpack.c.l.b16 %v907
      %v1293 = vunpack.c.l.b16 %v908
      %v1294 = vunpack.c.l.b16 %v909
      %v1295 = vunpack.c.l.b16 %v910
      %v1296 = vunpack.c.l.b16 %v911
      %v1297 = vunpack.c.l.b16 %v912
      %v1298 = vunpack.c.l.b16 %v913
      %v1299 = vunpack.c.l.b16 %v914
      %v1300 = vunpack.c.l.b16 %v915
      %v1301 = vunpack.c.l.b16 %v916
      %v1302 = vunpack.c.l.b16 %v917
      %v1303 = vunpack.c.l.b16 %v918
      %v1304 = vpack.c.b16 %v952, %v1288
      %v1305 = vpack.c.b16 %v954, %v1289
      %v1306 = vpack.c.b16 %v956, %v1290
      %v1307 = vpack.c.b16 %v958, %v1291
      %v1308 = vpack.c.b16 %v960, %v1292
      %v1309 = vpack.c.b16 %v962, %v1293
      %v1310 = vpack.c.b16 %v964, %v1294
      %v1311 = vpack.c.b16 %v966, %v1295
      %v1312 = vpack.c.b16 %v968, %v1296
      %v1313 = vpack.c.b16 %v970, %v1297
      %v1314 = vpack.c.b16 %v972, %v1298
      %v1315 = vpack.c.b16 %v974, %v1299
      %v1316 = vpack.c.b16 %v976, %v1300
      %v1317 = vpack.c.b16 %v978, %v1301
      %v1318 = vpack.c.b16 %v980, %v1302
      %v1319 = vpack.c.b16 %v982, %v1303
      %vm1320 = vcmask 1046528
      %v1321 = vrot.slane %v1304, 1
      %v1322 = vrot.slane %v1047, 1
      %v1323 = vsel %vm1320, %v1321, %v1322
      %v1324 = vrot.slane %v1305, 1
      %v1325 = vrot.slane %v1048, 1
      %v1326 = vsel %vm1320, %v1324, %v1325
      %v1327 = vrot.slane %v1306, 1
      %v1328 = vrot.slane %v1049, 1
      %v1329 = vsel %vm1320, %v1327, %v1328
      %v1330 = vrot.slane %v1307, 1
      %v1331 = vrot.slane %v1050, 1
      %v1332 = vsel %vm1320, %v1330, %v1331
      %v1333 = vrot.slane %v1308, 1
      %v1334 = vrot.slane %v1051, 1
      %v1335 = vsel %vm1320, %v1333, %v1334
      %v1336 = vrot.slane %v1309, 1
      %v1337 = vrot.slane %v1052, 1
      %v1338 = vsel %vm1320, %v1336, %v1337
      %v1339 = vrot.slane %v1310, 1
      %v1340 = vrot.slane %v1053, 1
      %v1341 = vsel %vm1320, %v1339, %v1340
      %v1342 = vrot.slane %v1311, 1
      %v1343 = vrot.slane %v1054, 1
      %v1344 = vsel %vm1320, %v1342, %v1343
      %v1345 = vrot.slane %v1312, 1
      %v1346 = vrot.slane %v1055, 1
      %v1347 = vsel %vm1320, %v1345, %v1346
      %v1348 = vrot.slane %v1313, 1
      %v1349 = vrot.slane %v1056, 1
      %v1350 = vsel %vm1320, %v1348, %v1349
      %v1351 = vrot.slane %v1314, 1
      %v1352 = vrot.slane %v1057, 1
      %v1353 = vsel %vm1320, %v1351, %v1352
      %v1354 = vrot.slane %v1315, 1
      %v1355 = vrot.slane %v1058, 1
      %v1356 = vsel %vm1320, %v1354, %v1355
      %v1357 = vrot.slane %v1316, 1
      %v1358 = vrot.slane %v1059, 1
      %v1359 = vsel %vm1320, %v1357, %v1358
      %v1360 = vrot.slane %v1317, 1
      %v1361 = vrot.slane %v1060, 1
      %v1362 = vsel %vm1320, %v1360, %v1361
      %v1363 = vrot.slane %v1318, 1
      %v1364 = vrot.slane %v1061, 1
      %v1365 = vsel %vm1320, %v1363, %v1364
      %v1366 = vrot.slane %v1319, 1
      %v1367 = vrot.slane %v1062, 1
      %v1368 = vsel %vm1320, %v1366, %v1367
      %v1385 = vld [vmem:[%s1] sm:$0xf]
      %v1386 = vld [vmem:[%s1 + $0x4] sm:$0xf]
      %v1387 = vld [vmem:[%s1 + $0x8] sm:$0xf]
      %v1388 = vld [vmem:[%s1 + $0xc] sm:$0xf]
      %v1389 = vld [vmem:[%s1 + $0x10] sm:$0xf]
      %v1390 = vld [vmem:[%s1 + $0x14] sm:$0xf]
      %v1391 = vld [vmem:[%s1 + $0x18] sm:$0xf]
      %v1392 = vld [vmem:[%s1 + $0x1c] sm:$0xf]
      %v1393 = vld [vmem:[%s1 + $0x20] sm:$0xf]
      %v1394 = vld [vmem:[%s1 + $0x24] sm:$0xf]
      %v1395 = vld [vmem:[%s1 + $0x28] sm:$0xf]
      %v1396 = vld [vmem:[%s1 + $0x2c] sm:$0xf]
      %v1397 = vld [vmem:[%s1 + $0x30] sm:$0xf]
      %v1398 = vld [vmem:[%s1 + $0x34] sm:$0xf]
      %v1399 = vld [vmem:[%s1 + $0x38] sm:$0xf]
      %v1400 = vld [vmem:[%s1 + $0x3c] sm:$0xf]
      %v1401 = vld [vmem:[%s1 + $0x40] sm:$0xf]
      %v1402 = vld [vmem:[%s1 + $0x44] sm:$0xf]
      %v1403 = vld [vmem:[%s1 + $0x48] sm:$0xf]
      %v1404 = vld [vmem:[%s1 + $0x4c] sm:$0xf]
      %v1405 = vld [vmem:[%s1 + $0x50] sm:$0xf]
      %v1406 = vld [vmem:[%s1 + $0x54] sm:$0xf]
      %v1407 = vld [vmem:[%s1 + $0x58] sm:$0xf]
      %v1408 = vld [vmem:[%s1 + $0x5c] sm:$0xf]
      %v1409 = vld [vmem:[%s1 + $0x60] sm:$0xf]
      %v1410 = vld [vmem:[%s1 + $0x64] sm:$0xf]
      %v1411 = vld [vmem:[%s1 + $0x68] sm:$0xf]
      %v1412 = vld [vmem:[%s1 + $0x6c] sm:$0xf]
      %v1413 = vld [vmem:[%s1 + $0x70] sm:$0xf]
      %v1414 = vld [vmem:[%s1 + $0x74] sm:$0xf]
      %v1415 = vld [vmem:[%s1 + $0x78] sm:$0xf]
      %v1416 = vld [vmem:[%s1 + $0x7c] sm:$0xf]
      %v1417 = vld [vmem:[%s1 + $0x80] sm:$0xf]
      %v1418 = vld [vmem:[%s1 + $0x84] sm:$0xf]
      %v1419 = vld [vmem:[%s1 + $0x88] sm:$0xf]
      %v1420 = vld [vmem:[%s1 + $0x8c] sm:$0xf]
      %v1421 = vld [vmem:[%s1 + $0x90] sm:$0xf]
      %v1422 = vld [vmem:[%s1 + $0x94] sm:$0xf]
      %v1423 = vld [vmem:[%s1 + $0x98] sm:$0xf]
      %v1424 = vld [vmem:[%s1 + $0x9c] sm:$0xf]
      %v1425 = vld [vmem:[%s1 + $0xa0] sm:$0xf]
      %v1426 = vld [vmem:[%s1 + $0xa4] sm:$0xf]
      %v1427 = vld [vmem:[%s1 + $0xa8] sm:$0xf]
      %v1428 = vld [vmem:[%s1 + $0xac] sm:$0xf]
      %v1429 = vld [vmem:[%s1 + $0xb0] sm:$0xf]
      %v1430 = vld [vmem:[%s1 + $0xb4] sm:$0xf]
      %v1431 = vld [vmem:[%s1 + $0xb8] sm:$0xf]
      %v1432 = vld [vmem:[%s1 + $0xbc] sm:$0xf]
      %v1433 = vld [vmem:[%s740] sm:$0xf]
      %v1434 = vld [vmem:[%s740 + $0x4] sm:$0xf]
      %v1435 = vld [vmem:[%s740 + $0xc] sm:$0xf]
      %v1436 = vld [vmem:[%s740 + $0x10] sm:$0xf]
      %v1437 = vld [vmem:[%s740 + $0x18] sm:$0xf]
      %v1438 = vld [vmem:[%s740 + $0x1c] sm:$0xf]
      %v1439 = vld [vmem:[%s740 + $0x24] sm:$0xf]
      %v1440 = vld [vmem:[%s740 + $0x28] sm:$0xf]
      %v1441 = vld [vmem:[%s740 + $0x30] sm:$0xf]
      %v1442 = vld [vmem:[%s740 + $0x34] sm:$0xf]
      %v1443 = vld [vmem:[%s740 + $0x3c] sm:$0xf]
      %v1444 = vld [vmem:[%s740 + $0x40] sm:$0xf]
      %v1445 = vld [vmem:[%s740 + $0x48] sm:$0xf]
      %v1446 = vld [vmem:[%s740 + $0x4c] sm:$0xf]
      %v1447 = vld [vmem:[%s740 + $0x54] sm:$0xf]
      %v1448 = vld [vmem:[%s740 + $0x58] sm:$0xf]
      %v1449 = vld [vmem:[%s740 + $0x60] sm:$0xf]
      %v1450 = vld [vmem:[%s740 + $0x64] sm:$0xf]
      %v1451 = vld [vmem:[%s740 + $0x6c] sm:$0xf]
      %v1452 = vld [vmem:[%s740 + $0x70] sm:$0xf]
      %v1453 = vld [vmem:[%s740 + $0x78] sm:$0xf]
      %v1454 = vld [vmem:[%s740 + $0x7c] sm:$0xf]
      %v1455 = vld [vmem:[%s740 + $0x84] sm:$0xf]
      %v1456 = vld [vmem:[%s740 + $0x88] sm:$0xf]
      %v1457 = vld [vmem:[%s740 + $0x90] sm:$0xf]
      %v1458 = vld [vmem:[%s740 + $0x94] sm:$0xf]
      %v1459 = vld [vmem:[%s740 + $0x9c] sm:$0xf]
      %v1460 = vld [vmem:[%s740 + $0xa0] sm:$0xf]
      %v1461 = vld [vmem:[%s740 + $0xa8] sm:$0xf]
      %v1462 = vld [vmem:[%s740 + $0xac] sm:$0xf]
      %v1463 = vld [vmem:[%s740 + $0xb4] sm:$0xf]
      %v1464 = vld [vmem:[%s740 + $0xb8] sm:$0xf]
      %v1465 = vld [vmem:[%s740 + $0x8] sm:$0x1]
      %v1466 = vld [vmem:[%s740 + $0x14] sm:$0x1]
      %v1467 = vld [vmem:[%s740 + $0x20] sm:$0x1]
      %v1468 = vld [vmem:[%s740 + $0x2c] sm:$0x1]
      %v1469 = vld [vmem:[%s740 + $0x38] sm:$0x1]
      %v1470 = vld [vmem:[%s740 + $0x44] sm:$0x1]
      %v1471 = vld [vmem:[%s740 + $0x50] sm:$0x1]
      %v1472 = vld [vmem:[%s740 + $0x5c] sm:$0x1]
      %v1473 = vld [vmem:[%s740 + $0x68] sm:$0x1]
      %v1474 = vld [vmem:[%s740 + $0x74] sm:$0x1]
      %v1475 = vld [vmem:[%s740 + $0x80] sm:$0x1]
      %v1476 = vld [vmem:[%s740 + $0x8c] sm:$0x1]
      %v1477 = vld [vmem:[%s740 + $0x98] sm:$0x1]
      %v1478 = vld [vmem:[%s740 + $0xa4] sm:$0x1]
      %v1479 = vld [vmem:[%s740 + $0xb0] sm:$0x1]
      %v1480 = vld [vmem:[%s740 + $0xbc] sm:$0x1]
      %v1481 = vld [vmem:[%s740] sm:$0xe]
      %v1482 = vld [vmem:[%s740 + $0xc] sm:$0xe]
      %v1483 = vld [vmem:[%s740 + $0x18] sm:$0xe]
      %v1484 = vld [vmem:[%s740 + $0x24] sm:$0xe]
      %v1485 = vld [vmem:[%s740 + $0x30] sm:$0xe]
      %v1486 = vld [vmem:[%s740 + $0x3c] sm:$0xe]
      %v1487 = vld [vmem:[%s740 + $0x48] sm:$0xe]
      %v1488 = vld [vmem:[%s740 + $0x54] sm:$0xe]
      %v1489 = vld [vmem:[%s740 + $0x60] sm:$0xe]
      %v1490 = vld [vmem:[%s740 + $0x6c] sm:$0xe]
      %v1491 = vld [vmem:[%s740 + $0x78] sm:$0xe]
      %v1492 = vld [vmem:[%s740 + $0x84] sm:$0xe]
      %v1493 = vld [vmem:[%s740 + $0x90] sm:$0xe]
      %v1494 = vld [vmem:[%s740 + $0x9c] sm:$0xe]
      %v1495 = vld [vmem:[%s740 + $0xa8] sm:$0xe]
      %v1496 = vld [vmem:[%s740 + $0xb4] sm:$0xe]
      %v1529 = vunpack.c.l.b16 %v1433
      %v1530 = vunpack.c.l.b16 %v1434
      %v1531 = vunpack.c.l.b16 %v1435
      %v1532 = vunpack.c.l.b16 %v1436
      %v1533 = vunpack.c.l.b16 %v1437
      %v1534 = vunpack.c.l.b16 %v1438
      %v1535 = vunpack.c.l.b16 %v1439
      %v1536 = vunpack.c.l.b16 %v1440
      %v1537 = vunpack.c.l.b16 %v1441
      %v1538 = vunpack.c.l.b16 %v1442
      %v1539 = vunpack.c.l.b16 %v1443
      %v1540 = vunpack.c.l.b16 %v1444
      %v1541 = vunpack.c.l.b16 %v1445
      %v1542 = vunpack.c.l.b16 %v1446
      %v1543 = vunpack.c.l.b16 %v1447
      %v1544 = vunpack.c.l.b16 %v1448
      %v1545 = vunpack.c.l.b16 %v1449
      %v1546 = vunpack.c.l.b16 %v1450
      %v1547 = vunpack.c.l.b16 %v1451
      %v1548 = vunpack.c.l.b16 %v1452
      %v1549 = vunpack.c.l.b16 %v1453
      %v1550 = vunpack.c.l.b16 %v1454
      %v1551 = vunpack.c.l.b16 %v1455
      %v1552 = vunpack.c.l.b16 %v1456
      %v1553 = vunpack.c.l.b16 %v1457
      %v1554 = vunpack.c.l.b16 %v1458
      %v1555 = vunpack.c.l.b16 %v1459
      %v1556 = vunpack.c.l.b16 %v1460
      %v1557 = vunpack.c.l.b16 %v1461
      %v1558 = vunpack.c.l.b16 %v1462
      %v1559 = vunpack.c.l.b16 %v1463
      %v1560 = vunpack.c.l.b16 %v1464
      %v1561 = vpack.c.b16 %v1530, %v1529
      %v1562 = vpack.c.b16 %v1532, %v1531
      %v1563 = vpack.c.b16 %v1534, %v1533
      %v1564 = vpack.c.b16 %v1536, %v1535
      %v1565 = vpack.c.b16 %v1538, %v1537
      %v1566 = vpack.c.b16 %v1540, %v1539
      %v1567 = vpack.c.b16 %v1542, %v1541
      %v1568 = vpack.c.b16 %v1544, %v1543
      %v1569 = vpack.c.b16 %v1546, %v1545
      %v1570 = vpack.c.b16 %v1548, %v1547
      %v1571 = vpack.c.b16 %v1550, %v1549
      %v1572 = vpack.c.b16 %v1552, %v1551
      %v1573 = vpack.c.b16 %v1554, %v1553
      %v1574 = vpack.c.b16 %v1556, %v1555
      %v1575 = vpack.c.b16 %v1558, %v1557
      %v1576 = vpack.c.b16 %v1560, %v1559
      %v1609 = vunpack.c.l.b16 %v1465
      %v1610 = vunpack.c.l.b16 %v1466
      %v1611 = vunpack.c.l.b16 %v1467
      %v1612 = vunpack.c.l.b16 %v1468
      %v1613 = vunpack.c.l.b16 %v1469
      %v1614 = vunpack.c.l.b16 %v1470
      %v1615 = vunpack.c.l.b16 %v1471
      %v1616 = vunpack.c.l.b16 %v1472
      %v1617 = vunpack.c.l.b16 %v1473
      %v1618 = vunpack.c.l.b16 %v1474
      %v1619 = vunpack.c.l.b16 %v1475
      %v1620 = vunpack.c.l.b16 %v1476
      %v1621 = vunpack.c.l.b16 %v1477
      %v1622 = vunpack.c.l.b16 %v1478
      %v1623 = vunpack.c.l.b16 %v1479
      %v1624 = vunpack.c.l.b16 %v1480
      %v1625 = vpack.c.b16 %v1609, %v1609
      %v1626 = vpack.c.b16 %v1610, %v1610
      %v1627 = vpack.c.b16 %v1611, %v1611
      %v1628 = vpack.c.b16 %v1612, %v1612
      %v1629 = vpack.c.b16 %v1613, %v1613
      %v1630 = vpack.c.b16 %v1614, %v1614
      %v1631 = vpack.c.b16 %v1615, %v1615
      %v1632 = vpack.c.b16 %v1616, %v1616
      %v1633 = vpack.c.b16 %v1617, %v1617
      %v1634 = vpack.c.b16 %v1618, %v1618
      %v1635 = vpack.c.b16 %v1619, %v1619
      %v1636 = vpack.c.b16 %v1620, %v1620
      %v1637 = vpack.c.b16 %v1621, %v1621
      %v1638 = vpack.c.b16 %v1622, %v1622
      %v1639 = vpack.c.b16 %v1623, %v1623
      %v1640 = vpack.c.b16 %v1624, %v1624
      %v1642 = vshrl.u32 %v1561, 16
      %v1644 = vshll.u32 %v1561, 16
      %v1646 = vrot.slane %v1644, 1
      %v1647 = vor.u32 %v1642, %v1646
      %v1649 = vshll.u32 %v1625, 16
      %v1651 = vrot.slane %v1649, 1
      %v1652 = vsel %vm1063, %v1647, %v1651
      %v1654 = vshrl.u32 %v1562, 16
      %v1656 = vshll.u32 %v1562, 16
      %v1658 = vrot.slane %v1656, 1
      %v1659 = vor.u32 %v1654, %v1658
      %v1661 = vshll.u32 %v1626, 16
      %v1663 = vrot.slane %v1661, 1
      %v1664 = vsel %vm1063, %v1659, %v1663
      %v1666 = vshrl.u32 %v1563, 16
      %v1668 = vshll.u32 %v1563, 16
      %v1670 = vrot.slane %v1668, 1
      %v1671 = vor.u32 %v1666, %v1670
      %v1673 = vshll.u32 %v1627, 16
      %v1675 = vrot.slane %v1673, 1
      %v1676 = vsel %vm1063, %v1671, %v1675
      %v1678 = vshrl.u32 %v1564, 16
      %v1680 = vshll.u32 %v1564, 16
      %v1682 = vrot.slane %v1680, 1
      %v1683 = vor.u32 %v1678, %v1682
      %v1685 = vshll.u32 %v1628, 16
      %v1687 = vrot.slane %v1685, 1
      %v1688 = vsel %vm1063, %v1683, %v1687
      %v1690 = vshrl.u32 %v1565, 16
      %v1692 = vshll.u32 %v1565, 16
      %v1694 = vrot.slane %v1692, 1
      %v1695 = vor.u32 %v1690, %v1694
      %v1697 = vshll.u32 %v1629, 16
      %v1699 = vrot.slane %v1697, 1
      %v1700 = vsel %vm1063, %v1695, %v1699
      %v1702 = vshrl.u32 %v1566, 16
      %v1704 = vshll.u32 %v1566, 16
      %v1706 = vrot.slane %v1704, 1
      %v1707 = vor.u32 %v1702, %v1706
      %v1709 = vshll.u32 %v1630, 16
      %v1711 = vrot.slane %v1709, 1
      %v1712 = vsel %vm1063, %v1707, %v1711
      %v1714 = vshrl.u32 %v1567, 16
      %v1716 = vshll.u32 %v1567, 16
      %v1718 = vrot.slane %v1716, 1
      %v1719 = vor.u32 %v1714, %v1718
      %v1721 = vshll.u32 %v1631, 16
      %v1723 = vrot.slane %v1721, 1
      %v1724 = vsel %vm1063, %v1719, %v1723
      %v1726 = vshrl.u32 %v1568, 16
      %v1728 = vshll.u32 %v1568, 16
      %v1730 = vrot.slane %v1728, 1
      %v1731 = vor.u32 %v1726, %v1730
      %v1733 = vshll.u32 %v1632, 16
      %v1735 = vrot.slane %v1733, 1
      %v1736 = vsel %vm1063, %v1731, %v1735
      %v1738 = vshrl.u32 %v1569, 16
      %v1740 = vshll.u32 %v1569, 16
      %v1742 = vrot.slane %v1740, 1
      %v1743 = vor.u32 %v1738, %v1742
      %v1745 = vshll.u32 %v1633, 16
      %v1747 = vrot.slane %v1745, 1
      %v1748 = vsel %vm1063, %v1743, %v1747
      %v1750 = vshrl.u32 %v1570, 16
      %v1752 = vshll.u32 %v1570, 16
      %v1754 = vrot.slane %v1752, 1
      %v1755 = vor.u32 %v1750, %v1754
      %v1757 = vshll.u32 %v1634, 16
      %v1759 = vrot.slane %v1757, 1
      %v1760 = vsel %vm1063, %v1755, %v1759
      %v1762 = vshrl.u32 %v1571, 16
      %v1764 = vshll.u32 %v1571, 16
      %v1766 = vrot.slane %v1764, 1
      %v1767 = vor.u32 %v1762, %v1766
      %v1769 = vshll.u32 %v1635, 16
      %v1771 = vrot.slane %v1769, 1
      %v1772 = vsel %vm1063, %v1767, %v1771
      %v1774 = vshrl.u32 %v1572, 16
      %v1776 = vshll.u32 %v1572, 16
      %v1778 = vrot.slane %v1776, 1
      %v1779 = vor.u32 %v1774, %v1778
      %v1781 = vshll.u32 %v1636, 16
      %v1783 = vrot.slane %v1781, 1
      %v1784 = vsel %vm1063, %v1779, %v1783
      %v1786 = vshrl.u32 %v1573, 16
      %v1788 = vshll.u32 %v1573, 16
      %v1790 = vrot.slane %v1788, 1
      %v1791 = vor.u32 %v1786, %v1790
      %v1793 = vshll.u32 %v1637, 16
      %v1795 = vrot.slane %v1793, 1
      %v1796 = vsel %vm1063, %v1791, %v1795
      %v1798 = vshrl.u32 %v1574, 16
      %v1800 = vshll.u32 %v1574, 16
      %v1802 = vrot.slane %v1800, 1
      %v1803 = vor.u32 %v1798, %v1802
      %v1805 = vshll.u32 %v1638, 16
      %v1807 = vrot.slane %v1805, 1
      %v1808 = vsel %vm1063, %v1803, %v1807
      %v1810 = vshrl.u32 %v1575, 16
      %v1812 = vshll.u32 %v1575, 16
      %v1814 = vrot.slane %v1812, 1
      %v1815 = vor.u32 %v1810, %v1814
      %v1817 = vshll.u32 %v1639, 16
      %v1819 = vrot.slane %v1817, 1
      %v1820 = vsel %vm1063, %v1815, %v1819
      %v1822 = vshrl.u32 %v1576, 16
      %v1824 = vshll.u32 %v1576, 16
      %v1826 = vrot.slane %v1824, 1
      %v1827 = vor.u32 %v1822, %v1826
      %v1829 = vshll.u32 %v1640, 16
      %v1831 = vrot.slane %v1829, 1
      %v1832 = vsel %vm1063, %v1827, %v1831
      %v1865 = vunpack.c.l.b16 %v1481
      %v1866 = vunpack.c.l.b16 %v1482
      %v1867 = vunpack.c.l.b16 %v1483
      %v1868 = vunpack.c.l.b16 %v1484
      %v1869 = vunpack.c.l.b16 %v1485
      %v1870 = vunpack.c.l.b16 %v1486
      %v1871 = vunpack.c.l.b16 %v1487
      %v1872 = vunpack.c.l.b16 %v1488
      %v1873 = vunpack.c.l.b16 %v1489
      %v1874 = vunpack.c.l.b16 %v1490
      %v1875 = vunpack.c.l.b16 %v1491
      %v1876 = vunpack.c.l.b16 %v1492
      %v1877 = vunpack.c.l.b16 %v1493
      %v1878 = vunpack.c.l.b16 %v1494
      %v1879 = vunpack.c.l.b16 %v1495
      %v1880 = vunpack.c.l.b16 %v1496
      %v1881 = vpack.c.b16 %v1530, %v1865
      %v1882 = vpack.c.b16 %v1532, %v1866
      %v1883 = vpack.c.b16 %v1534, %v1867
      %v1884 = vpack.c.b16 %v1536, %v1868
      %v1885 = vpack.c.b16 %v1538, %v1869
      %v1886 = vpack.c.b16 %v1540, %v1870
      %v1887 = vpack.c.b16 %v1542, %v1871
      %v1888 = vpack.c.b16 %v1544, %v1872
      %v1889 = vpack.c.b16 %v1546, %v1873
      %v1890 = vpack.c.b16 %v1548, %v1874
      %v1891 = vpack.c.b16 %v1550, %v1875
      %v1892 = vpack.c.b16 %v1552, %v1876
      %v1893 = vpack.c.b16 %v1554, %v1877
      %v1894 = vpack.c.b16 %v1556, %v1878
      %v1895 = vpack.c.b16 %v1558, %v1879
      %v1896 = vpack.c.b16 %v1560, %v1880
      %v1897 = vrot.slane %v1881, 1
      %v1898 = vrot.slane %v1625, 1
      %v1899 = vsel %vm1320, %v1897, %v1898
      %v1900 = vrot.slane %v1882, 1
      %v1901 = vrot.slane %v1626, 1
      %v1902 = vsel %vm1320, %v1900, %v1901
      %v1903 = vrot.slane %v1883, 1
      %v1904 = vrot.slane %v1627, 1
      %v1905 = vsel %vm1320, %v1903, %v1904
      %v1906 = vrot.slane %v1884, 1
      %v1907 = vrot.slane %v1628, 1
      %v1908 = vsel %vm1320, %v1906, %v1907
      %v1909 = vrot.slane %v1885, 1
      %v1910 = vrot.slane %v1629, 1
      %v1911 = vsel %vm1320, %v1909, %v1910
      %v1912 = vrot.slane %v1886, 1
      %v1913 = vrot.slane %v1630, 1
      %v1914 = vsel %vm1320, %v1912, %v1913
      %v1915 = vrot.slane %v1887, 1
      %v1916 = vrot.slane %v1631, 1
      %v1917 = vsel %vm1320, %v1915, %v1916
      %v1918 = vrot.slane %v1888, 1
      %v1919 = vrot.slane %v1632, 1
      %v1920 = vsel %vm1320, %v1918, %v1919
      %v1921 = vrot.slane %v1889, 1
      %v1922 = vrot.slane %v1633, 1
      %v1923 = vsel %vm1320, %v1921, %v1922
      %v1924 = vrot.slane %v1890, 1
      %v1925 = vrot.slane %v1634, 1
      %v1926 = vsel %vm1320, %v1924, %v1925
      %v1927 = vrot.slane %v1891, 1
      %v1928 = vrot.slane %v1635, 1
      %v1929 = vsel %vm1320, %v1927, %v1928
      %v1930 = vrot.slane %v1892, 1
      %v1931 = vrot.slane %v1636, 1
      %v1932 = vsel %vm1320, %v1930, %v1931
      %v1933 = vrot.slane %v1893, 1
      %v1934 = vrot.slane %v1637, 1
      %v1935 = vsel %vm1320, %v1933, %v1934
      %v1936 = vrot.slane %v1894, 1
      %v1937 = vrot.slane %v1638, 1
      %v1938 = vsel %vm1320, %v1936, %v1937
      %v1939 = vrot.slane %v1895, 1
      %v1940 = vrot.slane %v1639, 1
      %v1941 = vsel %vm1320, %v1939, %v1940
      %v1942 = vrot.slane %v1896, 1
      %v1943 = vrot.slane %v1640, 1
      %v1944 = vsel %vm1320, %v1942, %v1943
      %v1961 = vld [vmem:[%s1 + $0xc0] sm:$0xf]
      %v1962 = vld [vmem:[%s1 + $0xc4] sm:$0xf]
      %v1963 = vld [vmem:[%s1 + $0xc8] sm:$0xf]
      %v1964 = vld [vmem:[%s1 + $0xcc] sm:$0xf]
      %v1965 = vld [vmem:[%s1 + $0xd0] sm:$0xf]
      %v1966 = vld [vmem:[%s1 + $0xd4] sm:$0xf]
      %v1967 = vld [vmem:[%s1 + $0xd8] sm:$0xf]
      %v1968 = vld [vmem:[%s1 + $0xdc] sm:$0xf]
      %v1969 = vld [vmem:[%s1 + $0xe0] sm:$0xf]
      %v1970 = vld [vmem:[%s1 + $0xe4] sm:$0xf]
      %v1971 = vld [vmem:[%s1 + $0xe8] sm:$0xf]
      %v1972 = vld [vmem:[%s1 + $0xec] sm:$0xf]
      %v1973 = vld [vmem:[%s1 + $0xf0] sm:$0xf]
      %v1974 = vld [vmem:[%s1 + $0xf4] sm:$0xf]
      %v1975 = vld [vmem:[%s1 + $0xf8] sm:$0xf]
      %v1976 = vld [vmem:[%s1 + $0xfc] sm:$0xf]
      %v1977 = vld [vmem:[%s1 + $0x100] sm:$0xf]
      %v1978 = vld [vmem:[%s1 + $0x104] sm:$0xf]
      %v1979 = vld [vmem:[%s1 + $0x108] sm:$0xf]
      %v1980 = vld [vmem:[%s1 + $0x10c] sm:$0xf]
      %v1981 = vld [vmem:[%s1 + $0x110] sm:$0xf]
      %v1982 = vld [vmem:[%s1 + $0x114] sm:$0xf]
      %v1983 = vld [vmem:[%s1 + $0x118] sm:$0xf]
      %v1984 = vld [vmem:[%s1 + $0x11c] sm:$0xf]
      %v1985 = vld [vmem:[%s1 + $0x120] sm:$0xf]
      %v1986 = vld [vmem:[%s1 + $0x124] sm:$0xf]
      %v1987 = vld [vmem:[%s1 + $0x128] sm:$0xf]
      %v1988 = vld [vmem:[%s1 + $0x12c] sm:$0xf]
      %v1989 = vld [vmem:[%s1 + $0x130] sm:$0xf]
      %v1990 = vld [vmem:[%s1 + $0x134] sm:$0xf]
      %v1991 = vld [vmem:[%s1 + $0x138] sm:$0xf]
      %v1992 = vld [vmem:[%s1 + $0x13c] sm:$0xf]
      %v1993 = vld [vmem:[%s1 + $0x140] sm:$0xf]
      %v1994 = vld [vmem:[%s1 + $0x144] sm:$0xf]
      %v1995 = vld [vmem:[%s1 + $0x148] sm:$0xf]
      %v1996 = vld [vmem:[%s1 + $0x14c] sm:$0xf]
      %v1997 = vld [vmem:[%s1 + $0x150] sm:$0xf]
      %v1998 = vld [vmem:[%s1 + $0x154] sm:$0xf]
      %v1999 = vld [vmem:[%s1 + $0x158] sm:$0xf]
      %v2000 = vld [vmem:[%s1 + $0x15c] sm:$0xf]
      %v2001 = vld [vmem:[%s1 + $0x160] sm:$0xf]
      %v2002 = vld [vmem:[%s1 + $0x164] sm:$0xf]
      %v2003 = vld [vmem:[%s1 + $0x168] sm:$0xf]
      %v2004 = vld [vmem:[%s1 + $0x16c] sm:$0xf]
      %v2005 = vld [vmem:[%s1 + $0x170] sm:$0xf]
      %v2006 = vld [vmem:[%s1 + $0x174] sm:$0xf]
      %v2007 = vld [vmem:[%s1 + $0x178] sm:$0xf]
      %v2008 = vld [vmem:[%s1 + $0x17c] sm:$0xf]
      %v2057 = vunpack.c.l.b16 %v1961
      %v2058 = vunpack.c.l.b16 %v1962
      %v2059 = vunpack.c.l.b16 %v1963
      %v2060 = vunpack.c.l.b16 %v1964
      %v2061 = vunpack.c.l.b16 %v1965
      %v2062 = vunpack.c.l.b16 %v1966
      %v2063 = vunpack.c.l.b16 %v1967
      %v2064 = vunpack.c.l.b16 %v1968
      %v2065 = vunpack.c.l.b16 %v1969
      %v2066 = vunpack.c.l.b16 %v1970
      %v2067 = vunpack.c.l.b16 %v1971
      %v2068 = vunpack.c.l.b16 %v1972
      %v2069 = vunpack.c.l.b16 %v1973
      %v2070 = vunpack.c.l.b16 %v1974
      %v2071 = vunpack.c.l.b16 %v1975
      %v2072 = vunpack.c.l.b16 %v1976
      %v2073 = vunpack.c.l.b16 %v1977
      %v2074 = vunpack.c.l.b16 %v1978
      %v2075 = vunpack.c.l.b16 %v1979
      %v2076 = vunpack.c.l.b16 %v1980
      %v2077 = vunpack.c.l.b16 %v1981
      %v2078 = vunpack.c.l.b16 %v1982
      %v2079 = vunpack.c.l.b16 %v1983
      %v2080 = vunpack.c.l.b16 %v1984
      %v2081 = vunpack.c.l.b16 %v1985
      %v2082 = vunpack.c.l.b16 %v1986
      %v2083 = vunpack.c.l.b16 %v1987
      %v2084 = vunpack.c.l.b16 %v1988
      %v2085 = vunpack.c.l.b16 %v1989
      %v2086 = vunpack.c.l.b16 %v1990
      %v2087 = vunpack.c.l.b16 %v1991
      %v2088 = vunpack.c.l.b16 %v1992
      %v2089 = vunpack.c.l.b16 %v1993
      %v2090 = vunpack.c.l.b16 %v1994
      %v2091 = vunpack.c.l.b16 %v1995
      %v2092 = vunpack.c.l.b16 %v1996
      %v2093 = vunpack.c.l.b16 %v1997
      %v2094 = vunpack.c.l.b16 %v1998
      %v2095 = vunpack.c.l.b16 %v1999
      %v2096 = vunpack.c.l.b16 %v2000
      %v2097 = vunpack.c.l.b16 %v2001
      %v2098 = vunpack.c.l.b16 %v2002
      %v2099 = vunpack.c.l.b16 %v2003
      %v2100 = vunpack.c.l.b16 %v2004
      %v2101 = vunpack.c.l.b16 %v2005
      %v2102 = vunpack.c.l.b16 %v2006
      %v2103 = vunpack.c.l.b16 %v2007
      %v2104 = vunpack.c.l.b16 %v2008
      %v2105 = vpack.c.b16 %v2058, %v2057
      %v2106 = vpack.c.b16 %v2060, %v2059
      %v2107 = vpack.c.b16 %v2062, %v2061
      %v2108 = vpack.c.b16 %v2064, %v2063
      %v2109 = vpack.c.b16 %v2066, %v2065
      %v2110 = vpack.c.b16 %v2068, %v2067
      %v2111 = vpack.c.b16 %v2070, %v2069
      %v2112 = vpack.c.b16 %v2072, %v2071
      %v2113 = vpack.c.b16 %v2074, %v2073
      %v2114 = vpack.c.b16 %v2076, %v2075
      %v2115 = vpack.c.b16 %v2078, %v2077
      %v2116 = vpack.c.b16 %v2080, %v2079
      %v2117 = vpack.c.b16 %v2082, %v2081
      %v2118 = vpack.c.b16 %v2084, %v2083
      %v2119 = vpack.c.b16 %v2086, %v2085
      %v2120 = vpack.c.b16 %v2088, %v2087
      %v2121 = vpack.c.b16 %v2090, %v2089
      %v2122 = vpack.c.b16 %v2092, %v2091
      %v2123 = vpack.c.b16 %v2094, %v2093
      %v2124 = vpack.c.b16 %v2096, %v2095
      %v2125 = vpack.c.b16 %v2098, %v2097
      %v2126 = vpack.c.b16 %v2100, %v2099
      %v2127 = vpack.c.b16 %v2102, %v2101
      %v2128 = vpack.c.b16 %v2104, %v2103
      %2153 = vmatprep.subr.bf16.mxu0 0
      %2154 = vmatpush1.bf16.msra.mxu0 %v2105
      %2155 = vmatprep.subr.bf16.mxu0 0
      %2156 = vmatpush1.bf16.msra.mxu0 %v2106
      %2157 = vmatprep.subr.bf16.mxu0 0
      %2158 = vmatpush1.bf16.msra.mxu0 %v2107
      %2159 = vmatprep.subr.bf16.mxu0 0
      %2160 = vmatpush1.bf16.msra.mxu0 %v2108
      %2161 = vmatprep.subr.bf16.mxu0 0
      %2162 = vmatpush1.bf16.msra.mxu0 %v2109
      %2163 = vmatprep.subr.bf16.mxu0 0
      %2164 = vmatpush1.bf16.msra.mxu0 %v2110
      %2165 = vmatprep.subr.bf16.mxu0 0
      %2166 = vmatpush1.bf16.msra.mxu0 %v2111
      %2167 = vmatprep.subr.bf16.mxu0 0
      %2168 = vmatpush1.bf16.msra.mxu0 %v2112
      %2169 = vmatprep.subr.bf16.mxu0 0
      %2170 = vmatpush1.bf16.msra.mxu0 %v2113
      %2171 = vmatprep.subr.bf16.mxu0 0
      %2172 = vmatpush1.bf16.msra.mxu0 %v2114
      %2173 = vmatprep.subr.bf16.mxu0 0
      %2174 = vmatpush1.bf16.msra.mxu0 %v2115
      %2175 = vmatprep.subr.bf16.mxu0 0
      %2176 = vmatpush1.bf16.msra.mxu0 %v2116
      %2177 = vmatprep.subr.bf16.mxu0 0
      %2178 = vmatpush1.bf16.msra.mxu0 %v2117
      %2179 = vmatprep.subr.bf16.mxu0 0
      %2180 = vmatpush1.bf16.msra.mxu0 %v2118
      %2181 = vmatprep.subr.bf16.mxu0 0
      %2182 = vmatpush1.bf16.msra.mxu0 %v2119
      %2183 = vmatprep.subr.bf16.mxu0 0
      %2184 = vmatpush1.bf16.msra.mxu0 %v2120
      %2185 = vmatprep.mubr.bf16.mxu0 %v1652
      %2186 = vmatmul.mubr.bf16.gmra.mrb[0].mxu0 %v1561
      %v2187 = vpop.f32.mrb[0].mxu0
      %v2188 = vadd.f32 0.0, %v2187
      %v2189 = vpop.f32.mrb[0].mxu0
      %v2190 = vpop.f32.mrb[0].mxu0
      %v2191 = vadd.f32 0.0, %v2190
      %v2192 = vpop.f32.mrb[0].mxu0
      %2193 = vmatprep.mubr.bf16.mxu0 %v1664
      %2194 = vmatmul.mubr.bf16.gmra.mrb[0].mxu0 %v1562
      %v2195 = vpop.f32.mrb[0].mxu0
      %v2196 = vadd.f32 0.0, %v2195
      %v2197 = vpop.f32.mrb[0].mxu0
      %v2198 = vpop.f32.mrb[0].mxu0
      %v2199 = vadd.f32 0.0, %v2198
      %v2200 = vpop.f32.mrb[0].mxu0
      %2201 = vmatprep.mubr.bf16.mxu0 %v1676
      %2202 = vmatmul.mubr.bf16.gmra.mrb[0].mxu0 %v1563
      %v2203 = vpop.f32.mrb[0].mxu0
      %v2204 = vadd.f32 0.0, %v2203
      %v2205 = vpop.f32.mrb[0].mxu0
      %v2206 = vpop.f32.mrb[0].mxu0
      %v2207 = vadd.f32 0.0, %v2206
      %v2208 = vpop.f32.mrb[0].mxu0
      %2209 = vmatprep.mubr.bf16.mxu0 %v1688
      %2210 = vmatmul.mubr.bf16.gmra.mrb[0].mxu0 %v1564
      %v2211 = vpop.f32.mrb[0].mxu0
      %v2212 = vadd.f32 0.0, %v2211
      %v2213 = vpop.f32.mrb[0].mxu0
      %v2214 = vpop.f32.mrb[0].mxu0
      %v2215 = vadd.f32 0.0, %v2214
      %v2216 = vpop.f32.mrb[0].mxu0
      %2217 = vmatprep.mubr.bf16.mxu0 %v1700
      %2218 = vmatmul.mubr.bf16.gmra.mrb[0].mxu0 %v1565
      %v2219 = vpop.f32.mrb[0].mxu0
      %v2220 = vadd.f32 0.0, %v2219
      %v2221 = vpop.f32.mrb[0].mxu0
      %v2222 = vpop.f32.mrb[0].mxu0
      %v2223 = vadd.f32 0.0, %v2222
      %v2224 = vpop.f32.mrb[0].mxu0
      %2225 = vmatprep.mubr.bf16.mxu0 %v1712
      %2226 = vmatmul.mubr.bf16.gmra.mrb[0].mxu0 %v1566
      %v2227 = vpop.f32.mrb[0].mxu0
      %v2228 = vadd.f32 0.0, %v2227
      %v2229 = vpop.f32.mrb[0].mxu0
      %v2230 = vpop.f32.mrb[0].mxu0
      %v2231 = vadd.f32 0.0, %v2230
      %v2232 = vpop.f32.mrb[0].mxu0
      %2233 = vmatprep.mubr.bf16.mxu0 %v1724
      %2234 = vmatmul.mubr.bf16.gmra.mrb[0].mxu0 %v1567
      %v2235 = vpop.f32.mrb[0].mxu0
      %v2236 = vadd.f32 0.0, %v2235
      %v2237 = vpop.f32.mrb[0].mxu0
      %v2238 = vpop.f32.mrb[0].mxu0
      %v2239 = vadd.f32 0.0, %v2238
      %v2240 = vpop.f32.mrb[0].mxu0
      %2241 = vmatprep.mubr.bf16.mxu0 %v1736
      %2242 = vmatmul.mubr.bf16.gmra.mrb[0].mxu0 %v1568
      %v2243 = vpop.f32.mrb[0].mxu0
      %v2244 = vadd.f32 0.0, %v2243
      %v2245 = vpop.f32.mrb[0].mxu0
      %v2246 = vpop.f32.mrb[0].mxu0
      %v2247 = vadd.f32 0.0, %v2246
      %v2248 = vpop.f32.mrb[0].mxu0
      %2249 = vmatprep.mubr.bf16.mxu0 %v1748
      %2250 = vmatmul.mubr.bf16.gmra.mrb[0].mxu0 %v1569
      %v2251 = vpop.f32.mrb[0].mxu0
      %v2252 = vadd.f32 0.0, %v2251
      %v2253 = vpop.f32.mrb[0].mxu0
      %v2254 = vpop.f32.mrb[0].mxu0
      %v2255 = vadd.f32 0.0, %v2254
      %v2256 = vpop.f32.mrb[0].mxu0
      %2257 = vmatprep.mubr.bf16.mxu0 %v1760
      %2258 = vmatmul.mubr.bf16.gmra.mrb[0].mxu0 %v1570
      %v2259 = vpop.f32.mrb[0].mxu0
      %v2260 = vadd.f32 0.0, %v2259
      %v2261 = vpop.f32.mrb[0].mxu0
      %v2262 = vpop.f32.mrb[0].mxu0
      %v2263 = vadd.f32 0.0, %v2262
      %v2264 = vpop.f32.mrb[0].mxu0
      %2265 = vmatprep.mubr.bf16.mxu0 %v1772
      %2266 = vmatmul.mubr.bf16.gmra.mrb[0].mxu0 %v1571
      %v2267 = vpop.f32.mrb[0].mxu0
      %v2268 = vadd.f32 0.0, %v2267
      %v2269 = vpop.f32.mrb[0].mxu0
      %v2270 = vpop.f32.mrb[0].mxu0
      %v2271 = vadd.f32 0.0, %v2270
      %v2272 = vpop.f32.mrb[0].mxu0
      %2273 = vmatprep.mubr.bf16.mxu0 %v1784
      %2274 = vmatmul.mubr.bf16.gmra.mrb[0].mxu0 %v1572
      %v2275 = vpop.f32.mrb[0].mxu0
      %v2276 = vadd.f32 0.0, %v2275
      %v2277 = vpop.f32.mrb[0].mxu0
      %v2278 = vpop.f32.mrb[0].mxu0
      %v2279 = vadd.f32 0.0, %v2278
      %v2280 = vpop.f32.mrb[0].mxu0
      %2281 = vmatprep.mubr.bf16.mxu0 %v1796
      %2282 = vmatmul.mubr.bf16.gmra.mrb[0].mxu0 %v1573
      %v2283 = vpop.f32.mrb[0].mxu0
      %v2284 = vadd.f32 0.0, %v2283
      %v2285 = vpop.f32.mrb[0].mxu0
      %v2286 = vpop.f32.mrb[0].mxu0
      %v2287 = vadd.f32 0.0, %v2286
      %v2288 = vpop.f32.mrb[0].mxu0
      %2289 = vmatprep.mubr.bf16.mxu0 %v1808
      %2290 = vmatmul.mubr.bf16.gmra.mrb[0].mxu0 %v1574
      %v2291 = vpop.f32.mrb[0].mxu0
      %v2292 = vadd.f32 0.0, %v2291
      %v2293 = vpop.f32.mrb[0].mxu0
      %v2294 = vpop.f32.mrb[0].mxu0
      %v2295 = vadd.f32 0.0, %v2294
      %v2296 = vpop.f32.mrb[0].mxu0
      %2297 = vmatprep.mubr.bf16.mxu0 %v1820
      %2298 = vmatmul.mubr.bf16.gmra.mrb[0].mxu0 %v1575
      %v2299 = vpop.f32.mrb[0].mxu0
      %v2300 = vadd.f32 0.0, %v2299
      %v2301 = vpop.f32.mrb[0].mxu0
      %v2302 = vpop.f32.mrb[0].mxu0
      %v2303 = vadd.f32 0.0, %v2302
      %v2304 = vpop.f32.mrb[0].mxu0
      %2305 = vmatprep.mubr.bf16.mxu0 %v1832
      %2306 = vmatmul.mubr.bf16.gmra.mrb[0].mxu0 %v1576
      %v2307 = vpop.f32.mrb[0].mxu0
      %v2308 = vadd.f32 0.0, %v2307
      %v2309 = vpop.f32.mrb[0].mxu0
      %v2310 = vpop.f32.mrb[0].mxu0
      %v2311 = vadd.f32 0.0, %v2310
      %v2312 = vpop.f32.mrb[0].mxu0
      %2313 = vdwg.mxu0
      %2314 = vmatprep.subr.bf16.mxu0 0
      %2315 = vmatpush1.bf16.msra.mxu0 %v2121
      %2316 = vmatprep.subr.bf16.mxu0 0
      %2317 = vmatpush1.bf16.msra.mxu0 %v2122
      %2318 = vmatprep.subr.bf16.mxu0 0
      %2319 = vmatpush1.bf16.msra.mxu0 %v2123
      %2320 = vmatprep.subr.bf16.mxu0 0
      %2321 = vmatpush1.bf16.msra.mxu0 %v2124
      %2322 = vmatprep.subr.bf16.mxu0 0
      %2323 = vmatpush1.bf16.msra.mxu0 %v2125
      %2324 = vmatprep.subr.bf16.mxu0 0
      %2325 = vmatpush1.bf16.msra.mxu0 %v2126
      %2326 = vmatprep.subr.bf16.mxu0 0
      %2327 = vmatpush1.bf16.msra.mxu0 %v2127
      %2328 = vmatprep.subr.bf16.mxu0 0
      %2329 = vmatpush1.bf16.msra.mxu0 %v2128
      %2330 = vmatprep.subr.bf16.mxu0 0
      %2331 = vmatpush1.bf16.msra.mxu0 0
      %2332 = vmatprep.subr.bf16.mxu0 0
      %2333 = vmatpush1.bf16.msra.mxu0 0
      %2334 = vmatprep.subr.bf16.mxu0 0
      %2335 = vmatpush1.bf16.msra.mxu0 0
      %2336 = vmatprep.subr.bf16.mxu0 0
      %2337 = vmatpush1.bf16.msra.mxu0 0
      %2338 = vmatprep.subr.bf16.mxu0 0
      %2339 = vmatpush1.bf16.msra.mxu0 0
      %2340 = vmatprep.subr.bf16.mxu0 0
      %2341 = vmatpush1.bf16.msra.mxu0 0
      %2342 = vmatprep.subr.bf16.mxu0 0
      %2343 = vmatpush1.bf16.msra.mxu0 0
      %2344 = vmatprep.subr.bf16.mxu0 0
      %2345 = vmatpush1.bf16.msra.mxu0 0
      %2346 = vmatprep.mubr.bf16.mxu0 0
      %2347 = vmatmul.mubr.bf16.gmra.mrb[0].mxu0 %v1899
      %v2348 = vpop.f32.mrb[0].mxu0
      %v2349 = vadd.f32 %v2188, %v2348
      %v2350 = vpop.f32.mrb[0].mxu0
      %v2351 = vpop.f32.mrb[0].mxu0
      %v2352 = vadd.f32 %v2191, %v2351
      %v2353 = vpop.f32.mrb[0].mxu0
      %2354 = vmatprep.mubr.bf16.mxu0 0
      %2355 = vmatmul.mubr.bf16.gmra.mrb[0].mxu0 %v1902
      %v2356 = vpop.f32.mrb[0].mxu0
      %v2357 = vadd.f32 %v2196, %v2356
      %v2358 = vpop.f32.mrb[0].mxu0
      %v2359 = vpop.f32.mrb[0].mxu0
      %v2360 = vadd.f32 %v2199, %v2359
      %v2361 = vpop.f32.mrb[0].mxu0
      %2362 = vmatprep.mubr.bf16.mxu0 0
      %2363 = vmatmul.mubr.bf16.gmra.mrb[0].mxu0 %v1905
      %v2364 = vpop.f32.mrb[0].mxu0
      %v2365 = vadd.f32 %v2204, %v2364
      %v2366 = vpop.f32.mrb[0].mxu0
      %v2367 = vpop.f32.mrb[0].mxu0
      %v2368 = vadd.f32 %v2207, %v2367
      %v2369 = vpop.f32.mrb[0].mxu0
      %2370 = vmatprep.mubr.bf16.mxu0 0
      %2371 = vmatmul.mubr.bf16.gmra.mrb[0].mxu0 %v1908
      %v2372 = vpop.f32.mrb[0].mxu0
      %v2373 = vadd.f32 %v2212, %v2372
      %v2374 = vpop.f32.mrb[0].mxu0
      %v2375 = vpop.f32.mrb[0].mxu0
      %v2376 = vadd.f32 %v2215, %v2375
      %v2377 = vpop.f32.mrb[0].mxu0
      %2378 = vmatprep.mubr.bf16.mxu0 0
      %2379 = vmatmul.mubr.bf16.gmra.mrb[0].mxu0 %v1911
      %v2380 = vpop.f32.mrb[0].mxu0
      %v2381 = vadd.f32 %v2220, %v2380
      %v2382 = vpop.f32.mrb[0].mxu0
      %v2383 = vpop.f32.mrb[0].mxu0
      %v2384 = vadd.f32 %v2223, %v2383
      %v2385 = vpop.f32.mrb[0].mxu0
      %2386 = vmatprep.mubr.bf16.mxu0 0
      %2387 = vmatmul.mubr.bf16.gmra.mrb[0].mxu0 %v1914
      %v2388 = vpop.f32.mrb[0].mxu0
      %v2389 = vadd.f32 %v2228, %v2388
      %v2390 = vpop.f32.mrb[0].mxu0
      %v2391 = vpop.f32.mrb[0].mxu0
      %v2392 = vadd.f32 %v2231, %v2391
      %v2393 = vpop.f32.mrb[0].mxu0
      %2394 = vmatprep.mubr.bf16.mxu0 0
      %2395 = vmatmul.mubr.bf16.gmra.mrb[0].mxu0 %v1917
      %v2396 = vpop.f32.mrb[0].mxu0
      %v2397 = vadd.f32 %v2236, %v2396
      %v2398 = vpop.f32.mrb[0].mxu0
      %v2399 = vpop.f32.mrb[0].mxu0
      %v2400 = vadd.f32 %v2239, %v2399
      %v2401 = vpop.f32.mrb[0].mxu0
      %2402 = vmatprep.mubr.bf16.mxu0 0
      %2403 = vmatmul.mubr.bf16.gmra.mrb[0].mxu0 %v1920
      %v2404 = vpop.f32.mrb[0].mxu0
      %v2405 = vadd.f32 %v2244, %v2404
      %v2406 = vpop.f32.mrb[0].mxu0
      %v2407 = vpop.f32.mrb[0].mxu0
      %v2408 = vadd.f32 %v2247, %v2407
      %v2409 = vpop.f32.mrb[0].mxu0
      %2410 = vmatprep.mubr.bf16.mxu0 0
      %2411 = vmatmul.mubr.bf16.gmra.mrb[0].mxu0 %v1923
      %v2412 = vpop.f32.mrb[0].mxu0
      %v2413 = vadd.f32 %v2252, %v2412
      %v2414 = vpop.f32.mrb[0].mxu0
      %v2415 = vpop.f32.mrb[0].mxu0
      %v2416 = vadd.f32 %v2255, %v2415
      %v2417 = vpop.f32.mrb[0].mxu0
      %2418 = vmatprep.mubr.bf16.mxu0 0
      %2419 = vmatmul.mubr.bf16.gmra.mrb[0].mxu0 %v1926
      %v2420 = vpop.f32.mrb[0].mxu0
      %v2421 = vadd.f32 %v2260, %v2420
      %v2422 = vpop.f32.mrb[0].mxu0
      %v2423 = vpop.f32.mrb[0].mxu0
      %v2424 = vadd.f32 %v2263, %v2423
      %v2425 = vpop.f32.mrb[0].mxu0
      %2426 = vmatprep.mubr.bf16.mxu0 0
      %2427 = vmatmul.mubr.bf16.gmra.mrb[0].mxu0 %v1929
      %v2428 = vpop.f32.mrb[0].mxu0
      %v2429 = vadd.f32 %v2268, %v2428
      %v2430 = vpop.f32.mrb[0].mxu0
      %v2431 = vpop.f32.mrb[0].mxu0
      %v2432 = vadd.f32 %v2271, %v2431
      %v2433 = vpop.f32.mrb[0].mxu0
      %2434 = vmatprep.mubr.bf16.mxu0 0
      %2435 = vmatmul.mubr.bf16.gmra.mrb[0].mxu0 %v1932
      %v2436 = vpop.f32.mrb[0].mxu0
      %v2437 = vadd.f32 %v2276, %v2436
      %v2438 = vpop.f32.mrb[0].mxu0
      %v2439 = vpop.f32.mrb[0].mxu0
      %v2440 = vadd.f32 %v2279, %v2439
      %v2441 = vpop.f32.mrb[0].mxu0
      %2442 = vmatprep.mubr.bf16.mxu0 0
      %2443 = vmatmul.mubr.bf16.gmra.mrb[0].mxu0 %v1935
      %v2444 = vpop.f32.mrb[0].mxu0
      %v2445 = vadd.f32 %v2284, %v2444
      %v2446 = vpop.f32.mrb[0].mxu0
      %v2447 = vpop.f32.mrb[0].mxu0
      %v2448 = vadd.f32 %v2287, %v2447
      %v2449 = vpop.f32.mrb[0].mxu0
      %2450 = vmatprep.mubr.bf16.mxu0 0
      %2451 = vmatmul.mubr.bf16.gmra.mrb[0].mxu0 %v1938
      %v2452 = vpop.f32.mrb[0].mxu0
      %v2453 = vadd.f32 %v2292, %v2452
      %v2454 = vpop.f32.mrb[0].mxu0
      %v2455 = vpop.f32.mrb[0].mxu0
      %v2456 = vadd.f32 %v2295, %v2455
      %v2457 = vpop.f32.mrb[0].mxu0
      %2458 = vmatprep.mubr.bf16.mxu0 0
      %2459 = vmatmul.mubr.bf16.gmra.mrb[0].mxu0 %v1941
      %v2460 = vpop.f32.mrb[0].mxu0
      %v2461 = vadd.f32 %v2300, %v2460
      %v2462 = vpop.f32.mrb[0].mxu0
      %v2463 = vpop.f32.mrb[0].mxu0
      %v2464 = vadd.f32 %v2303, %v2463
      %v2465 = vpop.f32.mrb[0].mxu0
      %2466 = vmatprep.mubr.bf16.mxu0 0
      %2467 = vmatmul.mubr.bf16.gmra.mrb[0].mxu0 %v1944
      %v2468 = vpop.f32.mrb[0].mxu0
      %v2469 = vadd.f32 %v2308, %v2468
      %v2470 = vpop.f32.mrb[0].mxu0
      %v2471 = vpop.f32.mrb[0].mxu0
      %v2472 = vadd.f32 %v2311, %v2471
      %v2473 = vpop.f32.mrb[0].mxu0
      %2474 = vdwg.mxu0
      %v2523 = vunpack.c.l.b16 %v1385
      %v2524 = vunpack.c.l.b16 %v1386
      %v2525 = vunpack.c.l.b16 %v1387
      %v2526 = vunpack.c.l.b16 %v1388
      %v2527 = vunpack.c.l.b16 %v1389
      %v2528 = vunpack.c.l.b16 %v1390
      %v2529 = vunpack.c.l.b16 %v1391
      %v2530 = vunpack.c.l.b16 %v1392
      %v2531 = vunpack.c.l.b16 %v1393
      %v2532 = vunpack.c.l.b16 %v1394
      %v2533 = vunpack.c.l.b16 %v1395
      %v2534 = vunpack.c.l.b16 %v1396
      %v2535 = vunpack.c.l.b16 %v1397
      %v2536 = vunpack.c.l.b16 %v1398
      %v2537 = vunpack.c.l.b16 %v1399
      %v2538 = vunpack.c.l.b16 %v1400
      %v2539 = vunpack.c.l.b16 %v1401
      %v2540 = vunpack.c.l.b16 %v1402
      %v2541 = vunpack.c.l.b16 %v1403
      %v2542 = vunpack.c.l.b16 %v1404
      %v2543 = vunpack.c.l.b16 %v1405
      %v2544 = vunpack.c.l.b16 %v1406
      %v2545 = vunpack.c.l.b16 %v1407
      %v2546 = vunpack.c.l.b16 %v1408
      %v2547 = vunpack.c.l.b16 %v1409
      %v2548 = vunpack.c.l.b16 %v1410
      %v2549 = vunpack.c.l.b16 %v1411
      %v2550 = vunpack.c.l.b16 %v1412
      %v2551 = vunpack.c.l.b16 %v1413
      %v2552 = vunpack.c.l.b16 %v1414
      %v2553 = vunpack.c.l.b16 %v1415
      %v2554 = vunpack.c.l.b16 %v1416
      %v2555 = vunpack.c.l.b16 %v1417
      %v2556 = vunpack.c.l.b16 %v1418
      %v2557 = vunpack.c.l.b16 %v1419
      %v2558 = vunpack.c.l.b16 %v1420
      %v2559 = vunpack.c.l.b16 %v1421
      %v2560 = vunpack.c.l.b16 %v1422
      %v2561 = vunpack.c.l.b16 %v1423
      %v2562 = vunpack.c.l.b16 %v1424
      %v2563 = vunpack.c.l.b16 %v1425
      %v2564 = vunpack.c.l.b16 %v1426
      %v2565 = vunpack.c.l.b16 %v1427
      %v2566 = vunpack.c.l.b16 %v1428
      %v2567 = vunpack.c.l.b16 %v1429
      %v2568 = vunpack.c.l.b16 %v1430
      %v2569 = vunpack.c.l.b16 %v1431
      %v2570 = vunpack.c.l.b16 %v1432
      %v2571 = vpack.c.b16 %v2524, %v2523
      %v2572 = vpack.c.b16 %v2526, %v2525
      %v2573 = vpack.c.b16 %v2528, %v2527
      %v2574 = vpack.c.b16 %v2530, %v2529
      %v2575 = vpack.c.b16 %v2532, %v2531
      %v2576 = vpack.c.b16 %v2534, %v2533
      %v2577 = vpack.c.b16 %v2536, %v2535
      %v2578 = vpack.c.b16 %v2538, %v2537
      %v2579 = vpack.c.b16 %v2540, %v2539
      %v2580 = vpack.c.b16 %v2542, %v2541
      %v2581 = vpack.c.b16 %v2544, %v2543
      %v2582 = vpack.c.b16 %v2546, %v2545
      %v2583 = vpack.c.b16 %v2548, %v2547
      %v2584 = vpack.c.b16 %v2550, %v2549
      %v2585 = vpack.c.b16 %v2552, %v2551
      %v2586 = vpack.c.b16 %v2554, %v2553
      %v2587 = vpack.c.b16 %v2556, %v2555
      %v2588 = vpack.c.b16 %v2558, %v2557
      %v2589 = vpack.c.b16 %v2560, %v2559
      %v2590 = vpack.c.b16 %v2562, %v2561
      %v2591 = vpack.c.b16 %v2564, %v2563
      %v2592 = vpack.c.b16 %v2566, %v2565
      %v2593 = vpack.c.b16 %v2568, %v2567
      %v2594 = vpack.c.b16 %v2570, %v2569
      %2619 = vmatprep.subr.bf16.mxu0 0
      %2620 = vmatpush1.bf16.msra.mxu0 %v2571
      %2621 = vmatprep.subr.bf16.mxu0 0
      %2622 = vmatpush1.bf16.msra.mxu0 %v2572
      %2623 = vmatprep.subr.bf16.mxu0 0
      %2624 = vmatpush1.bf16.msra.mxu0 %v2573
      %2625 = vmatprep.subr.bf16.mxu0 0
      %2626 = vmatpush1.bf16.msra.mxu0 %v2574
      %2627 = vmatprep.subr.bf16.mxu0 0
      %2628 = vmatpush1.bf16.msra.mxu0 %v2575
      %2629 = vmatprep.subr.bf16.mxu0 0
      %2630 = vmatpush1.bf16.msra.mxu0 %v2576
      %2631 = vmatprep.subr.bf16.mxu0 0
      %2632 = vmatpush1.bf16.msra.mxu0 %v2577
      %2633 = vmatprep.subr.bf16.mxu0 0
      %2634 = vmatpush1.bf16.msra.mxu0 %v2578
      %2635 = vmatprep.subr.bf16.mxu0 0
      %2636 = vmatpush1.bf16.msra.mxu0 %v2579
      %2637 = vmatprep.subr.bf16.mxu0 0
      %2638 = vmatpush1.bf16.msra.mxu0 %v2580
      %2639 = vmatprep.subr.bf16.mxu0 0
      %2640 = vmatpush1.bf16.msra.mxu0 %v2581
      %2641 = vmatprep.subr.bf16.mxu0 0
      %2642 = vmatpush1.bf16.msra.mxu0 %v2582
      %2643 = vmatprep.subr.bf16.mxu0 0
      %2644 = vmatpush1.bf16.msra.mxu0 %v2583
      %2645 = vmatprep.subr.bf16.mxu0 0
      %2646 = vmatpush1.bf16.msra.mxu0 %v2584
      %2647 = vmatprep.subr.bf16.mxu0 0
      %2648 = vmatpush1.bf16.msra.mxu0 %v2585
      %2649 = vmatprep.subr.bf16.mxu0 0
      %2650 = vmatpush1.bf16.msra.mxu0 %v2586
      %2651 = vmatprep.mubr.bf16.mxu0 %v1075
      %2652 = vmatmul.mubr.bf16.gmra.mrb[0].mxu0 %v983
      %v2653 = vpop.f32.mrb[0].mxu0
      %v2654 = vadd.f32 %v2349, %v2653
      %v2655 = vpop.f32.mrb[0].mxu0
      %v2656 = vpop.f32.mrb[0].mxu0
      %v2657 = vadd.f32 %v2352, %v2656
      %v2658 = vpop.f32.mrb[0].mxu0
      %2659 = vmatprep.mubr.bf16.mxu0 %v1087
      %2660 = vmatmul.mubr.bf16.gmra.mrb[0].mxu0 %v984
      %v2661 = vpop.f32.mrb[0].mxu0
      %v2662 = vadd.f32 %v2357, %v2661
      %v2663 = vpop.f32.mrb[0].mxu0
      %v2664 = vpop.f32.mrb[0].mxu0
      %v2665 = vadd.f32 %v2360, %v2664
      %v2666 = vpop.f32.mrb[0].mxu0
      %2667 = vmatprep.mubr.bf16.mxu0 %v1099
      %2668 = vmatmul.mubr.bf16.gmra.mrb[0].mxu0 %v985
      %v2669 = vpop.f32.mrb[0].mxu0
      %v2670 = vadd.f32 %v2365, %v2669
      %v2671 = vpop.f32.mrb[0].mxu0
      %v2672 = vpop.f32.mrb[0].mxu0
      %v2673 = vadd.f32 %v2368, %v2672
      %v2674 = vpop.f32.mrb[0].mxu0
      %2675 = vmatprep.mubr.bf16.mxu0 %v1111
      %2676 = vmatmul.mubr.bf16.gmra.mrb[0].mxu0 %v986
      %v2677 = vpop.f32.mrb[0].mxu0
      %v2678 = vadd.f32 %v2373, %v2677
      %v2679 = vpop.f32.mrb[0].mxu0
      %v2680 = vpop.f32.mrb[0].mxu0
      %v2681 = vadd.f32 %v2376, %v2680
      %v2682 = vpop.f32.mrb[0].mxu0
      %2683 = vmatprep.mubr.bf16.mxu0 %v1123
      %2684 = vmatmul.mubr.bf16.gmra.mrb[0].mxu0 %v987
      %v2685 = vpop.f32.mrb[0].mxu0
      %v2686 = vadd.f32 %v2381, %v2685
      %v2687 = vpop.f32.mrb[0].mxu0
      %v2688 = vpop.f32.mrb[0].mxu0
      %v2689 = vadd.f32 %v2384, %v2688
      %v2690 = vpop.f32.mrb[0].mxu0
      %2691 = vmatprep.mubr.bf16.mxu0 %v1135
      %2692 = vmatmul.mubr.bf16.gmra.mrb[0].mxu0 %v988
      %v2693 = vpop.f32.mrb[0].mxu0
      %v2694 = vadd.f32 %v2389, %v2693
      %v2695 = vpop.f32.mrb[0].mxu0
      %v2696 = vpop.f32.mrb[0].mxu0
      %v2697 = vadd.f32 %v2392, %v2696
      %v2698 = vpop.f32.mrb[0].mxu0
      %2699 = vmatprep.mubr.bf16.mxu0 %v1147
      %2700 = vmatmul.mubr.bf16.gmra.mrb[0].mxu0 %v989
      %v2701 = vpop.f32.mrb[0].mxu0
      %v2702 = vadd.f32 %v2397, %v2701
      %v2703 = vpop.f32.mrb[0].mxu0
      %v2704 = vpop.f32.mrb[0].mxu0
      %v2705 = vadd.f32 %v2400, %v2704
      %v2706 = vpop.f32.mrb[0].mxu0
      %2707 = vmatprep.mubr.bf16.mxu0 %v1159
      %2708 = vmatmul.mubr.bf16.gmra.mrb[0].mxu0 %v990
      %v2709 = vpop.f32.mrb[0].mxu0
      %v2710 = vadd.f32 %v2405, %v2709
      %v2711 = vpop.f32.mrb[0].mxu0
      %v2712 = vpop.f32.mrb[0].mxu0
      %v2713 = vadd.f32 %v2408, %v2712
      %v2714 = vpop.f32.mrb[0].mxu0
      %2715 = vmatprep.mubr.bf16.mxu0 %v1171
      %2716 = vmatmul.mubr.bf16.gmra.mrb[0].mxu0 %v991
      %v2717 = vpop.f32.mrb[0].mxu0
      %v2718 = vadd.f32 %v2413, %v2717
      %v2719 = vpop.f32.mrb[0].mxu0
      %v2720 = vpop.f32.mrb[0].mxu0
      %v2721 = vadd.f32 %v2416, %v2720
      %v2722 = vpop.f32.mrb[0].mxu0
      %2723 = vmatprep.mubr.bf16.mxu0 %v1183
      %2724 = vmatmul.mubr.bf16.gmra.mrb[0].mxu0 %v992
      %v2725 = vpop.f32.mrb[0].mxu0
      %v2726 = vadd.f32 %v2421, %v2725
      %v2727 = vpop.f32.mrb[0].mxu0
      %v2728 = vpop.f32.mrb[0].mxu0
      %v2729 = vadd.f32 %v2424, %v2728
      %v2730 = vpop.f32.mrb[0].mxu0
      %2731 = vmatprep.mubr.bf16.mxu0 %v1195
      %2732 = vmatmul.mubr.bf16.gmra.mrb[0].mxu0 %v993
      %v2733 = vpop.f32.mrb[0].mxu0
      %v2734 = vadd.f32 %v2429, %v2733
      %v2735 = vpop.f32.mrb[0].mxu0
      %v2736 = vpop.f32.mrb[0].mxu0
      %v2737 = vadd.f32 %v2432, %v2736
      %v2738 = vpop.f32.mrb[0].mxu0
      %2739 = vmatprep.mubr.bf16.mxu0 %v1207
      %2740 = vmatmul.mubr.bf16.gmra.mrb[0].mxu0 %v994
      %v2741 = vpop.f32.mrb[0].mxu0
      %v2742 = vadd.f32 %v2437, %v2741
      %v2743 = vpop.f32.mrb[0].mxu0
      %v2744 = vpop.f32.mrb[0].mxu0
      %v2745 = vadd.f32 %v2440, %v2744
      %v2746 = vpop.f32.mrb[0].mxu0
      %2747 = vmatprep.mubr.bf16.mxu0 %v1219
      %2748 = vmatmul.mubr.bf16.gmra.mrb[0].mxu0 %v995
      %v2749 = vpop.f32.mrb[0].mxu0
      %v2750 = vadd.f32 %v2445, %v2749
      %v2751 = vpop.f32.mrb[0].mxu0
      %v2752 = vpop.f32.mrb[0].mxu0
      %v2753 = vadd.f32 %v2448, %v2752
      %v2754 = vpop.f32.mrb[0].mxu0
      %2755 = vmatprep.mubr.bf16.mxu0 %v1231
      %2756 = vmatmul.mubr.bf16.gmra.mrb[0].mxu0 %v996
      %v2757 = vpop.f32.mrb[0].mxu0
      %v2758 = vadd.f32 %v2453, %v2757
      %v2759 = vpop.f32.mrb[0].mxu0
      %v2760 = vpop.f32.mrb[0].mxu0
      %v2761 = vadd.f32 %v2456, %v2760
      %v2762 = vpop.f32.mrb[0].mxu0
      %2763 = vmatprep.mubr.bf16.mxu0 %v1243
      %2764 = vmatmul.mubr.bf16.gmra.mrb[0].mxu0 %v997
      %v2765 = vpop.f32.mrb[0].mxu0
      %v2766 = vadd.f32 %v2461, %v2765
      %v2767 = vpop.f32.mrb[0].mxu0
      %v2768 = vpop.f32.mrb[0].mxu0
      %v2769 = vadd.f32 %v2464, %v2768
      %v2770 = vpop.f32.mrb[0].mxu0
      %2771 = vmatprep.mubr.bf16.mxu0 %v1255
      %2772 = vmatmul.mubr.bf16.gmra.mrb[0].mxu0 %v998
      %v2773 = vpop.f32.mrb[0].mxu0
      %v2774 = vadd.f32 %v2469, %v2773
      %v2775 = vpop.f32.mrb[0].mxu0
      %v2776 = vpop.f32.mrb[0].mxu0
      %v2777 = vadd.f32 %v2472, %v2776
      %v2778 = vpop.f32.mrb[0].mxu0
      %2779 = vdwg.mxu0
      %2780 = vmatprep.subr.bf16.mxu0 0
      %2781 = vmatpush1.bf16.msra.mxu0 %v2587
      %2782 = vmatprep.subr.bf16.mxu0 0
      %2783 = vmatpush1.bf16.msra.mxu0 %v2588
      %2784 = vmatprep.subr.bf16.mxu0 0
      %2785 = vmatpush1.bf16.msra.mxu0 %v2589
      %2786 = vmatprep.subr.bf16.mxu0 0
      %2787 = vmatpush1.bf16.msra.mxu0 %v2590
      %2788 = vmatprep.subr.bf16.mxu0 0
      %2789 = vmatpush1.bf16.msra.mxu0 %v2591
      %2790 = vmatprep.subr.bf16.mxu0 0
      %2791 = vmatpush1.bf16.msra.mxu0 %v2592
      %2792 = vmatprep.subr.bf16.mxu0 0
      %2793 = vmatpush1.bf16.msra.mxu0 %v2593
      %2794 = vmatprep.subr.bf16.mxu0 0
      %2795 = vmatpush1.bf16.msra.mxu0 %v2594
      %2796 = vmatprep.subr.bf16.mxu0 0
      %2797 = vmatpush1.bf16.msra.mxu0 0
      %2798 = vmatprep.subr.bf16.mxu0 0
      %2799 = vmatpush1.bf16.msra.mxu0 0
      %2800 = vmatprep.subr.bf16.mxu0 0
      %2801 = vmatpush1.bf16.msra.mxu0 0
      %2802 = vmatprep.subr.bf16.mxu0 0
      %2803 = vmatpush1.bf16.msra.mxu0 0
      %2804 = vmatprep.subr.bf16.mxu0 0
      %2805 = vmatpush1.bf16.msra.mxu0 0
      %2806 = vmatprep.subr.bf16.mxu0 0
      %2807 = vmatpush1.bf16.msra.mxu0 0
      %2808 = vmatprep.subr.bf16.mxu0 0
      %2809 = vmatpush1.bf16.msra.mxu0 0
      %2810 = vmatprep.subr.bf16.mxu0 0
      %2811 = vmatpush1.bf16.msra.mxu0 0
      %2812 = vmatprep.mubr.bf16.mxu0 0
      %2813 = vmatmul.mubr.bf16.gmra.mrb[0].mxu0 %v1323
      %v2814 = vpop.f32.mrb[0].mxu0
      %v2815 = vadd.f32 %v2654, %v2814
      %v2816 = vpop.f32.mrb[0].mxu0
      %v2817 = vpop.f32.mrb[0].mxu0
      %v2818 = vadd.f32 %v2657, %v2817
      %v2819 = vpop.f32.mrb[0].mxu0
      %2820 = vmatprep.mubr.bf16.mxu0 0
      %2821 = vmatmul.mubr.bf16.gmra.mrb[0].mxu0 %v1326
      %v2822 = vpop.f32.mrb[0].mxu0
      %v2823 = vadd.f32 %v2662, %v2822
      %v2824 = vpop.f32.mrb[0].mxu0
      %v2825 = vpop.f32.mrb[0].mxu0
      %v2826 = vadd.f32 %v2665, %v2825
      %v2827 = vpop.f32.mrb[0].mxu0
      %2828 = vmatprep.mubr.bf16.mxu0 0
      %2829 = vmatmul.mubr.bf16.gmra.mrb[0].mxu0 %v1329
      %v2830 = vpop.f32.mrb[0].mxu0
      %v2831 = vadd.f32 %v2670, %v2830
      %v2832 = vpop.f32.mrb[0].mxu0
      %v2833 = vpop.f32.mrb[0].mxu0
      %v2834 = vadd.f32 %v2673, %v2833
      %v2835 = vpop.f32.mrb[0].mxu0
      %2836 = vmatprep.mubr.bf16.mxu0 0
      %2837 = vmatmul.mubr.bf16.gmra.mrb[0].mxu0 %v1332
      %v2838 = vpop.f32.mrb[0].mxu0
      %v2839 = vadd.f32 %v2678, %v2838
      %v2840 = vpop.f32.mrb[0].mxu0
      %v2841 = vpop.f32.mrb[0].mxu0
      %v2842 = vadd.f32 %v2681, %v2841
      %v2843 = vpop.f32.mrb[0].mxu0
      %2844 = vmatprep.mubr.bf16.mxu0 0
      %2845 = vmatmul.mubr.bf16.gmra.mrb[0].mxu0 %v1335
      %v2846 = vpop.f32.mrb[0].mxu0
      %v2847 = vadd.f32 %v2686, %v2846
      %v2848 = vpop.f32.mrb[0].mxu0
      %v2849 = vpop.f32.mrb[0].mxu0
      %v2850 = vadd.f32 %v2689, %v2849
      %v2851 = vpop.f32.mrb[0].mxu0
      %2852 = vmatprep.mubr.bf16.mxu0 0
      %2853 = vmatmul.mubr.bf16.gmra.mrb[0].mxu0 %v1338
      %v2854 = vpop.f32.mrb[0].mxu0
      %v2855 = vadd.f32 %v2694, %v2854
      %v2856 = vpop.f32.mrb[0].mxu0
      %v2857 = vpop.f32.mrb[0].mxu0
      %v2858 = vadd.f32 %v2697, %v2857
      %v2859 = vpop.f32.mrb[0].mxu0
      %2860 = vmatprep.mubr.bf16.mxu0 0
      %2861 = vmatmul.mubr.bf16.gmra.mrb[0].mxu0 %v1341
      %v2862 = vpop.f32.mrb[0].mxu0
      %v2863 = vadd.f32 %v2702, %v2862
      %v2864 = vpop.f32.mrb[0].mxu0
      %v2865 = vpop.f32.mrb[0].mxu0
      %v2866 = vadd.f32 %v2705, %v2865
      %v2867 = vpop.f32.mrb[0].mxu0
      %2868 = vmatprep.mubr.bf16.mxu0 0
      %2869 = vmatmul.mubr.bf16.gmra.mrb[0].mxu0 %v1344
      %v2870 = vpop.f32.mrb[0].mxu0
      %v2871 = vadd.f32 %v2710, %v2870
      %v2872 = vpop.f32.mrb[0].mxu0
      %v2873 = vpop.f32.mrb[0].mxu0
      %v2874 = vadd.f32 %v2713, %v2873
      %v2875 = vpop.f32.mrb[0].mxu0
      %2876 = vmatprep.mubr.bf16.mxu0 0
      %2877 = vmatmul.mubr.bf16.gmra.mrb[0].mxu0 %v1347
      %v2878 = vpop.f32.mrb[0].mxu0
      %v2879 = vadd.f32 %v2718, %v2878
      %v2880 = vpop.f32.mrb[0].mxu0
      %v2881 = vpop.f32.mrb[0].mxu0
      %v2882 = vadd.f32 %v2721, %v2881
      %v2883 = vpop.f32.mrb[0].mxu0
      %2884 = vmatprep.mubr.bf16.mxu0 0
      %2885 = vmatmul.mubr.bf16.gmra.mrb[0].mxu0 %v1350
      %v2886 = vpop.f32.mrb[0].mxu0
      %v2887 = vadd.f32 %v2726, %v2886
      %v2888 = vpop.f32.mrb[0].mxu0
      %v2889 = vpop.f32.mrb[0].mxu0
      %v2890 = vadd.f32 %v2729, %v2889
      %v2891 = vpop.f32.mrb[0].mxu0
      %2892 = vmatprep.mubr.bf16.mxu0 0
      %2893 = vmatmul.mubr.bf16.gmra.mrb[0].mxu0 %v1353
      %v2894 = vpop.f32.mrb[0].mxu0
      %v2895 = vadd.f32 %v2734, %v2894
      %v2896 = vpop.f32.mrb[0].mxu0
      %v2897 = vpop.f32.mrb[0].mxu0
      %v2898 = vadd.f32 %v2737, %v2897
      %v2899 = vpop.f32.mrb[0].mxu0
      %2900 = vmatprep.mubr.bf16.mxu0 0
      %2901 = vmatmul.mubr.bf16.gmra.mrb[0].mxu0 %v1356
      %v2902 = vpop.f32.mrb[0].mxu0
      %v2903 = vadd.f32 %v2742, %v2902
      %v2904 = vpop.f32.mrb[0].mxu0
      %v2905 = vpop.f32.mrb[0].mxu0
      %v2906 = vadd.f32 %v2745, %v2905
      %v2907 = vpop.f32.mrb[0].mxu0
      %2908 = vmatprep.mubr.bf16.mxu0 0
      %2909 = vmatmul.mubr.bf16.gmra.mrb[0].mxu0 %v1359
      %v2910 = vpop.f32.mrb[0].mxu0
      %v2911 = vadd.f32 %v2750, %v2910
      %v2912 = vpop.f32.mrb[0].mxu0
      %v2913 = vpop.f32.mrb[0].mxu0
      %v2914 = vadd.f32 %v2753, %v2913
      %v2915 = vpop.f32.mrb[0].mxu0
      %2916 = vmatprep.mubr.bf16.mxu0 0
      %2917 = vmatmul.mubr.bf16.gmra.mrb[0].mxu0 %v1362
      %v2918 = vpop.f32.mrb[0].mxu0
      %v2919 = vadd.f32 %v2758, %v2918
      %v2920 = vpop.f32.mrb[0].mxu0
      %v2921 = vpop.f32.mrb[0].mxu0
      %v2922 = vadd.f32 %v2761, %v2921
      %v2923 = vpop.f32.mrb[0].mxu0
      %2924 = vmatprep.mubr.bf16.mxu0 0
      %2925 = vmatmul.mubr.bf16.gmra.mrb[0].mxu0 %v1365
      %v2926 = vpop.f32.mrb[0].mxu0
      %v2927 = vadd.f32 %v2766, %v2926
      %v2928 = vpop.f32.mrb[0].mxu0
      %v2929 = vpop.f32.mrb[0].mxu0
      %v2930 = vadd.f32 %v2769, %v2929
      %v2931 = vpop.f32.mrb[0].mxu0
      %2932 = vmatprep.mubr.bf16.mxu0 0
      %2933 = vmatmul.mubr.bf16.gmra.mrb[0].mxu0 %v1368
      %v2934 = vpop.f32.mrb[0].mxu0
      %v2935 = vadd.f32 %v2774, %v2934
      %v2936 = vpop.f32.mrb[0].mxu0
      %v2937 = vpop.f32.mrb[0].mxu0
      %v2938 = vadd.f32 %v2777, %v2937
      %v2939 = vpop.f32.mrb[0].mxu0
      %2940 = vdwg.mxu0
      %s2941 = scalar_lea.vmem [#allocation2], 24
      %v2942 = vld [vmem:[%s2941] sm:$0xf]
      %v2943 = vld [vmem:[%s2941 + $0x4] sm:$0xf]
      %v2944 = vld [vmem:[%s2941 + $0xc] sm:$0xf]
      %v2945 = vld [vmem:[%s2941 + $0x10] sm:$0xf]
      %v2946 = vld [vmem:[%s2941 + $0x18] sm:$0xf]
      %v2947 = vld [vmem:[%s2941 + $0x1c] sm:$0xf]
      %v2948 = vld [vmem:[%s2941 + $0x24] sm:$0xf]
      %v2949 = vld [vmem:[%s2941 + $0x28] sm:$0xf]
      %v2950 = vld [vmem:[%s2941 + $0x30] sm:$0xf]
      %v2951 = vld [vmem:[%s2941 + $0x34] sm:$0xf]
      %v2952 = vld [vmem:[%s2941 + $0x3c] sm:$0xf]
      %v2953 = vld [vmem:[%s2941 + $0x40] sm:$0xf]
      %v2954 = vld [vmem:[%s2941 + $0x48] sm:$0xf]
      %v2955 = vld [vmem:[%s2941 + $0x4c] sm:$0xf]
      %v2956 = vld [vmem:[%s2941 + $0x54] sm:$0xf]
      %v2957 = vld [vmem:[%s2941 + $0x58] sm:$0xf]
      %v2958 = vld [vmem:[%s2941 + $0x60] sm:$0xf]
      %v2959 = vld [vmem:[%s2941 + $0x64] sm:$0xf]
      %v2960 = vld [vmem:[%s2941 + $0x6c] sm:$0xf]
      %v2961 = vld [vmem:[%s2941 + $0x70] sm:$0xf]
      %v2962 = vld [vmem:[%s2941 + $0x78] sm:$0xf]
      %v2963 = vld [vmem:[%s2941 + $0x7c] sm:$0xf]
      %v2964 = vld [vmem:[%s2941 + $0x84] sm:$0xf]
      %v2965 = vld [vmem:[%s2941 + $0x88] sm:$0xf]
      %v2966 = vld [vmem:[%s2941 + $0x90] sm:$0xf]
      %v2967 = vld [vmem:[%s2941 + $0x94] sm:$0xf]
      %v2968 = vld [vmem:[%s2941 + $0x9c] sm:$0xf]
      %v2969 = vld [vmem:[%s2941 + $0xa0] sm:$0xf]
      %v2970 = vld [vmem:[%s2941 + $0xa8] sm:$0xf]
      %v2971 = vld [vmem:[%s2941 + $0xac] sm:$0xf]
      %v2972 = vld [vmem:[%s2941 + $0xb4] sm:$0xf]
      %v2973 = vld [vmem:[%s2941 + $0xb8] sm:$0xf]
      %v2974 = vld [vmem:[%s2941 + $0x8] sm:$0x1]
      %v2975 = vld [vmem:[%s2941 + $0x14] sm:$0x1]
      %v2976 = vld [vmem:[%s2941 + $0x20] sm:$0x1]
      %v2977 = vld [vmem:[%s2941 + $0x2c] sm:$0x1]
      %v2978 = vld [vmem:[%s2941 + $0x38] sm:$0x1]
      %v2979 = vld [vmem:[%s2941 + $0x44] sm:$0x1]
      %v2980 = vld [vmem:[%s2941 + $0x50] sm:$0x1]
      %v2981 = vld [vmem:[%s2941 + $0x5c] sm:$0x1]
      %v2982 = vld [vmem:[%s2941 + $0x68] sm:$0x1]
      %v2983 = vld [vmem:[%s2941 + $0x74] sm:$0x1]
      %v2984 = vld [vmem:[%s2941 + $0x80] sm:$0x1]
      %v2985 = vld [vmem:[%s2941 + $0x8c] sm:$0x1]
      %v2986 = vld [vmem:[%s2941 + $0x98] sm:$0x1]
      %v2987 = vld [vmem:[%s2941 + $0xa4] sm:$0x1]
      %v2988 = vld [vmem:[%s2941 + $0xb0] sm:$0x1]
      %v2989 = vld [vmem:[%s2941 + $0xbc] sm:$0x1]
      %v2990 = vld [vmem:[%s2941] sm:$0xe]
      %v2991 = vld [vmem:[%s2941 + $0xc] sm:$0xe]
      %v2992 = vld [vmem:[%s2941 + $0x18] sm:$0xe]
      %v2993 = vld [vmem:[%s2941 + $0x24] sm:$0xe]
      %v2994 = vld [vmem:[%s2941 + $0x30] sm:$0xe]
      %v2995 = vld [vmem:[%s2941 + $0x3c] sm:$0xe]
      %v2996 = vld [vmem:[%s2941 + $0x48] sm:$0xe]
      %v2997 = vld [vmem:[%s2941 + $0x54] sm:$0xe]
      %v2998 = vld [vmem:[%s2941 + $0x60] sm:$0xe]
      %v2999 = vld [vmem:[%s2941 + $0x6c] sm:$0xe]
      %v3000 = vld [vmem:[%s2941 + $0x78] sm:$0xe]
      %v3001 = vld [vmem:[%s2941 + $0x84] sm:$0xe]
      %v3002 = vld [vmem:[%s2941 + $0x90] sm:$0xe]
      %v3003 = vld [vmem:[%s2941 + $0x9c] sm:$0xe]
      %v3004 = vld [vmem:[%s2941 + $0xa8] sm:$0xe]
      %v3005 = vld [vmem:[%s2941 + $0xb4] sm:$0xe]
      %v3038 = vunpack.c.l.b16 %v2942
      %v3039 = vunpack.c.l.b16 %v2943
      %v3040 = vunpack.c.l.b16 %v2944
      %v3041 = vunpack.c.l.b16 %v2945
      %v3042 = vunpack.c.l.b16 %v2946
      %v3043 = vunpack.c.l.b16 %v2947
      %v3044 = vunpack.c.l.b16 %v2948
      %v3045 = vunpack.c.l.b16 %v2949
      %v3046 = vunpack.c.l.b16 %v2950
      %v3047 = vunpack.c.l.b16 %v2951
      %v3048 = vunpack.c.l.b16 %v2952
      %v3049 = vunpack.c.l.b16 %v2953
      %v3050 = vunpack.c.l.b16 %v2954
      %v3051 = vunpack.c.l.b16 %v2955
      %v3052 = vunpack.c.l.b16 %v2956
      %v3053 = vunpack.c.l.b16 %v2957
      %v3054 = vunpack.c.l.b16 %v2958
      %v3055 = vunpack.c.l.b16 %v2959
      %v3056 = vunpack.c.l.b16 %v2960
      %v3057 = vunpack.c.l.b16 %v2961
      %v3058 = vunpack.c.l.b16 %v2962
      %v3059 = vunpack.c.l.b16 %v2963
      %v3060 = vunpack.c.l.b16 %v2964
      %v3061 = vunpack.c.l.b16 %v2965
      %v3062 = vunpack.c.l.b16 %v2966
      %v3063 = vunpack.c.l.b16 %v2967
      %v3064 = vunpack.c.l.b16 %v2968
      %v3065 = vunpack.c.l.b16 %v2969
      %v3066 = vunpack.c.l.b16 %v2970
      %v3067 = vunpack.c.l.b16 %v2971
      %v3068 = vunpack.c.l.b16 %v2972
      %v3069 = vunpack.c.l.b16 %v2973
      %v3070 = vpack.c.b16 %v3039, %v3038
      %v3071 = vpack.c.b16 %v3041, %v3040
      %v3072 = vpack.c.b16 %v3043, %v3042
      %v3073 = vpack.c.b16 %v3045, %v3044
      %v3074 = vpack.c.b16 %v3047, %v3046
      %v3075 = vpack.c.b16 %v3049, %v3048
      %v3076 = vpack.c.b16 %v3051, %v3050
      %v3077 = vpack.c.b16 %v3053, %v3052
      %v3078 = vpack.c.b16 %v3055, %v3054
      %v3079 = vpack.c.b16 %v3057, %v3056
      %v3080 = vpack.c.b16 %v3059, %v3058
      %v3081 = vpack.c.b16 %v3061, %v3060
      %v3082 = vpack.c.b16 %v3063, %v3062
      %v3083 = vpack.c.b16 %v3065, %v3064
      %v3084 = vpack.c.b16 %v3067, %v3066
      %v3085 = vpack.c.b16 %v3069, %v3068
      %v3118 = vunpack.c.l.b16 %v2974
      %v3119 = vunpack.c.l.b16 %v2975
      %v3120 = vunpack.c.l.b16 %v2976
      %v3121 = vunpack.c.l.b16 %v2977
      %v3122 = vunpack.c.l.b16 %v2978
      %v3123 = vunpack.c.l.b16 %v2979
      %v3124 = vunpack.c.l.b16 %v2980
      %v3125 = vunpack.c.l.b16 %v2981
      %v3126 = vunpack.c.l.b16 %v2982
      %v3127 = vunpack.c.l.b16 %v2983
      %v3128 = vunpack.c.l.b16 %v2984
      %v3129 = vunpack.c.l.b16 %v2985
      %v3130 = vunpack.c.l.b16 %v2986
      %v3131 = vunpack.c.l.b16 %v2987
      %v3132 = vunpack.c.l.b16 %v2988
      %v3133 = vunpack.c.l.b16 %v2989
      %v3134 = vpack.c.b16 %v3118, %v3118
      %v3135 = vpack.c.b16 %v3119, %v3119
      %v3136 = vpack.c.b16 %v3120, %v3120
      %v3137 = vpack.c.b16 %v3121, %v3121
      %v3138 = vpack.c.b16 %v3122, %v3122
      %v3139 = vpack.c.b16 %v3123, %v3123
      %v3140 = vpack.c.b16 %v3124, %v3124
      %v3141 = vpack.c.b16 %v3125, %v3125
      %v3142 = vpack.c.b16 %v3126, %v3126
      %v3143 = vpack.c.b16 %v3127, %v3127
      %v3144 = vpack.c.b16 %v3128, %v3128
      %v3145 = vpack.c.b16 %v3129, %v3129
      %v3146 = vpack.c.b16 %v3130, %v3130
      %v3147 = vpack.c.b16 %v3131, %v3131
      %v3148 = vpack.c.b16 %v3132, %v3132
      %v3149 = vpack.c.b16 %v3133, %v3133
      %v3151 = vshrl.u32 %v3070, 16
      %v3153 = vshll.u32 %v3070, 16
      %v3155 = vrot.slane %v3153, 1
      %v3156 = vor.u32 %v3151, %v3155
      %v3158 = vshll.u32 %v3134, 16
      %v3160 = vrot.slane %v3158, 1
      %v3161 = vsel %vm1063, %v3156, %v3160
      %v3163 = vshrl.u32 %v3071, 16
      %v3165 = vshll.u32 %v3071, 16
      %v3167 = vrot.slane %v3165, 1
      %v3168 = vor.u32 %v3163, %v3167
      %v3170 = vshll.u32 %v3135, 16
      %v3172 = vrot.slane %v3170, 1
      %v3173 = vsel %vm1063, %v3168, %v3172
      %v3175 = vshrl.u32 %v3072, 16
      %v3177 = vshll.u32 %v3072, 16
      %v3179 = vrot.slane %v3177, 1
      %v3180 = vor.u32 %v3175, %v3179
      %v3182 = vshll.u32 %v3136, 16
      %v3184 = vrot.slane %v3182, 1
      %v3185 = vsel %vm1063, %v3180, %v3184
      %v3187 = vshrl.u32 %v3073, 16
      %v3189 = vshll.u32 %v3073, 16
      %v3191 = vrot.slane %v3189, 1
      %v3192 = vor.u32 %v3187, %v3191
      %v3194 = vshll.u32 %v3137, 16
      %v3196 = vrot.slane %v3194, 1
      %v3197 = vsel %vm1063, %v3192, %v3196
      %v3199 = vshrl.u32 %v3074, 16
      %v3201 = vshll.u32 %v3074, 16
      %v3203 = vrot.slane %v3201, 1
      %v3204 = vor.u32 %v3199, %v3203
      %v3206 = vshll.u32 %v3138, 16
      %v3208 = vrot.slane %v3206, 1
      %v3209 = vsel %vm1063, %v3204, %v3208
      %v3211 = vshrl.u32 %v3075, 16
      %v3213 = vshll.u32 %v3075, 16
      %v3215 = vrot.slane %v3213, 1
      %v3216 = vor.u32 %v3211, %v3215
      %v3218 = vshll.u32 %v3139, 16
      %v3220 = vrot.slane %v3218, 1
      %v3221 = vsel %vm1063, %v3216, %v3220
      %v3223 = vshrl.u32 %v3076, 16
      %v3225 = vshll.u32 %v3076, 16
      %v3227 = vrot.slane %v3225, 1
      %v3228 = vor.u32 %v3223, %v3227
      %v3230 = vshll.u32 %v3140, 16
      %v3232 = vrot.slane %v3230, 1
      %v3233 = vsel %vm1063, %v3228, %v3232
      %v3235 = vshrl.u32 %v3077, 16
      %v3237 = vshll.u32 %v3077, 16
      %v3239 = vrot.slane %v3237, 1
      %v3240 = vor.u32 %v3235, %v3239
      %v3242 = vshll.u32 %v3141, 16
      %v3244 = vrot.slane %v3242, 1
      %v3245 = vsel %vm1063, %v3240, %v3244
      %v3247 = vshrl.u32 %v3078, 16
      %v3249 = vshll.u32 %v3078, 16
      %v3251 = vrot.slane %v3249, 1
      %v3252 = vor.u32 %v3247, %v3251
      %v3254 = vshll.u32 %v3142, 16
      %v3256 = vrot.slane %v3254, 1
      %v3257 = vsel %vm1063, %v3252, %v3256
      %v3259 = vshrl.u32 %v3079, 16
      %v3261 = vshll.u32 %v3079, 16
      %v3263 = vrot.slane %v3261, 1
      %v3264 = vor.u32 %v3259, %v3263
      %v3266 = vshll.u32 %v3143, 16
      %v3268 = vrot.slane %v3266, 1
      %v3269 = vsel %vm1063, %v3264, %v3268
      %v3271 = vshrl.u32 %v3080, 16
      %v3273 = vshll.u32 %v3080, 16
      %v3275 = vrot.slane %v3273, 1
      %v3276 = vor.u32 %v3271, %v3275
      %v3278 = vshll.u32 %v3144, 16
      %v3280 = vrot.slane %v3278, 1
      %v3281 = vsel %vm1063, %v3276, %v3280
      %v3283 = vshrl.u32 %v3081, 16
      %v3285 = vshll.u32 %v3081, 16
      %v3287 = vrot.slane %v3285, 1
      %v3288 = vor.u32 %v3283, %v3287
      %v3290 = vshll.u32 %v3145, 16
      %v3292 = vrot.slane %v3290, 1
      %v3293 = vsel %vm1063, %v3288, %v3292
      %v3295 = vshrl.u32 %v3082, 16
      %v3297 = vshll.u32 %v3082, 16
      %v3299 = vrot.slane %v3297, 1
      %v3300 = vor.u32 %v3295, %v3299
      %v3302 = vshll.u32 %v3146, 16
      %v3304 = vrot.slane %v3302, 1
      %v3305 = vsel %vm1063, %v3300, %v3304
      %v3307 = vshrl.u32 %v3083, 16
      %v3309 = vshll.u32 %v3083, 16
      %v3311 = vrot.slane %v3309, 1
      %v3312 = vor.u32 %v3307, %v3311
      %v3314 = vshll.u32 %v3147, 16
      %v3316 = vrot.slane %v3314, 1
      %v3317 = vsel %vm1063, %v3312, %v3316
      %v3319 = vshrl.u32 %v3084, 16
      %v3321 = vshll.u32 %v3084, 16
      %v3323 = vrot.slane %v3321, 1
      %v3324 = vor.u32 %v3319, %v3323
      %v3326 = vshll.u32 %v3148, 16
      %v3328 = vrot.slane %v3326, 1
      %v3329 = vsel %vm1063, %v3324, %v3328
      %v3331 = vshrl.u32 %v3085, 16
      %v3333 = vshll.u32 %v3085, 16
      %v3335 = vrot.slane %v3333, 1
      %v3336 = vor.u32 %v3331, %v3335
      %v3338 = vshll.u32 %v3149, 16
      %v3340 = vrot.slane %v3338, 1
      %v3341 = vsel %vm1063, %v3336, %v3340
      %v3374 = vunpack.c.l.b16 %v2990
      %v3375 = vunpack.c.l.b16 %v2991
      %v3376 = vunpack.c.l.b16 %v2992
      %v3377 = vunpack.c.l.b16 %v2993
      %v3378 = vunpack.c.l.b16 %v2994
      %v3379 = vunpack.c.l.b16 %v2995
      %v3380 = vunpack.c.l.b16 %v2996
      %v3381 = vunpack.c.l.b16 %v2997
      %v3382 = vunpack.c.l.b16 %v2998
      %v3383 = vunpack.c.l.b16 %v2999
      %v3384 = vunpack.c.l.b16 %v3000
      %v3385 = vunpack.c.l.b16 %v3001
      %v3386 = vunpack.c.l.b16 %v3002
      %v3387 = vunpack.c.l.b16 %v3003
      %v3388 = vunpack.c.l.b16 %v3004
      %v3389 = vunpack.c.l.b16 %v3005
      %v3390 = vpack.c.b16 %v3039, %v3374
      %v3391 = vpack.c.b16 %v3041, %v3375
      %v3392 = vpack.c.b16 %v3043, %v3376
      %v3393 = vpack.c.b16 %v3045, %v3377
      %v3394 = vpack.c.b16 %v3047, %v3378
      %v3395 = vpack.c.b16 %v3049, %v3379
      %v3396 = vpack.c.b16 %v3051, %v3380
      %v3397 = vpack.c.b16 %v3053, %v3381
      %v3398 = vpack.c.b16 %v3055, %v3382
      %v3399 = vpack.c.b16 %v3057, %v3383
      %v3400 = vpack.c.b16 %v3059, %v3384
      %v3401 = vpack.c.b16 %v3061, %v3385
      %v3402 = vpack.c.b16 %v3063, %v3386
      %v3403 = vpack.c.b16 %v3065, %v3387
      %v3404 = vpack.c.b16 %v3067, %v3388
      %v3405 = vpack.c.b16 %v3069, %v3389
      %v3406 = vrot.slane %v3390, 1
      %v3407 = vrot.slane %v3134, 1
      %v3408 = vsel %vm1320, %v3406, %v3407
      %v3409 = vrot.slane %v3391, 1
      %v3410 = vrot.slane %v3135, 1
      %v3411 = vsel %vm1320, %v3409, %v3410
      %v3412 = vrot.slane %v3392, 1
      %v3413 = vrot.slane %v3136, 1
      %v3414 = vsel %vm1320, %v3412, %v3413
      %v3415 = vrot.slane %v3393, 1
      %v3416 = vrot.slane %v3137, 1
      %v3417 = vsel %vm1320, %v3415, %v3416
      %v3418 = vrot.slane %v3394, 1
      %v3419 = vrot.slane %v3138, 1
      %v3420 = vsel %vm1320, %v3418, %v3419
      %v3421 = vrot.slane %v3395, 1
      %v3422 = vrot.slane %v3139, 1
      %v3423 = vsel %vm1320, %v3421, %v3422
      %v3424 = vrot.slane %v3396, 1
      %v3425 = vrot.slane %v3140, 1
      %v3426 = vsel %vm1320, %v3424, %v3425
      %v3427 = vrot.slane %v3397, 1
      %v3428 = vrot.slane %v3141, 1
      %v3429 = vsel %vm1320, %v3427, %v3428
      %v3430 = vrot.slane %v3398, 1
      %v3431 = vrot.slane %v3142, 1
      %v3432 = vsel %vm1320, %v3430, %v3431
      %v3433 = vrot.slane %v3399, 1
      %v3434 = vrot.slane %v3143, 1
      %v3435 = vsel %vm1320, %v3433, %v3434
      %v3436 = vrot.slane %v3400, 1
      %v3437 = vrot.slane %v3144, 1
      %v3438 = vsel %vm1320, %v3436, %v3437
      %v3439 = vrot.slane %v3401, 1
      %v3440 = vrot.slane %v3145, 1
      %v3441 = vsel %vm1320, %v3439, %v3440
      %v3442 = vrot.slane %v3402, 1
      %v3443 = vrot.slane %v3146, 1
      %v3444 = vsel %vm1320, %v3442, %v3443
      %v3445 = vrot.slane %v3403, 1
      %v3446 = vrot.slane %v3147, 1
      %v3447 = vsel %vm1320, %v3445, %v3446
      %v3448 = vrot.slane %v3404, 1
      %v3449 = vrot.slane %v3148, 1
      %v3450 = vsel %vm1320, %v3448, %v3449
      %v3451 = vrot.slane %v3405, 1
      %v3452 = vrot.slane %v3149, 1
      %v3453 = vsel %vm1320, %v3451, %v3452
      %v3470 = vld [vmem:[%s1 + $0x180] sm:$0xf]
      %v3471 = vld [vmem:[%s1 + $0x184] sm:$0xf]
      %v3472 = vld [vmem:[%s1 + $0x188] sm:$0xf]
      %v3473 = vld [vmem:[%s1 + $0x18c] sm:$0xf]
      %v3474 = vld [vmem:[%s1 + $0x190] sm:$0xf]
      %v3475 = vld [vmem:[%s1 + $0x194] sm:$0xf]
      %v3476 = vld [vmem:[%s1 + $0x198] sm:$0xf]
      %v3477 = vld [vmem:[%s1 + $0x19c] sm:$0xf]
      %v3478 = vld [vmem:[%s1 + $0x1a0] sm:$0xf]
      %v3479 = vld [vmem:[%s1 + $0x1a4] sm:$0xf]
      %v3480 = vld [vmem:[%s1 + $0x1a8] sm:$0xf]
      %v3481 = vld [vmem:[%s1 + $0x1ac] sm:$0xf]
      %v3482 = vld [vmem:[%s1 + $0x1b0] sm:$0xf]
      %v3483 = vld [vmem:[%s1 + $0x1b4] sm:$0xf]
      %v3484 = vld [vmem:[%s1 + $0x1b8] sm:$0xf]
      %v3485 = vld [vmem:[%s1 + $0x1bc] sm:$0xf]
      %v3486 = vld [vmem:[%s1 + $0x1c0] sm:$0xf]
      %v3487 = vld [vmem:[%s1 + $0x1c4] sm:$0xf]
      %v3488 = vld [vmem:[%s1 + $0x1c8] sm:$0xf]
      %v3489 = vld [vmem:[%s1 + $0x1cc] sm:$0xf]
      %v3490 = vld [vmem:[%s1 + $0x1d0] sm:$0xf]
      %v3491 = vld [vmem:[%s1 + $0x1d4] sm:$0xf]
      %v3492 = vld [vmem:[%s1 + $0x1d8] sm:$0xf]
      %v3493 = vld [vmem:[%s1 + $0x1dc] sm:$0xf]
      %v3494 = vld [vmem:[%s1 + $0x1e0] sm:$0xf]
      %v3495 = vld [vmem:[%s1 + $0x1e4] sm:$0xf]
      %v3496 = vld [vmem:[%s1 + $0x1e8] sm:$0xf]
      %v3497 = vld [vmem:[%s1 + $0x1ec] sm:$0xf]
      %v3498 = vld [vmem:[%s1 + $0x1f0] sm:$0xf]
      %v3499 = vld [vmem:[%s1 + $0x1f4] sm:$0xf]
      %v3500 = vld [vmem:[%s1 + $0x1f8] sm:$0xf]
      %v3501 = vld [vmem:[%s1 + $0x1fc] sm:$0xf]
      %v3502 = vld [vmem:[%s1 + $0x200] sm:$0xf]
      %v3503 = vld [vmem:[%s1 + $0x204] sm:$0xf]
      %v3504 = vld [vmem:[%s1 + $0x208] sm:$0xf]
      %v3505 = vld [vmem:[%s1 + $0x20c] sm:$0xf]
      %v3506 = vld [vmem:[%s1 + $0x210] sm:$0xf]
      %v3507 = vld [vmem:[%s1 + $0x214] sm:$0xf]
      %v3508 = vld [vmem:[%s1 + $0x218] sm:$0xf]
      %v3509 = vld [vmem:[%s1 + $0x21c] sm:$0xf]
      %v3510 = vld [vmem:[%s1 + $0x220] sm:$0xf]
      %v3511 = vld [vmem:[%s1 + $0x224] sm:$0xf]
      %v3512 = vld [vmem:[%s1 + $0x228] sm:$0xf]
      %v3513 = vld [vmem:[%s1 + $0x22c] sm:$0xf]
      %v3514 = vld [vmem:[%s1 + $0x230] sm:$0xf]
      %v3515 = vld [vmem:[%s1 + $0x234] sm:$0xf]
      %v3516 = vld [vmem:[%s1 + $0x238] sm:$0xf]
      %v3517 = vld [vmem:[%s1 + $0x23c] sm:$0xf]
      %v3566 = vunpack.c.l.b16 %v3470
      %v3567 = vunpack.c.l.b16 %v3471
      %v3568 = vunpack.c.l.b16 %v3472
      %v3569 = vunpack.c.l.b16 %v3473
      %v3570 = vunpack.c.l.b16 %v3474
      %v3571 = vunpack.c.l.b16 %v3475
      %v3572 = vunpack.c.l.b16 %v3476
      %v3573 = vunpack.c.l.b16 %v3477
      %v3574 = vunpack.c.l.b16 %v3478
      %v3575 = vunpack.c.l.b16 %v3479
      %v3576 = vunpack.c.l.b16 %v3480
      %v3577 = vunpack.c.l.b16 %v3481
      %v3578 = vunpack.c.l.b16 %v3482
      %v3579 = vunpack.c.l.b16 %v3483
      %v3580 = vunpack.c.l.b16 %v3484
      %v3581 = vunpack.c.l.b16 %v3485
      %v3582 = vunpack.c.l.b16 %v3486
      %v3583 = vunpack.c.l.b16 %v3487
      %v3584 = vunpack.c.l.b16 %v3488
      %v3585 = vunpack.c.l.b16 %v3489
      %v3586 = vunpack.c.l.b16 %v3490
      %v3587 = vunpack.c.l.b16 %v3491
      %v3588 = vunpack.c.l.b16 %v3492
      %v3589 = vunpack.c.l.b16 %v3493
      %v3590 = vunpack.c.l.b16 %v3494
      %v3591 = vunpack.c.l.b16 %v3495
      %v3592 = vunpack.c.l.b16 %v3496
      %v3593 = vunpack.c.l.b16 %v3497
      %v3594 = vunpack.c.l.b16 %v3498
      %v3595 = vunpack.c.l.b16 %v3499
      %v3596 = vunpack.c.l.b16 %v3500
      %v3597 = vunpack.c.l.b16 %v3501
      %v3598 = vunpack.c.l.b16 %v3502
      %v3599 = vunpack.c.l.b16 %v3503
      %v3600 = vunpack.c.l.b16 %v3504
      %v3601 = vunpack.c.l.b16 %v3505
      %v3602 = vunpack.c.l.b16 %v3506
      %v3603 = vunpack.c.l.b16 %v3507
      %v3604 = vunpack.c.l.b16 %v3508
      %v3605 = vunpack.c.l.b16 %v3509
      %v3606 = vunpack.c.l.b16 %v3510
      %v3607 = vunpack.c.l.b16 %v3511
      %v3608 = vunpack.c.l.b16 %v3512
      %v3609 = vunpack.c.l.b16 %v3513
      %v3610 = vunpack.c.l.b16 %v3514
      %v3611 = vunpack.c.l.b16 %v3515
      %v3612 = vunpack.c.l.b16 %v3516
      %v3613 = vunpack.c.l.b16 %v3517
      %v3614 = vpack.c.b16 %v3567, %v3566
      %v3615 = vpack.c.b16 %v3569, %v3568
      %v3616 = vpack.c.b16 %v3571, %v3570
      %v3617 = vpack.c.b16 %v3573, %v3572
      %v3618 = vpack.c.b16 %v3575, %v3574
      %v3619 = vpack.c.b16 %v3577, %v3576
      %v3620 = vpack.c.b16 %v3579, %v3578
      %v3621 = vpack.c.b16 %v3581, %v3580
      %v3622 = vpack.c.b16 %v3583, %v3582
      %v3623 = vpack.c.b16 %v3585, %v3584
      %v3624 = vpack.c.b16 %v3587, %v3586
      %v3625 = vpack.c.b16 %v3589, %v3588
      %v3626 = vpack.c.b16 %v3591, %v3590
      %v3627 = vpack.c.b16 %v3593, %v3592
      %v3628 = vpack.c.b16 %v3595, %v3594
      %v3629 = vpack.c.b16 %v3597, %v3596
      %v3630 = vpack.c.b16 %v3599, %v3598
      %v3631 = vpack.c.b16 %v3601, %v3600
      %v3632 = vpack.c.b16 %v3603, %v3602
      %v3633 = vpack.c.b16 %v3605, %v3604
      %v3634 = vpack.c.b16 %v3607, %v3606
      %v3635 = vpack.c.b16 %v3609, %v3608
      %v3636 = vpack.c.b16 %v3611, %v3610
      %v3637 = vpack.c.b16 %v3613, %v3612
      %3662 = vmatprep.subr.bf16.mxu0 0
      %3663 = vmatpush1.bf16.msra.mxu0 %v3614
      %3664 = vmatprep.subr.bf16.mxu0 0
      %3665 = vmatpush1.bf16.msra.mxu0 %v3615
      %3666 = vmatprep.subr.bf16.mxu0 0
      %3667 = vmatpush1.bf16.msra.mxu0 %v3616
      %3668 = vmatprep.subr.bf16.mxu0 0
      %3669 = vmatpush1.bf16.msra.mxu0 %v3617
      %3670 = vmatprep.subr.bf16.mxu0 0
      %3671 = vmatpush1.bf16.msra.mxu0 %v3618
      %3672 = vmatprep.subr.bf16.mxu0 0
      %3673 = vmatpush1.bf16.msra.mxu0 %v3619
      %3674 = vmatprep.subr.bf16.mxu0 0
      %3675 = vmatpush1.bf16.msra.mxu0 %v3620
      %3676 = vmatprep.subr.bf16.mxu0 0
      %3677 = vmatpush1.bf16.msra.mxu0 %v3621
      %3678 = vmatprep.subr.bf16.mxu0 0
      %3679 = vmatpush1.bf16.msra.mxu0 %v3622
      %3680 = vmatprep.subr.bf16.mxu0 0
      %3681 = vmatpush1.bf16.msra.mxu0 %v3623
      %3682 = vmatprep.subr.bf16.mxu0 0
      %3683 = vmatpush1.bf16.msra.mxu0 %v3624
      %3684 = vmatprep.subr.bf16.mxu0 0
      %3685 = vmatpush1.bf16.msra.mxu0 %v3625
      %3686 = vmatprep.subr.bf16.mxu0 0
      %3687 = vmatpush1.bf16.msra.mxu0 %v3626
      %3688 = vmatprep.subr.bf16.mxu0 0
      %3689 = vmatpush1.bf16.msra.mxu0 %v3627
      %3690 = vmatprep.subr.bf16.mxu0 0
      %3691 = vmatpush1.bf16.msra.mxu0 %v3628
      %3692 = vmatprep.subr.bf16.mxu0 0
      %3693 = vmatpush1.bf16.msra.mxu0 %v3629
      %3694 = vmatprep.mubr.bf16.mxu0 %v3161
      %3695 = vmatmul.mubr.bf16.gmra.mrb[0].mxu0 %v3070
      %v3696 = vpop.f32.mrb[0].mxu0
      %v3697 = vadd.f32 0.0, %v3696
      %v3698 = vpop.f32.mrb[0].mxu0
      %v3699 = vpop.f32.mrb[0].mxu0
      %v3700 = vadd.f32 0.0, %v3699
      %v3701 = vpop.f32.mrb[0].mxu0
      %3702 = vmatprep.mubr.bf16.mxu0 %v3173
      %3703 = vmatmul.mubr.bf16.gmra.mrb[0].mxu0 %v3071
      %v3704 = vpop.f32.mrb[0].mxu0
      %v3705 = vadd.f32 0.0, %v3704
      %v3706 = vpop.f32.mrb[0].mxu0
      %v3707 = vpop.f32.mrb[0].mxu0
      %v3708 = vadd.f32 0.0, %v3707
      %v3709 = vpop.f32.mrb[0].mxu0
      %3710 = vmatprep.mubr.bf16.mxu0 %v3185
      %3711 = vmatmul.mubr.bf16.gmra.mrb[0].mxu0 %v3072
      %v3712 = vpop.f32.mrb[0].mxu0
      %v3713 = vadd.f32 0.0, %v3712
      %v3714 = vpop.f32.mrb[0].mxu0
      %v3715 = vpop.f32.mrb[0].mxu0
      %v3716 = vadd.f32 0.0, %v3715
      %v3717 = vpop.f32.mrb[0].mxu0
      %3718 = vmatprep.mubr.bf16.mxu0 %v3197
      %3719 = vmatmul.mubr.bf16.gmra.mrb[0].mxu0 %v3073
      %v3720 = vpop.f32.mrb[0].mxu0
      %v3721 = vadd.f32 0.0, %v3720
      %v3722 = vpop.f32.mrb[0].mxu0
      %v3723 = vpop.f32.mrb[0].mxu0
      %v3724 = vadd.f32 0.0, %v3723
      %v3725 = vpop.f32.mrb[0].mxu0
      %3726 = vmatprep.mubr.bf16.mxu0 %v3209
      %3727 = vmatmul.mubr.bf16.gmra.mrb[0].mxu0 %v3074
      %v3728 = vpop.f32.mrb[0].mxu0
      %v3729 = vadd.f32 0.0, %v3728
      %v3730 = vpop.f32.mrb[0].mxu0
      %v3731 = vpop.f32.mrb[0].mxu0
      %v3732 = vadd.f32 0.0, %v3731
      %v3733 = vpop.f32.mrb[0].mxu0
      %3734 = vmatprep.mubr.bf16.mxu0 %v3221
      %3735 = vmatmul.mubr.bf16.gmra.mrb[0].mxu0 %v3075
      %v3736 = vpop.f32.mrb[0].mxu0
      %v3737 = vadd.f32 0.0, %v3736
      %v3738 = vpop.f32.mrb[0].mxu0
      %v3739 = vpop.f32.mrb[0].mxu0
      %v3740 = vadd.f32 0.0, %v3739
      %v3741 = vpop.f32.mrb[0].mxu0
      %3742 = vmatprep.mubr.bf16.mxu0 %v3233
      %3743 = vmatmul.mubr.bf16.gmra.mrb[0].mxu0 %v3076
      %v3744 = vpop.f32.mrb[0].mxu0
      %v3745 = vadd.f32 0.0, %v3744
      %v3746 = vpop.f32.mrb[0].mxu0
      %v3747 = vpop.f32.mrb[0].mxu0
      %v3748 = vadd.f32 0.0, %v3747
      %v3749 = vpop.f32.mrb[0].mxu0
      %3750 = vmatprep.mubr.bf16.mxu0 %v3245
      %3751 = vmatmul.mubr.bf16.gmra.mrb[0].mxu0 %v3077
      %v3752 = vpop.f32.mrb[0].mxu0
      %v3753 = vadd.f32 0.0, %v3752
      %v3754 = vpop.f32.mrb[0].mxu0
      %v3755 = vpop.f32.mrb[0].mxu0
      %v3756 = vadd.f32 0.0, %v3755
      %v3757 = vpop.f32.mrb[0].mxu0
      %3758 = vmatprep.mubr.bf16.mxu0 %v3257
      %3759 = vmatmul.mubr.bf16.gmra.mrb[0].mxu0 %v3078
      %v3760 = vpop.f32.mrb[0].mxu0
      %v3761 = vadd.f32 0.0, %v3760
      %v3762 = vpop.f32.mrb[0].mxu0
      %v3763 = vpop.f32.mrb[0].mxu0
      %v3764 = vadd.f32 0.0, %v3763
      %v3765 = vpop.f32.mrb[0].mxu0
      %3766 = vmatprep.mubr.bf16.mxu0 %v3269
      %3767 = vmatmul.mubr.bf16.gmra.mrb[0].mxu0 %v3079
      %v3768 = vpop.f32.mrb[0].mxu0
      %v3769 = vadd.f32 0.0, %v3768
      %v3770 = vpop.f32.mrb[0].mxu0
      %v3771 = vpop.f32.mrb[0].mxu0
      %v3772 = vadd.f32 0.0, %v3771
      %v3773 = vpop.f32.mrb[0].mxu0
      %3774 = vmatprep.mubr.bf16.mxu0 %v3281
      %3775 = vmatmul.mubr.bf16.gmra.mrb[0].mxu0 %v3080
      %v3776 = vpop.f32.mrb[0].mxu0
      %v3777 = vadd.f32 0.0, %v3776
      %v3778 = vpop.f32.mrb[0].mxu0
      %v3779 = vpop.f32.mrb[0].mxu0
      %v3780 = vadd.f32 0.0, %v3779
      %v3781 = vpop.f32.mrb[0].mxu0
      %3782 = vmatprep.mubr.bf16.mxu0 %v3293
      %3783 = vmatmul.mubr.bf16.gmra.mrb[0].mxu0 %v3081
      %v3784 = vpop.f32.mrb[0].mxu0
      %v3785 = vadd.f32 0.0, %v3784
      %v3786 = vpop.f32.mrb[0].mxu0
      %v3787 = vpop.f32.mrb[0].mxu0
      %v3788 = vadd.f32 0.0, %v3787
      %v3789 = vpop.f32.mrb[0].mxu0
      %3790 = vmatprep.mubr.bf16.mxu0 %v3305
      %3791 = vmatmul.mubr.bf16.gmra.mrb[0].mxu0 %v3082
      %v3792 = vpop.f32.mrb[0].mxu0
      %v3793 = vadd.f32 0.0, %v3792
      %v3794 = vpop.f32.mrb[0].mxu0
      %v3795 = vpop.f32.mrb[0].mxu0
      %v3796 = vadd.f32 0.0, %v3795
      %v3797 = vpop.f32.mrb[0].mxu0
      %3798 = vmatprep.mubr.bf16.mxu0 %v3317
      %3799 = vmatmul.mubr.bf16.gmra.mrb[0].mxu0 %v3083
      %v3800 = vpop.f32.mrb[0].mxu0
      %v3801 = vadd.f32 0.0, %v3800
      %v3802 = vpop.f32.mrb[0].mxu0
      %v3803 = vpop.f32.mrb[0].mxu0
      %v3804 = vadd.f32 0.0, %v3803
      %v3805 = vpop.f32.mrb[0].mxu0
      %3806 = vmatprep.mubr.bf16.mxu0 %v3329
      %3807 = vmatmul.mubr.bf16.gmra.mrb[0].mxu0 %v3084
      %v3808 = vpop.f32.mrb[0].mxu0
      %v3809 = vadd.f32 0.0, %v3808
      %v3810 = vpop.f32.mrb[0].mxu0
      %v3811 = vpop.f32.mrb[0].mxu0
      %v3812 = vadd.f32 0.0, %v3811
      %v3813 = vpop.f32.mrb[0].mxu0
      %3814 = vmatprep.mubr.bf16.mxu0 %v3341
      %3815 = vmatmul.mubr.bf16.gmra.mrb[0].mxu0 %v3085
      %v3816 = vpop.f32.mrb[0].mxu0
      %v3817 = vadd.f32 0.0, %v3816
      %v3818 = vpop.f32.mrb[0].mxu0
      %v3819 = vpop.f32.mrb[0].mxu0
      %v3820 = vadd.f32 0.0, %v3819
      %v3821 = vpop.f32.mrb[0].mxu0
      %3822 = vdwg.mxu0
      %3823 = vmatprep.subr.bf16.mxu0 0
      %3824 = vmatpush1.bf16.msra.mxu0 %v3630
      %3825 = vmatprep.subr.bf16.mxu0 0
      %3826 = vmatpush1.bf16.msra.mxu0 %v3631
      %3827 = vmatprep.subr.bf16.mxu0 0
      %3828 = vmatpush1.bf16.msra.mxu0 %v3632
      %3829 = vmatprep.subr.bf16.mxu0 0
      %3830 = vmatpush1.bf16.msra.mxu0 %v3633
      %3831 = vmatprep.subr.bf16.mxu0 0
      %3832 = vmatpush1.bf16.msra.mxu0 %v3634
      %3833 = vmatprep.subr.bf16.mxu0 0
      %3834 = vmatpush1.bf16.msra.mxu0 %v3635
      %3835 = vmatprep.subr.bf16.mxu0 0
      %3836 = vmatpush1.bf16.msra.mxu0 %v3636
      %3837 = vmatprep.subr.bf16.mxu0 0
      %3838 = vmatpush1.bf16.msra.mxu0 %v3637
      %3839 = vmatprep.subr.bf16.mxu0 0
      %3840 = vmatpush1.bf16.msra.mxu0 0
      %3841 = vmatprep.subr.bf16.mxu0 0
      %3842 = vmatpush1.bf16.msra.mxu0 0
      %3843 = vmatprep.subr.bf16.mxu0 0
      %3844 = vmatpush1.bf16.msra.mxu0 0
      %3845 = vmatprep.subr.bf16.mxu0 0
      %3846 = vmatpush1.bf16.msra.mxu0 0
      %3847 = vmatprep.subr.bf16.mxu0 0
      %3848 = vmatpush1.bf16.msra.mxu0 0
      %3849 = vmatprep.subr.bf16.mxu0 0
      %3850 = vmatpush1.bf16.msra.mxu0 0
      %3851 = vmatprep.subr.bf16.mxu0 0
      %3852 = vmatpush1.bf16.msra.mxu0 0
      %3853 = vmatprep.subr.bf16.mxu0 0
      %3854 = vmatpush1.bf16.msra.mxu0 0
      %3855 = vmatprep.mubr.bf16.mxu0 0
      %3856 = vmatmul.mubr.bf16.gmra.mrb[0].mxu0 %v3408
      %v3857 = vpop.f32.mrb[0].mxu0
      %v3858 = vadd.f32 %v3697, %v3857
      %v3859 = vpop.f32.mrb[0].mxu0
      %v3860 = vpop.f32.mrb[0].mxu0
      %v3861 = vadd.f32 %v3700, %v3860
      %v3862 = vpop.f32.mrb[0].mxu0
      %3863 = vmatprep.mubr.bf16.mxu0 0
      %3864 = vmatmul.mubr.bf16.gmra.mrb[0].mxu0 %v3411
      %v3865 = vpop.f32.mrb[0].mxu0
      %v3866 = vadd.f32 %v3705, %v3865
      %v3867 = vpop.f32.mrb[0].mxu0
      %v3868 = vpop.f32.mrb[0].mxu0
      %v3869 = vadd.f32 %v3708, %v3868
      %v3870 = vpop.f32.mrb[0].mxu0
      %3871 = vmatprep.mubr.bf16.mxu0 0
      %3872 = vmatmul.mubr.bf16.gmra.mrb[0].mxu0 %v3414
      %v3873 = vpop.f32.mrb[0].mxu0
      %v3874 = vadd.f32 %v3713, %v3873
      %v3875 = vpop.f32.mrb[0].mxu0
      %v3876 = vpop.f32.mrb[0].mxu0
      %v3877 = vadd.f32 %v3716, %v3876
      %v3878 = vpop.f32.mrb[0].mxu0
      %3879 = vmatprep.mubr.bf16.mxu0 0
      %3880 = vmatmul.mubr.bf16.gmra.mrb[0].mxu0 %v3417
      %v3881 = vpop.f32.mrb[0].mxu0
      %v3882 = vadd.f32 %v3721, %v3881
      %v3883 = vpop.f32.mrb[0].mxu0
      %v3884 = vpop.f32.mrb[0].mxu0
      %v3885 = vadd.f32 %v3724, %v3884
      %v3886 = vpop.f32.mrb[0].mxu0
      %3887 = vmatprep.mubr.bf16.mxu0 0
      %3888 = vmatmul.mubr.bf16.gmra.mrb[0].mxu0 %v3420
      %v3889 = vpop.f32.mrb[0].mxu0
      %v3890 = vadd.f32 %v3729, %v3889
      %v3891 = vpop.f32.mrb[0].mxu0
      %v3892 = vpop.f32.mrb[0].mxu0
      %v3893 = vadd.f32 %v3732, %v3892
      %v3894 = vpop.f32.mrb[0].mxu0
      %3895 = vmatprep.mubr.bf16.mxu0 0
      %3896 = vmatmul.mubr.bf16.gmra.mrb[0].mxu0 %v3423
      %v3897 = vpop.f32.mrb[0].mxu0
      %v3898 = vadd.f32 %v3737, %v3897
      %v3899 = vpop.f32.mrb[0].mxu0
      %v3900 = vpop.f32.mrb[0].mxu0
      %v3901 = vadd.f32 %v3740, %v3900
      %v3902 = vpop.f32.mrb[0].mxu0
      %3903 = vmatprep.mubr.bf16.mxu0 0
      %3904 = vmatmul.mubr.bf16.gmra.mrb[0].mxu0 %v3426
      %v3905 = vpop.f32.mrb[0].mxu0
      %v3906 = vadd.f32 %v3745, %v3905
      %v3907 = vpop.f32.mrb[0].mxu0
      %v3908 = vpop.f32.mrb[0].mxu0
      %v3909 = vadd.f32 %v3748, %v3908
      %v3910 = vpop.f32.mrb[0].mxu0
      %3911 = vmatprep.mubr.bf16.mxu0 0
      %3912 = vmatmul.mubr.bf16.gmra.mrb[0].mxu0 %v3429
      %v3913 = vpop.f32.mrb[0].mxu0
      %v3914 = vadd.f32 %v3753, %v3913
      %v3915 = vpop.f32.mrb[0].mxu0
      %v3916 = vpop.f32.mrb[0].mxu0
      %v3917 = vadd.f32 %v3756, %v3916
      %v3918 = vpop.f32.mrb[0].mxu0
      %3919 = vmatprep.mubr.bf16.mxu0 0
      %3920 = vmatmul.mubr.bf16.gmra.mrb[0].mxu0 %v3432
      %v3921 = vpop.f32.mrb[0].mxu0
      %v3922 = vadd.f32 %v3761, %v3921
      %v3923 = vpop.f32.mrb[0].mxu0
      %v3924 = vpop.f32.mrb[0].mxu0
      %v3925 = vadd.f32 %v3764, %v3924
      %v3926 = vpop.f32.mrb[0].mxu0
      %3927 = vmatprep.mubr.bf16.mxu0 0
      %3928 = vmatmul.mubr.bf16.gmra.mrb[0].mxu0 %v3435
      %v3929 = vpop.f32.mrb[0].mxu0
      %v3930 = vadd.f32 %v3769, %v3929
      %v3931 = vpop.f32.mrb[0].mxu0
      %v3932 = vpop.f32.mrb[0].mxu0
      %v3933 = vadd.f32 %v3772, %v3932
      %v3934 = vpop.f32.mrb[0].mxu0
      %3935 = vmatprep.mubr.bf16.mxu0 0
      %3936 = vmatmul.mubr.bf16.gmra.mrb[0].mxu0 %v3438
      %v3937 = vpop.f32.mrb[0].mxu0
      %v3938 = vadd.f32 %v3777, %v3937
      %v3939 = vpop.f32.mrb[0].mxu0
      %v3940 = vpop.f32.mrb[0].mxu0
      %v3941 = vadd.f32 %v3780, %v3940
      %v3942 = vpop.f32.mrb[0].mxu0
      %3943 = vmatprep.mubr.bf16.mxu0 0
      %3944 = vmatmul.mubr.bf16.gmra.mrb[0].mxu0 %v3441
      %v3945 = vpop.f32.mrb[0].mxu0
      %v3946 = vadd.f32 %v3785, %v3945
      %v3947 = vpop.f32.mrb[0].mxu0
      %v3948 = vpop.f32.mrb[0].mxu0
      %v3949 = vadd.f32 %v3788, %v3948
      %v3950 = vpop.f32.mrb[0].mxu0
      %3951 = vmatprep.mubr.bf16.mxu0 0
      %3952 = vmatmul.mubr.bf16.gmra.mrb[0].mxu0 %v3444
      %v3953 = vpop.f32.mrb[0].mxu0
      %v3954 = vadd.f32 %v3793, %v3953
      %v3955 = vpop.f32.mrb[0].mxu0
      %v3956 = vpop.f32.mrb[0].mxu0
      %v3957 = vadd.f32 %v3796, %v3956
      %v3958 = vpop.f32.mrb[0].mxu0
      %3959 = vmatprep.mubr.bf16.mxu0 0
      %3960 = vmatmul.mubr.bf16.gmra.mrb[0].mxu0 %v3447
      %v3961 = vpop.f32.mrb[0].mxu0
      %v3962 = vadd.f32 %v3801, %v3961
      %v3963 = vpop.f32.mrb[0].mxu0
      %v3964 = vpop.f32.mrb[0].mxu0
      %v3965 = vadd.f32 %v3804, %v3964
      %v3966 = vpop.f32.mrb[0].mxu0
      %3967 = vmatprep.mubr.bf16.mxu0 0
      %3968 = vmatmul.mubr.bf16.gmra.mrb[0].mxu0 %v3450
      %v3969 = vpop.f32.mrb[0].mxu0
      %v3970 = vadd.f32 %v3809, %v3969
      %v3971 = vpop.f32.mrb[0].mxu0
      %v3972 = vpop.f32.mrb[0].mxu0
      %v3973 = vadd.f32 %v3812, %v3972
      %v3974 = vpop.f32.mrb[0].mxu0
      %3975 = vmatprep.mubr.bf16.mxu0 0
      %3976 = vmatmul.mubr.bf16.gmra.mrb[0].mxu0 %v3453
      %v3977 = vpop.f32.mrb[0].mxu0
      %v3978 = vadd.f32 %v3817, %v3977
      %v3979 = vpop.f32.mrb[0].mxu0
      %v3980 = vpop.f32.mrb[0].mxu0
      %v3981 = vadd.f32 %v3820, %v3980
      %v3982 = vpop.f32.mrb[0].mxu0
      %3983 = vdwg.mxu0
      %v3984 = vadd.f32 %v2815, %v3858
      %v3985 = vadd.f32 %v2818, %v3861
      %v3986 = vadd.f32 %v2823, %v3866
      %v3987 = vadd.f32 %v2826, %v3869
      %v3988 = vadd.f32 %v2831, %v3874
      %v3989 = vadd.f32 %v2834, %v3877
      %v3990 = vadd.f32 %v2839, %v3882
      %v3991 = vadd.f32 %v2842, %v3885
      %v3992 = vadd.f32 %v2847, %v3890
      %v3993 = vadd.f32 %v2850, %v3893
      %v3994 = vadd.f32 %v2855, %v3898
      %v3995 = vadd.f32 %v2858, %v3901
      %v3996 = vadd.f32 %v2863, %v3906
      %v3997 = vadd.f32 %v2866, %v3909
      %v3998 = vadd.f32 %v2871, %v3914
      %v3999 = vadd.f32 %v2874, %v3917
      %v4000 = vadd.f32 %v2879, %v3922
      %v4001 = vadd.f32 %v2882, %v3925
      %v4002 = vadd.f32 %v2887, %v3930
      %v4003 = vadd.f32 %v2890, %v3933
      %v4004 = vadd.f32 %v2895, %v3938
      %v4005 = vadd.f32 %v2898, %v3941
      %v4006 = vadd.f32 %v2903, %v3946
      %v4007 = vadd.f32 %v2906, %v3949
      %v4008 = vadd.f32 %v2911, %v3954
      %v4009 = vadd.f32 %v2914, %v3957
      %v4010 = vadd.f32 %v2919, %v3962
      %v4011 = vadd.f32 %v2922, %v3965
      %v4012 = vadd.f32 %v2927, %v3970
      %v4013 = vadd.f32 %v2930, %v3973
      %v4014 = vadd.f32 %v2935, %v3978
      %v4015 = vadd.f32 %v2938, %v3981
      %v4016 = vld [vmem:[%s2] sm:$0x1]
      %v4018 = vlaneseq
      %v4019 = vshrl.u32 %v4018, 7
      %v4020 = vsub.s32 0, %v4019
      %v4021 = vrot.slane %v4016, %v4020
      %v4023 = vadd.f32 %v3984, %v4021
      %v4024 = vadd.f32 %v3985, %v4021
      %v4025 = vadd.f32 %v3986, %v4021
      %v4026 = vadd.f32 %v3987, %v4021
      %v4027 = vadd.f32 %v3988, %v4021
      %v4028 = vadd.f32 %v3989, %v4021
      %v4029 = vadd.f32 %v3990, %v4021
      %v4030 = vadd.f32 %v3991, %v4021
      %v4031 = vadd.f32 %v3992, %v4021
      %v4032 = vadd.f32 %v3993, %v4021
      %v4033 = vadd.f32 %v3994, %v4021
      %v4034 = vadd.f32 %v3995, %v4021
      %v4035 = vadd.f32 %v3996, %v4021
      %v4036 = vadd.f32 %v3997, %v4021
      %v4037 = vadd.f32 %v3998, %v4021
      %v4038 = vadd.f32 %v3999, %v4021
      %v4039 = vadd.f32 %v4000, %v4021
      %v4040 = vadd.f32 %v4001, %v4021
      %v4041 = vadd.f32 %v4002, %v4021
      %v4042 = vadd.f32 %v4003, %v4021
      %v4043 = vadd.f32 %v4004, %v4021
      %v4044 = vadd.f32 %v4005, %v4021
      %v4045 = vadd.f32 %v4006, %v4021
      %v4046 = vadd.f32 %v4007, %v4021
      %v4047 = vadd.f32 %v4008, %v4021
      %v4048 = vadd.f32 %v4009, %v4021
      %v4049 = vadd.f32 %v4010, %v4021
      %v4050 = vadd.f32 %v4011, %v4021
      %v4051 = vadd.f32 %v4012, %v4021
      %v4052 = vadd.f32 %v4013, %v4021
      %v4053 = vadd.f32 %v4014, %v4021
      %v4054 = vadd.f32 %v4015, %v4021
      %v4055 = vmax.f32 %v4023, 0.0
      %v4056 = vmax.f32 %v4024, 0.0
      %v4057 = vmax.f32 %v4025, 0.0
      %v4058 = vmax.f32 %v4026, 0.0
      %v4059 = vmax.f32 %v4027, 0.0
      %v4060 = vmax.f32 %v4028, 0.0
      %v4061 = vmax.f32 %v4029, 0.0
      %v4062 = vmax.f32 %v4030, 0.0
      %v4063 = vmax.f32 %v4031, 0.0
      %v4064 = vmax.f32 %v4032, 0.0
      %v4065 = vmax.f32 %v4033, 0.0
      %v4066 = vmax.f32 %v4034, 0.0
      %v4067 = vmax.f32 %v4035, 0.0
      %v4068 = vmax.f32 %v4036, 0.0
      %v4069 = vmax.f32 %v4037, 0.0
      %v4070 = vmax.f32 %v4038, 0.0
      %v4071 = vmax.f32 %v4039, 0.0
      %v4072 = vmax.f32 %v4040, 0.0
      %v4073 = vmax.f32 %v4041, 0.0
      %v4074 = vmax.f32 %v4042, 0.0
      %v4075 = vmax.f32 %v4043, 0.0
      %v4076 = vmax.f32 %v4044, 0.0
      %v4077 = vmax.f32 %v4045, 0.0
      %v4078 = vmax.f32 %v4046, 0.0
      %v4079 = vmax.f32 %v4047, 0.0
      %v4080 = vmax.f32 %v4048, 0.0
      %v4081 = vmax.f32 %v4049, 0.0
      %v4082 = vmax.f32 %v4050, 0.0
      %v4083 = vmax.f32 %v4051, 0.0
      %v4084 = vmax.f32 %v4052, 0.0
      %v4085 = vmax.f32 %v4053, 0.0
      %v4086 = vmax.f32 %v4054, 0.0
      %4087 = vst [vmem:[#allocation3] sm:$0xf] 0
      %4088 = vst [vmem:[#allocation3 + $0x4] sm:$0xf] 0
      %4089 = vst [vmem:[#allocation3 + $0x8] sm:$0x1] 0
      %s4090 = scalar_lea.vmem [#allocation3], 204
      %4091 = vst [vmem:[%s4090] sm:$0xf] 0
      %4092 = vst [vmem:[%s4090 + $0x4] sm:$0xf] 0
      %4093 = vst [vmem:[%s4090 + $0x8] sm:$0x1] 0
      %v4094 = vld [vmem:[#allocation3] sm:$0x1]
      %v4095 = vsel %vm275, 0, %v4094
      %4096 = vst [vmem:[#allocation3] sm:$0x1] %v4095
      %v4097 = vld [vmem:[#allocation3 + $0xc] sm:$0x1]
      %v4098 = vsel %vm275, 0, %v4097
      %4099 = vst [vmem:[#allocation3 + $0xc] sm:$0x1] %v4098
      %v4100 = vld [vmem:[#allocation3 + $0x18] sm:$0x1]
      %v4101 = vsel %vm275, 0, %v4100
      %4102 = vst [vmem:[#allocation3 + $0x18] sm:$0x1] %v4101
      %v4103 = vld [vmem:[#allocation3 + $0x24] sm:$0x1]
      %v4104 = vsel %vm275, 0, %v4103
      %4105 = vst [vmem:[#allocation3 + $0x24] sm:$0x1] %v4104
      %v4106 = vld [vmem:[#allocation3 + $0x30] sm:$0x1]
      %v4107 = vsel %vm275, 0, %v4106
      %4108 = vst [vmem:[#allocation3 + $0x30] sm:$0x1] %v4107
      %v4109 = vld [vmem:[#allocation3 + $0x3c] sm:$0x1]
      %v4110 = vsel %vm275, 0, %v4109
      %4111 = vst [vmem:[#allocation3 + $0x3c] sm:$0x1] %v4110
      %v4112 = vld [vmem:[#allocation3 + $0x48] sm:$0x1]
      %v4113 = vsel %vm275, 0, %v4112
      %4114 = vst [vmem:[#allocation3 + $0x48] sm:$0x1] %v4113
      %v4115 = vld [vmem:[#allocation3 + $0x54] sm:$0x1]
      %v4116 = vsel %vm275, 0, %v4115
      %4117 = vst [vmem:[#allocation3 + $0x54] sm:$0x1] %v4116
      %v4118 = vld [vmem:[#allocation3 + $0x60] sm:$0x1]
      %v4119 = vsel %vm275, 0, %v4118
      %4120 = vst [vmem:[#allocation3 + $0x60] sm:$0x1] %v4119
      %v4121 = vld [vmem:[#allocation3 + $0x6c] sm:$0x1]
      %v4122 = vsel %vm275, 0, %v4121
      %4123 = vst [vmem:[#allocation3 + $0x6c] sm:$0x1] %v4122
      %v4124 = vld [vmem:[#allocation3 + $0x78] sm:$0x1]
      %v4125 = vsel %vm275, 0, %v4124
      %4126 = vst [vmem:[#allocation3 + $0x78] sm:$0x1] %v4125
      %v4127 = vld [vmem:[#allocation3 + $0x84] sm:$0x1]
      %v4128 = vsel %vm275, 0, %v4127
      %4129 = vst [vmem:[#allocation3 + $0x84] sm:$0x1] %v4128
      %v4130 = vld [vmem:[#allocation3 + $0x90] sm:$0x1]
      %v4131 = vsel %vm275, 0, %v4130
      %4132 = vst [vmem:[#allocation3 + $0x90] sm:$0x1] %v4131
      %v4133 = vld [vmem:[#allocation3 + $0x9c] sm:$0x1]
      %v4134 = vsel %vm275, 0, %v4133
      %4135 = vst [vmem:[#allocation3 + $0x9c] sm:$0x1] %v4134
      %v4136 = vld [vmem:[#allocation3 + $0xa8] sm:$0x1]
      %v4137 = vsel %vm275, 0, %v4136
      %4138 = vst [vmem:[#allocation3 + $0xa8] sm:$0x1] %v4137
      %v4139 = vld [vmem:[#allocation3 + $0xb4] sm:$0x1]
      %v4140 = vsel %vm275, 0, %v4139
      %4141 = vst [vmem:[#allocation3 + $0xb4] sm:$0x1] %v4140
      %v4142 = vld [vmem:[#allocation3 + $0xc0] sm:$0x1]
      %v4143 = vsel %vm275, 0, %v4142
      %4144 = vst [vmem:[#allocation3 + $0xc0] sm:$0x1] %v4143
      %v4145 = vld [vmem:[#allocation3 + $0xcc] sm:$0x1]
      %v4146 = vsel %vm275, 0, %v4145
      %4147 = vst [vmem:[#allocation3 + $0xcc] sm:$0x1] %v4146
      %v4148 = vld [vmem:[#allocation3 + $0x8] sm:$0x1]
      %v4149 = vsel %vm331, 0, %v4148
      %4150 = vst [vmem:[#allocation3 + $0x8] sm:$0x1] %v4149
      %v4151 = vld [vmem:[#allocation3 + $0x14] sm:$0x1]
      %v4152 = vsel %vm331, 0, %v4151
      %4153 = vst [vmem:[#allocation3 + $0x14] sm:$0x1] %v4152
      %v4154 = vld [vmem:[#allocation3 + $0x20] sm:$0x1]
      %v4155 = vsel %vm331, 0, %v4154
      %4156 = vst [vmem:[#allocation3 + $0x20] sm:$0x1] %v4155
      %v4157 = vld [vmem:[#allocation3 + $0x2c] sm:$0x1]
      %v4158 = vsel %vm331, 0, %v4157
      %4159 = vst [vmem:[#allocation3 + $0x2c] sm:$0x1] %v4158
      %v4160 = vld [vmem:[#allocation3 + $0x38] sm:$0x1]
      %v4161 = vsel %vm331, 0, %v4160
      %4162 = vst [vmem:[#allocation3 + $0x38] sm:$0x1] %v4161
      %v4163 = vld [vmem:[#allocation3 + $0x44] sm:$0x1]
      %v4164 = vsel %vm331, 0, %v4163
      %4165 = vst [vmem:[#allocation3 + $0x44] sm:$0x1] %v4164
      %v4166 = vld [vmem:[#allocation3 + $0x50] sm:$0x1]
      %v4167 = vsel %vm331, 0, %v4166
      %4168 = vst [vmem:[#allocation3 + $0x50] sm:$0x1] %v4167
      %v4169 = vld [vmem:[#allocation3 + $0x5c] sm:$0x1]
      %v4170 = vsel %vm331, 0, %v4169
      %4171 = vst [vmem:[#allocation3 + $0x5c] sm:$0x1] %v4170
      %v4172 = vld [vmem:[#allocation3 + $0x68] sm:$0x1]
      %v4173 = vsel %vm331, 0, %v4172
      %4174 = vst [vmem:[#allocation3 + $0x68] sm:$0x1] %v4173
      %v4175 = vld [vmem:[#allocation3 + $0x74] sm:$0x1]
      %v4176 = vsel %vm331, 0, %v4175
      %4177 = vst [vmem:[#allocation3 + $0x74] sm:$0x1] %v4176
      %v4178 = vld [vmem:[#allocation3 + $0x80] sm:$0x1]
      %v4179 = vsel %vm331, 0, %v4178
      %4180 = vst [vmem:[#allocation3 + $0x80] sm:$0x1] %v4179
      %v4181 = vld [vmem:[#allocation3 + $0x8c] sm:$0x1]
      %v4182 = vsel %vm331, 0, %v4181
      %4183 = vst [vmem:[#allocation3 + $0x8c] sm:$0x1] %v4182
      %v4184 = vld [vmem:[#allocation3 + $0x98] sm:$0x1]
      %v4185 = vsel %vm331, 0, %v4184
      %4186 = vst [vmem:[#allocation3 + $0x98] sm:$0x1] %v4185
      %v4187 = vld [vmem:[#allocation3 + $0xa4] sm:$0x1]
      %v4188 = vsel %vm331, 0, %v4187
      %4189 = vst [vmem:[#allocation3 + $0xa4] sm:$0x1] %v4188
      %v4190 = vld [vmem:[#allocation3 + $0xb0] sm:$0x1]
      %v4191 = vsel %vm331, 0, %v4190
      %4192 = vst [vmem:[#allocation3 + $0xb0] sm:$0x1] %v4191
      %v4193 = vld [vmem:[#allocation3 + $0xbc] sm:$0x1]
      %v4194 = vsel %vm331, 0, %v4193
      %4195 = vst [vmem:[#allocation3 + $0xbc] sm:$0x1] %v4194
      %v4196 = vld [vmem:[#allocation3 + $0xc8] sm:$0x1]
      %v4197 = vsel %vm331, 0, %v4196
      %4198 = vst [vmem:[#allocation3 + $0xc8] sm:$0x1] %v4197
      %v4199 = vld [vmem:[#allocation3 + $0xd4] sm:$0x1]
      %v4200 = vsel %vm331, 0, %v4199
      %4201 = vst [vmem:[#allocation3 + $0xd4] sm:$0x1] %v4200
      %v4202 = vpack.c.bf16 %v4056, %v4055
      %v4203 = vpack.c.bf16 %v4058, %v4057
      %v4204 = vpack.c.bf16 %v4060, %v4059
      %v4205 = vpack.c.bf16 %v4062, %v4061
      %v4206 = vpack.c.bf16 %v4064, %v4063
      %v4207 = vpack.c.bf16 %v4066, %v4065
      %v4208 = vpack.c.bf16 %v4068, %v4067
      %v4209 = vpack.c.bf16 %v4070, %v4069
      %v4210 = vpack.c.bf16 %v4072, %v4071
      %v4211 = vpack.c.bf16 %v4074, %v4073
      %v4212 = vpack.c.bf16 %v4076, %v4075
      %v4213 = vpack.c.bf16 %v4078, %v4077
      %v4214 = vpack.c.bf16 %v4080, %v4079
      %v4215 = vpack.c.bf16 %v4082, %v4081
      %v4216 = vpack.c.bf16 %v4084, %v4083
      %v4217 = vpack.c.bf16 %v4086, %v4085
      %v4234 = vunpack.c.l.b16 %v4202
      %v4235 = vunpack.c.h.b16 %v4202
      %v4236 = vunpack.c.l.b16 %v4203
      %v4237 = vunpack.c.h.b16 %v4203
      %v4238 = vunpack.c.l.b16 %v4204
      %v4239 = vunpack.c.h.b16 %v4204
      %v4240 = vunpack.c.l.b16 %v4205
      %v4241 = vunpack.c.h.b16 %v4205
      %v4242 = vunpack.c.l.b16 %v4206
      %v4243 = vunpack.c.h.b16 %v4206
      %v4244 = vunpack.c.l.b16 %v4207
      %v4245 = vunpack.c.h.b16 %v4207
      %v4246 = vunpack.c.l.b16 %v4208
      %v4247 = vunpack.c.h.b16 %v4208
      %v4248 = vunpack.c.l.b16 %v4209
      %v4249 = vunpack.c.h.b16 %v4209
      %v4250 = vunpack.c.l.b16 %v4210
      %v4251 = vunpack.c.h.b16 %v4210
      %v4252 = vunpack.c.l.b16 %v4211
      %v4253 = vunpack.c.h.b16 %v4211
      %v4254 = vunpack.c.l.b16 %v4212
      %v4255 = vunpack.c.h.b16 %v4212
      %v4256 = vunpack.c.l.b16 %v4213
      %v4257 = vunpack.c.h.b16 %v4213
      %v4258 = vunpack.c.l.b16 %v4214
      %v4259 = vunpack.c.h.b16 %v4214
      %v4260 = vunpack.c.l.b16 %v4215
      %v4261 = vunpack.c.h.b16 %v4215
      %v4262 = vunpack.c.l.b16 %v4216
      %v4263 = vunpack.c.h.b16 %v4216
      %v4264 = vunpack.c.l.b16 %v4217
      %v4265 = vunpack.c.h.b16 %v4217
      %v4266 = vpack.c.b16 %v4234, %v4234
      %v4267 = vpack.c.b16 %v4235, %v4235
      %v4268 = vpack.c.b16 %v4236, %v4236
      %v4269 = vpack.c.b16 %v4237, %v4237
      %v4270 = vpack.c.b16 %v4238, %v4238
      %v4271 = vpack.c.b16 %v4239, %v4239
      %v4272 = vpack.c.b16 %v4240, %v4240
      %v4273 = vpack.c.b16 %v4241, %v4241
      %v4274 = vpack.c.b16 %v4242, %v4242
      %v4275 = vpack.c.b16 %v4243, %v4243
      %v4276 = vpack.c.b16 %v4244, %v4244
      %v4277 = vpack.c.b16 %v4245, %v4245
      %v4278 = vpack.c.b16 %v4246, %v4246
      %v4279 = vpack.c.b16 %v4247, %v4247
      %v4280 = vpack.c.b16 %v4248, %v4248
      %v4281 = vpack.c.b16 %v4249, %v4249
      %v4282 = vpack.c.b16 %v4250, %v4250
      %v4283 = vpack.c.b16 %v4251, %v4251
      %v4284 = vpack.c.b16 %v4252, %v4252
      %v4285 = vpack.c.b16 %v4253, %v4253
      %v4286 = vpack.c.b16 %v4254, %v4254
      %v4287 = vpack.c.b16 %v4255, %v4255
      %v4288 = vpack.c.b16 %v4256, %v4256
      %v4289 = vpack.c.b16 %v4257, %v4257
      %v4290 = vpack.c.b16 %v4258, %v4258
      %v4291 = vpack.c.b16 %v4259, %v4259
      %v4292 = vpack.c.b16 %v4260, %v4260
      %v4293 = vpack.c.b16 %v4261, %v4261
      %v4294 = vpack.c.b16 %v4262, %v4262
      %v4295 = vpack.c.b16 %v4263, %v4263
      %v4296 = vpack.c.b16 %v4264, %v4264
      %v4297 = vpack.c.b16 %v4265, %v4265
      %v4299 = vshrl.u32 %v4266, 16
      %v4301 = vrot.slane %v4299, 7
      %v4302 = vshll.u32 %v4266, 16
      %v4304 = vor.u32 %v4301, %v4302
      %v4305 = vrot.slane %v4301, 4
      %v4307 = vshrl.u32 %v4267, 16
      %v4309 = vrot.slane %v4307, 7
      %v4310 = vshll.u32 %v4267, 16
      %v4312 = vor.u32 %v4309, %v4310
      %v4313 = vsel %vm419, %v4305, %v4312
      %v4314 = vrot.slane %v4309, 4
      %v4316 = vshrl.u32 %v4268, 16
      %v4318 = vrot.slane %v4316, 7
      %v4319 = vshll.u32 %v4268, 16
      %v4321 = vor.u32 %v4318, %v4319
      %v4322 = vrot.slane %v4318, 4
      %v4324 = vshrl.u32 %v4269, 16
      %v4326 = vrot.slane %v4324, 7
      %v4327 = vshll.u32 %v4269, 16
      %v4329 = vor.u32 %v4326, %v4327
      %v4330 = vsel %vm419, %v4322, %v4329
      %v4331 = vrot.slane %v4326, 4
      %v4333 = vshrl.u32 %v4270, 16
      %v4335 = vrot.slane %v4333, 7
      %v4336 = vshll.u32 %v4270, 16
      %v4338 = vor.u32 %v4335, %v4336
      %v4339 = vrot.slane %v4335, 4
      %v4341 = vshrl.u32 %v4271, 16
      %v4343 = vrot.slane %v4341, 7
      %v4344 = vshll.u32 %v4271, 16
      %v4346 = vor.u32 %v4343, %v4344
      %v4347 = vsel %vm419, %v4339, %v4346
      %v4348 = vrot.slane %v4343, 4
      %v4350 = vshrl.u32 %v4272, 16
      %v4352 = vrot.slane %v4350, 7
      %v4353 = vshll.u32 %v4272, 16
      %v4355 = vor.u32 %v4352, %v4353
      %v4356 = vrot.slane %v4352, 4
      %v4358 = vshrl.u32 %v4273, 16
      %v4360 = vrot.slane %v4358, 7
      %v4361 = vshll.u32 %v4273, 16
      %v4363 = vor.u32 %v4360, %v4361
      %v4364 = vsel %vm419, %v4356, %v4363
      %v4365 = vrot.slane %v4360, 4
      %v4367 = vshrl.u32 %v4274, 16
      %v4369 = vrot.slane %v4367, 7
      %v4370 = vshll.u32 %v4274, 16
      %v4372 = vor.u32 %v4369, %v4370
      %v4373 = vrot.slane %v4369, 4
      %v4375 = vshrl.u32 %v4275, 16
      %v4377 = vrot.slane %v4375, 7
      %v4378 = vshll.u32 %v4275, 16
      %v4380 = vor.u32 %v4377, %v4378
      %v4381 = vsel %vm419, %v4373, %v4380
      %v4382 = vrot.slane %v4377, 4
      %v4384 = vshrl.u32 %v4276, 16
      %v4386 = vrot.slane %v4384, 7
      %v4387 = vshll.u32 %v4276, 16
      %v4389 = vor.u32 %v4386, %v4387
      %v4390 = vrot.slane %v4386, 4
      %v4392 = vshrl.u32 %v4277, 16
      %v4394 = vrot.slane %v4392, 7
      %v4395 = vshll.u32 %v4277, 16
      %v4397 = vor.u32 %v4394, %v4395
      %v4398 = vsel %vm419, %v4390, %v4397
      %v4399 = vrot.slane %v4394, 4
      %v4401 = vshrl.u32 %v4278, 16
      %v4403 = vrot.slane %v4401, 7
      %v4404 = vshll.u32 %v4278, 16
      %v4406 = vor.u32 %v4403, %v4404
      %v4407 = vrot.slane %v4403, 4
      %v4409 = vshrl.u32 %v4279, 16
      %v4411 = vrot.slane %v4409, 7
      %v4412 = vshll.u32 %v4279, 16
      %v4414 = vor.u32 %v4411, %v4412
      %v4415 = vsel %vm419, %v4407, %v4414
      %v4416 = vrot.slane %v4411, 4
      %v4418 = vshrl.u32 %v4280, 16
      %v4420 = vrot.slane %v4418, 7
      %v4421 = vshll.u32 %v4280, 16
      %v4423 = vor.u32 %v4420, %v4421
      %v4424 = vrot.slane %v4420, 4
      %v4426 = vshrl.u32 %v4281, 16
      %v4428 = vrot.slane %v4426, 7
      %v4429 = vshll.u32 %v4281, 16
      %v4431 = vor.u32 %v4428, %v4429
      %v4432 = vsel %vm419, %v4424, %v4431
      %v4433 = vrot.slane %v4428, 4
      %v4435 = vshrl.u32 %v4282, 16
      %v4437 = vrot.slane %v4435, 7
      %v4438 = vshll.u32 %v4282, 16
      %v4440 = vor.u32 %v4437, %v4438
      %v4441 = vrot.slane %v4437, 4
      %v4443 = vshrl.u32 %v4283, 16
      %v4445 = vrot.slane %v4443, 7
      %v4446 = vshll.u32 %v4283, 16
      %v4448 = vor.u32 %v4445, %v4446
      %v4449 = vsel %vm419, %v4441, %v4448
      %v4450 = vrot.slane %v4445, 4
      %v4452 = vshrl.u32 %v4284, 16
      %v4454 = vrot.slane %v4452, 7
      %v4455 = vshll.u32 %v4284, 16
      %v4457 = vor.u32 %v4454, %v4455
      %v4458 = vrot.slane %v4454, 4
      %v4460 = vshrl.u32 %v4285, 16
      %v4462 = vrot.slane %v4460, 7
      %v4463 = vshll.u32 %v4285, 16
      %v4465 = vor.u32 %v4462, %v4463
      %v4466 = vsel %vm419, %v4458, %v4465
      %v4467 = vrot.slane %v4462, 4
      %v4469 = vshrl.u32 %v4286, 16
      %v4471 = vrot.slane %v4469, 7
      %v4472 = vshll.u32 %v4286, 16
      %v4474 = vor.u32 %v4471, %v4472
      %v4475 = vrot.slane %v4471, 4
      %v4477 = vshrl.u32 %v4287, 16
      %v4479 = vrot.slane %v4477, 7
      %v4480 = vshll.u32 %v4287, 16
      %v4482 = vor.u32 %v4479, %v4480
      %v4483 = vsel %vm419, %v4475, %v4482
      %v4484 = vrot.slane %v4479, 4
      %v4486 = vshrl.u32 %v4288, 16
      %v4488 = vrot.slane %v4486, 7
      %v4489 = vshll.u32 %v4288, 16
      %v4491 = vor.u32 %v4488, %v4489
      %v4492 = vrot.slane %v4488, 4
      %v4494 = vshrl.u32 %v4289, 16
      %v4496 = vrot.slane %v4494, 7
      %v4497 = vshll.u32 %v4289, 16
      %v4499 = vor.u32 %v4496, %v4497
      %v4500 = vsel %vm419, %v4492, %v4499
      %v4501 = vrot.slane %v4496, 4
      %v4503 = vshrl.u32 %v4290, 16
      %v4505 = vrot.slane %v4503, 7
      %v4506 = vshll.u32 %v4290, 16
      %v4508 = vor.u32 %v4505, %v4506
      %v4509 = vrot.slane %v4505, 4
      %v4511 = vshrl.u32 %v4291, 16
      %v4513 = vrot.slane %v4511, 7
      %v4514 = vshll.u32 %v4291, 16
      %v4516 = vor.u32 %v4513, %v4514
      %v4517 = vsel %vm419, %v4509, %v4516
      %v4518 = vrot.slane %v4513, 4
      %v4520 = vshrl.u32 %v4292, 16
      %v4522 = vrot.slane %v4520, 7
      %v4523 = vshll.u32 %v4292, 16
      %v4525 = vor.u32 %v4522, %v4523
      %v4526 = vrot.slane %v4522, 4
      %v4528 = vshrl.u32 %v4293, 16
      %v4530 = vrot.slane %v4528, 7
      %v4531 = vshll.u32 %v4293, 16
      %v4533 = vor.u32 %v4530, %v4531
      %v4534 = vsel %vm419, %v4526, %v4533
      %v4535 = vrot.slane %v4530, 4
      %v4537 = vshrl.u32 %v4294, 16
      %v4539 = vrot.slane %v4537, 7
      %v4540 = vshll.u32 %v4294, 16
      %v4542 = vor.u32 %v4539, %v4540
      %v4543 = vrot.slane %v4539, 4
      %v4545 = vshrl.u32 %v4295, 16
      %v4547 = vrot.slane %v4545, 7
      %v4548 = vshll.u32 %v4295, 16
      %v4550 = vor.u32 %v4547, %v4548
      %v4551 = vsel %vm419, %v4543, %v4550
      %v4552 = vrot.slane %v4547, 4
      %v4554 = vshrl.u32 %v4296, 16
      %v4556 = vrot.slane %v4554, 7
      %v4557 = vshll.u32 %v4296, 16
      %v4559 = vor.u32 %v4556, %v4557
      %v4560 = vrot.slane %v4556, 4
      %v4562 = vshrl.u32 %v4297, 16
      %v4564 = vrot.slane %v4562, 7
      %v4565 = vshll.u32 %v4297, 16
      %v4567 = vor.u32 %v4564, %v4565
      %v4568 = vsel %vm419, %v4560, %v4567
      %v4569 = vrot.slane %v4564, 4
      %s4618 = scalar_lea.vmem [#allocation3], 12
      %v4619 = vld [vmem:[%s4618] sm:$0xf]
      %v4620 = vsel %vm742, %v4304, %v4619
      %4621 = vst [vmem:[%s4618] sm:$0xf] %v4620
      %4622 = vst [vmem:[%s4618 + $0x4] sm:$0xf] %v4313
      %v4623 = vld [vmem:[%s4618 + $0x8] sm:$0x1]
      %v4624 = vsel %vm275, %v4314, %v4623
      %4625 = vst [vmem:[%s4618 + $0x8] sm:$0x1] %v4624
      %v4626 = vld [vmem:[%s4618 + $0xc] sm:$0xf]
      %v4627 = vsel %vm742, %v4321, %v4626
      %4628 = vst [vmem:[%s4618 + $0xc] sm:$0xf] %v4627
      %4629 = vst [vmem:[%s4618 + $0x10] sm:$0xf] %v4330
      %v4630 = vld [vmem:[%s4618 + $0x14] sm:$0x1]
      %v4631 = vsel %vm275, %v4331, %v4630
      %4632 = vst [vmem:[%s4618 + $0x14] sm:$0x1] %v4631
      %v4633 = vld [vmem:[%s4618 + $0x18] sm:$0xf]
      %v4634 = vsel %vm742, %v4338, %v4633
      %4635 = vst [vmem:[%s4618 + $0x18] sm:$0xf] %v4634
      %4636 = vst [vmem:[%s4618 + $0x1c] sm:$0xf] %v4347
      %v4637 = vld [vmem:[%s4618 + $0x20] sm:$0x1]
      %v4638 = vsel %vm275, %v4348, %v4637
      %4639 = vst [vmem:[%s4618 + $0x20] sm:$0x1] %v4638
      %v4640 = vld [vmem:[%s4618 + $0x24] sm:$0xf]
      %v4641 = vsel %vm742, %v4355, %v4640
      %4642 = vst [vmem:[%s4618 + $0x24] sm:$0xf] %v4641
      %4643 = vst [vmem:[%s4618 + $0x28] sm:$0xf] %v4364
      %v4644 = vld [vmem:[%s4618 + $0x2c] sm:$0x1]
      %v4645 = vsel %vm275, %v4365, %v4644
      %4646 = vst [vmem:[%s4618 + $0x2c] sm:$0x1] %v4645
      %v4647 = vld [vmem:[%s4618 + $0x30] sm:$0xf]
      %v4648 = vsel %vm742, %v4372, %v4647
      %4649 = vst [vmem:[%s4618 + $0x30] sm:$0xf] %v4648
      %4650 = vst [vmem:[%s4618 + $0x34] sm:$0xf] %v4381
      %v4651 = vld [vmem:[%s4618 + $0x38] sm:$0x1]
      %v4652 = vsel %vm275, %v4382, %v4651
      %4653 = vst [vmem:[%s4618 + $0x38] sm:$0x1] %v4652
      %v4654 = vld [vmem:[%s4618 + $0x3c] sm:$0xf]
      %v4655 = vsel %vm742, %v4389, %v4654
      %4656 = vst [vmem:[%s4618 + $0x3c] sm:$0xf] %v4655
      %4657 = vst [vmem:[%s4618 + $0x40] sm:$0xf] %v4398
      %v4658 = vld [vmem:[%s4618 + $0x44] sm:$0x1]
      %v4659 = vsel %vm275, %v4399, %v4658
      %4660 = vst [vmem:[%s4618 + $0x44] sm:$0x1] %v4659
      %v4661 = vld [vmem:[%s4618 + $0x48] sm:$0xf]
      %v4662 = vsel %vm742, %v4406, %v4661
      %4663 = vst [vmem:[%s4618 + $0x48] sm:$0xf] %v4662
      %4664 = vst [vmem:[%s4618 + $0x4c] sm:$0xf] %v4415
      %v4665 = vld [vmem:[%s4618 + $0x50] sm:$0x1]
      %v4666 = vsel %vm275, %v4416, %v4665
      %4667 = vst [vmem:[%s4618 + $0x50] sm:$0x1] %v4666
      %v4668 = vld [vmem:[%s4618 + $0x54] sm:$0xf]
      %v4669 = vsel %vm742, %v4423, %v4668
      %4670 = vst [vmem:[%s4618 + $0x54] sm:$0xf] %v4669
      %4671 = vst [vmem:[%s4618 + $0x58] sm:$0xf] %v4432
      %v4672 = vld [vmem:[%s4618 + $0x5c] sm:$0x1]
      %v4673 = vsel %vm275, %v4433, %v4672
      %4674 = vst [vmem:[%s4618 + $0x5c] sm:$0x1] %v4673
      %v4675 = vld [vmem:[%s4618 + $0x60] sm:$0xf]
      %v4676 = vsel %vm742, %v4440, %v4675
      %4677 = vst [vmem:[%s4618 + $0x60] sm:$0xf] %v4676
      %4678 = vst [vmem:[%s4618 + $0x64] sm:$0xf] %v4449
      %v4679 = vld [vmem:[%s4618 + $0x68] sm:$0x1]
      %v4680 = vsel %vm275, %v4450, %v4679
      %4681 = vst [vmem:[%s4618 + $0x68] sm:$0x1] %v4680
      %v4682 = vld [vmem:[%s4618 + $0x6c] sm:$0xf]
      %v4683 = vsel %vm742, %v4457, %v4682
      %4684 = vst [vmem:[%s4618 + $0x6c] sm:$0xf] %v4683
      %4685 = vst [vmem:[%s4618 + $0x70] sm:$0xf] %v4466
      %v4686 = vld [vmem:[%s4618 + $0x74] sm:$0x1]
      %v4687 = vsel %vm275, %v4467, %v4686
      %4688 = vst [vmem:[%s4618 + $0x74] sm:$0x1] %v4687
      %v4689 = vld [vmem:[%s4618 + $0x78] sm:$0xf]
      %v4690 = vsel %vm742, %v4474, %v4689
      %4691 = vst [vmem:[%s4618 + $0x78] sm:$0xf] %v4690
      %4692 = vst [vmem:[%s4618 + $0x7c] sm:$0xf] %v4483
      %v4693 = vld [vmem:[%s4618 + $0x80] sm:$0x1]
      %v4694 = vsel %vm275, %v4484, %v4693
      %4695 = vst [vmem:[%s4618 + $0x80] sm:$0x1] %v4694
      %v4696 = vld [vmem:[%s4618 + $0x84] sm:$0xf]
      %v4697 = vsel %vm742, %v4491, %v4696
      %4698 = vst [vmem:[%s4618 + $0x84] sm:$0xf] %v4697
      %4699 = vst [vmem:[%s4618 + $0x88] sm:$0xf] %v4500
      %v4700 = vld [vmem:[%s4618 + $0x8c] sm:$0x1]
      %v4701 = vsel %vm275, %v4501, %v4700
      %4702 = vst [vmem:[%s4618 + $0x8c] sm:$0x1] %v4701
      %v4703 = vld [vmem:[%s4618 + $0x90] sm:$0xf]
      %v4704 = vsel %vm742, %v4508, %v4703
      %4705 = vst [vmem:[%s4618 + $0x90] sm:$0xf] %v4704
      %4706 = vst [vmem:[%s4618 + $0x94] sm:$0xf] %v4517
      %v4707 = vld [vmem:[%s4618 + $0x98] sm:$0x1]
      %v4708 = vsel %vm275, %v4518, %v4707
      %4709 = vst [vmem:[%s4618 + $0x98] sm:$0x1] %v4708
      %v4710 = vld [vmem:[%s4618 + $0x9c] sm:$0xf]
      %v4711 = vsel %vm742, %v4525, %v4710
      %4712 = vst [vmem:[%s4618 + $0x9c] sm:$0xf] %v4711
      %4713 = vst [vmem:[%s4618 + $0xa0] sm:$0xf] %v4534
      %v4714 = vld [vmem:[%s4618 + $0xa4] sm:$0x1]
      %v4715 = vsel %vm275, %v4535, %v4714
      %4716 = vst [vmem:[%s4618 + $0xa4] sm:$0x1] %v4715
      %v4717 = vld [vmem:[%s4618 + $0xa8] sm:$0xf]
      %v4718 = vsel %vm742, %v4542, %v4717
      %4719 = vst [vmem:[%s4618 + $0xa8] sm:$0xf] %v4718
      %4720 = vst [vmem:[%s4618 + $0xac] sm:$0xf] %v4551
      %v4721 = vld [vmem:[%s4618 + $0xb0] sm:$0x1]
      %v4722 = vsel %vm275, %v4552, %v4721
      %4723 = vst [vmem:[%s4618 + $0xb0] sm:$0x1] %v4722
      %v4724 = vld [vmem:[%s4618 + $0xb4] sm:$0xf]
      %v4725 = vsel %vm742, %v4559, %v4724
      %4726 = vst [vmem:[%s4618 + $0xb4] sm:$0xf] %v4725
      %4727 = vst [vmem:[%s4618 + $0xb8] sm:$0xf] %v4568
      %v4728 = vld [vmem:[%s4618 + $0xbc] sm:$0x1]
      %v4729 = vsel %vm275, %v4569, %v4728
      %4730 = vst [vmem:[%s4618 + $0xbc] sm:$0x1] %v4729
      %v4731 = vld [vmem:[#allocation3] sm:$0xf]
      %v4732 = vld [vmem:[#allocation3 + $0x4] sm:$0xf]
      %v4733 = vld [vmem:[#allocation3 + $0xc] sm:$0xf]
      %v4734 = vld [vmem:[#allocation3 + $0x10] sm:$0xf]
      %v4735 = vld [vmem:[#allocation3 + $0x18] sm:$0xf]
      %v4736 = vld [vmem:[#allocation3 + $0x1c] sm:$0xf]
      %v4737 = vld [vmem:[#allocation3 + $0x24] sm:$0xf]
      %v4738 = vld [vmem:[#allocation3 + $0x28] sm:$0xf]
      %v4739 = vld [vmem:[#allocation3 + $0x30] sm:$0xf]
      %v4740 = vld [vmem:[#allocation3 + $0x34] sm:$0xf]
      %v4741 = vld [vmem:[#allocation3 + $0x3c] sm:$0xf]
      %v4742 = vld [vmem:[#allocation3 + $0x40] sm:$0xf]
      %v4743 = vld [vmem:[#allocation3 + $0x48] sm:$0xf]
      %v4744 = vld [vmem:[#allocation3 + $0x4c] sm:$0xf]
      %v4745 = vld [vmem:[#allocation3 + $0x54] sm:$0xf]
      %v4746 = vld [vmem:[#allocation3 + $0x58] sm:$0xf]
      %v4747 = vld [vmem:[#allocation3 + $0x60] sm:$0xf]
      %v4748 = vld [vmem:[#allocation3 + $0x64] sm:$0xf]
      %v4749 = vld [vmem:[#allocation3 + $0x6c] sm:$0xf]
      %v4750 = vld [vmem:[#allocation3 + $0x70] sm:$0xf]
      %v4751 = vld [vmem:[#allocation3 + $0x78] sm:$0xf]
      %v4752 = vld [vmem:[#allocation3 + $0x7c] sm:$0xf]
      %v4753 = vld [vmem:[#allocation3 + $0x84] sm:$0xf]
      %v4754 = vld [vmem:[#allocation3 + $0x88] sm:$0xf]
      %v4755 = vld [vmem:[#allocation3 + $0x90] sm:$0xf]
      %v4756 = vld [vmem:[#allocation3 + $0x94] sm:$0xf]
      %v4757 = vld [vmem:[#allocation3 + $0x9c] sm:$0xf]
      %v4758 = vld [vmem:[#allocation3 + $0xa0] sm:$0xf]
      %v4759 = vld [vmem:[#allocation3 + $0xa8] sm:$0xf]
      %v4760 = vld [vmem:[#allocation3 + $0xac] sm:$0xf]
      %v4761 = vld [vmem:[#allocation3 + $0xb4] sm:$0xf]
      %v4762 = vld [vmem:[#allocation3 + $0xb8] sm:$0xf]
      %v4763 = vld [vmem:[#allocation3 + $0x8] sm:$0x1]
      %v4764 = vld [vmem:[#allocation3 + $0x14] sm:$0x1]
      %v4765 = vld [vmem:[#allocation3 + $0x20] sm:$0x1]
      %v4766 = vld [vmem:[#allocation3 + $0x2c] sm:$0x1]
      %v4767 = vld [vmem:[#allocation3 + $0x38] sm:$0x1]
      %v4768 = vld [vmem:[#allocation3 + $0x44] sm:$0x1]
      %v4769 = vld [vmem:[#allocation3 + $0x50] sm:$0x1]
      %v4770 = vld [vmem:[#allocation3 + $0x5c] sm:$0x1]
      %v4771 = vld [vmem:[#allocation3 + $0x68] sm:$0x1]
      %v4772 = vld [vmem:[#allocation3 + $0x74] sm:$0x1]
      %v4773 = vld [vmem:[#allocation3 + $0x80] sm:$0x1]
      %v4774 = vld [vmem:[#allocation3 + $0x8c] sm:$0x1]
      %v4775 = vld [vmem:[#allocation3 + $0x98] sm:$0x1]
      %v4776 = vld [vmem:[#allocation3 + $0xa4] sm:$0x1]
      %v4777 = vld [vmem:[#allocation3 + $0xb0] sm:$0x1]
      %v4778 = vld [vmem:[#allocation3 + $0xbc] sm:$0x1]
      %v4779 = vld [vmem:[#allocation3] sm:$0xe]
      %v4780 = vld [vmem:[#allocation3 + $0xc] sm:$0xe]
      %v4781 = vld [vmem:[#allocation3 + $0x18] sm:$0xe]
      %v4782 = vld [vmem:[#allocation3 + $0x24] sm:$0xe]
      %v4783 = vld [vmem:[#allocation3 + $0x30] sm:$0xe]
      %v4784 = vld [vmem:[#allocation3 + $0x3c] sm:$0xe]
      %v4785 = vld [vmem:[#allocation3 + $0x48] sm:$0xe]
      %v4786 = vld [vmem:[#allocation3 + $0x54] sm:$0xe]
      %v4787 = vld [vmem:[#allocation3 + $0x60] sm:$0xe]
      %v4788 = vld [vmem:[#allocation3 + $0x6c] sm:$0xe]
      %v4789 = vld [vmem:[#allocation3 + $0x78] sm:$0xe]
      %v4790 = vld [vmem:[#allocation3 + $0x84] sm:$0xe]
      %v4791 = vld [vmem:[#allocation3 + $0x90] sm:$0xe]
      %v4792 = vld [vmem:[#allocation3 + $0x9c] sm:$0xe]
      %v4793 = vld [vmem:[#allocation3 + $0xa8] sm:$0xe]
      %v4794 = vld [vmem:[#allocation3 + $0xb4] sm:$0xe]
      %v4827 = vunpack.c.l.b16 %v4731
      %v4828 = vunpack.c.l.b16 %v4732
      %v4829 = vunpack.c.l.b16 %v4733
      %v4830 = vunpack.c.l.b16 %v4734
      %v4831 = vunpack.c.l.b16 %v4735
      %v4832 = vunpack.c.l.b16 %v4736
      %v4833 = vunpack.c.l.b16 %v4737
      %v4834 = vunpack.c.l.b16 %v4738
      %v4835 = vunpack.c.l.b16 %v4739
      %v4836 = vunpack.c.l.b16 %v4740
      %v4837 = vunpack.c.l.b16 %v4741
      %v4838 = vunpack.c.l.b16 %v4742
      %v4839 = vunpack.c.l.b16 %v4743
      %v4840 = vunpack.c.l.b16 %v4744
      %v4841 = vunpack.c.l.b16 %v4745
      %v4842 = vunpack.c.l.b16 %v4746
      %v4843 = vunpack.c.l.b16 %v4747
      %v4844 = vunpack.c.l.b16 %v4748
      %v4845 = vunpack.c.l.b16 %v4749
      %v4846 = vunpack.c.l.b16 %v4750
      %v4847 = vunpack.c.l.b16 %v4751
      %v4848 = vunpack.c.l.b16 %v4752
      %v4849 = vunpack.c.l.b16 %v4753
      %v4850 = vunpack.c.l.b16 %v4754
      %v4851 = vunpack.c.l.b16 %v4755
      %v4852 = vunpack.c.l.b16 %v4756
      %v4853 = vunpack.c.l.b16 %v4757
      %v4854 = vunpack.c.l.b16 %v4758
      %v4855 = vunpack.c.l.b16 %v4759
      %v4856 = vunpack.c.l.b16 %v4760
      %v4857 = vunpack.c.l.b16 %v4761
      %v4858 = vunpack.c.l.b16 %v4762
      %v4859 = vpack.c.b16 %v4828, %v4827
      %v4860 = vpack.c.b16 %v4830, %v4829
      %v4861 = vpack.c.b16 %v4832, %v4831
      %v4862 = vpack.c.b16 %v4834, %v4833
      %v4863 = vpack.c.b16 %v4836, %v4835
      %v4864 = vpack.c.b16 %v4838, %v4837
      %v4865 = vpack.c.b16 %v4840, %v4839
      %v4866 = vpack.c.b16 %v4842, %v4841
      %v4867 = vpack.c.b16 %v4844, %v4843
      %v4868 = vpack.c.b16 %v4846, %v4845
      %v4869 = vpack.c.b16 %v4848, %v4847
      %v4870 = vpack.c.b16 %v4850, %v4849
      %v4871 = vpack.c.b16 %v4852, %v4851
      %v4872 = vpack.c.b16 %v4854, %v4853
      %v4873 = vpack.c.b16 %v4856, %v4855
      %v4874 = vpack.c.b16 %v4858, %v4857
      %v4907 = vunpack.c.l.b16 %v4763
      %v4908 = vunpack.c.l.b16 %v4764
      %v4909 = vunpack.c.l.b16 %v4765
      %v4910 = vunpack.c.l.b16 %v4766
      %v4911 = vunpack.c.l.b16 %v4767
      %v4912 = vunpack.c.l.b16 %v4768
      %v4913 = vunpack.c.l.b16 %v4769
      %v4914 = vunpack.c.l.b16 %v4770
      %v4915 = vunpack.c.l.b16 %v4771
      %v4916 = vunpack.c.l.b16 %v4772
      %v4917 = vunpack.c.l.b16 %v4773
      %v4918 = vunpack.c.l.b16 %v4774
      %v4919 = vunpack.c.l.b16 %v4775
      %v4920 = vunpack.c.l.b16 %v4776
      %v4921 = vunpack.c.l.b16 %v4777
      %v4922 = vunpack.c.l.b16 %v4778
      %v4923 = vpack.c.b16 %v4907, %v4907
      %v4924 = vpack.c.b16 %v4908, %v4908
      %v4925 = vpack.c.b16 %v4909, %v4909
      %v4926 = vpack.c.b16 %v4910, %v4910
      %v4927 = vpack.c.b16 %v4911, %v4911
      %v4928 = vpack.c.b16 %v4912, %v4912
      %v4929 = vpack.c.b16 %v4913, %v4913
      %v4930 = vpack.c.b16 %v4914, %v4914
      %v4931 = vpack.c.b16 %v4915, %v4915
      %v4932 = vpack.c.b16 %v4916, %v4916
      %v4933 = vpack.c.b16 %v4917, %v4917
      %v4934 = vpack.c.b16 %v4918, %v4918
      %v4935 = vpack.c.b16 %v4919, %v4919
      %v4936 = vpack.c.b16 %v4920, %v4920
      %v4937 = vpack.c.b16 %v4921, %v4921
      %v4938 = vpack.c.b16 %v4922, %v4922
      %v4940 = vshrl.u32 %v4859, 16
      %v4942 = vshll.u32 %v4859, 16
      %v4944 = vrot.slane %v4942, 1
      %v4945 = vor.u32 %v4940, %v4944
      %v4947 = vshll.u32 %v4923, 16
      %v4949 = vrot.slane %v4947, 1
      %v4950 = vsel %vm1063, %v4945, %v4949
      %v4952 = vshrl.u32 %v4860, 16
      %v4954 = vshll.u32 %v4860, 16
      %v4956 = vrot.slane %v4954, 1
      %v4957 = vor.u32 %v4952, %v4956
      %v4959 = vshll.u32 %v4924, 16
      %v4961 = vrot.slane %v4959, 1
      %v4962 = vsel %vm1063, %v4957, %v4961
      %v4964 = vshrl.u32 %v4861, 16
      %v4966 = vshll.u32 %v4861, 16
      %v4968 = vrot.slane %v4966, 1
      %v4969 = vor.u32 %v4964, %v4968
      %v4971 = vshll.u32 %v4925, 16
      %v4973 = vrot.slane %v4971, 1
      %v4974 = vsel %vm1063, %v4969, %v4973
      %v4976 = vshrl.u32 %v4862, 16
      %v4978 = vshll.u32 %v4862, 16
      %v4980 = vrot.slane %v4978, 1
      %v4981 = vor.u32 %v4976, %v4980
      %v4983 = vshll.u32 %v4926, 16
      %v4985 = vrot.slane %v4983, 1
      %v4986 = vsel %vm1063, %v4981, %v4985
      %v4988 = vshrl.u32 %v4863, 16
      %v4990 = vshll.u32 %v4863, 16
      %v4992 = vrot.slane %v4990, 1
      %v4993 = vor.u32 %v4988, %v4992
      %v4995 = vshll.u32 %v4927, 16
      %v4997 = vrot.slane %v4995, 1
      %v4998 = vsel %vm1063, %v4993, %v4997
      %v5000 = vshrl.u32 %v4864, 16
      %v5002 = vshll.u32 %v4864, 16
      %v5004 = vrot.slane %v5002, 1
      %v5005 = vor.u32 %v5000, %v5004
      %v5007 = vshll.u32 %v4928, 16
      %v5009 = vrot.slane %v5007, 1
      %v5010 = vsel %vm1063, %v5005, %v5009
      %v5012 = vshrl.u32 %v4865, 16
      %v5014 = vshll.u32 %v4865, 16
      %v5016 = vrot.slane %v5014, 1
      %v5017 = vor.u32 %v5012, %v5016
      %v5019 = vshll.u32 %v4929, 16
      %v5021 = vrot.slane %v5019, 1
      %v5022 = vsel %vm1063, %v5017, %v5021
      %v5024 = vshrl.u32 %v4866, 16
      %v5026 = vshll.u32 %v4866, 16
      %v5028 = vrot.slane %v5026, 1
      %v5029 = vor.u32 %v5024, %v5028
      %v5031 = vshll.u32 %v4930, 16
      %v5033 = vrot.slane %v5031, 1
      %v5034 = vsel %vm1063, %v5029, %v5033
      %v5036 = vshrl.u32 %v4867, 16
      %v5038 = vshll.u32 %v4867, 16
      %v5040 = vrot.slane %v5038, 1
      %v5041 = vor.u32 %v5036, %v5040
      %v5043 = vshll.u32 %v4931, 16
      %v5045 = vrot.slane %v5043, 1
      %v5046 = vsel %vm1063, %v5041, %v5045
      %v5048 = vshrl.u32 %v4868, 16
      %v5050 = vshll.u32 %v4868, 16
      %v5052 = vrot.slane %v5050, 1
      %v5053 = vor.u32 %v5048, %v5052
      %v5055 = vshll.u32 %v4932, 16
      %v5057 = vrot.slane %v5055, 1
      %v5058 = vsel %vm1063, %v5053, %v5057
      %v5060 = vshrl.u32 %v4869, 16
      %v5062 = vshll.u32 %v4869, 16
      %v5064 = vrot.slane %v5062, 1
      %v5065 = vor.u32 %v5060, %v5064
      %v5067 = vshll.u32 %v4933, 16
      %v5069 = vrot.slane %v5067, 1
      %v5070 = vsel %vm1063, %v5065, %v5069
      %v5072 = vshrl.u32 %v4870, 16
      %v5074 = vshll.u32 %v4870, 16
      %v5076 = vrot.slane %v5074, 1
      %v5077 = vor.u32 %v5072, %v5076
      %v5079 = vshll.u32 %v4934, 16
      %v5081 = vrot.slane %v5079, 1
      %v5082 = vsel %vm1063, %v5077, %v5081
      %v5084 = vshrl.u32 %v4871, 16
      %v5086 = vshll.u32 %v4871, 16
      %v5088 = vrot.slane %v5086, 1
      %v5089 = vor.u32 %v5084, %v5088
      %v5091 = vshll.u32 %v4935, 16
      %v5093 = vrot.slane %v5091, 1
      %v5094 = vsel %vm1063, %v5089, %v5093
      %v5096 = vshrl.u32 %v4872, 16
      %v5098 = vshll.u32 %v4872, 16
      %v5100 = vrot.slane %v5098, 1
      %v5101 = vor.u32 %v5096, %v5100
      %v5103 = vshll.u32 %v4936, 16
      %v5105 = vrot.slane %v5103, 1
      %v5106 = vsel %vm1063, %v5101, %v5105
      %v5108 = vshrl.u32 %v4873, 16
      %v5110 = vshll.u32 %v4873, 16
      %v5112 = vrot.slane %v5110, 1
      %v5113 = vor.u32 %v5108, %v5112
      %v5115 = vshll.u32 %v4937, 16
      %v5117 = vrot.slane %v5115, 1
      %v5118 = vsel %vm1063, %v5113, %v5117
      %v5120 = vshrl.u32 %v4874, 16
      %v5122 = vshll.u32 %v4874, 16
      %v5124 = vrot.slane %v5122, 1
      %v5125 = vor.u32 %v5120, %v5124
      %v5127 = vshll.u32 %v4938, 16
      %v5129 = vrot.slane %v5127, 1
      %v5130 = vsel %vm1063, %v5125, %v5129
      %v5163 = vunpack.c.l.b16 %v4779
      %v5164 = vunpack.c.l.b16 %v4780
      %v5165 = vunpack.c.l.b16 %v4781
      %v5166 = vunpack.c.l.b16 %v4782
      %v5167 = vunpack.c.l.b16 %v4783
      %v5168 = vunpack.c.l.b16 %v4784
      %v5169 = vunpack.c.l.b16 %v4785
      %v5170 = vunpack.c.l.b16 %v4786
      %v5171 = vunpack.c.l.b16 %v4787
      %v5172 = vunpack.c.l.b16 %v4788
      %v5173 = vunpack.c.l.b16 %v4789
      %v5174 = vunpack.c.l.b16 %v4790
      %v5175 = vunpack.c.l.b16 %v4791
      %v5176 = vunpack.c.l.b16 %v4792
      %v5177 = vunpack.c.l.b16 %v4793
      %v5178 = vunpack.c.l.b16 %v4794
      %v5179 = vpack.c.b16 %v4828, %v5163
      %v5180 = vpack.c.b16 %v4830, %v5164
      %v5181 = vpack.c.b16 %v4832, %v5165
      %v5182 = vpack.c.b16 %v4834, %v5166
      %v5183 = vpack.c.b16 %v4836, %v5167
      %v5184 = vpack.c.b16 %v4838, %v5168
      %v5185 = vpack.c.b16 %v4840, %v5169
      %v5186 = vpack.c.b16 %v4842, %v5170
      %v5187 = vpack.c.b16 %v4844, %v5171
      %v5188 = vpack.c.b16 %v4846, %v5172
      %v5189 = vpack.c.b16 %v4848, %v5173
      %v5190 = vpack.c.b16 %v4850, %v5174
      %v5191 = vpack.c.b16 %v4852, %v5175
      %v5192 = vpack.c.b16 %v4854, %v5176
      %v5193 = vpack.c.b16 %v4856, %v5177
      %v5194 = vpack.c.b16 %v4858, %v5178
      %v5195 = vrot.slane %v5179, 1
      %v5196 = vrot.slane %v4923, 1
      %v5197 = vsel %vm1320, %v5195, %v5196
      %v5198 = vrot.slane %v5180, 1
      %v5199 = vrot.slane %v4924, 1
      %v5200 = vsel %vm1320, %v5198, %v5199
      %v5201 = vrot.slane %v5181, 1
      %v5202 = vrot.slane %v4925, 1
      %v5203 = vsel %vm1320, %v5201, %v5202
      %v5204 = vrot.slane %v5182, 1
      %v5205 = vrot.slane %v4926, 1
      %v5206 = vsel %vm1320, %v5204, %v5205
      %v5207 = vrot.slane %v5183, 1
      %v5208 = vrot.slane %v4927, 1
      %v5209 = vsel %vm1320, %v5207, %v5208
      %v5210 = vrot.slane %v5184, 1
      %v5211 = vrot.slane %v4928, 1
      %v5212 = vsel %vm1320, %v5210, %v5211
      %v5213 = vrot.slane %v5185, 1
      %v5214 = vrot.slane %v4929, 1
      %v5215 = vsel %vm1320, %v5213, %v5214
      %v5216 = vrot.slane %v5186, 1
      %v5217 = vrot.slane %v4930, 1
      %v5218 = vsel %vm1320, %v5216, %v5217
      %v5219 = vrot.slane %v5187, 1
      %v5220 = vrot.slane %v4931, 1
      %v5221 = vsel %vm1320, %v5219, %v5220
      %v5222 = vrot.slane %v5188, 1
      %v5223 = vrot.slane %v4932, 1
      %v5224 = vsel %vm1320, %v5222, %v5223
      %v5225 = vrot.slane %v5189, 1
      %v5226 = vrot.slane %v4933, 1
      %v5227 = vsel %vm1320, %v5225, %v5226
      %v5228 = vrot.slane %v5190, 1
      %v5229 = vrot.slane %v4934, 1
      %v5230 = vsel %vm1320, %v5228, %v5229
      %v5231 = vrot.slane %v5191, 1
      %v5232 = vrot.slane %v4935, 1
      %v5233 = vsel %vm1320, %v5231, %v5232
      %v5234 = vrot.slane %v5192, 1
      %v5235 = vrot.slane %v4936, 1
      %v5236 = vsel %vm1320, %v5234, %v5235
      %v5237 = vrot.slane %v5193, 1
      %v5238 = vrot.slane %v4937, 1
      %v5239 = vsel %vm1320, %v5237, %v5238
      %v5240 = vrot.slane %v5194, 1
      %v5241 = vrot.slane %v4938, 1
      %v5242 = vsel %vm1320, %v5240, %v5241
      %v5259 = vld [vmem:[%s3] sm:$0xf]
      %v5260 = vld [vmem:[%s3 + $0x4] sm:$0xf]
      %v5261 = vld [vmem:[%s3 + $0x8] sm:$0xf]
      %v5262 = vld [vmem:[%s3 + $0xc] sm:$0xf]
      %v5263 = vld [vmem:[%s3 + $0x10] sm:$0xf]
      %v5264 = vld [vmem:[%s3 + $0x14] sm:$0xf]
      %v5265 = vld [vmem:[%s3 + $0x18] sm:$0xf]
      %v5266 = vld [vmem:[%s3 + $0x1c] sm:$0xf]
      %v5267 = vld [vmem:[%s3 + $0x20] sm:$0xf]
      %v5268 = vld [vmem:[%s3 + $0x24] sm:$0xf]
      %v5269 = vld [vmem:[%s3 + $0x28] sm:$0xf]
      %v5270 = vld [vmem:[%s3 + $0x2c] sm:$0xf]
      %v5271 = vld [vmem:[%s3 + $0x30] sm:$0xf]
      %v5272 = vld [vmem:[%s3 + $0x34] sm:$0xf]
      %v5273 = vld [vmem:[%s3 + $0x38] sm:$0xf]
      %v5274 = vld [vmem:[%s3 + $0x3c] sm:$0xf]
      %v5275 = vld [vmem:[%s3 + $0x40] sm:$0xf]
      %v5276 = vld [vmem:[%s3 + $0x44] sm:$0xf]
      %v5277 = vld [vmem:[%s3 + $0x48] sm:$0xf]
      %v5278 = vld [vmem:[%s3 + $0x4c] sm:$0xf]
      %v5279 = vld [vmem:[%s3 + $0x50] sm:$0xf]
      %v5280 = vld [vmem:[%s3 + $0x54] sm:$0xf]
      %v5281 = vld [vmem:[%s3 + $0x58] sm:$0xf]
      %v5282 = vld [vmem:[%s3 + $0x5c] sm:$0xf]
      %v5283 = vld [vmem:[%s3 + $0x60] sm:$0xf]
      %v5284 = vld [vmem:[%s3 + $0x64] sm:$0xf]
      %v5285 = vld [vmem:[%s3 + $0x68] sm:$0xf]
      %v5286 = vld [vmem:[%s3 + $0x6c] sm:$0xf]
      %v5287 = vld [vmem:[%s3 + $0x70] sm:$0xf]
      %v5288 = vld [vmem:[%s3 + $0x74] sm:$0xf]
      %v5289 = vld [vmem:[%s3 + $0x78] sm:$0xf]
      %v5290 = vld [vmem:[%s3 + $0x7c] sm:$0xf]
      %v5291 = vld [vmem:[%s3 + $0x80] sm:$0xf]
      %v5292 = vld [vmem:[%s3 + $0x84] sm:$0xf]
      %v5293 = vld [vmem:[%s3 + $0x88] sm:$0xf]
      %v5294 = vld [vmem:[%s3 + $0x8c] sm:$0xf]
      %v5295 = vld [vmem:[%s3 + $0x90] sm:$0xf]
      %v5296 = vld [vmem:[%s3 + $0x94] sm:$0xf]
      %v5297 = vld [vmem:[%s3 + $0x98] sm:$0xf]
      %v5298 = vld [vmem:[%s3 + $0x9c] sm:$0xf]
      %v5299 = vld [vmem:[%s3 + $0xa0] sm:$0xf]
      %v5300 = vld [vmem:[%s3 + $0xa4] sm:$0xf]
      %v5301 = vld [vmem:[%s3 + $0xa8] sm:$0xf]
      %v5302 = vld [vmem:[%s3 + $0xac] sm:$0xf]
      %v5303 = vld [vmem:[%s3 + $0xb0] sm:$0xf]
      %v5304 = vld [vmem:[%s3 + $0xb4] sm:$0xf]
      %v5305 = vld [vmem:[%s3 + $0xb8] sm:$0xf]
      %v5306 = vld [vmem:[%s3 + $0xbc] sm:$0xf]
      %v5307 = vld [vmem:[%s4618] sm:$0xf]
      %v5308 = vld [vmem:[%s4618 + $0x4] sm:$0xf]
      %v5309 = vld [vmem:[%s4618 + $0xc] sm:$0xf]
      %v5310 = vld [vmem:[%s4618 + $0x10] sm:$0xf]
      %v5311 = vld [vmem:[%s4618 + $0x18] sm:$0xf]
      %v5312 = vld [vmem:[%s4618 + $0x1c] sm:$0xf]
      %v5313 = vld [vmem:[%s4618 + $0x24] sm:$0xf]
      %v5314 = vld [vmem:[%s4618 + $0x28] sm:$0xf]
      %v5315 = vld [vmem:[%s4618 + $0x30] sm:$0xf]
      %v5316 = vld [vmem:[%s4618 + $0x34] sm:$0xf]
      %v5317 = vld [vmem:[%s4618 + $0x3c] sm:$0xf]
      %v5318 = vld [vmem:[%s4618 + $0x40] sm:$0xf]
      %v5319 = vld [vmem:[%s4618 + $0x48] sm:$0xf]
      %v5320 = vld [vmem:[%s4618 + $0x4c] sm:$0xf]
      %v5321 = vld [vmem:[%s4618 + $0x54] sm:$0xf]
      %v5322 = vld [vmem:[%s4618 + $0x58] sm:$0xf]
      %v5323 = vld [vmem:[%s4618 + $0x60] sm:$0xf]
      %v5324 = vld [vmem:[%s4618 + $0x64] sm:$0xf]
      %v5325 = vld [vmem:[%s4618 + $0x6c] sm:$0xf]
      %v5326 = vld [vmem:[%s4618 + $0x70] sm:$0xf]
      %v5327 = vld [vmem:[%s4618 + $0x78] sm:$0xf]
      %v5328 = vld [vmem:[%s4618 + $0x7c] sm:$0xf]
      %v5329 = vld [vmem:[%s4618 + $0x84] sm:$0xf]
      %v5330 = vld [vmem:[%s4618 + $0x88] sm:$0xf]
      %v5331 = vld [vmem:[%s4618 + $0x90] sm:$0xf]
      %v5332 = vld [vmem:[%s4618 + $0x94] sm:$0xf]
      %v5333 = vld [vmem:[%s4618 + $0x9c] sm:$0xf]
      %v5334 = vld [vmem:[%s4618 + $0xa0] sm:$0xf]
      %v5335 = vld [vmem:[%s4618 + $0xa8] sm:$0xf]
      %v5336 = vld [vmem:[%s4618 + $0xac] sm:$0xf]
      %v5337 = vld [vmem:[%s4618 + $0xb4] sm:$0xf]
      %v5338 = vld [vmem:[%s4618 + $0xb8] sm:$0xf]
      %v5339 = vld [vmem:[%s4618 + $0x8] sm:$0x1]
      %v5340 = vld [vmem:[%s4618 + $0x14] sm:$0x1]
      %v5341 = vld [vmem:[%s4618 + $0x20] sm:$0x1]
      %v5342 = vld [vmem:[%s4618 + $0x2c] sm:$0x1]
      %v5343 = vld [vmem:[%s4618 + $0x38] sm:$0x1]
      %v5344 = vld [vmem:[%s4618 + $0x44] sm:$0x1]
      %v5345 = vld [vmem:[%s4618 + $0x50] sm:$0x1]
      %v5346 = vld [vmem:[%s4618 + $0x5c] sm:$0x1]
      %v5347 = vld [vmem:[%s4618 + $0x68] sm:$0x1]
      %v5348 = vld [vmem:[%s4618 + $0x74] sm:$0x1]
      %v5349 = vld [vmem:[%s4618 + $0x80] sm:$0x1]
      %v5350 = vld [vmem:[%s4618 + $0x8c] sm:$0x1]
      %v5351 = vld [vmem:[%s4618 + $0x98] sm:$0x1]
      %v5352 = vld [vmem:[%s4618 + $0xa4] sm:$0x1]
      %v5353 = vld [vmem:[%s4618 + $0xb0] sm:$0x1]
      %v5354 = vld [vmem:[%s4618 + $0xbc] sm:$0x1]
      %v5355 = vld [vmem:[%s4618] sm:$0xe]
      %v5356 = vld [vmem:[%s4618 + $0xc] sm:$0xe]
      %v5357 = vld [vmem:[%s4618 + $0x18] sm:$0xe]
      %v5358 = vld [vmem:[%s4618 + $0x24] sm:$0xe]
      %v5359 = vld [vmem:[%s4618 + $0x30] sm:$0xe]
      %v5360 = vld [vmem:[%s4618 + $0x3c] sm:$0xe]
      %v5361 = vld [vmem:[%s4618 + $0x48] sm:$0xe]
      %v5362 = vld [vmem:[%s4618 + $0x54] sm:$0xe]
      %v5363 = vld [vmem:[%s4618 + $0x60] sm:$0xe]
      %v5364 = vld [vmem:[%s4618 + $0x6c] sm:$0xe]
      %v5365 = vld [vmem:[%s4618 + $0x78] sm:$0xe]
      %v5366 = vld [vmem:[%s4618 + $0x84] sm:$0xe]
      %v5367 = vld [vmem:[%s4618 + $0x90] sm:$0xe]
      %v5368 = vld [vmem:[%s4618 + $0x9c] sm:$0xe]
      %v5369 = vld [vmem:[%s4618 + $0xa8] sm:$0xe]
      %v5370 = vld [vmem:[%s4618 + $0xb4] sm:$0xe]
      %v5403 = vunpack.c.l.b16 %v5307
      %v5404 = vunpack.c.l.b16 %v5308
      %v5405 = vunpack.c.l.b16 %v5309
      %v5406 = vunpack.c.l.b16 %v5310
      %v5407 = vunpack.c.l.b16 %v5311
      %v5408 = vunpack.c.l.b16 %v5312
      %v5409 = vunpack.c.l.b16 %v5313
      %v5410 = vunpack.c.l.b16 %v5314
      %v5411 = vunpack.c.l.b16 %v5315
      %v5412 = vunpack.c.l.b16 %v5316
      %v5413 = vunpack.c.l.b16 %v5317
      %v5414 = vunpack.c.l.b16 %v5318
      %v5415 = vunpack.c.l.b16 %v5319
      %v5416 = vunpack.c.l.b16 %v5320
      %v5417 = vunpack.c.l.b16 %v5321
      %v5418 = vunpack.c.l.b16 %v5322
      %v5419 = vunpack.c.l.b16 %v5323
      %v5420 = vunpack.c.l.b16 %v5324
      %v5421 = vunpack.c.l.b16 %v5325
      %v5422 = vunpack.c.l.b16 %v5326
      %v5423 = vunpack.c.l.b16 %v5327
      %v5424 = vunpack.c.l.b16 %v5328
      %v5425 = vunpack.c.l.b16 %v5329
      %v5426 = vunpack.c.l.b16 %v5330
      %v5427 = vunpack.c.l.b16 %v5331
      %v5428 = vunpack.c.l.b16 %v5332
      %v5429 = vunpack.c.l.b16 %v5333
      %v5430 = vunpack.c.l.b16 %v5334
      %v5431 = vunpack.c.l.b16 %v5335
      %v5432 = vunpack.c.l.b16 %v5336
      %v5433 = vunpack.c.l.b16 %v5337
      %v5434 = vunpack.c.l.b16 %v5338
      %v5435 = vpack.c.b16 %v5404, %v5403
      %v5436 = vpack.c.b16 %v5406, %v5405
      %v5437 = vpack.c.b16 %v5408, %v5407
      %v5438 = vpack.c.b16 %v5410, %v5409
      %v5439 = vpack.c.b16 %v5412, %v5411
      %v5440 = vpack.c.b16 %v5414, %v5413
      %v5441 = vpack.c.b16 %v5416, %v5415
      %v5442 = vpack.c.b16 %v5418, %v5417
      %v5443 = vpack.c.b16 %v5420, %v5419
      %v5444 = vpack.c.b16 %v5422, %v5421
      %v5445 = vpack.c.b16 %v5424, %v5423
      %v5446 = vpack.c.b16 %v5426, %v5425
      %v5447 = vpack.c.b16 %v5428, %v5427
      %v5448 = vpack.c.b16 %v5430, %v5429
      %v5449 = vpack.c.b16 %v5432, %v5431
      %v5450 = vpack.c.b16 %v5434, %v5433
      %v5483 = vunpack.c.l.b16 %v5339
      %v5484 = vunpack.c.l.b16 %v5340
      %v5485 = vunpack.c.l.b16 %v5341
      %v5486 = vunpack.c.l.b16 %v5342
      %v5487 = vunpack.c.l.b16 %v5343
      %v5488 = vunpack.c.l.b16 %v5344
      %v5489 = vunpack.c.l.b16 %v5345
      %v5490 = vunpack.c.l.b16 %v5346
      %v5491 = vunpack.c.l.b16 %v5347
      %v5492 = vunpack.c.l.b16 %v5348
      %v5493 = vunpack.c.l.b16 %v5349
      %v5494 = vunpack.c.l.b16 %v5350
      %v5495 = vunpack.c.l.b16 %v5351
      %v5496 = vunpack.c.l.b16 %v5352
      %v5497 = vunpack.c.l.b16 %v5353
      %v5498 = vunpack.c.l.b16 %v5354
      %v5499 = vpack.c.b16 %v5483, %v5483
      %v5500 = vpack.c.b16 %v5484, %v5484
      %v5501 = vpack.c.b16 %v5485, %v5485
      %v5502 = vpack.c.b16 %v5486, %v5486
      %v5503 = vpack.c.b16 %v5487, %v5487
      %v5504 = vpack.c.b16 %v5488, %v5488
      %v5505 = vpack.c.b16 %v5489, %v5489
      %v5506 = vpack.c.b16 %v5490, %v5490
      %v5507 = vpack.c.b16 %v5491, %v5491
      %v5508 = vpack.c.b16 %v5492, %v5492
      %v5509 = vpack.c.b16 %v5493, %v5493
      %v5510 = vpack.c.b16 %v5494, %v5494
      %v5511 = vpack.c.b16 %v5495, %v5495
      %v5512 = vpack.c.b16 %v5496, %v5496
      %v5513 = vpack.c.b16 %v5497, %v5497
      %v5514 = vpack.c.b16 %v5498, %v5498
      %v5516 = vshrl.u32 %v5435, 16
      %v5518 = vshll.u32 %v5435, 16
      %v5520 = vrot.slane %v5518, 1
      %v5521 = vor.u32 %v5516, %v5520
      %v5523 = vshll.u32 %v5499, 16
      %v5525 = vrot.slane %v5523, 1
      %v5526 = vsel %vm1063, %v5521, %v5525
      %v5528 = vshrl.u32 %v5436, 16
      %v5530 = vshll.u32 %v5436, 16
      %v5532 = vrot.slane %v5530, 1
      %v5533 = vor.u32 %v5528, %v5532
      %v5535 = vshll.u32 %v5500, 16
      %v5537 = vrot.slane %v5535, 1
      %v5538 = vsel %vm1063, %v5533, %v5537
      %v5540 = vshrl.u32 %v5437, 16
      %v5542 = vshll.u32 %v5437, 16
      %v5544 = vrot.slane %v5542, 1
      %v5545 = vor.u32 %v5540, %v5544
      %v5547 = vshll.u32 %v5501, 16
      %v5549 = vrot.slane %v5547, 1
      %v5550 = vsel %vm1063, %v5545, %v5549
      %v5552 = vshrl.u32 %v5438, 16
      %v5554 = vshll.u32 %v5438, 16
      %v5556 = vrot.slane %v5554, 1
      %v5557 = vor.u32 %v5552, %v5556
      %v5559 = vshll.u32 %v5502, 16
      %v5561 = vrot.slane %v5559, 1
      %v5562 = vsel %vm1063, %v5557, %v5561
      %v5564 = vshrl.u32 %v5439, 16
      %v5566 = vshll.u32 %v5439, 16
      %v5568 = vrot.slane %v5566, 1
      %v5569 = vor.u32 %v5564, %v5568
      %v5571 = vshll.u32 %v5503, 16
      %v5573 = vrot.slane %v5571, 1
      %v5574 = vsel %vm1063, %v5569, %v5573
      %v5576 = vshrl.u32 %v5440, 16
      %v5578 = vshll.u32 %v5440, 16
      %v5580 = vrot.slane %v5578, 1
      %v5581 = vor.u32 %v5576, %v5580
      %v5583 = vshll.u32 %v5504, 16
      %v5585 = vrot.slane %v5583, 1
      %v5586 = vsel %vm1063, %v5581, %v5585
      %v5588 = vshrl.u32 %v5441, 16
      %v5590 = vshll.u32 %v5441, 16
      %v5592 = vrot.slane %v5590, 1
      %v5593 = vor.u32 %v5588, %v5592
      %v5595 = vshll.u32 %v5505, 16
      %v5597 = vrot.slane %v5595, 1
      %v5598 = vsel %vm1063, %v5593, %v5597
      %v5600 = vshrl.u32 %v5442, 16
      %v5602 = vshll.u32 %v5442, 16
      %v5604 = vrot.slane %v5602, 1
      %v5605 = vor.u32 %v5600, %v5604
      %v5607 = vshll.u32 %v5506, 16
      %v5609 = vrot.slane %v5607, 1
      %v5610 = vsel %vm1063, %v5605, %v5609
      %v5612 = vshrl.u32 %v5443, 16
      %v5614 = vshll.u32 %v5443, 16
      %v5616 = vrot.slane %v5614, 1
      %v5617 = vor.u32 %v5612, %v5616
      %v5619 = vshll.u32 %v5507, 16
      %v5621 = vrot.slane %v5619, 1
      %v5622 = vsel %vm1063, %v5617, %v5621
      %v5624 = vshrl.u32 %v5444, 16
      %v5626 = vshll.u32 %v5444, 16
      %v5628 = vrot.slane %v5626, 1
      %v5629 = vor.u32 %v5624, %v5628
      %v5631 = vshll.u32 %v5508, 16
      %v5633 = vrot.slane %v5631, 1
      %v5634 = vsel %vm1063, %v5629, %v5633
      %v5636 = vshrl.u32 %v5445, 16
      %v5638 = vshll.u32 %v5445, 16
      %v5640 = vrot.slane %v5638, 1
      %v5641 = vor.u32 %v5636, %v5640
      %v5643 = vshll.u32 %v5509, 16
      %v5645 = vrot.slane %v5643, 1
      %v5646 = vsel %vm1063, %v5641, %v5645
      %v5648 = vshrl.u32 %v5446, 16
      %v5650 = vshll.u32 %v5446, 16
      %v5652 = vrot.slane %v5650, 1
      %v5653 = vor.u32 %v5648, %v5652
      %v5655 = vshll.u32 %v5510, 16
      %v5657 = vrot.slane %v5655, 1
      %v5658 = vsel %vm1063, %v5653, %v5657
      %v5660 = vshrl.u32 %v5447, 16
      %v5662 = vshll.u32 %v5447, 16
      %v5664 = vrot.slane %v5662, 1
      %v5665 = vor.u32 %v5660, %v5664
      %v5667 = vshll.u32 %v5511, 16
      %v5669 = vrot.slane %v5667, 1
      %v5670 = vsel %vm1063, %v5665, %v5669
      %v5672 = vshrl.u32 %v5448, 16
      %v5674 = vshll.u32 %v5448, 16
      %v5676 = vrot.slane %v5674, 1
      %v5677 = vor.u32 %v5672, %v5676
      %v5679 = vshll.u32 %v5512, 16
      %v5681 = vrot.slane %v5679, 1
      %v5682 = vsel %vm1063, %v5677, %v5681
      %v5684 = vshrl.u32 %v5449, 16
      %v5686 = vshll.u32 %v5449, 16
      %v5688 = vrot.slane %v5686, 1
      %v5689 = vor.u32 %v5684, %v5688
      %v5691 = vshll.u32 %v5513, 16
      %v5693 = vrot.slane %v5691, 1
      %v5694 = vsel %vm1063, %v5689, %v5693
      %v5696 = vshrl.u32 %v5450, 16
      %v5698 = vshll.u32 %v5450, 16
      %v5700 = vrot.slane %v5698, 1
      %v5701 = vor.u32 %v5696, %v5700
      %v5703 = vshll.u32 %v5514, 16
      %v5705 = vrot.slane %v5703, 1
      %v5706 = vsel %vm1063, %v5701, %v5705
      %v5739 = vunpack.c.l.b16 %v5355
      %v5740 = vunpack.c.l.b16 %v5356
      %v5741 = vunpack.c.l.b16 %v5357
      %v5742 = vunpack.c.l.b16 %v5358
      %v5743 = vunpack.c.l.b16 %v5359
      %v5744 = vunpack.c.l.b16 %v5360
      %v5745 = vunpack.c.l.b16 %v5361
      %v5746 = vunpack.c.l.b16 %v5362
      %v5747 = vunpack.c.l.b16 %v5363
      %v5748 = vunpack.c.l.b16 %v5364
      %v5749 = vunpack.c.l.b16 %v5365
      %v5750 = vunpack.c.l.b16 %v5366
      %v5751 = vunpack.c.l.b16 %v5367
      %v5752 = vunpack.c.l.b16 %v5368
      %v5753 = vunpack.c.l.b16 %v5369
      %v5754 = vunpack.c.l.b16 %v5370
      %v5755 = vpack.c.b16 %v5404, %v5739
      %v5756 = vpack.c.b16 %v5406, %v5740
      %v5757 = vpack.c.b16 %v5408, %v5741
      %v5758 = vpack.c.b16 %v5410, %v5742
      %v5759 = vpack.c.b16 %v5412, %v5743
      %v5760 = vpack.c.b16 %v5414, %v5744
      %v5761 = vpack.c.b16 %v5416, %v5745
      %v5762 = vpack.c.b16 %v5418, %v5746
      %v5763 = vpack.c.b16 %v5420, %v5747
      %v5764 = vpack.c.b16 %v5422, %v5748
      %v5765 = vpack.c.b16 %v5424, %v5749
      %v5766 = vpack.c.b16 %v5426, %v5750
      %v5767 = vpack.c.b16 %v5428, %v5751
      %v5768 = vpack.c.b16 %v5430, %v5752
      %v5769 = vpack.c.b16 %v5432, %v5753
      %v5770 = vpack.c.b16 %v5434, %v5754
      %v5771 = vrot.slane %v5755, 1
      %v5772 = vrot.slane %v5499, 1
      %v5773 = vsel %vm1320, %v5771, %v5772
      %v5774 = vrot.slane %v5756, 1
      %v5775 = vrot.slane %v5500, 1
      %v5776 = vsel %vm1320, %v5774, %v5775
      %v5777 = vrot.slane %v5757, 1
      %v5778 = vrot.slane %v5501, 1
      %v5779 = vsel %vm1320, %v5777, %v5778
      %v5780 = vrot.slane %v5758, 1
      %v5781 = vrot.slane %v5502, 1
      %v5782 = vsel %vm1320, %v5780, %v5781
      %v5783 = vrot.slane %v5759, 1
      %v5784 = vrot.slane %v5503, 1
      %v5785 = vsel %vm1320, %v5783, %v5784
      %v5786 = vrot.slane %v5760, 1
      %v5787 = vrot.slane %v5504, 1
      %v5788 = vsel %vm1320, %v5786, %v5787
      %v5789 = vrot.slane %v5761, 1
      %v5790 = vrot.slane %v5505, 1
      %v5791 = vsel %vm1320, %v5789, %v5790
      %v5792 = vrot.slane %v5762, 1
      %v5793 = vrot.slane %v5506, 1
      %v5794 = vsel %vm1320, %v5792, %v5793
      %v5795 = vrot.slane %v5763, 1
      %v5796 = vrot.slane %v5507, 1
      %v5797 = vsel %vm1320, %v5795, %v5796
      %v5798 = vrot.slane %v5764, 1
      %v5799 = vrot.slane %v5508, 1
      %v5800 = vsel %vm1320, %v5798, %v5799
      %v5801 = vrot.slane %v5765, 1
      %v5802 = vrot.slane %v5509, 1
      %v5803 = vsel %vm1320, %v5801, %v5802
      %v5804 = vrot.slane %v5766, 1
      %v5805 = vrot.slane %v5510, 1
      %v5806 = vsel %vm1320, %v5804, %v5805
      %v5807 = vrot.slane %v5767, 1
      %v5808 = vrot.slane %v5511, 1
      %v5809 = vsel %vm1320, %v5807, %v5808
      %v5810 = vrot.slane %v5768, 1
      %v5811 = vrot.slane %v5512, 1
      %v5812 = vsel %vm1320, %v5810, %v5811
      %v5813 = vrot.slane %v5769, 1
      %v5814 = vrot.slane %v5513, 1
      %v5815 = vsel %vm1320, %v5813, %v5814
      %v5816 = vrot.slane %v5770, 1
      %v5817 = vrot.slane %v5514, 1
      %v5818 = vsel %vm1320, %v5816, %v5817
      %v5835 = vld [vmem:[%s3 + $0xc0] sm:$0xf]
      %v5836 = vld [vmem:[%s3 + $0xc4] sm:$0xf]
      %v5837 = vld [vmem:[%s3 + $0xc8] sm:$0xf]
      %v5838 = vld [vmem:[%s3 + $0xcc] sm:$0xf]
      %v5839 = vld [vmem:[%s3 + $0xd0] sm:$0xf]
      %v5840 = vld [vmem:[%s3 + $0xd4] sm:$0xf]
      %v5841 = vld [vmem:[%s3 + $0xd8] sm:$0xf]
      %v5842 = vld [vmem:[%s3 + $0xdc] sm:$0xf]
      %v5843 = vld [vmem:[%s3 + $0xe0] sm:$0xf]
      %v5844 = vld [vmem:[%s3 + $0xe4] sm:$0xf]
      %v5845 = vld [vmem:[%s3 + $0xe8] sm:$0xf]
      %v5846 = vld [vmem:[%s3 + $0xec] sm:$0xf]
      %v5847 = vld [vmem:[%s3 + $0xf0] sm:$0xf]
      %v5848 = vld [vmem:[%s3 + $0xf4] sm:$0xf]
      %v5849 = vld [vmem:[%s3 + $0xf8] sm:$0xf]
      %v5850 = vld [vmem:[%s3 + $0xfc] sm:$0xf]
      %v5851 = vld [vmem:[%s3 + $0x100] sm:$0xf]
      %v5852 = vld [vmem:[%s3 + $0x104] sm:$0xf]
      %v5853 = vld [vmem:[%s3 + $0x108] sm:$0xf]
      %v5854 = vld [vmem:[%s3 + $0x10c] sm:$0xf]
      %v5855 = vld [vmem:[%s3 + $0x110] sm:$0xf]
      %v5856 = vld [vmem:[%s3 + $0x114] sm:$0xf]
      %v5857 = vld [vmem:[%s3 + $0x118] sm:$0xf]
      %v5858 = vld [vmem:[%s3 + $0x11c] sm:$0xf]
      %v5859 = vld [vmem:[%s3 + $0x120] sm:$0xf]
      %v5860 = vld [vmem:[%s3 + $0x124] sm:$0xf]
      %v5861 = vld [vmem:[%s3 + $0x128] sm:$0xf]
      %v5862 = vld [vmem:[%s3 + $0x12c] sm:$0xf]
      %v5863 = vld [vmem:[%s3 + $0x130] sm:$0xf]
      %v5864 = vld [vmem:[%s3 + $0x134] sm:$0xf]
      %v5865 = vld [vmem:[%s3 + $0x138] sm:$0xf]
      %v5866 = vld [vmem:[%s3 + $0x13c] sm:$0xf]
      %v5867 = vld [vmem:[%s3 + $0x140] sm:$0xf]
      %v5868 = vld [vmem:[%s3 + $0x144] sm:$0xf]
      %v5869 = vld [vmem:[%s3 + $0x148] sm:$0xf]
      %v5870 = vld [vmem:[%s3 + $0x14c] sm:$0xf]
      %v5871 = vld [vmem:[%s3 + $0x150] sm:$0xf]
      %v5872 = vld [vmem:[%s3 + $0x154] sm:$0xf]
      %v5873 = vld [vmem:[%s3 + $0x158] sm:$0xf]
      %v5874 = vld [vmem:[%s3 + $0x15c] sm:$0xf]
      %v5875 = vld [vmem:[%s3 + $0x160] sm:$0xf]
      %v5876 = vld [vmem:[%s3 + $0x164] sm:$0xf]
      %v5877 = vld [vmem:[%s3 + $0x168] sm:$0xf]
      %v5878 = vld [vmem:[%s3 + $0x16c] sm:$0xf]
      %v5879 = vld [vmem:[%s3 + $0x170] sm:$0xf]
      %v5880 = vld [vmem:[%s3 + $0x174] sm:$0xf]
      %v5881 = vld [vmem:[%s3 + $0x178] sm:$0xf]
      %v5882 = vld [vmem:[%s3 + $0x17c] sm:$0xf]
      %v5931 = vunpack.c.l.b16 %v5835
      %v5932 = vunpack.c.l.b16 %v5836
      %v5933 = vunpack.c.l.b16 %v5837
      %v5934 = vunpack.c.l.b16 %v5838
      %v5935 = vunpack.c.l.b16 %v5839
      %v5936 = vunpack.c.l.b16 %v5840
      %v5937 = vunpack.c.l.b16 %v5841
      %v5938 = vunpack.c.l.b16 %v5842
      %v5939 = vunpack.c.l.b16 %v5843
      %v5940 = vunpack.c.l.b16 %v5844
      %v5941 = vunpack.c.l.b16 %v5845
      %v5942 = vunpack.c.l.b16 %v5846
      %v5943 = vunpack.c.l.b16 %v5847
      %v5944 = vunpack.c.l.b16 %v5848
      %v5945 = vunpack.c.l.b16 %v5849
      %v5946 = vunpack.c.l.b16 %v5850
      %v5947 = vunpack.c.l.b16 %v5851
      %v5948 = vunpack.c.l.b16 %v5852
      %v5949 = vunpack.c.l.b16 %v5853
      %v5950 = vunpack.c.l.b16 %v5854
      %v5951 = vunpack.c.l.b16 %v5855
      %v5952 = vunpack.c.l.b16 %v5856
      %v5953 = vunpack.c.l.b16 %v5857
      %v5954 = vunpack.c.l.b16 %v5858
      %v5955 = vunpack.c.l.b16 %v5859
      %v5956 = vunpack.c.l.b16 %v5860
      %v5957 = vunpack.c.l.b16 %v5861
      %v5958 = vunpack.c.l.b16 %v5862
      %v5959 = vunpack.c.l.b16 %v5863
      %v5960 = vunpack.c.l.b16 %v5864
      %v5961 = vunpack.c.l.b16 %v5865
      %v5962 = vunpack.c.l.b16 %v5866
      %v5963 = vunpack.c.l.b16 %v5867
      %v5964 = vunpack.c.l.b16 %v5868
      %v5965 = vunpack.c.l.b16 %v5869
      %v5966 = vunpack.c.l.b16 %v5870
      %v5967 = vunpack.c.l.b16 %v5871
      %v5968 = vunpack.c.l.b16 %v5872
      %v5969 = vunpack.c.l.b16 %v5873
      %v5970 = vunpack.c.l.b16 %v5874
      %v5971 = vunpack.c.l.b16 %v5875
      %v5972 = vunpack.c.l.b16 %v5876
      %v5973 = vunpack.c.l.b16 %v5877
      %v5974 = vunpack.c.l.b16 %v5878
      %v5975 = vunpack.c.l.b16 %v5879
      %v5976 = vunpack.c.l.b16 %v5880
      %v5977 = vunpack.c.l.b16 %v5881
      %v5978 = vunpack.c.l.b16 %v5882
      %v5979 = vpack.c.b16 %v5932, %v5931
      %v5980 = vpack.c.b16 %v5934, %v5933
      %v5981 = vpack.c.b16 %v5936, %v5935
      %v5982 = vpack.c.b16 %v5938, %v5937
      %v5983 = vpack.c.b16 %v5940, %v5939
      %v5984 = vpack.c.b16 %v5942, %v5941
      %v5985 = vpack.c.b16 %v5944, %v5943
      %v5986 = vpack.c.b16 %v5946, %v5945
      %v5987 = vpack.c.b16 %v5948, %v5947
      %v5988 = vpack.c.b16 %v5950, %v5949
      %v5989 = vpack.c.b16 %v5952, %v5951
      %v5990 = vpack.c.b16 %v5954, %v5953
      %v5991 = vpack.c.b16 %v5956, %v5955
      %v5992 = vpack.c.b16 %v5958, %v5957
      %v5993 = vpack.c.b16 %v5960, %v5959
      %v5994 = vpack.c.b16 %v5962, %v5961
      %v5995 = vpack.c.b16 %v5964, %v5963
      %v5996 = vpack.c.b16 %v5966, %v5965
      %v5997 = vpack.c.b16 %v5968, %v5967
      %v5998 = vpack.c.b16 %v5970, %v5969
      %v5999 = vpack.c.b16 %v5972, %v5971
      %v6000 = vpack.c.b16 %v5974, %v5973
      %v6001 = vpack.c.b16 %v5976, %v5975
      %v6002 = vpack.c.b16 %v5978, %v5977
      %6027 = vmatprep.subr.bf16.mxu0 0
      %6028 = vmatpush1.bf16.msra.mxu0 %v5979
      %6029 = vmatprep.subr.bf16.mxu0 0
      %6030 = vmatpush1.bf16.msra.mxu0 %v5980
      %6031 = vmatprep.subr.bf16.mxu0 0
      %6032 = vmatpush1.bf16.msra.mxu0 %v5981
      %6033 = vmatprep.subr.bf16.mxu0 0
      %6034 = vmatpush1.bf16.msra.mxu0 %v5982
      %6035 = vmatprep.subr.bf16.mxu0 0
      %6036 = vmatpush1.bf16.msra.mxu0 %v5983
      %6037 = vmatprep.subr.bf16.mxu0 0
      %6038 = vmatpush1.bf16.msra.mxu0 %v5984
      %6039 = vmatprep.subr.bf16.mxu0 0
      %6040 = vmatpush1.bf16.msra.mxu0 %v5985
      %6041 = vmatprep.subr.bf16.mxu0 0
      %6042 = vmatpush1.bf16.msra.mxu0 %v5986
      %6043 = vmatprep.subr.bf16.mxu0 0
      %6044 = vmatpush1.bf16.msra.mxu0 %v5987
      %6045 = vmatprep.subr.bf16.mxu0 0
      %6046 = vmatpush1.bf16.msra.mxu0 %v5988
      %6047 = vmatprep.subr.bf16.mxu0 0
      %6048 = vmatpush1.bf16.msra.mxu0 %v5989
      %6049 = vmatprep.subr.bf16.mxu0 0
      %6050 = vmatpush1.bf16.msra.mxu0 %v5990
      %6051 = vmatprep.subr.bf16.mxu0 0
      %6052 = vmatpush1.bf16.msra.mxu0 %v5991
      %6053 = vmatprep.subr.bf16.mxu0 0
      %6054 = vmatpush1.bf16.msra.mxu0 %v5992
      %6055 = vmatprep.subr.bf16.mxu0 0
      %6056 = vmatpush1.bf16.msra.mxu0 %v5993
      %6057 = vmatprep.subr.bf16.mxu0 0
      %6058 = vmatpush1.bf16.msra.mxu0 %v5994
      %6059 = vmatprep.mubr.bf16.mxu0 %v5526
      %6060 = vmatmul.mubr.bf16.gmra.mrb[0].mxu0 %v5435
      %v6061 = vpop.f32.mrb[0].mxu0
      %v6062 = vadd.f32 0.0, %v6061
      %v6063 = vpop.f32.mrb[0].mxu0
      %v6064 = vpop.f32.mrb[0].mxu0
      %v6065 = vadd.f32 0.0, %v6064
      %v6066 = vpop.f32.mrb[0].mxu0
      %6067 = vmatprep.mubr.bf16.mxu0 %v5538
      %6068 = vmatmul.mubr.bf16.gmra.mrb[0].mxu0 %v5436
      %v6069 = vpop.f32.mrb[0].mxu0
      %v6070 = vadd.f32 0.0, %v6069
      %v6071 = vpop.f32.mrb[0].mxu0
      %v6072 = vpop.f32.mrb[0].mxu0
      %v6073 = vadd.f32 0.0, %v6072
      %v6074 = vpop.f32.mrb[0].mxu0
      %6075 = vmatprep.mubr.bf16.mxu0 %v5550
      %6076 = vmatmul.mubr.bf16.gmra.mrb[0].mxu0 %v5437
      %v6077 = vpop.f32.mrb[0].mxu0
      %v6078 = vadd.f32 0.0, %v6077
      %v6079 = vpop.f32.mrb[0].mxu0
      %v6080 = vpop.f32.mrb[0].mxu0
      %v6081 = vadd.f32 0.0, %v6080
      %v6082 = vpop.f32.mrb[0].mxu0
      %6083 = vmatprep.mubr.bf16.mxu0 %v5562
      %6084 = vmatmul.mubr.bf16.gmra.mrb[0].mxu0 %v5438
      %v6085 = vpop.f32.mrb[0].mxu0
      %v6086 = vadd.f32 0.0, %v6085
      %v6087 = vpop.f32.mrb[0].mxu0
      %v6088 = vpop.f32.mrb[0].mxu0
      %v6089 = vadd.f32 0.0, %v6088
      %v6090 = vpop.f32.mrb[0].mxu0
      %6091 = vmatprep.mubr.bf16.mxu0 %v5574
      %6092 = vmatmul.mubr.bf16.gmra.mrb[0].mxu0 %v5439
      %v6093 = vpop.f32.mrb[0].mxu0
      %v6094 = vadd.f32 0.0, %v6093
      %v6095 = vpop.f32.mrb[0].mxu0
      %v6096 = vpop.f32.mrb[0].mxu0
      %v6097 = vadd.f32 0.0, %v6096
      %v6098 = vpop.f32.mrb[0].mxu0
      %6099 = vmatprep.mubr.bf16.mxu0 %v5586
      %6100 = vmatmul.mubr.bf16.gmra.mrb[0].mxu0 %v5440
      %v6101 = vpop.f32.mrb[0].mxu0
      %v6102 = vadd.f32 0.0, %v6101
      %v6103 = vpop.f32.mrb[0].mxu0
      %v6104 = vpop.f32.mrb[0].mxu0
      %v6105 = vadd.f32 0.0, %v6104
      %v6106 = vpop.f32.mrb[0].mxu0
      %6107 = vmatprep.mubr.bf16.mxu0 %v5598
      %6108 = vmatmul.mubr.bf16.gmra.mrb[0].mxu0 %v5441
      %v6109 = vpop.f32.mrb[0].mxu0
      %v6110 = vadd.f32 0.0, %v6109
      %v6111 = vpop.f32.mrb[0].mxu0
      %v6112 = vpop.f32.mrb[0].mxu0
      %v6113 = vadd.f32 0.0, %v6112
      %v6114 = vpop.f32.mrb[0].mxu0
      %6115 = vmatprep.mubr.bf16.mxu0 %v5610
      %6116 = vmatmul.mubr.bf16.gmra.mrb[0].mxu0 %v5442
      %v6117 = vpop.f32.mrb[0].mxu0
      %v6118 = vadd.f32 0.0, %v6117
      %v6119 = vpop.f32.mrb[0].mxu0
      %v6120 = vpop.f32.mrb[0].mxu0
      %v6121 = vadd.f32 0.0, %v6120
      %v6122 = vpop.f32.mrb[0].mxu0
      %6123 = vmatprep.mubr.bf16.mxu0 %v5622
      %6124 = vmatmul.mubr.bf16.gmra.mrb[0].mxu0 %v5443
      %v6125 = vpop.f32.mrb[0].mxu0
      %v6126 = vadd.f32 0.0, %v6125
      %v6127 = vpop.f32.mrb[0].mxu0
      %v6128 = vpop.f32.mrb[0].mxu0
      %v6129 = vadd.f32 0.0, %v6128
      %v6130 = vpop.f32.mrb[0].mxu0
      %6131 = vmatprep.mubr.bf16.mxu0 %v5634
      %6132 = vmatmul.mubr.bf16.gmra.mrb[0].mxu0 %v5444
      %v6133 = vpop.f32.mrb[0].mxu0
      %v6134 = vadd.f32 0.0, %v6133
      %v6135 = vpop.f32.mrb[0].mxu0
      %v6136 = vpop.f32.mrb[0].mxu0
      %v6137 = vadd.f32 0.0, %v6136
      %v6138 = vpop.f32.mrb[0].mxu0
      %6139 = vmatprep.mubr.bf16.mxu0 %v5646
      %6140 = vmatmul.mubr.bf16.gmra.mrb[0].mxu0 %v5445
      %v6141 = vpop.f32.mrb[0].mxu0
      %v6142 = vadd.f32 0.0, %v6141
      %v6143 = vpop.f32.mrb[0].mxu0
      %v6144 = vpop.f32.mrb[0].mxu0
      %v6145 = vadd.f32 0.0, %v6144
      %v6146 = vpop.f32.mrb[0].mxu0
      %6147 = vmatprep.mubr.bf16.mxu0 %v5658
      %6148 = vmatmul.mubr.bf16.gmra.mrb[0].mxu0 %v5446
      %v6149 = vpop.f32.mrb[0].mxu0
      %v6150 = vadd.f32 0.0, %v6149
      %v6151 = vpop.f32.mrb[0].mxu0
      %v6152 = vpop.f32.mrb[0].mxu0
      %v6153 = vadd.f32 0.0, %v6152
      %v6154 = vpop.f32.mrb[0].mxu0
      %6155 = vmatprep.mubr.bf16.mxu0 %v5670
      %6156 = vmatmul.mubr.bf16.gmra.mrb[0].mxu0 %v5447
      %v6157 = vpop.f32.mrb[0].mxu0
      %v6158 = vadd.f32 0.0, %v6157
      %v6159 = vpop.f32.mrb[0].mxu0
      %v6160 = vpop.f32.mrb[0].mxu0
      %v6161 = vadd.f32 0.0, %v6160
      %v6162 = vpop.f32.mrb[0].mxu0
      %6163 = vmatprep.mubr.bf16.mxu0 %v5682
      %6164 = vmatmul.mubr.bf16.gmra.mrb[0].mxu0 %v5448
      %v6165 = vpop.f32.mrb[0].mxu0
      %v6166 = vadd.f32 0.0, %v6165
      %v6167 = vpop.f32.mrb[0].mxu0
      %v6168 = vpop.f32.mrb[0].mxu0
      %v6169 = vadd.f32 0.0, %v6168
      %v6170 = vpop.f32.mrb[0].mxu0
      %6171 = vmatprep.mubr.bf16.mxu0 %v5694
      %6172 = vmatmul.mubr.bf16.gmra.mrb[0].mxu0 %v5449
      %v6173 = vpop.f32.mrb[0].mxu0
      %v6174 = vadd.f32 0.0, %v6173
      %v6175 = vpop.f32.mrb[0].mxu0
      %v6176 = vpop.f32.mrb[0].mxu0
      %v6177 = vadd.f32 0.0, %v6176
      %v6178 = vpop.f32.mrb[0].mxu0
      %6179 = vmatprep.mubr.bf16.mxu0 %v5706
      %6180 = vmatmul.mubr.bf16.gmra.mrb[0].mxu0 %v5450
      %v6181 = vpop.f32.mrb[0].mxu0
      %v6182 = vadd.f32 0.0, %v6181
      %v6183 = vpop.f32.mrb[0].mxu0
      %v6184 = vpop.f32.mrb[0].mxu0
      %v6185 = vadd.f32 0.0, %v6184
      %v6186 = vpop.f32.mrb[0].mxu0
      %6187 = vdwg.mxu0
      %6188 = vmatprep.subr.bf16.mxu0 0
      %6189 = vmatpush1.bf16.msra.mxu0 %v5995
      %6190 = vmatprep.subr.bf16.mxu0 0
      %6191 = vmatpush1.bf16.msra.mxu0 %v5996
      %6192 = vmatprep.subr.bf16.mxu0 0
      %6193 = vmatpush1.bf16.msra.mxu0 %v5997
      %6194 = vmatprep.subr.bf16.mxu0 0
      %6195 = vmatpush1.bf16.msra.mxu0 %v5998
      %6196 = vmatprep.subr.bf16.mxu0 0
      %6197 = vmatpush1.bf16.msra.mxu0 %v5999
      %6198 = vmatprep.subr.bf16.mxu0 0
      %6199 = vmatpush1.bf16.msra.mxu0 %v6000
      %6200 = vmatprep.subr.bf16.mxu0 0
      %6201 = vmatpush1.bf16.msra.mxu0 %v6001
      %6202 = vmatprep.subr.bf16.mxu0 0
      %6203 = vmatpush1.bf16.msra.mxu0 %v6002
      %6204 = vmatprep.subr.bf16.mxu0 0
      %6205 = vmatpush1.bf16.msra.mxu0 0
      %6206 = vmatprep.subr.bf16.mxu0 0
      %6207 = vmatpush1.bf16.msra.mxu0 0
      %6208 = vmatprep.subr.bf16.mxu0 0
      %6209 = vmatpush1.bf16.msra.mxu0 0
      %6210 = vmatprep.subr.bf16.mxu0 0
      %6211 = vmatpush1.bf16.msra.mxu0 0
      %6212 = vmatprep.subr.bf16.mxu0 0
      %6213 = vmatpush1.bf16.msra.mxu0 0
      %6214 = vmatprep.subr.bf16.mxu0 0
      %6215 = vmatpush1.bf16.msra.mxu0 0
      %6216 = vmatprep.subr.bf16.mxu0 0
      %6217 = vmatpush1.bf16.msra.mxu0 0
      %6218 = vmatprep.subr.bf16.mxu0 0
      %6219 = vmatpush1.bf16.msra.mxu0 0
      %6220 = vmatprep.mubr.bf16.mxu0 0
      %6221 = vmatmul.mubr.bf16.gmra.mrb[0].mxu0 %v5773
      %v6222 = vpop.f32.mrb[0].mxu0
      %v6223 = vadd.f32 %v6062, %v6222
      %v6224 = vpop.f32.mrb[0].mxu0
      %v6225 = vpop.f32.mrb[0].mxu0
      %v6226 = vadd.f32 %v6065, %v6225
      %v6227 = vpop.f32.mrb[0].mxu0
      %6228 = vmatprep.mubr.bf16.mxu0 0
      %6229 = vmatmul.mubr.bf16.gmra.mrb[0].mxu0 %v5776
      %v6230 = vpop.f32.mrb[0].mxu0
      %v6231 = vadd.f32 %v6070, %v6230
      %v6232 = vpop.f32.mrb[0].mxu0
      %v6233 = vpop.f32.mrb[0].mxu0
      %v6234 = vadd.f32 %v6073, %v6233
      %v6235 = vpop.f32.mrb[0].mxu0
      %6236 = vmatprep.mubr.bf16.mxu0 0
      %6237 = vmatmul.mubr.bf16.gmra.mrb[0].mxu0 %v5779
      %v6238 = vpop.f32.mrb[0].mxu0
      %v6239 = vadd.f32 %v6078, %v6238
      %v6240 = vpop.f32.mrb[0].mxu0
      %v6241 = vpop.f32.mrb[0].mxu0
      %v6242 = vadd.f32 %v6081, %v6241
      %v6243 = vpop.f32.mrb[0].mxu0
      %6244 = vmatprep.mubr.bf16.mxu0 0
      %6245 = vmatmul.mubr.bf16.gmra.mrb[0].mxu0 %v5782
      %v6246 = vpop.f32.mrb[0].mxu0
      %v6247 = vadd.f32 %v6086, %v6246
      %v6248 = vpop.f32.mrb[0].mxu0
      %v6249 = vpop.f32.mrb[0].mxu0
      %v6250 = vadd.f32 %v6089, %v6249
      %v6251 = vpop.f32.mrb[0].mxu0
      %6252 = vmatprep.mubr.bf16.mxu0 0
      %6253 = vmatmul.mubr.bf16.gmra.mrb[0].mxu0 %v5785
      %v6254 = vpop.f32.mrb[0].mxu0
      %v6255 = vadd.f32 %v6094, %v6254
      %v6256 = vpop.f32.mrb[0].mxu0
      %v6257 = vpop.f32.mrb[0].mxu0
      %v6258 = vadd.f32 %v6097, %v6257
      %v6259 = vpop.f32.mrb[0].mxu0
      %6260 = vmatprep.mubr.bf16.mxu0 0
      %6261 = vmatmul.mubr.bf16.gmra.mrb[0].mxu0 %v5788
      %v6262 = vpop.f32.mrb[0].mxu0
      %v6263 = vadd.f32 %v6102, %v6262
      %v6264 = vpop.f32.mrb[0].mxu0
      %v6265 = vpop.f32.mrb[0].mxu0
      %v6266 = vadd.f32 %v6105, %v6265
      %v6267 = vpop.f32.mrb[0].mxu0
      %6268 = vmatprep.mubr.bf16.mxu0 0
      %6269 = vmatmul.mubr.bf16.gmra.mrb[0].mxu0 %v5791
      %v6270 = vpop.f32.mrb[0].mxu0
      %v6271 = vadd.f32 %v6110, %v6270
      %v6272 = vpop.f32.mrb[0].mxu0
      %v6273 = vpop.f32.mrb[0].mxu0
      %v6274 = vadd.f32 %v6113, %v6273
      %v6275 = vpop.f32.mrb[0].mxu0
      %6276 = vmatprep.mubr.bf16.mxu0 0
      %6277 = vmatmul.mubr.bf16.gmra.mrb[0].mxu0 %v5794
      %v6278 = vpop.f32.mrb[0].mxu0
      %v6279 = vadd.f32 %v6118, %v6278
      %v6280 = vpop.f32.mrb[0].mxu0
      %v6281 = vpop.f32.mrb[0].mxu0
      %v6282 = vadd.f32 %v6121, %v6281
      %v6283 = vpop.f32.mrb[0].mxu0
      %6284 = vmatprep.mubr.bf16.mxu0 0
      %6285 = vmatmul.mubr.bf16.gmra.mrb[0].mxu0 %v5797
      %v6286 = vpop.f32.mrb[0].mxu0
      %v6287 = vadd.f32 %v6126, %v6286
      %v6288 = vpop.f32.mrb[0].mxu0
      %v6289 = vpop.f32.mrb[0].mxu0
      %v6290 = vadd.f32 %v6129, %v6289
      %v6291 = vpop.f32.mrb[0].mxu0
      %6292 = vmatprep.mubr.bf16.mxu0 0
      %6293 = vmatmul.mubr.bf16.gmra.mrb[0].mxu0 %v5800
      %v6294 = vpop.f32.mrb[0].mxu0
      %v6295 = vadd.f32 %v6134, %v6294
      %v6296 = vpop.f32.mrb[0].mxu0
      %v6297 = vpop.f32.mrb[0].mxu0
      %v6298 = vadd.f32 %v6137, %v6297
      %v6299 = vpop.f32.mrb[0].mxu0
      %6300 = vmatprep.mubr.bf16.mxu0 0
      %6301 = vmatmul.mubr.bf16.gmra.mrb[0].mxu0 %v5803
      %v6302 = vpop.f32.mrb[0].mxu0
      %v6303 = vadd.f32 %v6142, %v6302
      %v6304 = vpop.f32.mrb[0].mxu0
      %v6305 = vpop.f32.mrb[0].mxu0
      %v6306 = vadd.f32 %v6145, %v6305
      %v6307 = vpop.f32.mrb[0].mxu0
      %6308 = vmatprep.mubr.bf16.mxu0 0
      %6309 = vmatmul.mubr.bf16.gmra.mrb[0].mxu0 %v5806
      %v6310 = vpop.f32.mrb[0].mxu0
      %v6311 = vadd.f32 %v6150, %v6310
      %v6312 = vpop.f32.mrb[0].mxu0
      %v6313 = vpop.f32.mrb[0].mxu0
      %v6314 = vadd.f32 %v6153, %v6313
      %v6315 = vpop.f32.mrb[0].mxu0
      %6316 = vmatprep.mubr.bf16.mxu0 0
      %6317 = vmatmul.mubr.bf16.gmra.mrb[0].mxu0 %v5809
      %v6318 = vpop.f32.mrb[0].mxu0
      %v6319 = vadd.f32 %v6158, %v6318
      %v6320 = vpop.f32.mrb[0].mxu0
      %v6321 = vpop.f32.mrb[0].mxu0
      %v6322 = vadd.f32 %v6161, %v6321
      %v6323 = vpop.f32.mrb[0].mxu0
      %6324 = vmatprep.mubr.bf16.mxu0 0
      %6325 = vmatmul.mubr.bf16.gmra.mrb[0].mxu0 %v5812
      %v6326 = vpop.f32.mrb[0].mxu0
      %v6327 = vadd.f32 %v6166, %v6326
      %v6328 = vpop.f32.mrb[0].mxu0
      %v6329 = vpop.f32.mrb[0].mxu0
      %v6330 = vadd.f32 %v6169, %v6329
      %v6331 = vpop.f32.mrb[0].mxu0
      %6332 = vmatprep.mubr.bf16.mxu0 0
      %6333 = vmatmul.mubr.bf16.gmra.mrb[0].mxu0 %v5815
      %v6334 = vpop.f32.mrb[0].mxu0
      %v6335 = vadd.f32 %v6174, %v6334
      %v6336 = vpop.f32.mrb[0].mxu0
      %v6337 = vpop.f32.mrb[0].mxu0
      %v6338 = vadd.f32 %v6177, %v6337
      %v6339 = vpop.f32.mrb[0].mxu0
      %6340 = vmatprep.mubr.bf16.mxu0 0
      %6341 = vmatmul.mubr.bf16.gmra.mrb[0].mxu0 %v5818
      %v6342 = vpop.f32.mrb[0].mxu0
      %v6343 = vadd.f32 %v6182, %v6342
      %v6344 = vpop.f32.mrb[0].mxu0
      %v6345 = vpop.f32.mrb[0].mxu0
      %v6346 = vadd.f32 %v6185, %v6345
      %v6347 = vpop.f32.mrb[0].mxu0
      %6348 = vdwg.mxu0
      %v6397 = vunpack.c.l.b16 %v5259
      %v6398 = vunpack.c.l.b16 %v5260
      %v6399 = vunpack.c.l.b16 %v5261
      %v6400 = vunpack.c.l.b16 %v5262
      %v6401 = vunpack.c.l.b16 %v5263
      %v6402 = vunpack.c.l.b16 %v5264
      %v6403 = vunpack.c.l.b16 %v5265
      %v6404 = vunpack.c.l.b16 %v5266
      %v6405 = vunpack.c.l.b16 %v5267
      %v6406 = vunpack.c.l.b16 %v5268
      %v6407 = vunpack.c.l.b16 %v5269
      %v6408 = vunpack.c.l.b16 %v5270
      %v6409 = vunpack.c.l.b16 %v5271
      %v6410 = vunpack.c.l.b16 %v5272
      %v6411 = vunpack.c.l.b16 %v5273
      %v6412 = vunpack.c.l.b16 %v5274
      %v6413 = vunpack.c.l.b16 %v5275
      %v6414 = vunpack.c.l.b16 %v5276
      %v6415 = vunpack.c.l.b16 %v5277
      %v6416 = vunpack.c.l.b16 %v5278
      %v6417 = vunpack.c.l.b16 %v5279
      %v6418 = vunpack.c.l.b16 %v5280
      %v6419 = vunpack.c.l.b16 %v5281
      %v6420 = vunpack.c.l.b16 %v5282
      %v6421 = vunpack.c.l.b16 %v5283
      %v6422 = vunpack.c.l.b16 %v5284
      %v6423 = vunpack.c.l.b16 %v5285
      %v6424 = vunpack.c.l.b16 %v5286
      %v6425 = vunpack.c.l.b16 %v5287
      %v6426 = vunpack.c.l.b16 %v5288
      %v6427 = vunpack.c.l.b16 %v5289
      %v6428 = vunpack.c.l.b16 %v5290
      %v6429 = vunpack.c.l.b16 %v5291
      %v6430 = vunpack.c.l.b16 %v5292
      %v6431 = vunpack.c.l.b16 %v5293
      %v6432 = vunpack.c.l.b16 %v5294
      %v6433 = vunpack.c.l.b16 %v5295
      %v6434 = vunpack.c.l.b16 %v5296
      %v6435 = vunpack.c.l.b16 %v5297
      %v6436 = vunpack.c.l.b16 %v5298
      %v6437 = vunpack.c.l.b16 %v5299
      %v6438 = vunpack.c.l.b16 %v5300
      %v6439 = vunpack.c.l.b16 %v5301
      %v6440 = vunpack.c.l.b16 %v5302
      %v6441 = vunpack.c.l.b16 %v5303
      %v6442 = vunpack.c.l.b16 %v5304
      %v6443 = vunpack.c.l.b16 %v5305
      %v6444 = vunpack.c.l.b16 %v5306
      %v6445 = vpack.c.b16 %v6398, %v6397
      %v6446 = vpack.c.b16 %v6400, %v6399
      %v6447 = vpack.c.b16 %v6402, %v6401
      %v6448 = vpack.c.b16 %v6404, %v6403
      %v6449 = vpack.c.b16 %v6406, %v6405
      %v6450 = vpack.c.b16 %v6408, %v6407
      %v6451 = vpack.c.b16 %v6410, %v6409
      %v6452 = vpack.c.b16 %v6412, %v6411
      %v6453 = vpack.c.b16 %v6414, %v6413
      %v6454 = vpack.c.b16 %v6416, %v6415
      %v6455 = vpack.c.b16 %v6418, %v6417
      %v6456 = vpack.c.b16 %v6420, %v6419
      %v6457 = vpack.c.b16 %v6422, %v6421
      %v6458 = vpack.c.b16 %v6424, %v6423
      %v6459 = vpack.c.b16 %v6426, %v6425
      %v6460 = vpack.c.b16 %v6428, %v6427
      %v6461 = vpack.c.b16 %v6430, %v6429
      %v6462 = vpack.c.b16 %v6432, %v6431
      %v6463 = vpack.c.b16 %v6434, %v6433
      %v6464 = vpack.c.b16 %v6436, %v6435
      %v6465 = vpack.c.b16 %v6438, %v6437
      %v6466 = vpack.c.b16 %v6440, %v6439
      %v6467 = vpack.c.b16 %v6442, %v6441
      %v6468 = vpack.c.b16 %v6444, %v6443
      %6493 = vmatprep.subr.bf16.mxu0 0
      %6494 = vmatpush1.bf16.msra.mxu0 %v6445
      %6495 = vmatprep.subr.bf16.mxu0 0
      %6496 = vmatpush1.bf16.msra.mxu0 %v6446
      %6497 = vmatprep.subr.bf16.mxu0 0
      %6498 = vmatpush1.bf16.msra.mxu0 %v6447
      %6499 = vmatprep.subr.bf16.mxu0 0
      %6500 = vmatpush1.bf16.msra.mxu0 %v6448
      %6501 = vmatprep.subr.bf16.mxu0 0
      %6502 = vmatpush1.bf16.msra.mxu0 %v6449
      %6503 = vmatprep.subr.bf16.mxu0 0
      %6504 = vmatpush1.bf16.msra.mxu0 %v6450
      %6505 = vmatprep.subr.bf16.mxu0 0
      %6506 = vmatpush1.bf16.msra.mxu0 %v6451
      %6507 = vmatprep.subr.bf16.mxu0 0
      %6508 = vmatpush1.bf16.msra.mxu0 %v6452
      %6509 = vmatprep.subr.bf16.mxu0 0
      %6510 = vmatpush1.bf16.msra.mxu0 %v6453
      %6511 = vmatprep.subr.bf16.mxu0 0
      %6512 = vmatpush1.bf16.msra.mxu0 %v6454
      %6513 = vmatprep.subr.bf16.mxu0 0
      %6514 = vmatpush1.bf16.msra.mxu0 %v6455
      %6515 = vmatprep.subr.bf16.mxu0 0
      %6516 = vmatpush1.bf16.msra.mxu0 %v6456
      %6517 = vmatprep.subr.bf16.mxu0 0
      %6518 = vmatpush1.bf16.msra.mxu0 %v6457
      %6519 = vmatprep.subr.bf16.mxu0 0
      %6520 = vmatpush1.bf16.msra.mxu0 %v6458
      %6521 = vmatprep.subr.bf16.mxu0 0
      %6522 = vmatpush1.bf16.msra.mxu0 %v6459
      %6523 = vmatprep.subr.bf16.mxu0 0
      %6524 = vmatpush1.bf16.msra.mxu0 %v6460
      %6525 = vmatprep.mubr.bf16.mxu0 %v4950
      %6526 = vmatmul.mubr.bf16.gmra.mrb[0].mxu0 %v4859
      %v6527 = vpop.f32.mrb[0].mxu0
      %v6528 = vadd.f32 %v6223, %v6527
      %v6529 = vpop.f32.mrb[0].mxu0
      %v6530 = vpop.f32.mrb[0].mxu0
      %v6531 = vadd.f32 %v6226, %v6530
      %v6532 = vpop.f32.mrb[0].mxu0
      %6533 = vmatprep.mubr.bf16.mxu0 %v4962
      %6534 = vmatmul.mubr.bf16.gmra.mrb[0].mxu0 %v4860
      %v6535 = vpop.f32.mrb[0].mxu0
      %v6536 = vadd.f32 %v6231, %v6535
      %v6537 = vpop.f32.mrb[0].mxu0
      %v6538 = vpop.f32.mrb[0].mxu0
      %v6539 = vadd.f32 %v6234, %v6538
      %v6540 = vpop.f32.mrb[0].mxu0
      %6541 = vmatprep.mubr.bf16.mxu0 %v4974
      %6542 = vmatmul.mubr.bf16.gmra.mrb[0].mxu0 %v4861
      %v6543 = vpop.f32.mrb[0].mxu0
      %v6544 = vadd.f32 %v6239, %v6543
      %v6545 = vpop.f32.mrb[0].mxu0
      %v6546 = vpop.f32.mrb[0].mxu0
      %v6547 = vadd.f32 %v6242, %v6546
      %v6548 = vpop.f32.mrb[0].mxu0
      %6549 = vmatprep.mubr.bf16.mxu0 %v4986
      %6550 = vmatmul.mubr.bf16.gmra.mrb[0].mxu0 %v4862
      %v6551 = vpop.f32.mrb[0].mxu0
      %v6552 = vadd.f32 %v6247, %v6551
      %v6553 = vpop.f32.mrb[0].mxu0
      %v6554 = vpop.f32.mrb[0].mxu0
      %v6555 = vadd.f32 %v6250, %v6554
      %v6556 = vpop.f32.mrb[0].mxu0
      %6557 = vmatprep.mubr.bf16.mxu0 %v4998
      %6558 = vmatmul.mubr.bf16.gmra.mrb[0].mxu0 %v4863
      %v6559 = vpop.f32.mrb[0].mxu0
      %v6560 = vadd.f32 %v6255, %v6559
      %v6561 = vpop.f32.mrb[0].mxu0
      %v6562 = vpop.f32.mrb[0].mxu0
      %v6563 = vadd.f32 %v6258, %v6562
      %v6564 = vpop.f32.mrb[0].mxu0
      %6565 = vmatprep.mubr.bf16.mxu0 %v5010
      %6566 = vmatmul.mubr.bf16.gmra.mrb[0].mxu0 %v4864
      %v6567 = vpop.f32.mrb[0].mxu0
      %v6568 = vadd.f32 %v6263, %v6567
      %v6569 = vpop.f32.mrb[0].mxu0
      %v6570 = vpop.f32.mrb[0].mxu0
      %v6571 = vadd.f32 %v6266, %v6570
      %v6572 = vpop.f32.mrb[0].mxu0
      %6573 = vmatprep.mubr.bf16.mxu0 %v5022
      %6574 = vmatmul.mubr.bf16.gmra.mrb[0].mxu0 %v4865
      %v6575 = vpop.f32.mrb[0].mxu0
      %v6576 = vadd.f32 %v6271, %v6575
      %v6577 = vpop.f32.mrb[0].mxu0
      %v6578 = vpop.f32.mrb[0].mxu0
      %v6579 = vadd.f32 %v6274, %v6578
      %v6580 = vpop.f32.mrb[0].mxu0
      %6581 = vmatprep.mubr.bf16.mxu0 %v5034
      %6582 = vmatmul.mubr.bf16.gmra.mrb[0].mxu0 %v4866
      %v6583 = vpop.f32.mrb[0].mxu0
      %v6584 = vadd.f32 %v6279, %v6583
      %v6585 = vpop.f32.mrb[0].mxu0
      %v6586 = vpop.f32.mrb[0].mxu0
      %v6587 = vadd.f32 %v6282, %v6586
      %v6588 = vpop.f32.mrb[0].mxu0
      %6589 = vmatprep.mubr.bf16.mxu0 %v5046
      %6590 = vmatmul.mubr.bf16.gmra.mrb[0].mxu0 %v4867
      %v6591 = vpop.f32.mrb[0].mxu0
      %v6592 = vadd.f32 %v6287, %v6591
      %v6593 = vpop.f32.mrb[0].mxu0
      %v6594 = vpop.f32.mrb[0].mxu0
      %v6595 = vadd.f32 %v6290, %v6594
      %v6596 = vpop.f32.mrb[0].mxu0
      %6597 = vmatprep.mubr.bf16.mxu0 %v5058
      %6598 = vmatmul.mubr.bf16.gmra.mrb[0].mxu0 %v4868
      %v6599 = vpop.f32.mrb[0].mxu0
      %v6600 = vadd.f32 %v6295, %v6599
      %v6601 = vpop.f32.mrb[0].mxu0
      %v6602 = vpop.f32.mrb[0].mxu0
      %v6603 = vadd.f32 %v6298, %v6602
      %v6604 = vpop.f32.mrb[0].mxu0
      %6605 = vmatprep.mubr.bf16.mxu0 %v5070
      %6606 = vmatmul.mubr.bf16.gmra.mrb[0].mxu0 %v4869
      %v6607 = vpop.f32.mrb[0].mxu0
      %v6608 = vadd.f32 %v6303, %v6607
      %v6609 = vpop.f32.mrb[0].mxu0
      %v6610 = vpop.f32.mrb[0].mxu0
      %v6611 = vadd.f32 %v6306, %v6610
      %v6612 = vpop.f32.mrb[0].mxu0
      %6613 = vmatprep.mubr.bf16.mxu0 %v5082
      %6614 = vmatmul.mubr.bf16.gmra.mrb[0].mxu0 %v4870
      %v6615 = vpop.f32.mrb[0].mxu0
      %v6616 = vadd.f32 %v6311, %v6615
      %v6617 = vpop.f32.mrb[0].mxu0
      %v6618 = vpop.f32.mrb[0].mxu0
      %v6619 = vadd.f32 %v6314, %v6618
      %v6620 = vpop.f32.mrb[0].mxu0
      %6621 = vmatprep.mubr.bf16.mxu0 %v5094
      %6622 = vmatmul.mubr.bf16.gmra.mrb[0].mxu0 %v4871
      %v6623 = vpop.f32.mrb[0].mxu0
      %v6624 = vadd.f32 %v6319, %v6623
      %v6625 = vpop.f32.mrb[0].mxu0
      %v6626 = vpop.f32.mrb[0].mxu0
      %v6627 = vadd.f32 %v6322, %v6626
      %v6628 = vpop.f32.mrb[0].mxu0
      %6629 = vmatprep.mubr.bf16.mxu0 %v5106
      %6630 = vmatmul.mubr.bf16.gmra.mrb[0].mxu0 %v4872
      %v6631 = vpop.f32.mrb[0].mxu0
      %v6632 = vadd.f32 %v6327, %v6631
      %v6633 = vpop.f32.mrb[0].mxu0
      %v6634 = vpop.f32.mrb[0].mxu0
      %v6635 = vadd.f32 %v6330, %v6634
      %v6636 = vpop.f32.mrb[0].mxu0
      %6637 = vmatprep.mubr.bf16.mxu0 %v5118
      %6638 = vmatmul.mubr.bf16.gmra.mrb[0].mxu0 %v4873
      %v6639 = vpop.f32.mrb[0].mxu0
      %v6640 = vadd.f32 %v6335, %v6639
      %v6641 = vpop.f32.mrb[0].mxu0
      %v6642 = vpop.f32.mrb[0].mxu0
      %v6643 = vadd.f32 %v6338, %v6642
      %v6644 = vpop.f32.mrb[0].mxu0
      %6645 = vmatprep.mubr.bf16.mxu0 %v5130
      %6646 = vmatmul.mubr.bf16.gmra.mrb[0].mxu0 %v4874
      %v6647 = vpop.f32.mrb[0].mxu0
      %v6648 = vadd.f32 %v6343, %v6647
      %v6649 = vpop.f32.mrb[0].mxu0
      %v6650 = vpop.f32.mrb[0].mxu0
      %v6651 = vadd.f32 %v6346, %v6650
      %v6652 = vpop.f32.mrb[0].mxu0
      %6653 = vdwg.mxu0
      %6654 = vmatprep.subr.bf16.mxu0 0
      %6655 = vmatpush1.bf16.msra.mxu0 %v6461
      %6656 = vmatprep.subr.bf16.mxu0 0
      %6657 = vmatpush1.bf16.msra.mxu0 %v6462
      %6658 = vmatprep.subr.bf16.mxu0 0
      %6659 = vmatpush1.bf16.msra.mxu0 %v6463
      %6660 = vmatprep.subr.bf16.mxu0 0
      %6661 = vmatpush1.bf16.msra.mxu0 %v6464
      %6662 = vmatprep.subr.bf16.mxu0 0
      %6663 = vmatpush1.bf16.msra.mxu0 %v6465
      %6664 = vmatprep.subr.bf16.mxu0 0
      %6665 = vmatpush1.bf16.msra.mxu0 %v6466
      %6666 = vmatprep.subr.bf16.mxu0 0
      %6667 = vmatpush1.bf16.msra.mxu0 %v6467
      %6668 = vmatprep.subr.bf16.mxu0 0
      %6669 = vmatpush1.bf16.msra.mxu0 %v6468
      %6670 = vmatprep.subr.bf16.mxu0 0
      %6671 = vmatpush1.bf16.msra.mxu0 0
      %6672 = vmatprep.subr.bf16.mxu0 0
      %6673 = vmatpush1.bf16.msra.mxu0 0
      %6674 = vmatprep.subr.bf16.mxu0 0
      %6675 = vmatpush1.bf16.msra.mxu0 0
      %6676 = vmatprep.subr.bf16.mxu0 0
      %6677 = vmatpush1.bf16.msra.mxu0 0
      %6678 = vmatprep.subr.bf16.mxu0 0
      %6679 = vmatpush1.bf16.msra.mxu0 0
      %6680 = vmatprep.subr.bf16.mxu0 0
      %6681 = vmatpush1.bf16.msra.mxu0 0
      %6682 = vmatprep.subr.bf16.mxu0 0
      %6683 = vmatpush1.bf16.msra.mxu0 0
      %6684 = vmatprep.subr.bf16.mxu0 0
      %6685 = vmatpush1.bf16.msra.mxu0 0
      %6686 = vmatprep.mubr.bf16.mxu0 0
      %6687 = vmatmul.mubr.bf16.gmra.mrb[0].mxu0 %v5197
      %v6688 = vpop.f32.mrb[0].mxu0
      %v6689 = vadd.f32 %v6528, %v6688
      %v6690 = vpop.f32.mrb[0].mxu0
      %v6691 = vpop.f32.mrb[0].mxu0
      %v6692 = vadd.f32 %v6531, %v6691
      %v6693 = vpop.f32.mrb[0].mxu0
      %6694 = vmatprep.mubr.bf16.mxu0 0
      %6695 = vmatmul.mubr.bf16.gmra.mrb[0].mxu0 %v5200
      %v6696 = vpop.f32.mrb[0].mxu0
      %v6697 = vadd.f32 %v6536, %v6696
      %v6698 = vpop.f32.mrb[0].mxu0
      %v6699 = vpop.f32.mrb[0].mxu0
      %v6700 = vadd.f32 %v6539, %v6699
      %v6701 = vpop.f32.mrb[0].mxu0
      %6702 = vmatprep.mubr.bf16.mxu0 0
      %6703 = vmatmul.mubr.bf16.gmra.mrb[0].mxu0 %v5203
      %v6704 = vpop.f32.mrb[0].mxu0
      %v6705 = vadd.f32 %v6544, %v6704
      %v6706 = vpop.f32.mrb[0].mxu0
      %v6707 = vpop.f32.mrb[0].mxu0
      %v6708 = vadd.f32 %v6547, %v6707
      %v6709 = vpop.f32.mrb[0].mxu0
      %6710 = vmatprep.mubr.bf16.mxu0 0
      %6711 = vmatmul.mubr.bf16.gmra.mrb[0].mxu0 %v5206
      %v6712 = vpop.f32.mrb[0].mxu0
      %v6713 = vadd.f32 %v6552, %v6712
      %v6714 = vpop.f32.mrb[0].mxu0
      %v6715 = vpop.f32.mrb[0].mxu0
      %v6716 = vadd.f32 %v6555, %v6715
      %v6717 = vpop.f32.mrb[0].mxu0
      %6718 = vmatprep.mubr.bf16.mxu0 0
      %6719 = vmatmul.mubr.bf16.gmra.mrb[0].mxu0 %v5209
      %v6720 = vpop.f32.mrb[0].mxu0
      %v6721 = vadd.f32 %v6560, %v6720
      %v6722 = vpop.f32.mrb[0].mxu0
      %v6723 = vpop.f32.mrb[0].mxu0
      %v6724 = vadd.f32 %v6563, %v6723
      %v6725 = vpop.f32.mrb[0].mxu0
      %6726 = vmatprep.mubr.bf16.mxu0 0
      %6727 = vmatmul.mubr.bf16.gmra.mrb[0].mxu0 %v5212
      %v6728 = vpop.f32.mrb[0].mxu0
      %v6729 = vadd.f32 %v6568, %v6728
      %v6730 = vpop.f32.mrb[0].mxu0
      %v6731 = vpop.f32.mrb[0].mxu0
      %v6732 = vadd.f32 %v6571, %v6731
      %v6733 = vpop.f32.mrb[0].mxu0
      %6734 = vmatprep.mubr.bf16.mxu0 0
      %6735 = vmatmul.mubr.bf16.gmra.mrb[0].mxu0 %v5215
      %v6736 = vpop.f32.mrb[0].mxu0
      %v6737 = vadd.f32 %v6576, %v6736
      %v6738 = vpop.f32.mrb[0].mxu0
      %v6739 = vpop.f32.mrb[0].mxu0
      %v6740 = vadd.f32 %v6579, %v6739
      %v6741 = vpop.f32.mrb[0].mxu0
      %6742 = vmatprep.mubr.bf16.mxu0 0
      %6743 = vmatmul.mubr.bf16.gmra.mrb[0].mxu0 %v5218
      %v6744 = vpop.f32.mrb[0].mxu0
      %v6745 = vadd.f32 %v6584, %v6744
      %v6746 = vpop.f32.mrb[0].mxu0
      %v6747 = vpop.f32.mrb[0].mxu0
      %v6748 = vadd.f32 %v6587, %v6747
      %v6749 = vpop.f32.mrb[0].mxu0
      %6750 = vmatprep.mubr.bf16.mxu0 0
      %6751 = vmatmul.mubr.bf16.gmra.mrb[0].mxu0 %v5221
      %v6752 = vpop.f32.mrb[0].mxu0
      %v6753 = vadd.f32 %v6592, %v6752
      %v6754 = vpop.f32.mrb[0].mxu0
      %v6755 = vpop.f32.mrb[0].mxu0
      %v6756 = vadd.f32 %v6595, %v6755
      %v6757 = vpop.f32.mrb[0].mxu0
      %6758 = vmatprep.mubr.bf16.mxu0 0
      %6759 = vmatmul.mubr.bf16.gmra.mrb[0].mxu0 %v5224
      %v6760 = vpop.f32.mrb[0].mxu0
      %v6761 = vadd.f32 %v6600, %v6760
      %v6762 = vpop.f32.mrb[0].mxu0
      %v6763 = vpop.f32.mrb[0].mxu0
      %v6764 = vadd.f32 %v6603, %v6763
      %v6765 = vpop.f32.mrb[0].mxu0
      %6766 = vmatprep.mubr.bf16.mxu0 0
      %6767 = vmatmul.mubr.bf16.gmra.mrb[0].mxu0 %v5227
      %v6768 = vpop.f32.mrb[0].mxu0
      %v6769 = vadd.f32 %v6608, %v6768
      %v6770 = vpop.f32.mrb[0].mxu0
      %v6771 = vpop.f32.mrb[0].mxu0
      %v6772 = vadd.f32 %v6611, %v6771
      %v6773 = vpop.f32.mrb[0].mxu0
      %6774 = vmatprep.mubr.bf16.mxu0 0
      %6775 = vmatmul.mubr.bf16.gmra.mrb[0].mxu0 %v5230
      %v6776 = vpop.f32.mrb[0].mxu0
      %v6777 = vadd.f32 %v6616, %v6776
      %v6778 = vpop.f32.mrb[0].mxu0
      %v6779 = vpop.f32.mrb[0].mxu0
      %v6780 = vadd.f32 %v6619, %v6779
      %v6781 = vpop.f32.mrb[0].mxu0
      %6782 = vmatprep.mubr.bf16.mxu0 0
      %6783 = vmatmul.mubr.bf16.gmra.mrb[0].mxu0 %v5233
      %v6784 = vpop.f32.mrb[0].mxu0
      %v6785 = vadd.f32 %v6624, %v6784
      %v6786 = vpop.f32.mrb[0].mxu0
      %v6787 = vpop.f32.mrb[0].mxu0
      %v6788 = vadd.f32 %v6627, %v6787
      %v6789 = vpop.f32.mrb[0].mxu0
      %6790 = vmatprep.mubr.bf16.mxu0 0
      %6791 = vmatmul.mubr.bf16.gmra.mrb[0].mxu0 %v5236
      %v6792 = vpop.f32.mrb[0].mxu0
      %v6793 = vadd.f32 %v6632, %v6792
      %v6794 = vpop.f32.mrb[0].mxu0
      %v6795 = vpop.f32.mrb[0].mxu0
      %v6796 = vadd.f32 %v6635, %v6795
      %v6797 = vpop.f32.mrb[0].mxu0
      %6798 = vmatprep.mubr.bf16.mxu0 0
      %6799 = vmatmul.mubr.bf16.gmra.mrb[0].mxu0 %v5239
      %v6800 = vpop.f32.mrb[0].mxu0
      %v6801 = vadd.f32 %v6640, %v6800
      %v6802 = vpop.f32.mrb[0].mxu0
      %v6803 = vpop.f32.mrb[0].mxu0
      %v6804 = vadd.f32 %v6643, %v6803
      %v6805 = vpop.f32.mrb[0].mxu0
      %6806 = vmatprep.mubr.bf16.mxu0 0
      %6807 = vmatmul.mubr.bf16.gmra.mrb[0].mxu0 %v5242
      %v6808 = vpop.f32.mrb[0].mxu0
      %v6809 = vadd.f32 %v6648, %v6808
      %v6810 = vpop.f32.mrb[0].mxu0
      %v6811 = vpop.f32.mrb[0].mxu0
      %v6812 = vadd.f32 %v6651, %v6811
      %v6813 = vpop.f32.mrb[0].mxu0
      %6814 = vdwg.mxu0
      %s6815 = scalar_lea.vmem [#allocation3], 24
      %v6816 = vld [vmem:[%s6815] sm:$0xf]
      %v6817 = vld [vmem:[%s6815 + $0x4] sm:$0xf]
      %v6818 = vld [vmem:[%s6815 + $0xc] sm:$0xf]
      %v6819 = vld [vmem:[%s6815 + $0x10] sm:$0xf]
      %v6820 = vld [vmem:[%s6815 + $0x18] sm:$0xf]
      %v6821 = vld [vmem:[%s6815 + $0x1c] sm:$0xf]
      %v6822 = vld [vmem:[%s6815 + $0x24] sm:$0xf]
      %v6823 = vld [vmem:[%s6815 + $0x28] sm:$0xf]
      %v6824 = vld [vmem:[%s6815 + $0x30] sm:$0xf]
      %v6825 = vld [vmem:[%s6815 + $0x34] sm:$0xf]
      %v6826 = vld [vmem:[%s6815 + $0x3c] sm:$0xf]
      %v6827 = vld [vmem:[%s6815 + $0x40] sm:$0xf]
      %v6828 = vld [vmem:[%s6815 + $0x48] sm:$0xf]
      %v6829 = vld [vmem:[%s6815 + $0x4c] sm:$0xf]
      %v6830 = vld [vmem:[%s6815 + $0x54] sm:$0xf]
      %v6831 = vld [vmem:[%s6815 + $0x58] sm:$0xf]
      %v6832 = vld [vmem:[%s6815 + $0x60] sm:$0xf]
      %v6833 = vld [vmem:[%s6815 + $0x64] sm:$0xf]
      %v6834 = vld [vmem:[%s6815 + $0x6c] sm:$0xf]
      %v6835 = vld [vmem:[%s6815 + $0x70] sm:$0xf]
      %v6836 = vld [vmem:[%s6815 + $0x78] sm:$0xf]
      %v6837 = vld [vmem:[%s6815 + $0x7c] sm:$0xf]
      %v6838 = vld [vmem:[%s6815 + $0x84] sm:$0xf]
      %v6839 = vld [vmem:[%s6815 + $0x88] sm:$0xf]
      %v6840 = vld [vmem:[%s6815 + $0x90] sm:$0xf]
      %v6841 = vld [vmem:[%s6815 + $0x94] sm:$0xf]
      %v6842 = vld [vmem:[%s6815 + $0x9c] sm:$0xf]
      %v6843 = vld [vmem:[%s6815 + $0xa0] sm:$0xf]
      %v6844 = vld [vmem:[%s6815 + $0xa8] sm:$0xf]
      %v6845 = vld [vmem:[%s6815 + $0xac] sm:$0xf]
      %v6846 = vld [vmem:[%s6815 + $0xb4] sm:$0xf]
      %v6847 = vld [vmem:[%s6815 + $0xb8] sm:$0xf]
      %v6848 = vld [vmem:[%s6815 + $0x8] sm:$0x1]
      %v6849 = vld [vmem:[%s6815 + $0x14] sm:$0x1]
      %v6850 = vld [vmem:[%s6815 + $0x20] sm:$0x1]
      %v6851 = vld [vmem:[%s6815 + $0x2c] sm:$0x1]
      %v6852 = vld [vmem:[%s6815 + $0x38] sm:$0x1]
      %v6853 = vld [vmem:[%s6815 + $0x44] sm:$0x1]
      %v6854 = vld [vmem:[%s6815 + $0x50] sm:$0x1]
      %v6855 = vld [vmem:[%s6815 + $0x5c] sm:$0x1]
      %v6856 = vld [vmem:[%s6815 + $0x68] sm:$0x1]
      %v6857 = vld [vmem:[%s6815 + $0x74] sm:$0x1]
      %v6858 = vld [vmem:[%s6815 + $0x80] sm:$0x1]
      %v6859 = vld [vmem:[%s6815 + $0x8c] sm:$0x1]
      %v6860 = vld [vmem:[%s6815 + $0x98] sm:$0x1]
      %v6861 = vld [vmem:[%s6815 + $0xa4] sm:$0x1]
      %v6862 = vld [vmem:[%s6815 + $0xb0] sm:$0x1]
      %v6863 = vld [vmem:[%s6815 + $0xbc] sm:$0x1]
      %v6864 = vld [vmem:[%s6815] sm:$0xe]
      %v6865 = vld [vmem:[%s6815 + $0xc] sm:$0xe]
      %v6866 = vld [vmem:[%s6815 + $0x18] sm:$0xe]
      %v6867 = vld [vmem:[%s6815 + $0x24] sm:$0xe]
      %v6868 = vld [vmem:[%s6815 + $0x30] sm:$0xe]
      %v6869 = vld [vmem:[%s6815 + $0x3c] sm:$0xe]
      %v6870 = vld [vmem:[%s6815 + $0x48] sm:$0xe]
      %v6871 = vld [vmem:[%s6815 + $0x54] sm:$0xe]
      %v6872 = vld [vmem:[%s6815 + $0x60] sm:$0xe]
      %v6873 = vld [vmem:[%s6815 + $0x6c] sm:$0xe]
      %v6874 = vld [vmem:[%s6815 + $0x78] sm:$0xe]
      %v6875 = vld [vmem:[%s6815 + $0x84] sm:$0xe]
      %v6876 = vld [vmem:[%s6815 + $0x90] sm:$0xe]
      %v6877 = vld [vmem:[%s6815 + $0x9c] sm:$0xe]
      %v6878 = vld [vmem:[%s6815 + $0xa8] sm:$0xe]
      %v6879 = vld [vmem:[%s6815 + $0xb4] sm:$0xe]
      %v6912 = vunpack.c.l.b16 %v6816
      %v6913 = vunpack.c.l.b16 %v6817
      %v6914 = vunpack.c.l.b16 %v6818
      %v6915 = vunpack.c.l.b16 %v6819
      %v6916 = vunpack.c.l.b16 %v6820
      %v6917 = vunpack.c.l.b16 %v6821
      %v6918 = vunpack.c.l.b16 %v6822
      %v6919 = vunpack.c.l.b16 %v6823
      %v6920 = vunpack.c.l.b16 %v6824
      %v6921 = vunpack.c.l.b16 %v6825
      %v6922 = vunpack.c.l.b16 %v6826
      %v6923 = vunpack.c.l.b16 %v6827
      %v6924 = vunpack.c.l.b16 %v6828
      %v6925 = vunpack.c.l.b16 %v6829
      %v6926 = vunpack.c.l.b16 %v6830
      %v6927 = vunpack.c.l.b16 %v6831
      %v6928 = vunpack.c.l.b16 %v6832
      %v6929 = vunpack.c.l.b16 %v6833
      %v6930 = vunpack.c.l.b16 %v6834
      %v6931 = vunpack.c.l.b16 %v6835
      %v6932 = vunpack.c.l.b16 %v6836
      %v6933 = vunpack.c.l.b16 %v6837
      %v6934 = vunpack.c.l.b16 %v6838
      %v6935 = vunpack.c.l.b16 %v6839
      %v6936 = vunpack.c.l.b16 %v6840
      %v6937 = vunpack.c.l.b16 %v6841
      %v6938 = vunpack.c.l.b16 %v6842
      %v6939 = vunpack.c.l.b16 %v6843
      %v6940 = vunpack.c.l.b16 %v6844
      %v6941 = vunpack.c.l.b16 %v6845
      %v6942 = vunpack.c.l.b16 %v6846
      %v6943 = vunpack.c.l.b16 %v6847
      %v6944 = vpack.c.b16 %v6913, %v6912
      %v6945 = vpack.c.b16 %v6915, %v6914
      %v6946 = vpack.c.b16 %v6917, %v6916
      %v6947 = vpack.c.b16 %v6919, %v6918
      %v6948 = vpack.c.b16 %v6921, %v6920
      %v6949 = vpack.c.b16 %v6923, %v6922
      %v6950 = vpack.c.b16 %v6925, %v6924
      %v6951 = vpack.c.b16 %v6927, %v6926
      %v6952 = vpack.c.b16 %v6929, %v6928
      %v6953 = vpack.c.b16 %v6931, %v6930
      %v6954 = vpack.c.b16 %v6933, %v6932
      %v6955 = vpack.c.b16 %v6935, %v6934
      %v6956 = vpack.c.b16 %v6937, %v6936
      %v6957 = vpack.c.b16 %v6939, %v6938
      %v6958 = vpack.c.b16 %v6941, %v6940
      %v6959 = vpack.c.b16 %v6943, %v6942
      %v6992 = vunpack.c.l.b16 %v6848
      %v6993 = vunpack.c.l.b16 %v6849
      %v6994 = vunpack.c.l.b16 %v6850
      %v6995 = vunpack.c.l.b16 %v6851
      %v6996 = vunpack.c.l.b16 %v6852
      %v6997 = vunpack.c.l.b16 %v6853
      %v6998 = vunpack.c.l.b16 %v6854
      %v6999 = vunpack.c.l.b16 %v6855
      %v7000 = vunpack.c.l.b16 %v6856
      %v7001 = vunpack.c.l.b16 %v6857
      %v7002 = vunpack.c.l.b16 %v6858
      %v7003 = vunpack.c.l.b16 %v6859
      %v7004 = vunpack.c.l.b16 %v6860
      %v7005 = vunpack.c.l.b16 %v6861
      %v7006 = vunpack.c.l.b16 %v6862
      %v7007 = vunpack.c.l.b16 %v6863
      %v7008 = vpack.c.b16 %v6992, %v6992
      %v7009 = vpack.c.b16 %v6993, %v6993
      %v7010 = vpack.c.b16 %v6994, %v6994
      %v7011 = vpack.c.b16 %v6995, %v6995
      %v7012 = vpack.c.b16 %v6996, %v6996
      %v7013 = vpack.c.b16 %v6997, %v6997
      %v7014 = vpack.c.b16 %v6998, %v6998
      %v7015 = vpack.c.b16 %v6999, %v6999
      %v7016 = vpack.c.b16 %v7000, %v7000
      %v7017 = vpack.c.b16 %v7001, %v7001
      %v7018 = vpack.c.b16 %v7002, %v7002
      %v7019 = vpack.c.b16 %v7003, %v7003
      %v7020 = vpack.c.b16 %v7004, %v7004
      %v7021 = vpack.c.b16 %v7005, %v7005
      %v7022 = vpack.c.b16 %v7006, %v7006
      %v7023 = vpack.c.b16 %v7007, %v7007
      %v7025 = vshrl.u32 %v6944, 16
      %v7027 = vshll.u32 %v6944, 16
      %v7029 = vrot.slane %v7027, 1
      %v7030 = vor.u32 %v7025, %v7029
      %v7032 = vshll.u32 %v7008, 16
      %v7034 = vrot.slane %v7032, 1
      %v7035 = vsel %vm1063, %v7030, %v7034
      %v7037 = vshrl.u32 %v6945, 16
      %v7039 = vshll.u32 %v6945, 16
      %v7041 = vrot.slane %v7039, 1
      %v7042 = vor.u32 %v7037, %v7041
      %v7044 = vshll.u32 %v7009, 16
      %v7046 = vrot.slane %v7044, 1
      %v7047 = vsel %vm1063, %v7042, %v7046
      %v7049 = vshrl.u32 %v6946, 16
      %v7051 = vshll.u32 %v6946, 16
      %v7053 = vrot.slane %v7051, 1
      %v7054 = vor.u32 %v7049, %v7053
      %v7056 = vshll.u32 %v7010, 16
      %v7058 = vrot.slane %v7056, 1
      %v7059 = vsel %vm1063, %v7054, %v7058
      %v7061 = vshrl.u32 %v6947, 16
      %v7063 = vshll.u32 %v6947, 16
      %v7065 = vrot.slane %v7063, 1
      %v7066 = vor.u32 %v7061, %v7065
      %v7068 = vshll.u32 %v7011, 16
      %v7070 = vrot.slane %v7068, 1
      %v7071 = vsel %vm1063, %v7066, %v7070
      %v7073 = vshrl.u32 %v6948, 16
      %v7075 = vshll.u32 %v6948, 16
      %v7077 = vrot.slane %v7075, 1
      %v7078 = vor.u32 %v7073, %v7077
      %v7080 = vshll.u32 %v7012, 16
      %v7082 = vrot.slane %v7080, 1
      %v7083 = vsel %vm1063, %v7078, %v7082
      %v7085 = vshrl.u32 %v6949, 16
      %v7087 = vshll.u32 %v6949, 16
      %v7089 = vrot.slane %v7087, 1
      %v7090 = vor.u32 %v7085, %v7089
      %v7092 = vshll.u32 %v7013, 16
      %v7094 = vrot.slane %v7092, 1
      %v7095 = vsel %vm1063, %v7090, %v7094
      %v7097 = vshrl.u32 %v6950, 16
      %v7099 = vshll.u32 %v6950, 16
      %v7101 = vrot.slane %v7099, 1
      %v7102 = vor.u32 %v7097, %v7101
      %v7104 = vshll.u32 %v7014, 16
      %v7106 = vrot.slane %v7104, 1
      %v7107 = vsel %vm1063, %v7102, %v7106
      %v7109 = vshrl.u32 %v6951, 16
      %v7111 = vshll.u32 %v6951, 16
      %v7113 = vrot.slane %v7111, 1
      %v7114 = vor.u32 %v7109, %v7113
      %v7116 = vshll.u32 %v7015, 16
      %v7118 = vrot.slane %v7116, 1
      %v7119 = vsel %vm1063, %v7114, %v7118
      %v7121 = vshrl.u32 %v6952, 16
      %v7123 = vshll.u32 %v6952, 16
      %v7125 = vrot.slane %v7123, 1
      %v7126 = vor.u32 %v7121, %v7125
      %v7128 = vshll.u32 %v7016, 16
      %v7130 = vrot.slane %v7128, 1
      %v7131 = vsel %vm1063, %v7126, %v7130
      %v7133 = vshrl.u32 %v6953, 16
      %v7135 = vshll.u32 %v6953, 16
      %v7137 = vrot.slane %v7135, 1
      %v7138 = vor.u32 %v7133, %v7137
      %v7140 = vshll.u32 %v7017, 16
      %v7142 = vrot.slane %v7140, 1
      %v7143 = vsel %vm1063, %v7138, %v7142
      %v7145 = vshrl.u32 %v6954, 16
      %v7147 = vshll.u32 %v6954, 16
      %v7149 = vrot.slane %v7147, 1
      %v7150 = vor.u32 %v7145, %v7149
      %v7152 = vshll.u32 %v7018, 16
      %v7154 = vrot.slane %v7152, 1
      %v7155 = vsel %vm1063, %v7150, %v7154
      %v7157 = vshrl.u32 %v6955, 16
      %v7159 = vshll.u32 %v6955, 16
      %v7161 = vrot.slane %v7159, 1
      %v7162 = vor.u32 %v7157, %v7161
      %v7164 = vshll.u32 %v7019, 16
      %v7166 = vrot.slane %v7164, 1
      %v7167 = vsel %vm1063, %v7162, %v7166
      %v7169 = vshrl.u32 %v6956, 16
      %v7171 = vshll.u32 %v6956, 16
      %v7173 = vrot.slane %v7171, 1
      %v7174 = vor.u32 %v7169, %v7173
      %v7176 = vshll.u32 %v7020, 16
      %v7178 = vrot.slane %v7176, 1
      %v7179 = vsel %vm1063, %v7174, %v7178
      %v7181 = vshrl.u32 %v6957, 16
      %v7183 = vshll.u32 %v6957, 16
      %v7185 = vrot.slane %v7183, 1
      %v7186 = vor.u32 %v7181, %v7185
      %v7188 = vshll.u32 %v7021, 16
      %v7190 = vrot.slane %v7188, 1
      %v7191 = vsel %vm1063, %v7186, %v7190
      %v7193 = vshrl.u32 %v6958, 16
      %v7195 = vshll.u32 %v6958, 16
      %v7197 = vrot.slane %v7195, 1
      %v7198 = vor.u32 %v7193, %v7197
      %v7200 = vshll.u32 %v7022, 16
      %v7202 = vrot.slane %v7200, 1
      %v7203 = vsel %vm1063, %v7198, %v7202
      %v7205 = vshrl.u32 %v6959, 16
      %v7207 = vshll.u32 %v6959, 16
      %v7209 = vrot.slane %v7207, 1
      %v7210 = vor.u32 %v7205, %v7209
      %v7212 = vshll.u32 %v7023, 16
      %v7214 = vrot.slane %v7212, 1
      %v7215 = vsel %vm1063, %v7210, %v7214
      %v7248 = vunpack.c.l.b16 %v6864
      %v7249 = vunpack.c.l.b16 %v6865
      %v7250 = vunpack.c.l.b16 %v6866
      %v7251 = vunpack.c.l.b16 %v6867
      %v7252 = vunpack.c.l.b16 %v6868
      %v7253 = vunpack.c.l.b16 %v6869
      %v7254 = vunpack.c.l.b16 %v6870
      %v7255 = vunpack.c.l.b16 %v6871
      %v7256 = vunpack.c.l.b16 %v6872
      %v7257 = vunpack.c.l.b16 %v6873
      %v7258 = vunpack.c.l.b16 %v6874
      %v7259 = vunpack.c.l.b16 %v6875
      %v7260 = vunpack.c.l.b16 %v6876
      %v7261 = vunpack.c.l.b16 %v6877
      %v7262 = vunpack.c.l.b16 %v6878
      %v7263 = vunpack.c.l.b16 %v6879
      %v7264 = vpack.c.b16 %v6913, %v7248
      %v7265 = vpack.c.b16 %v6915, %v7249
      %v7266 = vpack.c.b16 %v6917, %v7250
      %v7267 = vpack.c.b16 %v6919, %v7251
      %v7268 = vpack.c.b16 %v6921, %v7252
      %v7269 = vpack.c.b16 %v6923, %v7253
      %v7270 = vpack.c.b16 %v6925, %v7254
      %v7271 = vpack.c.b16 %v6927, %v7255
      %v7272 = vpack.c.b16 %v6929, %v7256
      %v7273 = vpack.c.b16 %v6931, %v7257
      %v7274 = vpack.c.b16 %v6933, %v7258
      %v7275 = vpack.c.b16 %v6935, %v7259
      %v7276 = vpack.c.b16 %v6937, %v7260
      %v7277 = vpack.c.b16 %v6939, %v7261
      %v7278 = vpack.c.b16 %v6941, %v7262
      %v7279 = vpack.c.b16 %v6943, %v7263
      %v7280 = vrot.slane %v7264, 1
      %v7281 = vrot.slane %v7008, 1
      %v7282 = vsel %vm1320, %v7280, %v7281
      %v7283 = vrot.slane %v7265, 1
      %v7284 = vrot.slane %v7009, 1
      %v7285 = vsel %vm1320, %v7283, %v7284
      %v7286 = vrot.slane %v7266, 1
      %v7287 = vrot.slane %v7010, 1
      %v7288 = vsel %vm1320, %v7286, %v7287
      %v7289 = vrot.slane %v7267, 1
      %v7290 = vrot.slane %v7011, 1
      %v7291 = vsel %vm1320, %v7289, %v7290
      %v7292 = vrot.slane %v7268, 1
      %v7293 = vrot.slane %v7012, 1
      %v7294 = vsel %vm1320, %v7292, %v7293
      %v7295 = vrot.slane %v7269, 1
      %v7296 = vrot.slane %v7013, 1
      %v7297 = vsel %vm1320, %v7295, %v7296
      %v7298 = vrot.slane %v7270, 1
      %v7299 = vrot.slane %v7014, 1
      %v7300 = vsel %vm1320, %v7298, %v7299
      %v7301 = vrot.slane %v7271, 1
      %v7302 = vrot.slane %v7015, 1
      %v7303 = vsel %vm1320, %v7301, %v7302
      %v7304 = vrot.slane %v7272, 1
      %v7305 = vrot.slane %v7016, 1
      %v7306 = vsel %vm1320, %v7304, %v7305
      %v7307 = vrot.slane %v7273, 1
      %v7308 = vrot.slane %v7017, 1
      %v7309 = vsel %vm1320, %v7307, %v7308
      %v7310 = vrot.slane %v7274, 1
      %v7311 = vrot.slane %v7018, 1
      %v7312 = vsel %vm1320, %v7310, %v7311
      %v7313 = vrot.slane %v7275, 1
      %v7314 = vrot.slane %v7019, 1
      %v7315 = vsel %vm1320, %v7313, %v7314
      %v7316 = vrot.slane %v7276, 1
      %v7317 = vrot.slane %v7020, 1
      %v7318 = vsel %vm1320, %v7316, %v7317
      %v7319 = vrot.slane %v7277, 1
      %v7320 = vrot.slane %v7021, 1
      %v7321 = vsel %vm1320, %v7319, %v7320
      %v7322 = vrot.slane %v7278, 1
      %v7323 = vrot.slane %v7022, 1
      %v7324 = vsel %vm1320, %v7322, %v7323
      %v7325 = vrot.slane %v7279, 1
      %v7326 = vrot.slane %v7023, 1
      %v7327 = vsel %vm1320, %v7325, %v7326
      %v7344 = vld [vmem:[%s3 + $0x180] sm:$0xf]
      %v7345 = vld [vmem:[%s3 + $0x184] sm:$0xf]
      %v7346 = vld [vmem:[%s3 + $0x188] sm:$0xf]
      %v7347 = vld [vmem:[%s3 + $0x18c] sm:$0xf]
      %v7348 = vld [vmem:[%s3 + $0x190] sm:$0xf]
      %v7349 = vld [vmem:[%s3 + $0x194] sm:$0xf]
      %v7350 = vld [vmem:[%s3 + $0x198] sm:$0xf]
      %v7351 = vld [vmem:[%s3 + $0x19c] sm:$0xf]
      %v7352 = vld [vmem:[%s3 + $0x1a0] sm:$0xf]
      %v7353 = vld [vmem:[%s3 + $0x1a4] sm:$0xf]
      %v7354 = vld [vmem:[%s3 + $0x1a8] sm:$0xf]
      %v7355 = vld [vmem:[%s3 + $0x1ac] sm:$0xf]
      %v7356 = vld [vmem:[%s3 + $0x1b0] sm:$0xf]
      %v7357 = vld [vmem:[%s3 + $0x1b4] sm:$0xf]
      %v7358 = vld [vmem:[%s3 + $0x1b8] sm:$0xf]
      %v7359 = vld [vmem:[%s3 + $0x1bc] sm:$0xf]
      %v7360 = vld [vmem:[%s3 + $0x1c0] sm:$0xf]
      %v7361 = vld [vmem:[%s3 + $0x1c4] sm:$0xf]
      %v7362 = vld [vmem:[%s3 + $0x1c8] sm:$0xf]
      %v7363 = vld [vmem:[%s3 + $0x1cc] sm:$0xf]
      %v7364 = vld [vmem:[%s3 + $0x1d0] sm:$0xf]
      %v7365 = vld [vmem:[%s3 + $0x1d4] sm:$0xf]
      %v7366 = vld [vmem:[%s3 + $0x1d8] sm:$0xf]
      %v7367 = vld [vmem:[%s3 + $0x1dc] sm:$0xf]
      %v7368 = vld [vmem:[%s3 + $0x1e0] sm:$0xf]
      %v7369 = vld [vmem:[%s3 + $0x1e4] sm:$0xf]
      %v7370 = vld [vmem:[%s3 + $0x1e8] sm:$0xf]
      %v7371 = vld [vmem:[%s3 + $0x1ec] sm:$0xf]
      %v7372 = vld [vmem:[%s3 + $0x1f0] sm:$0xf]
      %v7373 = vld [vmem:[%s3 + $0x1f4] sm:$0xf]
      %v7374 = vld [vmem:[%s3 + $0x1f8] sm:$0xf]
      %v7375 = vld [vmem:[%s3 + $0x1fc] sm:$0xf]
      %v7376 = vld [vmem:[%s3 + $0x200] sm:$0xf]
      %v7377 = vld [vmem:[%s3 + $0x204] sm:$0xf]
      %v7378 = vld [vmem:[%s3 + $0x208] sm:$0xf]
      %v7379 = vld [vmem:[%s3 + $0x20c] sm:$0xf]
      %v7380 = vld [vmem:[%s3 + $0x210] sm:$0xf]
      %v7381 = vld [vmem:[%s3 + $0x214] sm:$0xf]
      %v7382 = vld [vmem:[%s3 + $0x218] sm:$0xf]
      %v7383 = vld [vmem:[%s3 + $0x21c] sm:$0xf]
      %v7384 = vld [vmem:[%s3 + $0x220] sm:$0xf]
      %v7385 = vld [vmem:[%s3 + $0x224] sm:$0xf]
      %v7386 = vld [vmem:[%s3 + $0x228] sm:$0xf]
      %v7387 = vld [vmem:[%s3 + $0x22c] sm:$0xf]
      %v7388 = vld [vmem:[%s3 + $0x230] sm:$0xf]
      %v7389 = vld [vmem:[%s3 + $0x234] sm:$0xf]
      %v7390 = vld [vmem:[%s3 + $0x238] sm:$0xf]
      %v7391 = vld [vmem:[%s3 + $0x23c] sm:$0xf]
      %v7440 = vunpack.c.l.b16 %v7344
      %v7441 = vunpack.c.l.b16 %v7345
      %v7442 = vunpack.c.l.b16 %v7346
      %v7443 = vunpack.c.l.b16 %v7347
      %v7444 = vunpack.c.l.b16 %v7348
      %v7445 = vunpack.c.l.b16 %v7349
      %v7446 = vunpack.c.l.b16 %v7350
      %v7447 = vunpack.c.l.b16 %v7351
      %v7448 = vunpack.c.l.b16 %v7352
      %v7449 = vunpack.c.l.b16 %v7353
      %v7450 = vunpack.c.l.b16 %v7354
      %v7451 = vunpack.c.l.b16 %v7355
      %v7452 = vunpack.c.l.b16 %v7356
      %v7453 = vunpack.c.l.b16 %v7357
      %v7454 = vunpack.c.l.b16 %v7358
      %v7455 = vunpack.c.l.b16 %v7359
      %v7456 = vunpack.c.l.b16 %v7360
      %v7457 = vunpack.c.l.b16 %v7361
      %v7458 = vunpack.c.l.b16 %v7362
      %v7459 = vunpack.c.l.b16 %v7363
      %v7460 = vunpack.c.l.b16 %v7364
      %v7461 = vunpack.c.l.b16 %v7365
      %v7462 = vunpack.c.l.b16 %v7366
      %v7463 = vunpack.c.l.b16 %v7367
      %v7464 = vunpack.c.l.b16 %v7368
      %v7465 = vunpack.c.l.b16 %v7369
      %v7466 = vunpack.c.l.b16 %v7370
      %v7467 = vunpack.c.l.b16 %v7371
      %v7468 = vunpack.c.l.b16 %v7372
      %v7469 = vunpack.c.l.b16 %v7373
      %v7470 = vunpack.c.l.b16 %v7374
      %v7471 = vunpack.c.l.b16 %v7375
      %v7472 = vunpack.c.l.b16 %v7376
      %v7473 = vunpack.c.l.b16 %v7377
      %v7474 = vunpack.c.l.b16 %v7378
      %v7475 = vunpack.c.l.b16 %v7379
      %v7476 = vunpack.c.l.b16 %v7380
      %v7477 = vunpack.c.l.b16 %v7381
      %v7478 = vunpack.c.l.b16 %v7382
      %v7479 = vunpack.c.l.b16 %v7383
      %v7480 = vunpack.c.l.b16 %v7384
      %v7481 = vunpack.c.l.b16 %v7385
      %v7482 = vunpack.c.l.b16 %v7386
      %v7483 = vunpack.c.l.b16 %v7387
      %v7484 = vunpack.c.l.b16 %v7388
      %v7485 = vunpack.c.l.b16 %v7389
      %v7486 = vunpack.c.l.b16 %v7390
      %v7487 = vunpack.c.l.b16 %v7391
      %v7488 = vpack.c.b16 %v7441, %v7440
      %v7489 = vpack.c.b16 %v7443, %v7442
      %v7490 = vpack.c.b16 %v7445, %v7444
      %v7491 = vpack.c.b16 %v7447, %v7446
      %v7492 = vpack.c.b16 %v7449, %v7448
      %v7493 = vpack.c.b16 %v7451, %v7450
      %v7494 = vpack.c.b16 %v7453, %v7452
      %v7495 = vpack.c.b16 %v7455, %v7454
      %v7496 = vpack.c.b16 %v7457, %v7456
      %v7497 = vpack.c.b16 %v7459, %v7458
      %v7498 = vpack.c.b16 %v7461, %v7460
      %v7499 = vpack.c.b16 %v7463, %v7462
      %v7500 = vpack.c.b16 %v7465, %v7464
      %v7501 = vpack.c.b16 %v7467, %v7466
      %v7502 = vpack.c.b16 %v7469, %v7468
      %v7503 = vpack.c.b16 %v7471, %v7470
      %v7504 = vpack.c.b16 %v7473, %v7472
      %v7505 = vpack.c.b16 %v7475, %v7474
      %v7506 = vpack.c.b16 %v7477, %v7476
      %v7507 = vpack.c.b16 %v7479, %v7478
      %v7508 = vpack.c.b16 %v7481, %v7480
      %v7509 = vpack.c.b16 %v7483, %v7482
      %v7510 = vpack.c.b16 %v7485, %v7484
      %v7511 = vpack.c.b16 %v7487, %v7486
      %7536 = vmatprep.subr.bf16.mxu0 0
      %7537 = vmatpush1.bf16.msra.mxu0 %v7488
      %7538 = vmatprep.subr.bf16.mxu0 0
      %7539 = vmatpush1.bf16.msra.mxu0 %v7489
      %7540 = vmatprep.subr.bf16.mxu0 0
      %7541 = vmatpush1.bf16.msra.mxu0 %v7490
      %7542 = vmatprep.subr.bf16.mxu0 0
      %7543 = vmatpush1.bf16.msra.mxu0 %v7491
      %7544 = vmatprep.subr.bf16.mxu0 0
      %7545 = vmatpush1.bf16.msra.mxu0 %v7492
      %7546 = vmatprep.subr.bf16.mxu0 0
      %7547 = vmatpush1.bf16.msra.mxu0 %v7493
      %7548 = vmatprep.subr.bf16.mxu0 0
      %7549 = vmatpush1.bf16.msra.mxu0 %v7494
      %7550 = vmatprep.subr.bf16.mxu0 0
      %7551 = vmatpush1.bf16.msra.mxu0 %v7495
      %7552 = vmatprep.subr.bf16.mxu0 0
      %7553 = vmatpush1.bf16.msra.mxu0 %v7496
      %7554 = vmatprep.subr.bf16.mxu0 0
      %7555 = vmatpush1.bf16.msra.mxu0 %v7497
      %7556 = vmatprep.subr.bf16.mxu0 0
      %7557 = vmatpush1.bf16.msra.mxu0 %v7498
      %7558 = vmatprep.subr.bf16.mxu0 0
      %7559 = vmatpush1.bf16.msra.mxu0 %v7499
      %7560 = vmatprep.subr.bf16.mxu0 0
      %7561 = vmatpush1.bf16.msra.mxu0 %v7500
      %7562 = vmatprep.subr.bf16.mxu0 0
      %7563 = vmatpush1.bf16.msra.mxu0 %v7501
      %7564 = vmatprep.subr.bf16.mxu0 0
      %7565 = vmatpush1.bf16.msra.mxu0 %v7502
      %7566 = vmatprep.subr.bf16.mxu0 0
      %7567 = vmatpush1.bf16.msra.mxu0 %v7503
      %7568 = vmatprep.mubr.bf16.mxu0 %v7035
      %7569 = vmatmul.mubr.bf16.gmra.mrb[0].mxu0 %v6944
      %v7570 = vpop.f32.mrb[0].mxu0
      %v7571 = vadd.f32 0.0, %v7570
      %v7572 = vpop.f32.mrb[0].mxu0
      %v7573 = vpop.f32.mrb[0].mxu0
      %v7574 = vadd.f32 0.0, %v7573
      %v7575 = vpop.f32.mrb[0].mxu0
      %7576 = vmatprep.mubr.bf16.mxu0 %v7047
      %7577 = vmatmul.mubr.bf16.gmra.mrb[0].mxu0 %v6945
      %v7578 = vpop.f32.mrb[0].mxu0
      %v7579 = vadd.f32 0.0, %v7578
      %v7580 = vpop.f32.mrb[0].mxu0
      %v7581 = vpop.f32.mrb[0].mxu0
      %v7582 = vadd.f32 0.0, %v7581
      %v7583 = vpop.f32.mrb[0].mxu0
      %7584 = vmatprep.mubr.bf16.mxu0 %v7059
      %7585 = vmatmul.mubr.bf16.gmra.mrb[0].mxu0 %v6946
      %v7586 = vpop.f32.mrb[0].mxu0
      %v7587 = vadd.f32 0.0, %v7586
      %v7588 = vpop.f32.mrb[0].mxu0
      %v7589 = vpop.f32.mrb[0].mxu0
      %v7590 = vadd.f32 0.0, %v7589
      %v7591 = vpop.f32.mrb[0].mxu0
      %7592 = vmatprep.mubr.bf16.mxu0 %v7071
      %7593 = vmatmul.mubr.bf16.gmra.mrb[0].mxu0 %v6947
      %v7594 = vpop.f32.mrb[0].mxu0
      %v7595 = vadd.f32 0.0, %v7594
      %v7596 = vpop.f32.mrb[0].mxu0
      %v7597 = vpop.f32.mrb[0].mxu0
      %v7598 = vadd.f32 0.0, %v7597
      %v7599 = vpop.f32.mrb[0].mxu0
      %7600 = vmatprep.mubr.bf16.mxu0 %v7083
      %7601 = vmatmul.mubr.bf16.gmra.mrb[0].mxu0 %v6948
      %v7602 = vpop.f32.mrb[0].mxu0
      %v7603 = vadd.f32 0.0, %v7602
      %v7604 = vpop.f32.mrb[0].mxu0
      %v7605 = vpop.f32.mrb[0].mxu0
      %v7606 = vadd.f32 0.0, %v7605
      %v7607 = vpop.f32.mrb[0].mxu0
      %7608 = vmatprep.mubr.bf16.mxu0 %v7095
      %7609 = vmatmul.mubr.bf16.gmra.mrb[0].mxu0 %v6949
      %v7610 = vpop.f32.mrb[0].mxu0
      %v7611 = vadd.f32 0.0, %v7610
      %v7612 = vpop.f32.mrb[0].mxu0
      %v7613 = vpop.f32.mrb[0].mxu0
      %v7614 = vadd.f32 0.0, %v7613
      %v7615 = vpop.f32.mrb[0].mxu0
      %7616 = vmatprep.mubr.bf16.mxu0 %v7107
      %7617 = vmatmul.mubr.bf16.gmra.mrb[0].mxu0 %v6950
      %v7618 = vpop.f32.mrb[0].mxu0
      %v7619 = vadd.f32 0.0, %v7618
      %v7620 = vpop.f32.mrb[0].mxu0
      %v7621 = vpop.f32.mrb[0].mxu0
      %v7622 = vadd.f32 0.0, %v7621
      %v7623 = vpop.f32.mrb[0].mxu0
      %7624 = vmatprep.mubr.bf16.mxu0 %v7119
      %7625 = vmatmul.mubr.bf16.gmra.mrb[0].mxu0 %v6951
      %v7626 = vpop.f32.mrb[0].mxu0
      %v7627 = vadd.f32 0.0, %v7626
      %v7628 = vpop.f32.mrb[0].mxu0
      %v7629 = vpop.f32.mrb[0].mxu0
      %v7630 = vadd.f32 0.0, %v7629
      %v7631 = vpop.f32.mrb[0].mxu0
      %7632 = vmatprep.mubr.bf16.mxu0 %v7131
      %7633 = vmatmul.mubr.bf16.gmra.mrb[0].mxu0 %v6952
      %v7634 = vpop.f32.mrb[0].mxu0
      %v7635 = vadd.f32 0.0, %v7634
      %v7636 = vpop.f32.mrb[0].mxu0
      %v7637 = vpop.f32.mrb[0].mxu0
      %v7638 = vadd.f32 0.0, %v7637
      %v7639 = vpop.f32.mrb[0].mxu0
      %7640 = vmatprep.mubr.bf16.mxu0 %v7143
      %7641 = vmatmul.mubr.bf16.gmra.mrb[0].mxu0 %v6953
      %v7642 = vpop.f32.mrb[0].mxu0
      %v7643 = vadd.f32 0.0, %v7642
      %v7644 = vpop.f32.mrb[0].mxu0
      %v7645 = vpop.f32.mrb[0].mxu0
      %v7646 = vadd.f32 0.0, %v7645
      %v7647 = vpop.f32.mrb[0].mxu0
      %7648 = vmatprep.mubr.bf16.mxu0 %v7155
      %7649 = vmatmul.mubr.bf16.gmra.mrb[0].mxu0 %v6954
      %v7650 = vpop.f32.mrb[0].mxu0
      %v7651 = vadd.f32 0.0, %v7650
      %v7652 = vpop.f32.mrb[0].mxu0
      %v7653 = vpop.f32.mrb[0].mxu0
      %v7654 = vadd.f32 0.0, %v7653
      %v7655 = vpop.f32.mrb[0].mxu0
      %7656 = vmatprep.mubr.bf16.mxu0 %v7167
      %7657 = vmatmul.mubr.bf16.gmra.mrb[0].mxu0 %v6955
      %v7658 = vpop.f32.mrb[0].mxu0
      %v7659 = vadd.f32 0.0, %v7658
      %v7660 = vpop.f32.mrb[0].mxu0
      %v7661 = vpop.f32.mrb[0].mxu0
      %v7662 = vadd.f32 0.0, %v7661
      %v7663 = vpop.f32.mrb[0].mxu0
      %7664 = vmatprep.mubr.bf16.mxu0 %v7179
      %7665 = vmatmul.mubr.bf16.gmra.mrb[0].mxu0 %v6956
      %v7666 = vpop.f32.mrb[0].mxu0
      %v7667 = vadd.f32 0.0, %v7666
      %v7668 = vpop.f32.mrb[0].mxu0
      %v7669 = vpop.f32.mrb[0].mxu0
      %v7670 = vadd.f32 0.0, %v7669
      %v7671 = vpop.f32.mrb[0].mxu0
      %7672 = vmatprep.mubr.bf16.mxu0 %v7191
      %7673 = vmatmul.mubr.bf16.gmra.mrb[0].mxu0 %v6957
      %v7674 = vpop.f32.mrb[0].mxu0
      %v7675 = vadd.f32 0.0, %v7674
      %v7676 = vpop.f32.mrb[0].mxu0
      %v7677 = vpop.f32.mrb[0].mxu0
      %v7678 = vadd.f32 0.0, %v7677
      %v7679 = vpop.f32.mrb[0].mxu0
      %7680 = vmatprep.mubr.bf16.mxu0 %v7203
      %7681 = vmatmul.mubr.bf16.gmra.mrb[0].mxu0 %v6958
      %v7682 = vpop.f32.mrb[0].mxu0
      %v7683 = vadd.f32 0.0, %v7682
      %v7684 = vpop.f32.mrb[0].mxu0
      %v7685 = vpop.f32.mrb[0].mxu0
      %v7686 = vadd.f32 0.0, %v7685
      %v7687 = vpop.f32.mrb[0].mxu0
      %7688 = vmatprep.mubr.bf16.mxu0 %v7215
      %7689 = vmatmul.mubr.bf16.gmra.mrb[0].mxu0 %v6959
      %v7690 = vpop.f32.mrb[0].mxu0
      %v7691 = vadd.f32 0.0, %v7690
      %v7692 = vpop.f32.mrb[0].mxu0
      %v7693 = vpop.f32.mrb[0].mxu0
      %v7694 = vadd.f32 0.0, %v7693
      %v7695 = vpop.f32.mrb[0].mxu0
      %7696 = vdwg.mxu0
      %7697 = vmatprep.subr.bf16.mxu0 0
      %7698 = vmatpush1.bf16.msra.mxu0 %v7504
      %7699 = vmatprep.subr.bf16.mxu0 0
      %7700 = vmatpush1.bf16.msra.mxu0 %v7505
      %7701 = vmatprep.subr.bf16.mxu0 0
      %7702 = vmatpush1.bf16.msra.mxu0 %v7506
      %7703 = vmatprep.subr.bf16.mxu0 0
      %7704 = vmatpush1.bf16.msra.mxu0 %v7507
      %7705 = vmatprep.subr.bf16.mxu0 0
      %7706 = vmatpush1.bf16.msra.mxu0 %v7508
      %7707 = vmatprep.subr.bf16.mxu0 0
      %7708 = vmatpush1.bf16.msra.mxu0 %v7509
      %7709 = vmatprep.subr.bf16.mxu0 0
      %7710 = vmatpush1.bf16.msra.mxu0 %v7510
      %7711 = vmatprep.subr.bf16.mxu0 0
      %7712 = vmatpush1.bf16.msra.mxu0 %v7511
      %7713 = vmatprep.subr.bf16.mxu0 0
      %7714 = vmatpush1.bf16.msra.mxu0 0
      %7715 = vmatprep.subr.bf16.mxu0 0
      %7716 = vmatpush1.bf16.msra.mxu0 0
      %7717 = vmatprep.subr.bf16.mxu0 0
      %7718 = vmatpush1.bf16.msra.mxu0 0
      %7719 = vmatprep.subr.bf16.mxu0 0
      %7720 = vmatpush1.bf16.msra.mxu0 0
      %7721 = vmatprep.subr.bf16.mxu0 0
      %7722 = vmatpush1.bf16.msra.mxu0 0
      %7723 = vmatprep.subr.bf16.mxu0 0
      %7724 = vmatpush1.bf16.msra.mxu0 0
      %7725 = vmatprep.subr.bf16.mxu0 0
      %7726 = vmatpush1.bf16.msra.mxu0 0
      %7727 = vmatprep.subr.bf16.mxu0 0
      %7728 = vmatpush1.bf16.msra.mxu0 0
      %7729 = vmatprep.mubr.bf16.mxu0 0
      %7730 = vmatmul.mubr.bf16.gmra.mrb[0].mxu0 %v7282
      %v7731 = vpop.f32.mrb[0].mxu0
      %v7732 = vadd.f32 %v7571, %v7731
      %v7733 = vpop.f32.mrb[0].mxu0
      %v7734 = vpop.f32.mrb[0].mxu0
      %v7735 = vadd.f32 %v7574, %v7734
      %v7736 = vpop.f32.mrb[0].mxu0
      %7737 = vmatprep.mubr.bf16.mxu0 0
      %7738 = vmatmul.mubr.bf16.gmra.mrb[0].mxu0 %v7285
      %v7739 = vpop.f32.mrb[0].mxu0
      %v7740 = vadd.f32 %v7579, %v7739
      %v7741 = vpop.f32.mrb[0].mxu0
      %v7742 = vpop.f32.mrb[0].mxu0
      %v7743 = vadd.f32 %v7582, %v7742
      %v7744 = vpop.f32.mrb[0].mxu0
      %7745 = vmatprep.mubr.bf16.mxu0 0
      %7746 = vmatmul.mubr.bf16.gmra.mrb[0].mxu0 %v7288
      %v7747 = vpop.f32.mrb[0].mxu0
      %v7748 = vadd.f32 %v7587, %v7747
      %v7749 = vpop.f32.mrb[0].mxu0
      %v7750 = vpop.f32.mrb[0].mxu0
      %v7751 = vadd.f32 %v7590, %v7750
      %v7752 = vpop.f32.mrb[0].mxu0
      %7753 = vmatprep.mubr.bf16.mxu0 0
      %7754 = vmatmul.mubr.bf16.gmra.mrb[0].mxu0 %v7291
      %v7755 = vpop.f32.mrb[0].mxu0
      %v7756 = vadd.f32 %v7595, %v7755
      %v7757 = vpop.f32.mrb[0].mxu0
      %v7758 = vpop.f32.mrb[0].mxu0
      %v7759 = vadd.f32 %v7598, %v7758
      %v7760 = vpop.f32.mrb[0].mxu0
      %7761 = vmatprep.mubr.bf16.mxu0 0
      %7762 = vmatmul.mubr.bf16.gmra.mrb[0].mxu0 %v7294
      %v7763 = vpop.f32.mrb[0].mxu0
      %v7764 = vadd.f32 %v7603, %v7763
      %v7765 = vpop.f32.mrb[0].mxu0
      %v7766 = vpop.f32.mrb[0].mxu0
      %v7767 = vadd.f32 %v7606, %v7766
      %v7768 = vpop.f32.mrb[0].mxu0
      %7769 = vmatprep.mubr.bf16.mxu0 0
      %7770 = vmatmul.mubr.bf16.gmra.mrb[0].mxu0 %v7297
      %v7771 = vpop.f32.mrb[0].mxu0
      %v7772 = vadd.f32 %v7611, %v7771
      %v7773 = vpop.f32.mrb[0].mxu0
      %v7774 = vpop.f32.mrb[0].mxu0
      %v7775 = vadd.f32 %v7614, %v7774
      %v7776 = vpop.f32.mrb[0].mxu0
      %7777 = vmatprep.mubr.bf16.mxu0 0
      %7778 = vmatmul.mubr.bf16.gmra.mrb[0].mxu0 %v7300
      %v7779 = vpop.f32.mrb[0].mxu0
      %v7780 = vadd.f32 %v7619, %v7779
      %v7781 = vpop.f32.mrb[0].mxu0
      %v7782 = vpop.f32.mrb[0].mxu0
      %v7783 = vadd.f32 %v7622, %v7782
      %v7784 = vpop.f32.mrb[0].mxu0
      %7785 = vmatprep.mubr.bf16.mxu0 0
      %7786 = vmatmul.mubr.bf16.gmra.mrb[0].mxu0 %v7303
      %v7787 = vpop.f32.mrb[0].mxu0
      %v7788 = vadd.f32 %v7627, %v7787
      %v7789 = vpop.f32.mrb[0].mxu0
      %v7790 = vpop.f32.mrb[0].mxu0
      %v7791 = vadd.f32 %v7630, %v7790
      %v7792 = vpop.f32.mrb[0].mxu0
      %7793 = vmatprep.mubr.bf16.mxu0 0
      %7794 = vmatmul.mubr.bf16.gmra.mrb[0].mxu0 %v7306
      %v7795 = vpop.f32.mrb[0].mxu0
      %v7796 = vadd.f32 %v7635, %v7795
      %v7797 = vpop.f32.mrb[0].mxu0
      %v7798 = vpop.f32.mrb[0].mxu0
      %v7799 = vadd.f32 %v7638, %v7798
      %v7800 = vpop.f32.mrb[0].mxu0
      %7801 = vmatprep.mubr.bf16.mxu0 0
      %7802 = vmatmul.mubr.bf16.gmra.mrb[0].mxu0 %v7309
      %v7803 = vpop.f32.mrb[0].mxu0
      %v7804 = vadd.f32 %v7643, %v7803
      %v7805 = vpop.f32.mrb[0].mxu0
      %v7806 = vpop.f32.mrb[0].mxu0
      %v7807 = vadd.f32 %v7646, %v7806
      %v7808 = vpop.f32.mrb[0].mxu0
      %7809 = vmatprep.mubr.bf16.mxu0 0
      %7810 = vmatmul.mubr.bf16.gmra.mrb[0].mxu0 %v7312
      %v7811 = vpop.f32.mrb[0].mxu0
      %v7812 = vadd.f32 %v7651, %v7811
      %v7813 = vpop.f32.mrb[0].mxu0
      %v7814 = vpop.f32.mrb[0].mxu0
      %v7815 = vadd.f32 %v7654, %v7814
      %v7816 = vpop.f32.mrb[0].mxu0
      %7817 = vmatprep.mubr.bf16.mxu0 0
      %7818 = vmatmul.mubr.bf16.gmra.mrb[0].mxu0 %v7315
      %v7819 = vpop.f32.mrb[0].mxu0
      %v7820 = vadd.f32 %v7659, %v7819
      %v7821 = vpop.f32.mrb[0].mxu0
      %v7822 = vpop.f32.mrb[0].mxu0
      %v7823 = vadd.f32 %v7662, %v7822
      %v7824 = vpop.f32.mrb[0].mxu0
      %7825 = vmatprep.mubr.bf16.mxu0 0
      %7826 = vmatmul.mubr.bf16.gmra.mrb[0].mxu0 %v7318
      %v7827 = vpop.f32.mrb[0].mxu0
      %v7828 = vadd.f32 %v7667, %v7827
      %v7829 = vpop.f32.mrb[0].mxu0
      %v7830 = vpop.f32.mrb[0].mxu0
      %v7831 = vadd.f32 %v7670, %v7830
      %v7832 = vpop.f32.mrb[0].mxu0
      %7833 = vmatprep.mubr.bf16.mxu0 0
      %7834 = vmatmul.mubr.bf16.gmra.mrb[0].mxu0 %v7321
      %v7835 = vpop.f32.mrb[0].mxu0
      %v7836 = vadd.f32 %v7675, %v7835
      %v7837 = vpop.f32.mrb[0].mxu0
      %v7838 = vpop.f32.mrb[0].mxu0
      %v7839 = vadd.f32 %v7678, %v7838
      %v7840 = vpop.f32.mrb[0].mxu0
      %7841 = vmatprep.mubr.bf16.mxu0 0
      %7842 = vmatmul.mubr.bf16.gmra.mrb[0].mxu0 %v7324
      %v7843 = vpop.f32.mrb[0].mxu0
      %v7844 = vadd.f32 %v7683, %v7843
      %v7845 = vpop.f32.mrb[0].mxu0
      %v7846 = vpop.f32.mrb[0].mxu0
      %v7847 = vadd.f32 %v7686, %v7846
      %v7848 = vpop.f32.mrb[0].mxu0
      %7849 = vmatprep.mubr.bf16.mxu0 0
      %7850 = vmatmul.mubr.bf16.gmra.mrb[0].mxu0 %v7327
      %v7851 = vpop.f32.mrb[0].mxu0
      %v7852 = vadd.f32 %v7691, %v7851
      %v7853 = vpop.f32.mrb[0].mxu0
      %v7854 = vpop.f32.mrb[0].mxu0
      %v7855 = vadd.f32 %v7694, %v7854
      %v7856 = vpop.f32.mrb[0].mxu0
      %7857 = vdwg.mxu0
      %v7858 = vadd.f32 %v6689, %v7732
      %v7859 = vadd.f32 %v6692, %v7735
      %v7860 = vadd.f32 %v6697, %v7740
      %v7861 = vadd.f32 %v6700, %v7743
      %v7862 = vadd.f32 %v6705, %v7748
      %v7863 = vadd.f32 %v6708, %v7751
      %v7864 = vadd.f32 %v6713, %v7756
      %v7865 = vadd.f32 %v6716, %v7759
      %v7866 = vadd.f32 %v6721, %v7764
      %v7867 = vadd.f32 %v6724, %v7767
      %v7868 = vadd.f32 %v6729, %v7772
      %v7869 = vadd.f32 %v6732, %v7775
      %v7870 = vadd.f32 %v6737, %v7780
      %v7871 = vadd.f32 %v6740, %v7783
      %v7872 = vadd.f32 %v6745, %v7788
      %v7873 = vadd.f32 %v6748, %v7791
      %v7874 = vadd.f32 %v6753, %v7796
      %v7875 = vadd.f32 %v6756, %v7799
      %v7876 = vadd.f32 %v6761, %v7804
      %v7877 = vadd.f32 %v6764, %v7807
      %v7878 = vadd.f32 %v6769, %v7812
      %v7879 = vadd.f32 %v6772, %v7815
      %v7880 = vadd.f32 %v6777, %v7820
      %v7881 = vadd.f32 %v6780, %v7823
      %v7882 = vadd.f32 %v6785, %v7828
      %v7883 = vadd.f32 %v6788, %v7831
      %v7884 = vadd.f32 %v6793, %v7836
      %v7885 = vadd.f32 %v6796, %v7839
      %v7886 = vadd.f32 %v6801, %v7844
      %v7887 = vadd.f32 %v6804, %v7847
      %v7888 = vadd.f32 %v6809, %v7852
      %v7889 = vadd.f32 %v6812, %v7855
      %v7890 = vld [vmem:[%s4] sm:$0x1]
      %v7892 = vlaneseq
      %v7893 = vshrl.u32 %v7892, 7
      %v7894 = vsub.s32 0, %v7893
      %v7895 = vrot.slane %v7890, %v7894
      %v7897 = vadd.f32 %v7858, %v7895
      %v7898 = vadd.f32 %v7859, %v7895
      %v7899 = vadd.f32 %v7860, %v7895
      %v7900 = vadd.f32 %v7861, %v7895
      %v7901 = vadd.f32 %v7862, %v7895
      %v7902 = vadd.f32 %v7863, %v7895
      %v7903 = vadd.f32 %v7864, %v7895
      %v7904 = vadd.f32 %v7865, %v7895
      %v7905 = vadd.f32 %v7866, %v7895
      %v7906 = vadd.f32 %v7867, %v7895
      %v7907 = vadd.f32 %v7868, %v7895
      %v7908 = vadd.f32 %v7869, %v7895
      %v7909 = vadd.f32 %v7870, %v7895
      %v7910 = vadd.f32 %v7871, %v7895
      %v7911 = vadd.f32 %v7872, %v7895
      %v7912 = vadd.f32 %v7873, %v7895
      %v7913 = vadd.f32 %v7874, %v7895
      %v7914 = vadd.f32 %v7875, %v7895
      %v7915 = vadd.f32 %v7876, %v7895
      %v7916 = vadd.f32 %v7877, %v7895
      %v7917 = vadd.f32 %v7878, %v7895
      %v7918 = vadd.f32 %v7879, %v7895
      %v7919 = vadd.f32 %v7880, %v7895
      %v7920 = vadd.f32 %v7881, %v7895
      %v7921 = vadd.f32 %v7882, %v7895
      %v7922 = vadd.f32 %v7883, %v7895
      %v7923 = vadd.f32 %v7884, %v7895
      %v7924 = vadd.f32 %v7885, %v7895
      %v7925 = vadd.f32 %v7886, %v7895
      %v7926 = vadd.f32 %v7887, %v7895
      %v7927 = vadd.f32 %v7888, %v7895
      %v7928 = vadd.f32 %v7889, %v7895
      %v7929 = vmax.f32 %v7897, 0.0
      %v7930 = vmax.f32 %v7898, 0.0
      %v7931 = vmax.f32 %v7899, 0.0
      %v7932 = vmax.f32 %v7900, 0.0
      %v7933 = vmax.f32 %v7901, 0.0
      %v7934 = vmax.f32 %v7902, 0.0
      %v7935 = vmax.f32 %v7903, 0.0
      %v7936 = vmax.f32 %v7904, 0.0
      %v7937 = vmax.f32 %v7905, 0.0
      %v7938 = vmax.f32 %v7906, 0.0
      %v7939 = vmax.f32 %v7907, 0.0
      %v7940 = vmax.f32 %v7908, 0.0
      %v7941 = vmax.f32 %v7909, 0.0
      %v7942 = vmax.f32 %v7910, 0.0
      %v7943 = vmax.f32 %v7911, 0.0
      %v7944 = vmax.f32 %v7912, 0.0
      %v7945 = vmax.f32 %v7913, 0.0
      %v7946 = vmax.f32 %v7914, 0.0
      %v7947 = vmax.f32 %v7915, 0.0
      %v7948 = vmax.f32 %v7916, 0.0
      %v7949 = vmax.f32 %v7917, 0.0
      %v7950 = vmax.f32 %v7918, 0.0
      %v7951 = vmax.f32 %v7919, 0.0
      %v7952 = vmax.f32 %v7920, 0.0
      %v7953 = vmax.f32 %v7921, 0.0
      %v7954 = vmax.f32 %v7922, 0.0
      %v7955 = vmax.f32 %v7923, 0.0
      %v7956 = vmax.f32 %v7924, 0.0
      %v7957 = vmax.f32 %v7925, 0.0
      %v7958 = vmax.f32 %v7926, 0.0
      %v7959 = vmax.f32 %v7927, 0.0
      %v7960 = vmax.f32 %v7928, 0.0
      %v7961 = vpack.c.bf16 %v7930, %v7929
      %v7962 = vpack.c.bf16 %v7932, %v7931
      %v7963 = vpack.c.bf16 %v7934, %v7933
      %v7964 = vpack.c.bf16 %v7936, %v7935
      %v7965 = vpack.c.bf16 %v7938, %v7937
      %v7966 = vpack.c.bf16 %v7940, %v7939
      %v7967 = vpack.c.bf16 %v7942, %v7941
      %v7968 = vpack.c.bf16 %v7944, %v7943
      %v7969 = vpack.c.bf16 %v7946, %v7945
      %v7970 = vpack.c.bf16 %v7948, %v7947
      %v7971 = vpack.c.bf16 %v7950, %v7949
      %v7972 = vpack.c.bf16 %v7952, %v7951
      %v7973 = vpack.c.bf16 %v7954, %v7953
      %v7974 = vpack.c.bf16 %v7956, %v7955
      %v7975 = vpack.c.bf16 %v7958, %v7957
      %v7976 = vpack.c.bf16 %v7960, %v7959
      %v7993 = vunpack.c.l.b16 %v7961
      %v7994 = vunpack.c.h.b16 %v7961
      %v7995 = vunpack.c.l.b16 %v7962
      %v7996 = vunpack.c.h.b16 %v7962
      %v7997 = vunpack.c.l.b16 %v7963
      %v7998 = vunpack.c.h.b16 %v7963
      %v7999 = vunpack.c.l.b16 %v7964
      %v8000 = vunpack.c.h.b16 %v7964
      %v8001 = vunpack.c.l.b16 %v7965
      %v8002 = vunpack.c.h.b16 %v7965
      %v8003 = vunpack.c.l.b16 %v7966
      %v8004 = vunpack.c.h.b16 %v7966
      %v8005 = vunpack.c.l.b16 %v7967
      %v8006 = vunpack.c.h.b16 %v7967
      %v8007 = vunpack.c.l.b16 %v7968
      %v8008 = vunpack.c.h.b16 %v7968
      %v8009 = vunpack.c.l.b16 %v7969
      %v8010 = vunpack.c.h.b16 %v7969
      %v8011 = vunpack.c.l.b16 %v7970
      %v8012 = vunpack.c.h.b16 %v7970
      %v8013 = vunpack.c.l.b16 %v7971
      %v8014 = vunpack.c.h.b16 %v7971
      %v8015 = vunpack.c.l.b16 %v7972
      %v8016 = vunpack.c.h.b16 %v7972
      %v8017 = vunpack.c.l.b16 %v7973
      %v8018 = vunpack.c.h.b16 %v7973
      %v8019 = vunpack.c.l.b16 %v7974
      %v8020 = vunpack.c.h.b16 %v7974
      %v8021 = vunpack.c.l.b16 %v7975
      %v8022 = vunpack.c.h.b16 %v7975
      %v8023 = vunpack.c.l.b16 %v7976
      %v8024 = vunpack.c.h.b16 %v7976
      %v8025 = vpack.c.b16 %v7993, %v7993
      %v8026 = vpack.c.b16 %v7994, %v7994
      %v8027 = vpack.c.b16 %v7995, %v7995
      %v8028 = vpack.c.b16 %v7996, %v7996
      %v8029 = vpack.c.b16 %v7997, %v7997
      %v8030 = vpack.c.b16 %v7998, %v7998
      %v8031 = vpack.c.b16 %v7999, %v7999
      %v8032 = vpack.c.b16 %v8000, %v8000
      %v8033 = vpack.c.b16 %v8001, %v8001
      %v8034 = vpack.c.b16 %v8002, %v8002
      %v8035 = vpack.c.b16 %v8003, %v8003
      %v8036 = vpack.c.b16 %v8004, %v8004
      %v8037 = vpack.c.b16 %v8005, %v8005
      %v8038 = vpack.c.b16 %v8006, %v8006
      %v8039 = vpack.c.b16 %v8007, %v8007
      %v8040 = vpack.c.b16 %v8008, %v8008
      %v8041 = vpack.c.b16 %v8009, %v8009
      %v8042 = vpack.c.b16 %v8010, %v8010
      %v8043 = vpack.c.b16 %v8011, %v8011
      %v8044 = vpack.c.b16 %v8012, %v8012
      %v8045 = vpack.c.b16 %v8013, %v8013
      %v8046 = vpack.c.b16 %v8014, %v8014
      %v8047 = vpack.c.b16 %v8015, %v8015
      %v8048 = vpack.c.b16 %v8016, %v8016
      %v8049 = vpack.c.b16 %v8017, %v8017
      %v8050 = vpack.c.b16 %v8018, %v8018
      %v8051 = vpack.c.b16 %v8019, %v8019
      %v8052 = vpack.c.b16 %v8020, %v8020
      %v8053 = vpack.c.b16 %v8021, %v8021
      %v8054 = vpack.c.b16 %v8022, %v8022
      %v8055 = vpack.c.b16 %v8023, %v8023
      %v8056 = vpack.c.b16 %v8024, %v8024
      %8089 = vst [vmem:[%s259] sm:$0xf] %v8025
      %8090 = vst [vmem:[%s259 + $0x4] sm:$0xf] %v8026
      %8091 = vst [vmem:[%s259 + $0x8] sm:$0xf] %v8027
      %8092 = vst [vmem:[%s259 + $0xc] sm:$0xf] %v8028
      %8093 = vst [vmem:[%s259 + $0x10] sm:$0xf] %v8029
      %8094 = vst [vmem:[%s259 + $0x14] sm:$0xf] %v8030
      %8095 = vst [vmem:[%s259 + $0x18] sm:$0xf] %v8031
      %8096 = vst [vmem:[%s259 + $0x1c] sm:$0xf] %v8032
      %8097 = vst [vmem:[%s259 + $0x20] sm:$0xf] %v8033
      %8098 = vst [vmem:[%s259 + $0x24] sm:$0xf] %v8034
      %8099 = vst [vmem:[%s259 + $0x28] sm:$0xf] %v8035
      %8100 = vst [vmem:[%s259 + $0x2c] sm:$0xf] %v8036
      %8101 = vst [vmem:[%s259 + $0x30] sm:$0xf] %v8037
      %8102 = vst [vmem:[%s259 + $0x34] sm:$0xf] %v8038
      %8103 = vst [vmem:[%s259 + $0x38] sm:$0xf] %v8039
      %8104 = vst [vmem:[%s259 + $0x3c] sm:$0xf] %v8040
      %8105 = vst [vmem:[%s259 + $0x40] sm:$0xf] %v8041
      %8106 = vst [vmem:[%s259 + $0x44] sm:$0xf] %v8042
      %8107 = vst [vmem:[%s259 + $0x48] sm:$0xf] %v8043
      %8108 = vst [vmem:[%s259 + $0x4c] sm:$0xf] %v8044
      %8109 = vst [vmem:[%s259 + $0x50] sm:$0xf] %v8045
      %8110 = vst [vmem:[%s259 + $0x54] sm:$0xf] %v8046
      %8111 = vst [vmem:[%s259 + $0x58] sm:$0xf] %v8047
      %8112 = vst [vmem:[%s259 + $0x5c] sm:$0xf] %v8048
      %8113 = vst [vmem:[%s259 + $0x60] sm:$0xf] %v8049
      %8114 = vst [vmem:[%s259 + $0x64] sm:$0xf] %v8050
      %8115 = vst [vmem:[%s259 + $0x68] sm:$0xf] %v8051
      %8116 = vst [vmem:[%s259 + $0x6c] sm:$0xf] %v8052
      %8117 = vst [vmem:[%s259 + $0x70] sm:$0xf] %v8053
      %8118 = vst [vmem:[%s259 + $0x74] sm:$0xf] %v8054
      %8119 = vst [vmem:[%s259 + $0x78] sm:$0xf] %v8055
      %8120 = vst [vmem:[%s259 + $0x7c] sm:$0xf] %v8056
      %8121 = vst [vmem:[#allocation4] sm:$0xf] 0
      %8122 = vst [vmem:[#allocation4 + $0x4] sm:$0xf] 0
      %8123 = vst [vmem:[#allocation4 + $0x8] sm:$0x1] 0
      %s8124 = scalar_lea.vmem [#allocation4], 204
      %8125 = vst [vmem:[%s8124] sm:$0xf] 0
      %8126 = vst [vmem:[%s8124 + $0x4] sm:$0xf] 0
      %8127 = vst [vmem:[%s8124 + $0x8] sm:$0x1] 0
      %v8128 = vld [vmem:[#allocation4] sm:$0x1]
      %v8129 = vsel %vm275, 0, %v8128
      %8130 = vst [vmem:[#allocation4] sm:$0x1] %v8129
      %v8131 = vld [vmem:[#allocation4 + $0xc] sm:$0x1]
      %v8132 = vsel %vm275, 0, %v8131
      %8133 = vst [vmem:[#allocation4 + $0xc] sm:$0x1] %v8132
      %v8134 = vld [vmem:[#allocation4 + $0x18] sm:$0x1]
      %v8135 = vsel %vm275, 0, %v8134
      %8136 = vst [vmem:[#allocation4 + $0x18] sm:$0x1] %v8135
      %v8137 = vld [vmem:[#allocation4 + $0x24] sm:$0x1]
      %v8138 = vsel %vm275, 0, %v8137
      %8139 = vst [vmem:[#allocation4 + $0x24] sm:$0x1] %v8138
      %v8140 = vld [vmem:[#allocation4 + $0x30] sm:$0x1]
      %v8141 = vsel %vm275, 0, %v8140
      %8142 = vst [vmem:[#allocation4 + $0x30] sm:$0x1] %v8141
      %v8143 = vld [vmem:[#allocation4 + $0x3c] sm:$0x1]
      %v8144 = vsel %vm275, 0, %v8143
      %8145 = vst [vmem:[#allocation4 + $0x3c] sm:$0x1] %v8144
      %v8146 = vld [vmem:[#allocation4 + $0x48] sm:$0x1]
      %v8147 = vsel %vm275, 0, %v8146
      %8148 = vst [vmem:[#allocation4 + $0x48] sm:$0x1] %v8147
      %v8149 = vld [vmem:[#allocation4 + $0x54] sm:$0x1]
      %v8150 = vsel %vm275, 0, %v8149
      %8151 = vst [vmem:[#allocation4 + $0x54] sm:$0x1] %v8150
      %v8152 = vld [vmem:[#allocation4 + $0x60] sm:$0x1]
      %v8153 = vsel %vm275, 0, %v8152
      %8154 = vst [vmem:[#allocation4 + $0x60] sm:$0x1] %v8153
      %v8155 = vld [vmem:[#allocation4 + $0x6c] sm:$0x1]
      %v8156 = vsel %vm275, 0, %v8155
      %8157 = vst [vmem:[#allocation4 + $0x6c] sm:$0x1] %v8156
      %v8158 = vld [vmem:[#allocation4 + $0x78] sm:$0x1]
      %v8159 = vsel %vm275, 0, %v8158
      %8160 = vst [vmem:[#allocation4 + $0x78] sm:$0x1] %v8159
      %v8161 = vld [vmem:[#allocation4 + $0x84] sm:$0x1]
      %v8162 = vsel %vm275, 0, %v8161
      %8163 = vst [vmem:[#allocation4 + $0x84] sm:$0x1] %v8162
      %v8164 = vld [vmem:[#allocation4 + $0x90] sm:$0x1]
      %v8165 = vsel %vm275, 0, %v8164
      %8166 = vst [vmem:[#allocation4 + $0x90] sm:$0x1] %v8165
      %v8167 = vld [vmem:[#allocation4 + $0x9c] sm:$0x1]
      %v8168 = vsel %vm275, 0, %v8167
      %8169 = vst [vmem:[#allocation4 + $0x9c] sm:$0x1] %v8168
      %v8170 = vld [vmem:[#allocation4 + $0xa8] sm:$0x1]
      %v8171 = vsel %vm275, 0, %v8170
      %8172 = vst [vmem:[#allocation4 + $0xa8] sm:$0x1] %v8171
      %v8173 = vld [vmem:[#allocation4 + $0xb4] sm:$0x1]
      %v8174 = vsel %vm275, 0, %v8173
      %8175 = vst [vmem:[#allocation4 + $0xb4] sm:$0x1] %v8174
      %v8176 = vld [vmem:[#allocation4 + $0xc0] sm:$0x1]
      %v8177 = vsel %vm275, 0, %v8176
      %8178 = vst [vmem:[#allocation4 + $0xc0] sm:$0x1] %v8177
      %v8179 = vld [vmem:[#allocation4 + $0xcc] sm:$0x1]
      %v8180 = vsel %vm275, 0, %v8179
      %8181 = vst [vmem:[#allocation4 + $0xcc] sm:$0x1] %v8180
      %v8182 = vld [vmem:[#allocation4 + $0x8] sm:$0x1]
      %v8183 = vsel %vm331, 0, %v8182
      %8184 = vst [vmem:[#allocation4 + $0x8] sm:$0x1] %v8183
      %v8185 = vld [vmem:[#allocation4 + $0x14] sm:$0x1]
      %v8186 = vsel %vm331, 0, %v8185
      %8187 = vst [vmem:[#allocation4 + $0x14] sm:$0x1] %v8186
      %v8188 = vld [vmem:[#allocation4 + $0x20] sm:$0x1]
      %v8189 = vsel %vm331, 0, %v8188
      %8190 = vst [vmem:[#allocation4 + $0x20] sm:$0x1] %v8189
      %v8191 = vld [vmem:[#allocation4 + $0x2c] sm:$0x1]
      %v8192 = vsel %vm331, 0, %v8191
      %8193 = vst [vmem:[#allocation4 + $0x2c] sm:$0x1] %v8192
      %v8194 = vld [vmem:[#allocation4 + $0x38] sm:$0x1]
      %v8195 = vsel %vm331, 0, %v8194
      %8196 = vst [vmem:[#allocation4 + $0x38] sm:$0x1] %v8195
      %v8197 = vld [vmem:[#allocation4 + $0x44] sm:$0x1]
      %v8198 = vsel %vm331, 0, %v8197
      %8199 = vst [vmem:[#allocation4 + $0x44] sm:$0x1] %v8198
      %v8200 = vld [vmem:[#allocation4 + $0x50] sm:$0x1]
      %v8201 = vsel %vm331, 0, %v8200
      %8202 = vst [vmem:[#allocation4 + $0x50] sm:$0x1] %v8201
      %v8203 = vld [vmem:[#allocation4 + $0x5c] sm:$0x1]
      %v8204 = vsel %vm331, 0, %v8203
      %8205 = vst [vmem:[#allocation4 + $0x5c] sm:$0x1] %v8204
      %v8206 = vld [vmem:[#allocation4 + $0x68] sm:$0x1]
      %v8207 = vsel %vm331, 0, %v8206
      %8208 = vst [vmem:[#allocation4 + $0x68] sm:$0x1] %v8207
      %v8209 = vld [vmem:[#allocation4 + $0x74] sm:$0x1]
      %v8210 = vsel %vm331, 0, %v8209
      %8211 = vst [vmem:[#allocation4 + $0x74] sm:$0x1] %v8210
      %v8212 = vld [vmem:[#allocation4 + $0x80] sm:$0x1]
      %v8213 = vsel %vm331, 0, %v8212
      %8214 = vst [vmem:[#allocation4 + $0x80] sm:$0x1] %v8213
      %v8215 = vld [vmem:[#allocation4 + $0x8c] sm:$0x1]
      %v8216 = vsel %vm331, 0, %v8215
      %8217 = vst [vmem:[#allocation4 + $0x8c] sm:$0x1] %v8216
      %v8218 = vld [vmem:[#allocation4 + $0x98] sm:$0x1]
      %v8219 = vsel %vm331, 0, %v8218
      %8220 = vst [vmem:[#allocation4 + $0x98] sm:$0x1] %v8219
      %v8221 = vld [vmem:[#allocation4 + $0xa4] sm:$0x1]
      %v8222 = vsel %vm331, 0, %v8221
      %8223 = vst [vmem:[#allocation4 + $0xa4] sm:$0x1] %v8222
      %v8224 = vld [vmem:[#allocation4 + $0xb0] sm:$0x1]
      %v8225 = vsel %vm331, 0, %v8224
      %8226 = vst [vmem:[#allocation4 + $0xb0] sm:$0x1] %v8225
      %v8227 = vld [vmem:[#allocation4 + $0xbc] sm:$0x1]
      %v8228 = vsel %vm331, 0, %v8227
      %8229 = vst [vmem:[#allocation4 + $0xbc] sm:$0x1] %v8228
      %v8230 = vld [vmem:[#allocation4 + $0xc8] sm:$0x1]
      %v8231 = vsel %vm331, 0, %v8230
      %8232 = vst [vmem:[#allocation4 + $0xc8] sm:$0x1] %v8231
      %v8233 = vld [vmem:[#allocation4 + $0xd4] sm:$0x1]
      %v8234 = vsel %vm331, 0, %v8233
      %8235 = vst [vmem:[#allocation4 + $0xd4] sm:$0x1] %v8234
      %v8237 = vshrl.u32 %v8025, 16
      %v8239 = vrot.slane %v8237, 7
      %v8240 = vshll.u32 %v8025, 16
      %v8242 = vor.u32 %v8239, %v8240
      %v8243 = vrot.slane %v8239, 4
      %v8245 = vshrl.u32 %v8026, 16
      %v8247 = vrot.slane %v8245, 7
      %v8248 = vshll.u32 %v8026, 16
      %v8250 = vor.u32 %v8247, %v8248
      %v8251 = vsel %vm419, %v8243, %v8250
      %v8252 = vrot.slane %v8247, 4
      %v8254 = vshrl.u32 %v8027, 16
      %v8256 = vrot.slane %v8254, 7
      %v8257 = vshll.u32 %v8027, 16
      %v8259 = vor.u32 %v8256, %v8257
      %v8260 = vrot.slane %v8256, 4
      %v8262 = vshrl.u32 %v8028, 16
      %v8264 = vrot.slane %v8262, 7
      %v8265 = vshll.u32 %v8028, 16
      %v8267 = vor.u32 %v8264, %v8265
      %v8268 = vsel %vm419, %v8260, %v8267
      %v8269 = vrot.slane %v8264, 4
      %v8271 = vshrl.u32 %v8029, 16
      %v8273 = vrot.slane %v8271, 7
      %v8274 = vshll.u32 %v8029, 16
      %v8276 = vor.u32 %v8273, %v8274
      %v8277 = vrot.slane %v8273, 4
      %v8279 = vshrl.u32 %v8030, 16
      %v8281 = vrot.slane %v8279, 7
      %v8282 = vshll.u32 %v8030, 16
      %v8284 = vor.u32 %v8281, %v8282
      %v8285 = vsel %vm419, %v8277, %v8284
      %v8286 = vrot.slane %v8281, 4
      %v8288 = vshrl.u32 %v8031, 16
      %v8290 = vrot.slane %v8288, 7
      %v8291 = vshll.u32 %v8031, 16
      %v8293 = vor.u32 %v8290, %v8291
      %v8294 = vrot.slane %v8290, 4
      %v8296 = vshrl.u32 %v8032, 16
      %v8298 = vrot.slane %v8296, 7
      %v8299 = vshll.u32 %v8032, 16
      %v8301 = vor.u32 %v8298, %v8299
      %v8302 = vsel %vm419, %v8294, %v8301
      %v8303 = vrot.slane %v8298, 4
      %v8305 = vshrl.u32 %v8033, 16
      %v8307 = vrot.slane %v8305, 7
      %v8308 = vshll.u32 %v8033, 16
      %v8310 = vor.u32 %v8307, %v8308
      %v8311 = vrot.slane %v8307, 4
      %v8313 = vshrl.u32 %v8034, 16
      %v8315 = vrot.slane %v8313, 7
      %v8316 = vshll.u32 %v8034, 16
      %v8318 = vor.u32 %v8315, %v8316
      %v8319 = vsel %vm419, %v8311, %v8318
      %v8320 = vrot.slane %v8315, 4
      %v8322 = vshrl.u32 %v8035, 16
      %v8324 = vrot.slane %v8322, 7
      %v8325 = vshll.u32 %v8035, 16
      %v8327 = vor.u32 %v8324, %v8325
      %v8328 = vrot.slane %v8324, 4
      %v8330 = vshrl.u32 %v8036, 16
      %v8332 = vrot.slane %v8330, 7
      %v8333 = vshll.u32 %v8036, 16
      %v8335 = vor.u32 %v8332, %v8333
      %v8336 = vsel %vm419, %v8328, %v8335
      %v8337 = vrot.slane %v8332, 4
      %v8339 = vshrl.u32 %v8037, 16
      %v8341 = vrot.slane %v8339, 7
      %v8342 = vshll.u32 %v8037, 16
      %v8344 = vor.u32 %v8341, %v8342
      %v8345 = vrot.slane %v8341, 4
      %v8347 = vshrl.u32 %v8038, 16
      %v8349 = vrot.slane %v8347, 7
      %v8350 = vshll.u32 %v8038, 16
      %v8352 = vor.u32 %v8349, %v8350
      %v8353 = vsel %vm419, %v8345, %v8352
      %v8354 = vrot.slane %v8349, 4
      %v8356 = vshrl.u32 %v8039, 16
      %v8358 = vrot.slane %v8356, 7
      %v8359 = vshll.u32 %v8039, 16
      %v8361 = vor.u32 %v8358, %v8359
      %v8362 = vrot.slane %v8358, 4
      %v8364 = vshrl.u32 %v8040, 16
      %v8366 = vrot.slane %v8364, 7
      %v8367 = vshll.u32 %v8040, 16
      %v8369 = vor.u32 %v8366, %v8367
      %v8370 = vsel %vm419, %v8362, %v8369
      %v8371 = vrot.slane %v8366, 4
      %v8373 = vshrl.u32 %v8041, 16
      %v8375 = vrot.slane %v8373, 7
      %v8376 = vshll.u32 %v8041, 16
      %v8378 = vor.u32 %v8375, %v8376
      %v8379 = vrot.slane %v8375, 4
      %v8381 = vshrl.u32 %v8042, 16
      %v8383 = vrot.slane %v8381, 7
      %v8384 = vshll.u32 %v8042, 16
      %v8386 = vor.u32 %v8383, %v8384
      %v8387 = vsel %vm419, %v8379, %v8386
      %v8388 = vrot.slane %v8383, 4
      %v8390 = vshrl.u32 %v8043, 16
      %v8392 = vrot.slane %v8390, 7
      %v8393 = vshll.u32 %v8043, 16
      %v8395 = vor.u32 %v8392, %v8393
      %v8396 = vrot.slane %v8392, 4
      %v8398 = vshrl.u32 %v8044, 16
      %v8400 = vrot.slane %v8398, 7
      %v8401 = vshll.u32 %v8044, 16
      %v8403 = vor.u32 %v8400, %v8401
      %v8404 = vsel %vm419, %v8396, %v8403
      %v8405 = vrot.slane %v8400, 4
      %v8407 = vshrl.u32 %v8045, 16
      %v8409 = vrot.slane %v8407, 7
      %v8410 = vshll.u32 %v8045, 16
      %v8412 = vor.u32 %v8409, %v8410
      %v8413 = vrot.slane %v8409, 4
      %v8415 = vshrl.u32 %v8046, 16
      %v8417 = vrot.slane %v8415, 7
      %v8418 = vshll.u32 %v8046, 16
      %v8420 = vor.u32 %v8417, %v8418
      %v8421 = vsel %vm419, %v8413, %v8420
      %v8422 = vrot.slane %v8417, 4
      %v8424 = vshrl.u32 %v8047, 16
      %v8426 = vrot.slane %v8424, 7
      %v8427 = vshll.u32 %v8047, 16
      %v8429 = vor.u32 %v8426, %v8427
      %v8430 = vrot.slane %v8426, 4
      %v8432 = vshrl.u32 %v8048, 16
      %v8434 = vrot.slane %v8432, 7
      %v8435 = vshll.u32 %v8048, 16
      %v8437 = vor.u32 %v8434, %v8435
      %v8438 = vsel %vm419, %v8430, %v8437
      %v8439 = vrot.slane %v8434, 4
      %v8441 = vshrl.u32 %v8049, 16
      %v8443 = vrot.slane %v8441, 7
      %v8444 = vshll.u32 %v8049, 16
      %v8446 = vor.u32 %v8443, %v8444
      %v8447 = vrot.slane %v8443, 4
      %v8449 = vshrl.u32 %v8050, 16
      %v8451 = vrot.slane %v8449, 7
      %v8452 = vshll.u32 %v8050, 16
      %v8454 = vor.u32 %v8451, %v8452
      %v8455 = vsel %vm419, %v8447, %v8454
      %v8456 = vrot.slane %v8451, 4
      %v8458 = vshrl.u32 %v8051, 16
      %v8460 = vrot.slane %v8458, 7
      %v8461 = vshll.u32 %v8051, 16
      %v8463 = vor.u32 %v8460, %v8461
      %v8464 = vrot.slane %v8460, 4
      %v8466 = vshrl.u32 %v8052, 16
      %v8468 = vrot.slane %v8466, 7
      %v8469 = vshll.u32 %v8052, 16
      %v8471 = vor.u32 %v8468, %v8469
      %v8472 = vsel %vm419, %v8464, %v8471
      %v8473 = vrot.slane %v8468, 4
      %v8475 = vshrl.u32 %v8053, 16
      %v8477 = vrot.slane %v8475, 7
      %v8478 = vshll.u32 %v8053, 16
      %v8480 = vor.u32 %v8477, %v8478
      %v8481 = vrot.slane %v8477, 4
      %v8483 = vshrl.u32 %v8054, 16
      %v8485 = vrot.slane %v8483, 7
      %v8486 = vshll.u32 %v8054, 16
      %v8488 = vor.u32 %v8485, %v8486
      %v8489 = vsel %vm419, %v8481, %v8488
      %v8490 = vrot.slane %v8485, 4
      %v8492 = vshrl.u32 %v8055, 16
      %v8494 = vrot.slane %v8492, 7
      %v8495 = vshll.u32 %v8055, 16
      %v8497 = vor.u32 %v8494, %v8495
      %v8498 = vrot.slane %v8494, 4
      %v8500 = vshrl.u32 %v8056, 16
      %v8502 = vrot.slane %v8500, 7
      %v8503 = vshll.u32 %v8056, 16
      %v8505 = vor.u32 %v8502, %v8503
      %v8506 = vsel %vm419, %v8498, %v8505
      %v8507 = vrot.slane %v8502, 4
      %s8556 = scalar_lea.vmem [#allocation4], 12
      %v8557 = vld [vmem:[%s8556] sm:$0xf]
      %v8558 = vsel %vm742, %v8242, %v8557
      %8559 = vst [vmem:[%s8556] sm:$0xf] %v8558
      %8560 = vst [vmem:[%s8556 + $0x4] sm:$0xf] %v8251
      %v8561 = vld [vmem:[%s8556 + $0x8] sm:$0x1]
      %v8562 = vsel %vm275, %v8252, %v8561
      %8563 = vst [vmem:[%s8556 + $0x8] sm:$0x1] %v8562
      %v8564 = vld [vmem:[%s8556 + $0xc] sm:$0xf]
      %v8565 = vsel %vm742, %v8259, %v8564
      %8566 = vst [vmem:[%s8556 + $0xc] sm:$0xf] %v8565
      %8567 = vst [vmem:[%s8556 + $0x10] sm:$0xf] %v8268
      %v8568 = vld [vmem:[%s8556 + $0x14] sm:$0x1]
      %v8569 = vsel %vm275, %v8269, %v8568
      %8570 = vst [vmem:[%s8556 + $0x14] sm:$0x1] %v8569
      %v8571 = vld [vmem:[%s8556 + $0x18] sm:$0xf]
      %v8572 = vsel %vm742, %v8276, %v8571
      %8573 = vst [vmem:[%s8556 + $0x18] sm:$0xf] %v8572
      %8574 = vst [vmem:[%s8556 + $0x1c] sm:$0xf] %v8285
      %v8575 = vld [vmem:[%s8556 + $0x20] sm:$0x1]
      %v8576 = vsel %vm275, %v8286, %v8575
      %8577 = vst [vmem:[%s8556 + $0x20] sm:$0x1] %v8576
      %v8578 = vld [vmem:[%s8556 + $0x24] sm:$0xf]
      %v8579 = vsel %vm742, %v8293, %v8578
      %8580 = vst [vmem:[%s8556 + $0x24] sm:$0xf] %v8579
      %8581 = vst [vmem:[%s8556 + $0x28] sm:$0xf] %v8302
      %v8582 = vld [vmem:[%s8556 + $0x2c] sm:$0x1]
      %v8583 = vsel %vm275, %v8303, %v8582
      %8584 = vst [vmem:[%s8556 + $0x2c] sm:$0x1] %v8583
      %v8585 = vld [vmem:[%s8556 + $0x30] sm:$0xf]
      %v8586 = vsel %vm742, %v8310, %v8585
      %8587 = vst [vmem:[%s8556 + $0x30] sm:$0xf] %v8586
      %8588 = vst [vmem:[%s8556 + $0x34] sm:$0xf] %v8319
      %v8589 = vld [vmem:[%s8556 + $0x38] sm:$0x1]
      %v8590 = vsel %vm275, %v8320, %v8589
      %8591 = vst [vmem:[%s8556 + $0x38] sm:$0x1] %v8590
      %v8592 = vld [vmem:[%s8556 + $0x3c] sm:$0xf]
      %v8593 = vsel %vm742, %v8327, %v8592
      %8594 = vst [vmem:[%s8556 + $0x3c] sm:$0xf] %v8593
      %8595 = vst [vmem:[%s8556 + $0x40] sm:$0xf] %v8336
      %v8596 = vld [vmem:[%s8556 + $0x44] sm:$0x1]
      %v8597 = vsel %vm275, %v8337, %v8596
      %8598 = vst [vmem:[%s8556 + $0x44] sm:$0x1] %v8597
      %v8599 = vld [vmem:[%s8556 + $0x48] sm:$0xf]
      %v8600 = vsel %vm742, %v8344, %v8599
      %8601 = vst [vmem:[%s8556 + $0x48] sm:$0xf] %v8600
      %8602 = vst [vmem:[%s8556 + $0x4c] sm:$0xf] %v8353
      %v8603 = vld [vmem:[%s8556 + $0x50] sm:$0x1]
      %v8604 = vsel %vm275, %v8354, %v8603
      %8605 = vst [vmem:[%s8556 + $0x50] sm:$0x1] %v8604
      %v8606 = vld [vmem:[%s8556 + $0x54] sm:$0xf]
      %v8607 = vsel %vm742, %v8361, %v8606
      %8608 = vst [vmem:[%s8556 + $0x54] sm:$0xf] %v8607
      %8609 = vst [vmem:[%s8556 + $0x58] sm:$0xf] %v8370
      %v8610 = vld [vmem:[%s8556 + $0x5c] sm:$0x1]
      %v8611 = vsel %vm275, %v8371, %v8610
      %8612 = vst [vmem:[%s8556 + $0x5c] sm:$0x1] %v8611
      %v8613 = vld [vmem:[%s8556 + $0x60] sm:$0xf]
      %v8614 = vsel %vm742, %v8378, %v8613
      %8615 = vst [vmem:[%s8556 + $0x60] sm:$0xf] %v8614
      %8616 = vst [vmem:[%s8556 + $0x64] sm:$0xf] %v8387
      %v8617 = vld [vmem:[%s8556 + $0x68] sm:$0x1]
      %v8618 = vsel %vm275, %v8388, %v8617
      %8619 = vst [vmem:[%s8556 + $0x68] sm:$0x1] %v8618
      %v8620 = vld [vmem:[%s8556 + $0x6c] sm:$0xf]
      %v8621 = vsel %vm742, %v8395, %v8620
      %8622 = vst [vmem:[%s8556 + $0x6c] sm:$0xf] %v8621
      %8623 = vst [vmem:[%s8556 + $0x70] sm:$0xf] %v8404
      %v8624 = vld [vmem:[%s8556 + $0x74] sm:$0x1]
      %v8625 = vsel %vm275, %v8405, %v8624
      %8626 = vst [vmem:[%s8556 + $0x74] sm:$0x1] %v8625
      %v8627 = vld [vmem:[%s8556 + $0x78] sm:$0xf]
      %v8628 = vsel %vm742, %v8412, %v8627
      %8629 = vst [vmem:[%s8556 + $0x78] sm:$0xf] %v8628
      %8630 = vst [vmem:[%s8556 + $0x7c] sm:$0xf] %v8421
      %v8631 = vld [vmem:[%s8556 + $0x80] sm:$0x1]
      %v8632 = vsel %vm275, %v8422, %v8631
      %8633 = vst [vmem:[%s8556 + $0x80] sm:$0x1] %v8632
      %v8634 = vld [vmem:[%s8556 + $0x84] sm:$0xf]
      %v8635 = vsel %vm742, %v8429, %v8634
      %8636 = vst [vmem:[%s8556 + $0x84] sm:$0xf] %v8635
      %8637 = vst [vmem:[%s8556 + $0x88] sm:$0xf] %v8438
      %v8638 = vld [vmem:[%s8556 + $0x8c] sm:$0x1]
      %v8639 = vsel %vm275, %v8439, %v8638
      %8640 = vst [vmem:[%s8556 + $0x8c] sm:$0x1] %v8639
      %v8641 = vld [vmem:[%s8556 + $0x90] sm:$0xf]
      %v8642 = vsel %vm742, %v8446, %v8641
      %8643 = vst [vmem:[%s8556 + $0x90] sm:$0xf] %v8642
      %8644 = vst [vmem:[%s8556 + $0x94] sm:$0xf] %v8455
      %v8645 = vld [vmem:[%s8556 + $0x98] sm:$0x1]
      %v8646 = vsel %vm275, %v8456, %v8645
      %8647 = vst [vmem:[%s8556 + $0x98] sm:$0x1] %v8646
      %v8648 = vld [vmem:[%s8556 + $0x9c] sm:$0xf]
      %v8649 = vsel %vm742, %v8463, %v8648
      %8650 = vst [vmem:[%s8556 + $0x9c] sm:$0xf] %v8649
      %8651 = vst [vmem:[%s8556 + $0xa0] sm:$0xf] %v8472
      %v8652 = vld [vmem:[%s8556 + $0xa4] sm:$0x1]
      %v8653 = vsel %vm275, %v8473, %v8652
      %8654 = vst [vmem:[%s8556 + $0xa4] sm:$0x1] %v8653
      %v8655 = vld [vmem:[%s8556 + $0xa8] sm:$0xf]
      %v8656 = vsel %vm742, %v8480, %v8655
      %8657 = vst [vmem:[%s8556 + $0xa8] sm:$0xf] %v8656
      %8658 = vst [vmem:[%s8556 + $0xac] sm:$0xf] %v8489
      %v8659 = vld [vmem:[%s8556 + $0xb0] sm:$0x1]
      %v8660 = vsel %vm275, %v8490, %v8659
      %8661 = vst [vmem:[%s8556 + $0xb0] sm:$0x1] %v8660
      %v8662 = vld [vmem:[%s8556 + $0xb4] sm:$0xf]
      %v8663 = vsel %vm742, %v8497, %v8662
      %8664 = vst [vmem:[%s8556 + $0xb4] sm:$0xf] %v8663
      %8665 = vst [vmem:[%s8556 + $0xb8] sm:$0xf] %v8506
      %v8666 = vld [vmem:[%s8556 + $0xbc] sm:$0x1]
      %v8667 = vsel %vm275, %v8507, %v8666
      %8668 = vst [vmem:[%s8556 + $0xbc] sm:$0x1] %v8667
      %v8669 = vld [vmem:[#allocation4] sm:$0xf]
      %v8670 = vld [vmem:[#allocation4 + $0x4] sm:$0xf]
      %v8671 = vld [vmem:[#allocation4 + $0x8] sm:$0x1]
      %v8672 = vld [vmem:[#allocation4 + $0xc] sm:$0xf]
      %v8673 = vld [vmem:[#allocation4 + $0x10] sm:$0xf]
      %v8674 = vld [vmem:[#allocation4 + $0x14] sm:$0x1]
      %v8675 = vld [vmem:[#allocation4 + $0x18] sm:$0xf]
      %v8676 = vld [vmem:[#allocation4 + $0x1c] sm:$0xf]
      %v8677 = vld [vmem:[#allocation4 + $0x20] sm:$0x1]
      %v8678 = vld [vmem:[#allocation4 + $0x24] sm:$0xf]
      %v8679 = vld [vmem:[#allocation4 + $0x28] sm:$0xf]
      %v8680 = vld [vmem:[#allocation4 + $0x2c] sm:$0x1]
      %v8681 = vld [vmem:[#allocation4 + $0x30] sm:$0xf]
      %v8682 = vld [vmem:[#allocation4 + $0x34] sm:$0xf]
      %v8683 = vld [vmem:[#allocation4 + $0x38] sm:$0x1]
      %v8684 = vld [vmem:[#allocation4 + $0x3c] sm:$0xf]
      %v8685 = vld [vmem:[#allocation4 + $0x40] sm:$0xf]
      %v8686 = vld [vmem:[#allocation4 + $0x44] sm:$0x1]
      %v8687 = vld [vmem:[#allocation4 + $0x48] sm:$0xf]
      %v8688 = vld [vmem:[#allocation4 + $0x4c] sm:$0xf]
      %v8689 = vld [vmem:[#allocation4 + $0x50] sm:$0x1]
      %v8690 = vld [vmem:[#allocation4 + $0x54] sm:$0xf]
      %v8691 = vld [vmem:[#allocation4 + $0x58] sm:$0xf]
      %v8692 = vld [vmem:[#allocation4 + $0x5c] sm:$0x1]
      %v8693 = vld [vmem:[#allocation4 + $0x60] sm:$0xf]
      %v8694 = vld [vmem:[#allocation4 + $0x64] sm:$0xf]
      %v8695 = vld [vmem:[#allocation4 + $0x68] sm:$0x1]
      %v8696 = vld [vmem:[#allocation4 + $0x6c] sm:$0xf]
      %v8697 = vld [vmem:[#allocation4 + $0x70] sm:$0xf]
      %v8698 = vld [vmem:[#allocation4 + $0x74] sm:$0x1]
      %v8699 = vld [vmem:[#allocation4 + $0x78] sm:$0xf]
      %v8700 = vld [vmem:[#allocation4 + $0x7c] sm:$0xf]
      %v8701 = vld [vmem:[#allocation4 + $0x80] sm:$0x1]
      %v8702 = vld [vmem:[#allocation4 + $0x84] sm:$0xf]
      %v8703 = vld [vmem:[#allocation4 + $0x88] sm:$0xf]
      %v8704 = vld [vmem:[#allocation4 + $0x8c] sm:$0x1]
      %v8705 = vld [vmem:[#allocation4 + $0x90] sm:$0xf]
      %v8706 = vld [vmem:[#allocation4 + $0x94] sm:$0xf]
      %v8707 = vld [vmem:[#allocation4 + $0x98] sm:$0x1]
      %v8708 = vld [vmem:[#allocation4 + $0x9c] sm:$0xf]
      %v8709 = vld [vmem:[#allocation4 + $0xa0] sm:$0xf]
      %v8710 = vld [vmem:[#allocation4 + $0xa4] sm:$0x1]
      %v8711 = vld [vmem:[#allocation4 + $0xa8] sm:$0xf]
      %v8712 = vld [vmem:[#allocation4 + $0xac] sm:$0xf]
      %v8713 = vld [vmem:[#allocation4 + $0xb0] sm:$0x1]
      %v8714 = vld [vmem:[#allocation4 + $0xb4] sm:$0xf]
      %v8715 = vld [vmem:[#allocation4 + $0xb8] sm:$0xf]
      %v8716 = vld [vmem:[#allocation4 + $0xbc] sm:$0x1]
      %v8717 = vld [vmem:[#allocation4 + $0xc0] sm:$0xf]
      %v8718 = vld [vmem:[#allocation4 + $0xc4] sm:$0xf]
      %v8719 = vld [vmem:[#allocation4 + $0xc8] sm:$0x1]
      %v8720 = vmax.bf16 %v8669, %v8672
      %v8721 = vmax.bf16 %v8670, %v8673
      %v8722 = vmax.bf16 %v8671, %v8674
      %v8723 = vmax.bf16 %v8675, %v8678
      %v8724 = vmax.bf16 %v8676, %v8679
      %v8725 = vmax.bf16 %v8677, %v8680
      %v8726 = vmax.bf16 %v8681, %v8684
      %v8727 = vmax.bf16 %v8682, %v8685
      %v8728 = vmax.bf16 %v8683, %v8686
      %v8729 = vmax.bf16 %v8687, %v8690
      %v8730 = vmax.bf16 %v8688, %v8691
      %v8731 = vmax.bf16 %v8689, %v8692
      %v8732 = vmax.bf16 %v8693, %v8696
      %v8733 = vmax.bf16 %v8694, %v8697
      %v8734 = vmax.bf16 %v8695, %v8698
      %v8735 = vmax.bf16 %v8699, %v8702
      %v8736 = vmax.bf16 %v8700, %v8703
      %v8737 = vmax.bf16 %v8701, %v8704
      %v8738 = vmax.bf16 %v8705, %v8708
      %v8739 = vmax.bf16 %v8706, %v8709
      %v8740 = vmax.bf16 %v8707, %v8710
      %v8741 = vmax.bf16 %v8711, %v8714
      %v8742 = vmax.bf16 %v8712, %v8715
      %v8743 = vmax.bf16 %v8713, %v8716
      %v8744 = vmax.bf16 %v8720, %v8675
      %v8745 = vmax.bf16 %v8721, %v8676
      %v8746 = vmax.bf16 %v8722, %v8677
      %v8747 = vmax.bf16 %v8723, %v8681
      %v8748 = vmax.bf16 %v8724, %v8682
      %v8749 = vmax.bf16 %v8725, %v8683
      %v8750 = vmax.bf16 %v8726, %v8687
      %v8751 = vmax.bf16 %v8727, %v8688
      %v8752 = vmax.bf16 %v8728, %v8689
      %v8753 = vmax.bf16 %v8729, %v8693
      %v8754 = vmax.bf16 %v8730, %v8694
      %v8755 = vmax.bf16 %v8731, %v8695
      %v8756 = vmax.bf16 %v8732, %v8699
      %v8757 = vmax.bf16 %v8733, %v8700
      %v8758 = vmax.bf16 %v8734, %v8701
      %v8759 = vmax.bf16 %v8735, %v8705
      %v8760 = vmax.bf16 %v8736, %v8706
      %v8761 = vmax.bf16 %v8737, %v8707
      %v8762 = vmax.bf16 %v8738, %v8711
      %v8763 = vmax.bf16 %v8739, %v8712
      %v8764 = vmax.bf16 %v8740, %v8713
      %v8765 = vmax.bf16 %v8741, %v8717
      %v8766 = vmax.bf16 %v8742, %v8718
      %v8767 = vmax.bf16 %v8743, %v8719
      %vm8768 = vsmask.f32 3328
      %vm8769 = vsmask.f32 7440
      %vm8770 = vmor %vm8768, %vm8769
      %v8772 = vshrl.u32 %v8744, 16
      %v8774 = vrot.slane %v8772, 4
      %v8775 = vshll.u32 %v8744, 16
      %v8777 = vrot.slane %v8775, 5
      %v8778 = vor.u32 %v8774, %v8777
      %v8779 = vrot.slane %v8778, 4
      %v8781 = vshll.u32 %v8745, 16
      %v8783 = vrot.slane %v8781, 5
      %v8784 = vsel %vm8770, %v8779, %v8783
      %v8785 = vshrl.u32 %v8745, 16
      %v8787 = vrot.slane %v8785, 4
      %v8788 = vor.u32 %v8787, %v8783
      %v8789 = vrot.slane %v8788, 4
      %v8791 = vshll.u32 %v8746, 16
      %v8793 = vrot.slane %v8791, 5
      %v8794 = vsel %vm8770, %v8789, %v8793
      %v8796 = vshrl.u32 %v8747, 16
      %v8798 = vrot.slane %v8796, 4
      %v8799 = vshll.u32 %v8747, 16
      %v8801 = vrot.slane %v8799, 5
      %v8802 = vor.u32 %v8798, %v8801
      %v8803 = vrot.slane %v8802, 4
      %v8805 = vshll.u32 %v8748, 16
      %v8807 = vrot.slane %v8805, 5
      %v8808 = vsel %vm8770, %v8803, %v8807
      %v8809 = vshrl.u32 %v8748, 16
      %v8811 = vrot.slane %v8809, 4
      %v8812 = vor.u32 %v8811, %v8807
      %v8813 = vrot.slane %v8812, 4
      %v8815 = vshll.u32 %v8749, 16
      %v8817 = vrot.slane %v8815, 5
      %v8818 = vsel %vm8770, %v8813, %v8817
      %v8820 = vshrl.u32 %v8750, 16
      %v8822 = vrot.slane %v8820, 4
      %v8823 = vshll.u32 %v8750, 16
      %v8825 = vrot.slane %v8823, 5
      %v8826 = vor.u32 %v8822, %v8825
      %v8827 = vrot.slane %v8826, 4
      %v8829 = vshll.u32 %v8751, 16
      %v8831 = vrot.slane %v8829, 5
      %v8832 = vsel %vm8770, %v8827, %v8831
      %v8833 = vshrl.u32 %v8751, 16
      %v8835 = vrot.slane %v8833, 4
      %v8836 = vor.u32 %v8835, %v8831
      %v8837 = vrot.slane %v8836, 4
      %v8839 = vshll.u32 %v8752, 16
      %v8841 = vrot.slane %v8839, 5
      %v8842 = vsel %vm8770, %v8837, %v8841
      %v8844 = vshrl.u32 %v8753, 16
      %v8846 = vrot.slane %v8844, 4
      %v8847 = vshll.u32 %v8753, 16
      %v8849 = vrot.slane %v8847, 5
      %v8850 = vor.u32 %v8846, %v8849
      %v8851 = vrot.slane %v8850, 4
      %v8853 = vshll.u32 %v8754, 16
      %v8855 = vrot.slane %v8853, 5
      %v8856 = vsel %vm8770, %v8851, %v8855
      %v8857 = vshrl.u32 %v8754, 16
      %v8859 = vrot.slane %v8857, 4
      %v8860 = vor.u32 %v8859, %v8855
      %v8861 = vrot.slane %v8860, 4
      %v8863 = vshll.u32 %v8755, 16
      %v8865 = vrot.slane %v8863, 5
      %v8866 = vsel %vm8770, %v8861, %v8865
      %v8868 = vshrl.u32 %v8756, 16
      %v8870 = vrot.slane %v8868, 4
      %v8871 = vshll.u32 %v8756, 16
      %v8873 = vrot.slane %v8871, 5
      %v8874 = vor.u32 %v8870, %v8873
      %v8875 = vrot.slane %v8874, 4
      %v8877 = vshll.u32 %v8757, 16
      %v8879 = vrot.slane %v8877, 5
      %v8880 = vsel %vm8770, %v8875, %v8879
      %v8881 = vshrl.u32 %v8757, 16
      %v8883 = vrot.slane %v8881, 4
      %v8884 = vor.u32 %v8883, %v8879
      %v8885 = vrot.slane %v8884, 4
      %v8887 = vshll.u32 %v8758, 16
      %v8889 = vrot.slane %v8887, 5
      %v8890 = vsel %vm8770, %v8885, %v8889
      %v8892 = vshrl.u32 %v8759, 16
      %v8894 = vrot.slane %v8892, 4
      %v8895 = vshll.u32 %v8759, 16
      %v8897 = vrot.slane %v8895, 5
      %v8898 = vor.u32 %v8894, %v8897
      %v8899 = vrot.slane %v8898, 4
      %v8901 = vshll.u32 %v8760, 16
      %v8903 = vrot.slane %v8901, 5
      %v8904 = vsel %vm8770, %v8899, %v8903
      %v8905 = vshrl.u32 %v8760, 16
      %v8907 = vrot.slane %v8905, 4
      %v8908 = vor.u32 %v8907, %v8903
      %v8909 = vrot.slane %v8908, 4
      %v8911 = vshll.u32 %v8761, 16
      %v8913 = vrot.slane %v8911, 5
      %v8914 = vsel %vm8770, %v8909, %v8913
      %v8916 = vshrl.u32 %v8762, 16
      %v8918 = vrot.slane %v8916, 4
      %v8919 = vshll.u32 %v8762, 16
      %v8921 = vrot.slane %v8919, 5
      %v8922 = vor.u32 %v8918, %v8921
      %v8923 = vrot.slane %v8922, 4
      %v8925 = vshll.u32 %v8763, 16
      %v8927 = vrot.slane %v8925, 5
      %v8928 = vsel %vm8770, %v8923, %v8927
      %v8929 = vshrl.u32 %v8763, 16
      %v8931 = vrot.slane %v8929, 4
      %v8932 = vor.u32 %v8931, %v8927
      %v8933 = vrot.slane %v8932, 4
      %v8935 = vshll.u32 %v8764, 16
      %v8937 = vrot.slane %v8935, 5
      %v8938 = vsel %vm8770, %v8933, %v8937
      %v8940 = vshrl.u32 %v8765, 16
      %v8942 = vrot.slane %v8940, 4
      %v8943 = vshll.u32 %v8765, 16
      %v8945 = vrot.slane %v8943, 5
      %v8946 = vor.u32 %v8942, %v8945
      %v8947 = vrot.slane %v8946, 4
      %v8949 = vshll.u32 %v8766, 16
      %v8951 = vrot.slane %v8949, 5
      %v8952 = vsel %vm8770, %v8947, %v8951
      %v8953 = vshrl.u32 %v8766, 16
      %v8955 = vrot.slane %v8953, 4
      %v8956 = vor.u32 %v8955, %v8951
      %v8957 = vrot.slane %v8956, 4
      %v8959 = vshll.u32 %v8767, 16
      %v8961 = vrot.slane %v8959, 5
      %v8962 = vsel %vm8770, %v8957, %v8961
      %v8979 = vmax.bf16 %v8744, %v8784
      %v8980 = vmax.bf16 %v8745, %v8794
      %v8981 = vmax.bf16 %v8747, %v8808
      %v8982 = vmax.bf16 %v8748, %v8818
      %v8983 = vmax.bf16 %v8750, %v8832
      %v8984 = vmax.bf16 %v8751, %v8842
      %v8985 = vmax.bf16 %v8753, %v8856
      %v8986 = vmax.bf16 %v8754, %v8866
      %v8987 = vmax.bf16 %v8756, %v8880
      %v8988 = vmax.bf16 %v8757, %v8890
      %v8989 = vmax.bf16 %v8759, %v8904
      %v8990 = vmax.bf16 %v8760, %v8914
      %v8991 = vmax.bf16 %v8762, %v8928
      %v8992 = vmax.bf16 %v8763, %v8938
      %v8993 = vmax.bf16 %v8765, %v8952
      %v8994 = vmax.bf16 %v8766, %v8962
      %vm9019 = vcmask 1042432
      %vm9020 = vcmask 1046532
      %vm9021 = vmor %vm9019, %vm9020
      %v9022 = vrot.slane %v8744, 5
      %v9023 = vrot.slane %v9022, 4
      %v9024 = vrot.slane %v8745, 5
      %v9025 = vsel %vm9021, %v9023, %v9024
      %v9026 = vrot.slane %v9024, 4
      %v9027 = vrot.slane %v8746, 5
      %v9028 = vsel %vm9021, %v9026, %v9027
      %v9029 = vrot.slane %v8747, 5
      %v9030 = vrot.slane %v9029, 4
      %v9031 = vrot.slane %v8748, 5
      %v9032 = vsel %vm9021, %v9030, %v9031
      %v9033 = vrot.slane %v9031, 4
      %v9034 = vrot.slane %v8749, 5
      %v9035 = vsel %vm9021, %v9033, %v9034
      %v9036 = vrot.slane %v8750, 5
      %v9037 = vrot.slane %v9036, 4
      %v9038 = vrot.slane %v8751, 5
      %v9039 = vsel %vm9021, %v9037, %v9038
      %v9040 = vrot.slane %v9038, 4
      %v9041 = vrot.slane %v8752, 5
      %v9042 = vsel %vm9021, %v9040, %v9041
      %v9043 = vrot.slane %v8753, 5
      %v9044 = vrot.slane %v9043, 4
      %v9045 = vrot.slane %v8754, 5
      %v9046 = vsel %vm9021, %v9044, %v9045
      %v9047 = vrot.slane %v9045, 4
      %v9048 = vrot.slane %v8755, 5
      %v9049 = vsel %vm9021, %v9047, %v9048
      %v9050 = vrot.slane %v8756, 5
      %v9051 = vrot.slane %v9050, 4
      %v9052 = vrot.slane %v8757, 5
      %v9053 = vsel %vm9021, %v9051, %v9052
      %v9054 = vrot.slane %v9052, 4
      %v9055 = vrot.slane %v8758, 5
      %v9056 = vsel %vm9021, %v9054, %v9055
      %v9057 = vrot.slane %v8759, 5
      %v9058 = vrot.slane %v9057, 4
      %v9059 = vrot.slane %v8760, 5
      %v9060 = vsel %vm9021, %v9058, %v9059
      %v9061 = vrot.slane %v9059, 4
      %v9062 = vrot.slane %v8761, 5
      %v9063 = vsel %vm9021, %v9061, %v9062
      %v9064 = vrot.slane %v8762, 5
      %v9065 = vrot.slane %v9064, 4
      %v9066 = vrot.slane %v8763, 5
      %v9067 = vsel %vm9021, %v9065, %v9066
      %v9068 = vrot.slane %v9066, 4
      %v9069 = vrot.slane %v8764, 5
      %v9070 = vsel %vm9021, %v9068, %v9069
      %v9071 = vrot.slane %v8765, 5
      %v9072 = vrot.slane %v9071, 4
      %v9073 = vrot.slane %v8766, 5
      %v9074 = vsel %vm9021, %v9072, %v9073
      %v9075 = vrot.slane %v9073, 4
      %v9076 = vrot.slane %v8767, 5
      %v9077 = vsel %vm9021, %v9075, %v9076
      %v9094 = vmax.bf16 %v8979, %v9025
      %v9095 = vmax.bf16 %v8980, %v9028
      %v9096 = vmax.bf16 %v8981, %v9032
      %v9097 = vmax.bf16 %v8982, %v9035
      %v9098 = vmax.bf16 %v8983, %v9039
      %v9099 = vmax.bf16 %v8984, %v9042
      %v9100 = vmax.bf16 %v8985, %v9046
      %v9101 = vmax.bf16 %v8986, %v9049
      %v9102 = vmax.bf16 %v8987, %v9053
      %v9103 = vmax.bf16 %v8988, %v9056
      %v9104 = vmax.bf16 %v8989, %v9060
      %v9105 = vmax.bf16 %v8990, %v9063
      %v9106 = vmax.bf16 %v8991, %v9067
      %v9107 = vmax.bf16 %v8992, %v9070
      %v9108 = vmax.bf16 %v8993, %v9074
      %v9109 = vmax.bf16 %v8994, %v9077
      %v9127 = vunpack.c.l.s4 1966171168
      %v9128 = vunpack.c.0.s8 %v9127
      %v9129 = vlaneseq
      %v9130 = vshrl.u32 %v9129, 7
      %v9131 = vsub.s32 %v9128, %v9130
      %v9132 = vrot.slane %v9094, %v9131
      %v9133 = vcombine.high %v9132, %v9132
      %v9135 = vunpack.c.l.s4 1966171168
      %v9136 = vunpack.c.0.s8 %v9135
      %v9137 = vlaneseq
      %v9138 = vshrl.u32 %v9137, 7
      %v9139 = vsub.s32 %v9136, %v9138
      %v9140 = vrot.slane %v9132, %v9139
      %v9142 = vunpack.c.l.s4 1966171168
      %v9143 = vunpack.c.0.s8 %v9142
      %v9144 = vlaneseq
      %v9145 = vshrl.u32 %v9144, 7
      %v9146 = vsub.s32 %v9143, %v9145
      %v9147 = vrot.slane %v9133, %v9146
      %v9148 = vcombine.high %v9140, %v9140
      %v9149 = vcombine.high %v9147, %v9147
      %v9151 = vunpack.c.l.s4 1966171168
      %v9152 = vunpack.c.0.s8 %v9151
      %v9153 = vlaneseq
      %v9154 = vshrl.u32 %v9153, 7
      %v9155 = vsub.s32 %v9152, %v9154
      %v9156 = vrot.slane %v9095, %v9155
      %v9157 = vcombine.high %v9156, %v9156
      %v9159 = vunpack.c.l.s4 1966171168
      %v9160 = vunpack.c.0.s8 %v9159
      %v9161 = vlaneseq
      %v9162 = vshrl.u32 %v9161, 7
      %v9163 = vsub.s32 %v9160, %v9162
      %v9164 = vrot.slane %v9156, %v9163
      %v9166 = vunpack.c.l.s4 1966171168
      %v9167 = vunpack.c.0.s8 %v9166
      %v9168 = vlaneseq
      %v9169 = vshrl.u32 %v9168, 7
      %v9170 = vsub.s32 %v9167, %v9169
      %v9171 = vrot.slane %v9157, %v9170
      %v9172 = vcombine.high %v9164, %v9164
      %v9173 = vcombine.high %v9171, %v9171
      %v9175 = vunpack.c.l.s4 1966171168
      %v9176 = vunpack.c.0.s8 %v9175
      %v9177 = vlaneseq
      %v9178 = vshrl.u32 %v9177, 7
      %v9179 = vsub.s32 %v9176, %v9178
      %v9180 = vrot.slane %v9096, %v9179
      %v9181 = vcombine.high %v9180, %v9180
      %v9183 = vunpack.c.l.s4 1966171168
      %v9184 = vunpack.c.0.s8 %v9183
      %v9185 = vlaneseq
      %v9186 = vshrl.u32 %v9185, 7
      %v9187 = vsub.s32 %v9184, %v9186
      %v9188 = vrot.slane %v9180, %v9187
      %v9190 = vunpack.c.l.s4 1966171168
      %v9191 = vunpack.c.0.s8 %v9190
      %v9192 = vlaneseq
      %v9193 = vshrl.u32 %v9192, 7
      %v9194 = vsub.s32 %v9191, %v9193
      %v9195 = vrot.slane %v9181, %v9194
      %v9196 = vcombine.high %v9188, %v9188
      %v9197 = vcombine.high %v9195, %v9195
      %v9199 = vunpack.c.l.s4 1966171168
      %v9200 = vunpack.c.0.s8 %v9199
      %v9201 = vlaneseq
      %v9202 = vshrl.u32 %v9201, 7
      %v9203 = vsub.s32 %v9200, %v9202
      %v9204 = vrot.slane %v9097, %v9203
      %v9205 = vcombine.high %v9204, %v9204
      %v9207 = vunpack.c.l.s4 1966171168
      %v9208 = vunpack.c.0.s8 %v9207
      %v9209 = vlaneseq
      %v9210 = vshrl.u32 %v9209, 7
      %v9211 = vsub.s32 %v9208, %v9210
      %v9212 = vrot.slane %v9204, %v9211
      %v9214 = vunpack.c.l.s4 1966171168
      %v9215 = vunpack.c.0.s8 %v9214
      %v9216 = vlaneseq
      %v9217 = vshrl.u32 %v9216, 7
      %v9218 = vsub.s32 %v9215, %v9217
      %v9219 = vrot.slane %v9205, %v9218
      %v9220 = vcombine.high %v9212, %v9212
      %v9221 = vcombine.high %v9219, %v9219
      %v9223 = vunpack.c.l.s4 1966171168
      %v9224 = vunpack.c.0.s8 %v9223
      %v9225 = vlaneseq
      %v9226 = vshrl.u32 %v9225, 7
      %v9227 = vsub.s32 %v9224, %v9226
      %v9228 = vrot.slane %v9098, %v9227
      %v9229 = vcombine.high %v9228, %v9228
      %v9231 = vunpack.c.l.s4 1966171168
      %v9232 = vunpack.c.0.s8 %v9231
      %v9233 = vlaneseq
      %v9234 = vshrl.u32 %v9233, 7
      %v9235 = vsub.s32 %v9232, %v9234
      %v9236 = vrot.slane %v9228, %v9235
      %v9238 = vunpack.c.l.s4 1966171168
      %v9239 = vunpack.c.0.s8 %v9238
      %v9240 = vlaneseq
      %v9241 = vshrl.u32 %v9240, 7
      %v9242 = vsub.s32 %v9239, %v9241
      %v9243 = vrot.slane %v9229, %v9242
      %v9244 = vcombine.high %v9236, %v9236
      %v9245 = vcombine.high %v9243, %v9243
      %v9247 = vunpack.c.l.s4 1966171168
      %v9248 = vunpack.c.0.s8 %v9247
      %v9249 = vlaneseq
      %v9250 = vshrl.u32 %v9249, 7
      %v9251 = vsub.s32 %v9248, %v9250
      %v9252 = vrot.slane %v9099, %v9251
      %v9253 = vcombine.high %v9252, %v9252
      %v9255 = vunpack.c.l.s4 1966171168
      %v9256 = vunpack.c.0.s8 %v9255
      %v9257 = vlaneseq
      %v9258 = vshrl.u32 %v9257, 7
      %v9259 = vsub.s32 %v9256, %v9258
      %v9260 = vrot.slane %v9252, %v9259
      %v9262 = vunpack.c.l.s4 1966171168
      %v9263 = vunpack.c.0.s8 %v9262
      %v9264 = vlaneseq
      %v9265 = vshrl.u32 %v9264, 7
      %v9266 = vsub.s32 %v9263, %v9265
      %v9267 = vrot.slane %v9253, %v9266
      %v9268 = vcombine.high %v9260, %v9260
      %v9269 = vcombine.high %v9267, %v9267
      %v9271 = vunpack.c.l.s4 1966171168
      %v9272 = vunpack.c.0.s8 %v9271
      %v9273 = vlaneseq
      %v9274 = vshrl.u32 %v9273, 7
      %v9275 = vsub.s32 %v9272, %v9274
      %v9276 = vrot.slane %v9100, %v9275
      %v9277 = vcombine.high %v9276, %v9276
      %v9279 = vunpack.c.l.s4 1966171168
      %v9280 = vunpack.c.0.s8 %v9279
      %v9281 = vlaneseq
      %v9282 = vshrl.u32 %v9281, 7
      %v9283 = vsub.s32 %v9280, %v9282
      %v9284 = vrot.slane %v9276, %v9283
      %v9286 = vunpack.c.l.s4 1966171168
      %v9287 = vunpack.c.0.s8 %v9286
      %v9288 = vlaneseq
      %v9289 = vshrl.u32 %v9288, 7
      %v9290 = vsub.s32 %v9287, %v9289
      %v9291 = vrot.slane %v9277, %v9290
      %v9292 = vcombine.high %v9284, %v9284
      %v9293 = vcombine.high %v9291, %v9291
      %v9295 = vunpack.c.l.s4 1966171168
      %v9296 = vunpack.c.0.s8 %v9295
      %v9297 = vlaneseq
      %v9298 = vshrl.u32 %v9297, 7
      %v9299 = vsub.s32 %v9296, %v9298
      %v9300 = vrot.slane %v9101, %v9299
      %v9301 = vcombine.high %v9300, %v9300
      %v9303 = vunpack.c.l.s4 1966171168
      %v9304 = vunpack.c.0.s8 %v9303
      %v9305 = vlaneseq
      %v9306 = vshrl.u32 %v9305, 7
      %v9307 = vsub.s32 %v9304, %v9306
      %v9308 = vrot.slane %v9300, %v9307
      %v9310 = vunpack.c.l.s4 1966171168
      %v9311 = vunpack.c.0.s8 %v9310
      %v9312 = vlaneseq
      %v9313 = vshrl.u32 %v9312, 7
      %v9314 = vsub.s32 %v9311, %v9313
      %v9315 = vrot.slane %v9301, %v9314
      %v9316 = vcombine.high %v9308, %v9308
      %v9317 = vcombine.high %v9315, %v9315
      %v9319 = vunpack.c.l.s4 1966171168
      %v9320 = vunpack.c.0.s8 %v9319
      %v9321 = vlaneseq
      %v9322 = vshrl.u32 %v9321, 7
      %v9323 = vsub.s32 %v9320, %v9322
      %v9324 = vrot.slane %v9102, %v9323
      %v9325 = vcombine.high %v9324, %v9324
      %v9327 = vunpack.c.l.s4 1966171168
      %v9328 = vunpack.c.0.s8 %v9327
      %v9329 = vlaneseq
      %v9330 = vshrl.u32 %v9329, 7
      %v9331 = vsub.s32 %v9328, %v9330
      %v9332 = vrot.slane %v9324, %v9331
      %v9334 = vunpack.c.l.s4 1966171168
      %v9335 = vunpack.c.0.s8 %v9334
      %v9336 = vlaneseq
      %v9337 = vshrl.u32 %v9336, 7
      %v9338 = vsub.s32 %v9335, %v9337
      %v9339 = vrot.slane %v9325, %v9338
      %v9340 = vcombine.high %v9332, %v9332
      %v9341 = vcombine.high %v9339, %v9339
      %v9343 = vunpack.c.l.s4 1966171168
      %v9344 = vunpack.c.0.s8 %v9343
      %v9345 = vlaneseq
      %v9346 = vshrl.u32 %v9345, 7
      %v9347 = vsub.s32 %v9344, %v9346
      %v9348 = vrot.slane %v9103, %v9347
      %v9349 = vcombine.high %v9348, %v9348
      %v9351 = vunpack.c.l.s4 1966171168
      %v9352 = vunpack.c.0.s8 %v9351
      %v9353 = vlaneseq
      %v9354 = vshrl.u32 %v9353, 7
      %v9355 = vsub.s32 %v9352, %v9354
      %v9356 = vrot.slane %v9348, %v9355
      %v9358 = vunpack.c.l.s4 1966171168
      %v9359 = vunpack.c.0.s8 %v9358
      %v9360 = vlaneseq
      %v9361 = vshrl.u32 %v9360, 7
      %v9362 = vsub.s32 %v9359, %v9361
      %v9363 = vrot.slane %v9349, %v9362
      %v9364 = vcombine.high %v9356, %v9356
      %v9365 = vcombine.high %v9363, %v9363
      %v9367 = vunpack.c.l.s4 1966171168
      %v9368 = vunpack.c.0.s8 %v9367
      %v9369 = vlaneseq
      %v9370 = vshrl.u32 %v9369, 7
      %v9371 = vsub.s32 %v9368, %v9370
      %v9372 = vrot.slane %v9104, %v9371
      %v9373 = vcombine.high %v9372, %v9372
      %v9375 = vunpack.c.l.s4 1966171168
      %v9376 = vunpack.c.0.s8 %v9375
      %v9377 = vlaneseq
      %v9378 = vshrl.u32 %v9377, 7
      %v9379 = vsub.s32 %v9376, %v9378
      %v9380 = vrot.slane %v9372, %v9379
      %v9382 = vunpack.c.l.s4 1966171168
      %v9383 = vunpack.c.0.s8 %v9382
      %v9384 = vlaneseq
      %v9385 = vshrl.u32 %v9384, 7
      %v9386 = vsub.s32 %v9383, %v9385
      %v9387 = vrot.slane %v9373, %v9386
      %v9388 = vcombine.high %v9380, %v9380
      %v9389 = vcombine.high %v9387, %v9387
      %v9391 = vunpack.c.l.s4 1966171168
      %v9392 = vunpack.c.0.s8 %v9391
      %v9393 = vlaneseq
      %v9394 = vshrl.u32 %v9393, 7
      %v9395 = vsub.s32 %v9392, %v9394
      %v9396 = vrot.slane %v9105, %v9395
      %v9397 = vcombine.high %v9396, %v9396
      %v9399 = vunpack.c.l.s4 1966171168
      %v9400 = vunpack.c.0.s8 %v9399
      %v9401 = vlaneseq
      %v9402 = vshrl.u32 %v9401, 7
      %v9403 = vsub.s32 %v9400, %v9402
      %v9404 = vrot.slane %v9396, %v9403
      %v9406 = vunpack.c.l.s4 1966171168
      %v9407 = vunpack.c.0.s8 %v9406
      %v9408 = vlaneseq
      %v9409 = vshrl.u32 %v9408, 7
      %v9410 = vsub.s32 %v9407, %v9409
      %v9411 = vrot.slane %v9397, %v9410
      %v9412 = vcombine.high %v9404, %v9404
      %v9413 = vcombine.high %v9411, %v9411
      %v9415 = vunpack.c.l.s4 1966171168
      %v9416 = vunpack.c.0.s8 %v9415
      %v9417 = vlaneseq
      %v9418 = vshrl.u32 %v9417, 7
      %v9419 = vsub.s32 %v9416, %v9418
      %v9420 = vrot.slane %v9106, %v9419
      %v9421 = vcombine.high %v9420, %v9420
      %v9423 = vunpack.c.l.s4 1966171168
      %v9424 = vunpack.c.0.s8 %v9423
      %v9425 = vlaneseq
      %v9426 = vshrl.u32 %v9425, 7
      %v9427 = vsub.s32 %v9424, %v9426
      %v9428 = vrot.slane %v9420, %v9427
      %v9430 = vunpack.c.l.s4 1966171168
      %v9431 = vunpack.c.0.s8 %v9430
      %v9432 = vlaneseq
      %v9433 = vshrl.u32 %v9432, 7
      %v9434 = vsub.s32 %v9431, %v9433
      %v9435 = vrot.slane %v9421, %v9434
      %v9436 = vcombine.high %v9428, %v9428
      %v9437 = vcombine.high %v9435, %v9435
      %v9439 = vunpack.c.l.s4 1966171168
      %v9440 = vunpack.c.0.s8 %v9439
      %v9441 = vlaneseq
      %v9442 = vshrl.u32 %v9441, 7
      %v9443 = vsub.s32 %v9440, %v9442
      %v9444 = vrot.slane %v9107, %v9443
      %v9445 = vcombine.high %v9444, %v9444
      %v9447 = vunpack.c.l.s4 1966171168
      %v9448 = vunpack.c.0.s8 %v9447
      %v9449 = vlaneseq
      %v9450 = vshrl.u32 %v9449, 7
      %v9451 = vsub.s32 %v9448, %v9450
      %v9452 = vrot.slane %v9444, %v9451
      %v9454 = vunpack.c.l.s4 1966171168
      %v9455 = vunpack.c.0.s8 %v9454
      %v9456 = vlaneseq
      %v9457 = vshrl.u32 %v9456, 7
      %v9458 = vsub.s32 %v9455, %v9457
      %v9459 = vrot.slane %v9445, %v9458
      %v9460 = vcombine.high %v9452, %v9452
      %v9461 = vcombine.high %v9459, %v9459
      %v9463 = vunpack.c.l.s4 1966171168
      %v9464 = vunpack.c.0.s8 %v9463
      %v9465 = vlaneseq
      %v9466 = vshrl.u32 %v9465, 7
      %v9467 = vsub.s32 %v9464, %v9466
      %v9468 = vrot.slane %v9108, %v9467
      %v9469 = vcombine.high %v9468, %v9468
      %v9471 = vunpack.c.l.s4 1966171168
      %v9472 = vunpack.c.0.s8 %v9471
      %v9473 = vlaneseq
      %v9474 = vshrl.u32 %v9473, 7
      %v9475 = vsub.s32 %v9472, %v9474
      %v9476 = vrot.slane %v9468, %v9475
      %v9478 = vunpack.c.l.s4 1966171168
      %v9479 = vunpack.c.0.s8 %v9478
      %v9480 = vlaneseq
      %v9481 = vshrl.u32 %v9480, 7
      %v9482 = vsub.s32 %v9479, %v9481
      %v9483 = vrot.slane %v9469, %v9482
      %v9484 = vcombine.high %v9476, %v9476
      %v9485 = vcombine.high %v9483, %v9483
      %v9487 = vunpack.c.l.s4 1966171168
      %v9488 = vunpack.c.0.s8 %v9487
      %v9489 = vlaneseq
      %v9490 = vshrl.u32 %v9489, 7
      %v9491 = vsub.s32 %v9488, %v9490
      %v9492 = vrot.slane %v9109, %v9491
      %v9493 = vcombine.high %v9492, %v9492
      %v9495 = vunpack.c.l.s4 1966171168
      %v9496 = vunpack.c.0.s8 %v9495
      %v9497 = vlaneseq
      %v9498 = vshrl.u32 %v9497, 7
      %v9499 = vsub.s32 %v9496, %v9498
      %v9500 = vrot.slane %v9492, %v9499
      %v9502 = vunpack.c.l.s4 1966171168
      %v9503 = vunpack.c.0.s8 %v9502
      %v9504 = vlaneseq
      %v9505 = vshrl.u32 %v9504, 7
      %v9506 = vsub.s32 %v9503, %v9505
      %v9507 = vrot.slane %v9493, %v9506
      %v9508 = vcombine.high %v9500, %v9500
      %v9509 = vcombine.high %v9507, %v9507
      %v9511 = vunpack.c.l.s4 1935823168
      %v9512 = vunpack.c.0.s8 %v9511
      %v9513 = vlaneseq
      %v9514 = vshrl.u32 %v9513, 7
      %v9515 = vsub.s32 %v9512, %v9514
      %v9516 = vrot.slane %v9140, %v9515
      %v9518 = vunpack.c.l.s4 1935823168
      %v9519 = vunpack.c.0.s8 %v9518
      %v9520 = vlaneseq
      %v9521 = vshrl.u32 %v9520, 7
      %v9522 = vsub.s32 %v9519, %v9521
      %v9523 = vrot.slane %v9516, %v9522
      %v9525 = vunpack.c.l.s4 1935823168
      %v9526 = vunpack.c.0.s8 %v9525
      %v9527 = vlaneseq
      %v9528 = vshrl.u32 %v9527, 7
      %v9529 = vsub.s32 %v9526, %v9528
      %v9530 = vrot.slane %v9147, %v9529
      %v9532 = vunpack.c.l.s4 1935823168
      %v9533 = vunpack.c.0.s8 %v9532
      %v9534 = vlaneseq
      %v9535 = vshrl.u32 %v9534, 7
      %v9536 = vsub.s32 %v9533, %v9535
      %v9537 = vrot.slane %v9530, %v9536
      %v9539 = vunpack.c.l.s4 1935823168
      %v9540 = vunpack.c.0.s8 %v9539
      %v9541 = vlaneseq
      %v9542 = vshrl.u32 %v9541, 7
      %v9543 = vsub.s32 %v9540, %v9542
      %v9544 = vrot.slane %v9148, %v9543
      %v9546 = vunpack.c.l.s4 1935823168
      %v9547 = vunpack.c.0.s8 %v9546
      %v9548 = vlaneseq
      %v9549 = vshrl.u32 %v9548, 7
      %v9550 = vsub.s32 %v9547, %v9549
      %v9551 = vrot.slane %v9544, %v9550
      %v9553 = vunpack.c.l.s4 1935823168
      %v9554 = vunpack.c.0.s8 %v9553
      %v9555 = vlaneseq
      %v9556 = vshrl.u32 %v9555, 7
      %v9557 = vsub.s32 %v9554, %v9556
      %v9558 = vrot.slane %v9149, %v9557
      %v9560 = vunpack.c.l.s4 1935823168
      %v9561 = vunpack.c.0.s8 %v9560
      %v9562 = vlaneseq
      %v9563 = vshrl.u32 %v9562, 7
      %v9564 = vsub.s32 %v9561, %v9563
      %v9565 = vrot.slane %v9558, %v9564
      %v9567 = vunpack.c.l.s4 1935823168
      %v9568 = vunpack.c.0.s8 %v9567
      %v9569 = vlaneseq
      %v9570 = vshrl.u32 %v9569, 7
      %v9571 = vsub.s32 %v9568, %v9570
      %v9572 = vrot.slane %v9164, %v9571
      %v9574 = vunpack.c.l.s4 1935823168
      %v9575 = vunpack.c.0.s8 %v9574
      %v9576 = vlaneseq
      %v9577 = vshrl.u32 %v9576, 7
      %v9578 = vsub.s32 %v9575, %v9577
      %v9579 = vrot.slane %v9572, %v9578
      %v9581 = vunpack.c.l.s4 1935823168
      %v9582 = vunpack.c.0.s8 %v9581
      %v9583 = vlaneseq
      %v9584 = vshrl.u32 %v9583, 7
      %v9585 = vsub.s32 %v9582, %v9584
      %v9586 = vrot.slane %v9171, %v9585
      %v9588 = vunpack.c.l.s4 1935823168
      %v9589 = vunpack.c.0.s8 %v9588
      %v9590 = vlaneseq
      %v9591 = vshrl.u32 %v9590, 7
      %v9592 = vsub.s32 %v9589, %v9591
      %v9593 = vrot.slane %v9586, %v9592
      %v9595 = vunpack.c.l.s4 1935823168
      %v9596 = vunpack.c.0.s8 %v9595
      %v9597 = vlaneseq
      %v9598 = vshrl.u32 %v9597, 7
      %v9599 = vsub.s32 %v9596, %v9598
      %v9600 = vrot.slane %v9172, %v9599
      %v9602 = vunpack.c.l.s4 1935823168
      %v9603 = vunpack.c.0.s8 %v9602
      %v9604 = vlaneseq
      %v9605 = vshrl.u32 %v9604, 7
      %v9606 = vsub.s32 %v9603, %v9605
      %v9607 = vrot.slane %v9600, %v9606
      %v9609 = vunpack.c.l.s4 1935823168
      %v9610 = vunpack.c.0.s8 %v9609
      %v9611 = vlaneseq
      %v9612 = vshrl.u32 %v9611, 7
      %v9613 = vsub.s32 %v9610, %v9612
      %v9614 = vrot.slane %v9173, %v9613
      %v9616 = vunpack.c.l.s4 1935823168
      %v9617 = vunpack.c.0.s8 %v9616
      %v9618 = vlaneseq
      %v9619 = vshrl.u32 %v9618, 7
      %v9620 = vsub.s32 %v9617, %v9619
      %v9621 = vrot.slane %v9614, %v9620
      %v9623 = vunpack.c.l.s4 1935823168
      %v9624 = vunpack.c.0.s8 %v9623
      %v9625 = vlaneseq
      %v9626 = vshrl.u32 %v9625, 7
      %v9627 = vsub.s32 %v9624, %v9626
      %v9628 = vrot.slane %v9188, %v9627
      %v9630 = vunpack.c.l.s4 1935823168
      %v9631 = vunpack.c.0.s8 %v9630
      %v9632 = vlaneseq
      %v9633 = vshrl.u32 %v9632, 7
      %v9634 = vsub.s32 %v9631, %v9633
      %v9635 = vrot.slane %v9628, %v9634
      %v9637 = vunpack.c.l.s4 1935823168
      %v9638 = vunpack.c.0.s8 %v9637
      %v9639 = vlaneseq
      %v9640 = vshrl.u32 %v9639, 7
      %v9641 = vsub.s32 %v9638, %v9640
      %v9642 = vrot.slane %v9195, %v9641
      %v9644 = vunpack.c.l.s4 1935823168
      %v9645 = vunpack.c.0.s8 %v9644
      %v9646 = vlaneseq
      %v9647 = vshrl.u32 %v9646, 7
      %v9648 = vsub.s32 %v9645, %v9647
      %v9649 = vrot.slane %v9642, %v9648
      %v9651 = vunpack.c.l.s4 1935823168
      %v9652 = vunpack.c.0.s8 %v9651
      %v9653 = vlaneseq
      %v9654 = vshrl.u32 %v9653, 7
      %v9655 = vsub.s32 %v9652, %v9654
      %v9656 = vrot.slane %v9196, %v9655
      %v9658 = vunpack.c.l.s4 1935823168
      %v9659 = vunpack.c.0.s8 %v9658
      %v9660 = vlaneseq
      %v9661 = vshrl.u32 %v9660, 7
      %v9662 = vsub.s32 %v9659, %v9661
      %v9663 = vrot.slane %v9656, %v9662
      %v9665 = vunpack.c.l.s4 1935823168
      %v9666 = vunpack.c.0.s8 %v9665
      %v9667 = vlaneseq
      %v9668 = vshrl.u32 %v9667, 7
      %v9669 = vsub.s32 %v9666, %v9668
      %v9670 = vrot.slane %v9197, %v9669
      %v9672 = vunpack.c.l.s4 1935823168
      %v9673 = vunpack.c.0.s8 %v9672
      %v9674 = vlaneseq
      %v9675 = vshrl.u32 %v9674, 7
      %v9676 = vsub.s32 %v9673, %v9675
      %v9677 = vrot.slane %v9670, %v9676
      %v9679 = vunpack.c.l.s4 1935823168
      %v9680 = vunpack.c.0.s8 %v9679
      %v9681 = vlaneseq
      %v9682 = vshrl.u32 %v9681, 7
      %v9683 = vsub.s32 %v9680, %v9682
      %v9684 = vrot.slane %v9212, %v9683
      %v9686 = vunpack.c.l.s4 1935823168
      %v9687 = vunpack.c.0.s8 %v9686
      %v9688 = vlaneseq
      %v9689 = vshrl.u32 %v9688, 7
      %v9690 = vsub.s32 %v9687, %v9689
      %v9691 = vrot.slane %v9684, %v9690
      %v9693 = vunpack.c.l.s4 1935823168
      %v9694 = vunpack.c.0.s8 %v9693
      %v9695 = vlaneseq
      %v9696 = vshrl.u32 %v9695, 7
      %v9697 = vsub.s32 %v9694, %v9696
      %v9698 = vrot.slane %v9219, %v9697
      %v9700 = vunpack.c.l.s4 1935823168
      %v9701 = vunpack.c.0.s8 %v9700
      %v9702 = vlaneseq
      %v9703 = vshrl.u32 %v9702, 7
      %v9704 = vsub.s32 %v9701, %v9703
      %v9705 = vrot.slane %v9698, %v9704
      %v9707 = vunpack.c.l.s4 1935823168
      %v9708 = vunpack.c.0.s8 %v9707
      %v9709 = vlaneseq
      %v9710 = vshrl.u32 %v9709, 7
      %v9711 = vsub.s32 %v9708, %v9710
      %v9712 = vrot.slane %v9220, %v9711
      %v9714 = vunpack.c.l.s4 1935823168
      %v9715 = vunpack.c.0.s8 %v9714
      %v9716 = vlaneseq
      %v9717 = vshrl.u32 %v9716, 7
      %v9718 = vsub.s32 %v9715, %v9717
      %v9719 = vrot.slane %v9712, %v9718
      %v9721 = vunpack.c.l.s4 1935823168
      %v9722 = vunpack.c.0.s8 %v9721
      %v9723 = vlaneseq
      %v9724 = vshrl.u32 %v9723, 7
      %v9725 = vsub.s32 %v9722, %v9724
      %v9726 = vrot.slane %v9221, %v9725
      %v9728 = vunpack.c.l.s4 1935823168
      %v9729 = vunpack.c.0.s8 %v9728
      %v9730 = vlaneseq
      %v9731 = vshrl.u32 %v9730, 7
      %v9732 = vsub.s32 %v9729, %v9731
      %v9733 = vrot.slane %v9726, %v9732
      %v9735 = vunpack.c.l.s4 1935823168
      %v9736 = vunpack.c.0.s8 %v9735
      %v9737 = vlaneseq
      %v9738 = vshrl.u32 %v9737, 7
      %v9739 = vsub.s32 %v9736, %v9738
      %v9740 = vrot.slane %v9236, %v9739
      %v9742 = vunpack.c.l.s4 1935823168
      %v9743 = vunpack.c.0.s8 %v9742
      %v9744 = vlaneseq
      %v9745 = vshrl.u32 %v9744, 7
      %v9746 = vsub.s32 %v9743, %v9745
      %v9747 = vrot.slane %v9740, %v9746
      %v9749 = vunpack.c.l.s4 1935823168
      %v9750 = vunpack.c.0.s8 %v9749
      %v9751 = vlaneseq
      %v9752 = vshrl.u32 %v9751, 7
      %v9753 = vsub.s32 %v9750, %v9752
      %v9754 = vrot.slane %v9243, %v9753
      %v9756 = vunpack.c.l.s4 1935823168
      %v9757 = vunpack.c.0.s8 %v9756
      %v9758 = vlaneseq
      %v9759 = vshrl.u32 %v9758, 7
      %v9760 = vsub.s32 %v9757, %v9759
      %v9761 = vrot.slane %v9754, %v9760
      %v9763 = vunpack.c.l.s4 1935823168
      %v9764 = vunpack.c.0.s8 %v9763
      %v9765 = vlaneseq
      %v9766 = vshrl.u32 %v9765, 7
      %v9767 = vsub.s32 %v9764, %v9766
      %v9768 = vrot.slane %v9244, %v9767
      %v9770 = vunpack.c.l.s4 1935823168
      %v9771 = vunpack.c.0.s8 %v9770
      %v9772 = vlaneseq
      %v9773 = vshrl.u32 %v9772, 7
      %v9774 = vsub.s32 %v9771, %v9773
      %v9775 = vrot.slane %v9768, %v9774
      %v9777 = vunpack.c.l.s4 1935823168
      %v9778 = vunpack.c.0.s8 %v9777
      %v9779 = vlaneseq
      %v9780 = vshrl.u32 %v9779, 7
      %v9781 = vsub.s32 %v9778, %v9780
      %v9782 = vrot.slane %v9245, %v9781
      %v9784 = vunpack.c.l.s4 1935823168
      %v9785 = vunpack.c.0.s8 %v9784
      %v9786 = vlaneseq
      %v9787 = vshrl.u32 %v9786, 7
      %v9788 = vsub.s32 %v9785, %v9787
      %v9789 = vrot.slane %v9782, %v9788
      %v9791 = vunpack.c.l.s4 1935823168
      %v9792 = vunpack.c.0.s8 %v9791
      %v9793 = vlaneseq
      %v9794 = vshrl.u32 %v9793, 7
      %v9795 = vsub.s32 %v9792, %v9794
      %v9796 = vrot.slane %v9260, %v9795
      %v9798 = vunpack.c.l.s4 1935823168
      %v9799 = vunpack.c.0.s8 %v9798
      %v9800 = vlaneseq
      %v9801 = vshrl.u32 %v9800, 7
      %v9802 = vsub.s32 %v9799, %v9801
      %v9803 = vrot.slane %v9796, %v9802
      %v9805 = vunpack.c.l.s4 1935823168
      %v9806 = vunpack.c.0.s8 %v9805
      %v9807 = vlaneseq
      %v9808 = vshrl.u32 %v9807, 7
      %v9809 = vsub.s32 %v9806, %v9808
      %v9810 = vrot.slane %v9267, %v9809
      %v9812 = vunpack.c.l.s4 1935823168
      %v9813 = vunpack.c.0.s8 %v9812
      %v9814 = vlaneseq
      %v9815 = vshrl.u32 %v9814, 7
      %v9816 = vsub.s32 %v9813, %v9815
      %v9817 = vrot.slane %v9810, %v9816
      %v9819 = vunpack.c.l.s4 1935823168
      %v9820 = vunpack.c.0.s8 %v9819
      %v9821 = vlaneseq
      %v9822 = vshrl.u32 %v9821, 7
      %v9823 = vsub.s32 %v9820, %v9822
      %v9824 = vrot.slane %v9268, %v9823
      %v9826 = vunpack.c.l.s4 1935823168
      %v9827 = vunpack.c.0.s8 %v9826
      %v9828 = vlaneseq
      %v9829 = vshrl.u32 %v9828, 7
      %v9830 = vsub.s32 %v9827, %v9829
      %v9831 = vrot.slane %v9824, %v9830
      %v9833 = vunpack.c.l.s4 1935823168
      %v9834 = vunpack.c.0.s8 %v9833
      %v9835 = vlaneseq
      %v9836 = vshrl.u32 %v9835, 7
      %v9837 = vsub.s32 %v9834, %v9836
      %v9838 = vrot.slane %v9269, %v9837
      %v9840 = vunpack.c.l.s4 1935823168
      %v9841 = vunpack.c.0.s8 %v9840
      %v9842 = vlaneseq
      %v9843 = vshrl.u32 %v9842, 7
      %v9844 = vsub.s32 %v9841, %v9843
      %v9845 = vrot.slane %v9838, %v9844
      %v9847 = vunpack.c.l.s4 1935823168
      %v9848 = vunpack.c.0.s8 %v9847
      %v9849 = vlaneseq
      %v9850 = vshrl.u32 %v9849, 7
      %v9851 = vsub.s32 %v9848, %v9850
      %v9852 = vrot.slane %v9284, %v9851
      %v9854 = vunpack.c.l.s4 1935823168
      %v9855 = vunpack.c.0.s8 %v9854
      %v9856 = vlaneseq
      %v9857 = vshrl.u32 %v9856, 7
      %v9858 = vsub.s32 %v9855, %v9857
      %v9859 = vrot.slane %v9852, %v9858
      %v9861 = vunpack.c.l.s4 1935823168
      %v9862 = vunpack.c.0.s8 %v9861
      %v9863 = vlaneseq
      %v9864 = vshrl.u32 %v9863, 7
      %v9865 = vsub.s32 %v9862, %v9864
      %v9866 = vrot.slane %v9291, %v9865
      %v9868 = vunpack.c.l.s4 1935823168
      %v9869 = vunpack.c.0.s8 %v9868
      %v9870 = vlaneseq
      %v9871 = vshrl.u32 %v9870, 7
      %v9872 = vsub.s32 %v9869, %v9871
      %v9873 = vrot.slane %v9866, %v9872
      %v9875 = vunpack.c.l.s4 1935823168
      %v9876 = vunpack.c.0.s8 %v9875
      %v9877 = vlaneseq
      %v9878 = vshrl.u32 %v9877, 7
      %v9879 = vsub.s32 %v9876, %v9878
      %v9880 = vrot.slane %v9292, %v9879
      %v9882 = vunpack.c.l.s4 1935823168
      %v9883 = vunpack.c.0.s8 %v9882
      %v9884 = vlaneseq
      %v9885 = vshrl.u32 %v9884, 7
      %v9886 = vsub.s32 %v9883, %v9885
      %v9887 = vrot.slane %v9880, %v9886
      %v9889 = vunpack.c.l.s4 1935823168
      %v9890 = vunpack.c.0.s8 %v9889
      %v9891 = vlaneseq
      %v9892 = vshrl.u32 %v9891, 7
      %v9893 = vsub.s32 %v9890, %v9892
      %v9894 = vrot.slane %v9293, %v9893
      %v9896 = vunpack.c.l.s4 1935823168
      %v9897 = vunpack.c.0.s8 %v9896
      %v9898 = vlaneseq
      %v9899 = vshrl.u32 %v9898, 7
      %v9900 = vsub.s32 %v9897, %v9899
      %v9901 = vrot.slane %v9894, %v9900
      %v9903 = vunpack.c.l.s4 1935823168
      %v9904 = vunpack.c.0.s8 %v9903
      %v9905 = vlaneseq
      %v9906 = vshrl.u32 %v9905, 7
      %v9907 = vsub.s32 %v9904, %v9906
      %v9908 = vrot.slane %v9308, %v9907
      %v9910 = vunpack.c.l.s4 1935823168
      %v9911 = vunpack.c.0.s8 %v9910
      %v9912 = vlaneseq
      %v9913 = vshrl.u32 %v9912, 7
      %v9914 = vsub.s32 %v9911, %v9913
      %v9915 = vrot.slane %v9908, %v9914
      %v9917 = vunpack.c.l.s4 1935823168
      %v9918 = vunpack.c.0.s8 %v9917
      %v9919 = vlaneseq
      %v9920 = vshrl.u32 %v9919, 7
      %v9921 = vsub.s32 %v9918, %v9920
      %v9922 = vrot.slane %v9315, %v9921
      %v9924 = vunpack.c.l.s4 1935823168
      %v9925 = vunpack.c.0.s8 %v9924
      %v9926 = vlaneseq
      %v9927 = vshrl.u32 %v9926, 7
      %v9928 = vsub.s32 %v9925, %v9927
      %v9929 = vrot.slane %v9922, %v9928
      %v9931 = vunpack.c.l.s4 1935823168
      %v9932 = vunpack.c.0.s8 %v9931
      %v9933 = vlaneseq
      %v9934 = vshrl.u32 %v9933, 7
      %v9935 = vsub.s32 %v9932, %v9934
      %v9936 = vrot.slane %v9316, %v9935
      %v9938 = vunpack.c.l.s4 1935823168
      %v9939 = vunpack.c.0.s8 %v9938
      %v9940 = vlaneseq
      %v9941 = vshrl.u32 %v9940, 7
      %v9942 = vsub.s32 %v9939, %v9941
      %v9943 = vrot.slane %v9936, %v9942
      %v9945 = vunpack.c.l.s4 1935823168
      %v9946 = vunpack.c.0.s8 %v9945
      %v9947 = vlaneseq
      %v9948 = vshrl.u32 %v9947, 7
      %v9949 = vsub.s32 %v9946, %v9948
      %v9950 = vrot.slane %v9317, %v9949
      %v9952 = vunpack.c.l.s4 1935823168
      %v9953 = vunpack.c.0.s8 %v9952
      %v9954 = vlaneseq
      %v9955 = vshrl.u32 %v9954, 7
      %v9956 = vsub.s32 %v9953, %v9955
      %v9957 = vrot.slane %v9950, %v9956
      %v9959 = vunpack.c.l.s4 1935823168
      %v9960 = vunpack.c.0.s8 %v9959
      %v9961 = vlaneseq
      %v9962 = vshrl.u32 %v9961, 7
      %v9963 = vsub.s32 %v9960, %v9962
      %v9964 = vrot.slane %v9332, %v9963
      %v9966 = vunpack.c.l.s4 1935823168
      %v9967 = vunpack.c.0.s8 %v9966
      %v9968 = vlaneseq
      %v9969 = vshrl.u32 %v9968, 7
      %v9970 = vsub.s32 %v9967, %v9969
      %v9971 = vrot.slane %v9964, %v9970
      %v9973 = vunpack.c.l.s4 1935823168
      %v9974 = vunpack.c.0.s8 %v9973
      %v9975 = vlaneseq
      %v9976 = vshrl.u32 %v9975, 7
      %v9977 = vsub.s32 %v9974, %v9976
      %v9978 = vrot.slane %v9339, %v9977
      %v9980 = vunpack.c.l.s4 1935823168
      %v9981 = vunpack.c.0.s8 %v9980
      %v9982 = vlaneseq
      %v9983 = vshrl.u32 %v9982, 7
      %v9984 = vsub.s32 %v9981, %v9983
      %v9985 = vrot.slane %v9978, %v9984
      %v9987 = vunpack.c.l.s4 1935823168
      %v9988 = vunpack.c.0.s8 %v9987
      %v9989 = vlaneseq
      %v9990 = vshrl.u32 %v9989, 7
      %v9991 = vsub.s32 %v9988, %v9990
      %v9992 = vrot.slane %v9340, %v9991
      %v9994 = vunpack.c.l.s4 1935823168
      %v9995 = vunpack.c.0.s8 %v9994
      %v9996 = vlaneseq
      %v9997 = vshrl.u32 %v9996, 7
      %v9998 = vsub.s32 %v9995, %v9997
      %v9999 = vrot.slane %v9992, %v9998
      %v10001 = vunpack.c.l.s4 1935823168
      %v10002 = vunpack.c.0.s8 %v10001
      %v10003 = vlaneseq
      %v10004 = vshrl.u32 %v10003, 7
      %v10005 = vsub.s32 %v10002, %v10004
      %v10006 = vrot.slane %v9341, %v10005
      %v10008 = vunpack.c.l.s4 1935823168
      %v10009 = vunpack.c.0.s8 %v10008
      %v10010 = vlaneseq
      %v10011 = vshrl.u32 %v10010, 7
      %v10012 = vsub.s32 %v10009, %v10011
      %v10013 = vrot.slane %v10006, %v10012
      %v10015 = vunpack.c.l.s4 1935823168
      %v10016 = vunpack.c.0.s8 %v10015
      %v10017 = vlaneseq
      %v10018 = vshrl.u32 %v10017, 7
      %v10019 = vsub.s32 %v10016, %v10018
      %v10020 = vrot.slane %v9356, %v10019
      %v10022 = vunpack.c.l.s4 1935823168
      %v10023 = vunpack.c.0.s8 %v10022
      %v10024 = vlaneseq
      %v10025 = vshrl.u32 %v10024, 7
      %v10026 = vsub.s32 %v10023, %v10025
      %v10027 = vrot.slane %v10020, %v10026
      %v10029 = vunpack.c.l.s4 1935823168
      %v10030 = vunpack.c.0.s8 %v10029
      %v10031 = vlaneseq
      %v10032 = vshrl.u32 %v10031, 7
      %v10033 = vsub.s32 %v10030, %v10032
      %v10034 = vrot.slane %v9363, %v10033
      %v10036 = vunpack.c.l.s4 1935823168
      %v10037 = vunpack.c.0.s8 %v10036
      %v10038 = vlaneseq
      %v10039 = vshrl.u32 %v10038, 7
      %v10040 = vsub.s32 %v10037, %v10039
      %v10041 = vrot.slane %v10034, %v10040
      %v10043 = vunpack.c.l.s4 1935823168
      %v10044 = vunpack.c.0.s8 %v10043
      %v10045 = vlaneseq
      %v10046 = vshrl.u32 %v10045, 7
      %v10047 = vsub.s32 %v10044, %v10046
      %v10048 = vrot.slane %v9364, %v10047
      %v10050 = vunpack.c.l.s4 1935823168
      %v10051 = vunpack.c.0.s8 %v10050
      %v10052 = vlaneseq
      %v10053 = vshrl.u32 %v10052, 7
      %v10054 = vsub.s32 %v10051, %v10053
      %v10055 = vrot.slane %v10048, %v10054
      %v10057 = vunpack.c.l.s4 1935823168
      %v10058 = vunpack.c.0.s8 %v10057
      %v10059 = vlaneseq
      %v10060 = vshrl.u32 %v10059, 7
      %v10061 = vsub.s32 %v10058, %v10060
      %v10062 = vrot.slane %v9365, %v10061
      %v10064 = vunpack.c.l.s4 1935823168
      %v10065 = vunpack.c.0.s8 %v10064
      %v10066 = vlaneseq
      %v10067 = vshrl.u32 %v10066, 7
      %v10068 = vsub.s32 %v10065, %v10067
      %v10069 = vrot.slane %v10062, %v10068
      %v10071 = vunpack.c.l.s4 1935823168
      %v10072 = vunpack.c.0.s8 %v10071
      %v10073 = vlaneseq
      %v10074 = vshrl.u32 %v10073, 7
      %v10075 = vsub.s32 %v10072, %v10074
      %v10076 = vrot.slane %v9380, %v10075
      %v10078 = vunpack.c.l.s4 1935823168
      %v10079 = vunpack.c.0.s8 %v10078
      %v10080 = vlaneseq
      %v10081 = vshrl.u32 %v10080, 7
      %v10082 = vsub.s32 %v10079, %v10081
      %v10083 = vrot.slane %v10076, %v10082
      %v10085 = vunpack.c.l.s4 1935823168
      %v10086 = vunpack.c.0.s8 %v10085
      %v10087 = vlaneseq
      %v10088 = vshrl.u32 %v10087, 7
      %v10089 = vsub.s32 %v10086, %v10088
      %v10090 = vrot.slane %v9387, %v10089
      %v10092 = vunpack.c.l.s4 1935823168
      %v10093 = vunpack.c.0.s8 %v10092
      %v10094 = vlaneseq
      %v10095 = vshrl.u32 %v10094, 7
      %v10096 = vsub.s32 %v10093, %v10095
      %v10097 = vrot.slane %v10090, %v10096
      %v10099 = vunpack.c.l.s4 1935823168
      %v10100 = vunpack.c.0.s8 %v10099
      %v10101 = vlaneseq
      %v10102 = vshrl.u32 %v10101, 7
      %v10103 = vsub.s32 %v10100, %v10102
      %v10104 = vrot.slane %v9388, %v10103
      %v10106 = vunpack.c.l.s4 1935823168
      %v10107 = vunpack.c.0.s8 %v10106
      %v10108 = vlaneseq
      %v10109 = vshrl.u32 %v10108, 7
      %v10110 = vsub.s32 %v10107, %v10109
      %v10111 = vrot.slane %v10104, %v10110
      %v10113 = vunpack.c.l.s4 1935823168
      %v10114 = vunpack.c.0.s8 %v10113
      %v10115 = vlaneseq
      %v10116 = vshrl.u32 %v10115, 7
      %v10117 = vsub.s32 %v10114, %v10116
      %v10118 = vrot.slane %v9389, %v10117
      %v10120 = vunpack.c.l.s4 1935823168
      %v10121 = vunpack.c.0.s8 %v10120
      %v10122 = vlaneseq
      %v10123 = vshrl.u32 %v10122, 7
      %v10124 = vsub.s32 %v10121, %v10123
      %v10125 = vrot.slane %v10118, %v10124
      %v10127 = vunpack.c.l.s4 1935823168
      %v10128 = vunpack.c.0.s8 %v10127
      %v10129 = vlaneseq
      %v10130 = vshrl.u32 %v10129, 7
      %v10131 = vsub.s32 %v10128, %v10130
      %v10132 = vrot.slane %v9404, %v10131
      %v10134 = vunpack.c.l.s4 1935823168
      %v10135 = vunpack.c.0.s8 %v10134
      %v10136 = vlaneseq
      %v10137 = vshrl.u32 %v10136, 7
      %v10138 = vsub.s32 %v10135, %v10137
      %v10139 = vrot.slane %v10132, %v10138
      %v10141 = vunpack.c.l.s4 1935823168
      %v10142 = vunpack.c.0.s8 %v10141
      %v10143 = vlaneseq
      %v10144 = vshrl.u32 %v10143, 7
      %v10145 = vsub.s32 %v10142, %v10144
      %v10146 = vrot.slane %v9411, %v10145
      %v10148 = vunpack.c.l.s4 1935823168
      %v10149 = vunpack.c.0.s8 %v10148
      %v10150 = vlaneseq
      %v10151 = vshrl.u32 %v10150, 7
      %v10152 = vsub.s32 %v10149, %v10151
      %v10153 = vrot.slane %v10146, %v10152
      %v10155 = vunpack.c.l.s4 1935823168
      %v10156 = vunpack.c.0.s8 %v10155
      %v10157 = vlaneseq
      %v10158 = vshrl.u32 %v10157, 7
      %v10159 = vsub.s32 %v10156, %v10158
      %v10160 = vrot.slane %v9412, %v10159
      %v10162 = vunpack.c.l.s4 1935823168
      %v10163 = vunpack.c.0.s8 %v10162
      %v10164 = vlaneseq
      %v10165 = vshrl.u32 %v10164, 7
      %v10166 = vsub.s32 %v10163, %v10165
      %v10167 = vrot.slane %v10160, %v10166
      %v10169 = vunpack.c.l.s4 1935823168
      %v10170 = vunpack.c.0.s8 %v10169
      %v10171 = vlaneseq
      %v10172 = vshrl.u32 %v10171, 7
      %v10173 = vsub.s32 %v10170, %v10172
      %v10174 = vrot.slane %v9413, %v10173
      %v10176 = vunpack.c.l.s4 1935823168
      %v10177 = vunpack.c.0.s8 %v10176
      %v10178 = vlaneseq
      %v10179 = vshrl.u32 %v10178, 7
      %v10180 = vsub.s32 %v10177, %v10179
      %v10181 = vrot.slane %v10174, %v10180
      %v10183 = vunpack.c.l.s4 1935823168
      %v10184 = vunpack.c.0.s8 %v10183
      %v10185 = vlaneseq
      %v10186 = vshrl.u32 %v10185, 7
      %v10187 = vsub.s32 %v10184, %v10186
      %v10188 = vrot.slane %v9428, %v10187
      %v10190 = vunpack.c.l.s4 1935823168
      %v10191 = vunpack.c.0.s8 %v10190
      %v10192 = vlaneseq
      %v10193 = vshrl.u32 %v10192, 7
      %v10194 = vsub.s32 %v10191, %v10193
      %v10195 = vrot.slane %v10188, %v10194
      %v10197 = vunpack.c.l.s4 1935823168
      %v10198 = vunpack.c.0.s8 %v10197
      %v10199 = vlaneseq
      %v10200 = vshrl.u32 %v10199, 7
      %v10201 = vsub.s32 %v10198, %v10200
      %v10202 = vrot.slane %v9435, %v10201
      %v10204 = vunpack.c.l.s4 1935823168
      %v10205 = vunpack.c.0.s8 %v10204
      %v10206 = vlaneseq
      %v10207 = vshrl.u32 %v10206, 7
      %v10208 = vsub.s32 %v10205, %v10207
      %v10209 = vrot.slane %v10202, %v10208
      %v10211 = vunpack.c.l.s4 1935823168
      %v10212 = vunpack.c.0.s8 %v10211
      %v10213 = vlaneseq
      %v10214 = vshrl.u32 %v10213, 7
      %v10215 = vsub.s32 %v10212, %v10214
      %v10216 = vrot.slane %v9436, %v10215
      %v10218 = vunpack.c.l.s4 1935823168
      %v10219 = vunpack.c.0.s8 %v10218
      %v10220 = vlaneseq
      %v10221 = vshrl.u32 %v10220, 7
      %v10222 = vsub.s32 %v10219, %v10221
      %v10223 = vrot.slane %v10216, %v10222
      %v10225 = vunpack.c.l.s4 1935823168
      %v10226 = vunpack.c.0.s8 %v10225
      %v10227 = vlaneseq
      %v10228 = vshrl.u32 %v10227, 7
      %v10229 = vsub.s32 %v10226, %v10228
      %v10230 = vrot.slane %v9437, %v10229
      %v10232 = vunpack.c.l.s4 1935823168
      %v10233 = vunpack.c.0.s8 %v10232
      %v10234 = vlaneseq
      %v10235 = vshrl.u32 %v10234, 7
      %v10236 = vsub.s32 %v10233, %v10235
      %v10237 = vrot.slane %v10230, %v10236
      %v10239 = vunpack.c.l.s4 1935823168
      %v10240 = vunpack.c.0.s8 %v10239
      %v10241 = vlaneseq
      %v10242 = vshrl.u32 %v10241, 7
      %v10243 = vsub.s32 %v10240, %v10242
      %v10244 = vrot.slane %v9452, %v10243
      %v10246 = vunpack.c.l.s4 1935823168
      %v10247 = vunpack.c.0.s8 %v10246
      %v10248 = vlaneseq
      %v10249 = vshrl.u32 %v10248, 7
      %v10250 = vsub.s32 %v10247, %v10249
      %v10251 = vrot.slane %v10244, %v10250
      %v10253 = vunpack.c.l.s4 1935823168
      %v10254 = vunpack.c.0.s8 %v10253
      %v10255 = vlaneseq
      %v10256 = vshrl.u32 %v10255, 7
      %v10257 = vsub.s32 %v10254, %v10256
      %v10258 = vrot.slane %v9459, %v10257
      %v10260 = vunpack.c.l.s4 1935823168
      %v10261 = vunpack.c.0.s8 %v10260
      %v10262 = vlaneseq
      %v10263 = vshrl.u32 %v10262, 7
      %v10264 = vsub.s32 %v10261, %v10263
      %v10265 = vrot.slane %v10258, %v10264
      %v10267 = vunpack.c.l.s4 1935823168
      %v10268 = vunpack.c.0.s8 %v10267
      %v10269 = vlaneseq
      %v10270 = vshrl.u32 %v10269, 7
      %v10271 = vsub.s32 %v10268, %v10270
      %v10272 = vrot.slane %v9460, %v10271
      %v10274 = vunpack.c.l.s4 1935823168
      %v10275 = vunpack.c.0.s8 %v10274
      %v10276 = vlaneseq
      %v10277 = vshrl.u32 %v10276, 7
      %v10278 = vsub.s32 %v10275, %v10277
      %v10279 = vrot.slane %v10272, %v10278
      %v10281 = vunpack.c.l.s4 1935823168
      %v10282 = vunpack.c.0.s8 %v10281
      %v10283 = vlaneseq
      %v10284 = vshrl.u32 %v10283, 7
      %v10285 = vsub.s32 %v10282, %v10284
      %v10286 = vrot.slane %v9461, %v10285
      %v10288 = vunpack.c.l.s4 1935823168
      %v10289 = vunpack.c.0.s8 %v10288
      %v10290 = vlaneseq
      %v10291 = vshrl.u32 %v10290, 7
      %v10292 = vsub.s32 %v10289, %v10291
      %v10293 = vrot.slane %v10286, %v10292
      %v10295 = vunpack.c.l.s4 1935823168
      %v10296 = vunpack.c.0.s8 %v10295
      %v10297 = vlaneseq
      %v10298 = vshrl.u32 %v10297, 7
      %v10299 = vsub.s32 %v10296, %v10298
      %v10300 = vrot.slane %v9476, %v10299
      %v10302 = vunpack.c.l.s4 1935823168
      %v10303 = vunpack.c.0.s8 %v10302
      %v10304 = vlaneseq
      %v10305 = vshrl.u32 %v10304, 7
      %v10306 = vsub.s32 %v10303, %v10305
      %v10307 = vrot.slane %v10300, %v10306
      %v10309 = vunpack.c.l.s4 1935823168
      %v10310 = vunpack.c.0.s8 %v10309
      %v10311 = vlaneseq
      %v10312 = vshrl.u32 %v10311, 7
      %v10313 = vsub.s32 %v10310, %v10312
      %v10314 = vrot.slane %v9483, %v10313
      %v10316 = vunpack.c.l.s4 1935823168
      %v10317 = vunpack.c.0.s8 %v10316
      %v10318 = vlaneseq
      %v10319 = vshrl.u32 %v10318, 7
      %v10320 = vsub.s32 %v10317, %v10319
      %v10321 = vrot.slane %v10314, %v10320
      %v10323 = vunpack.c.l.s4 1935823168
      %v10324 = vunpack.c.0.s8 %v10323
      %v10325 = vlaneseq
      %v10326 = vshrl.u32 %v10325, 7
      %v10327 = vsub.s32 %v10324, %v10326
      %v10328 = vrot.slane %v9484, %v10327
      %v10330 = vunpack.c.l.s4 1935823168
      %v10331 = vunpack.c.0.s8 %v10330
      %v10332 = vlaneseq
      %v10333 = vshrl.u32 %v10332, 7
      %v10334 = vsub.s32 %v10331, %v10333
      %v10335 = vrot.slane %v10328, %v10334
      %v10337 = vunpack.c.l.s4 1935823168
      %v10338 = vunpack.c.0.s8 %v10337
      %v10339 = vlaneseq
      %v10340 = vshrl.u32 %v10339, 7
      %v10341 = vsub.s32 %v10338, %v10340
      %v10342 = vrot.slane %v9485, %v10341
      %v10344 = vunpack.c.l.s4 1935823168
      %v10345 = vunpack.c.0.s8 %v10344
      %v10346 = vlaneseq
      %v10347 = vshrl.u32 %v10346, 7
      %v10348 = vsub.s32 %v10345, %v10347
      %v10349 = vrot.slane %v10342, %v10348
      %v10351 = vunpack.c.l.s4 1935823168
      %v10352 = vunpack.c.0.s8 %v10351
      %v10353 = vlaneseq
      %v10354 = vshrl.u32 %v10353, 7
      %v10355 = vsub.s32 %v10352, %v10354
      %v10356 = vrot.slane %v9500, %v10355
      %v10358 = vunpack.c.l.s4 1935823168
      %v10359 = vunpack.c.0.s8 %v10358
      %v10360 = vlaneseq
      %v10361 = vshrl.u32 %v10360, 7
      %v10362 = vsub.s32 %v10359, %v10361
      %v10363 = vrot.slane %v10356, %v10362
      %v10365 = vunpack.c.l.s4 1935823168
      %v10366 = vunpack.c.0.s8 %v10365
      %v10367 = vlaneseq
      %v10368 = vshrl.u32 %v10367, 7
      %v10369 = vsub.s32 %v10366, %v10368
      %v10370 = vrot.slane %v9507, %v10369
      %v10372 = vunpack.c.l.s4 1935823168
      %v10373 = vunpack.c.0.s8 %v10372
      %v10374 = vlaneseq
      %v10375 = vshrl.u32 %v10374, 7
      %v10376 = vsub.s32 %v10373, %v10375
      %v10377 = vrot.slane %v10370, %v10376
      %v10379 = vunpack.c.l.s4 1935823168
      %v10380 = vunpack.c.0.s8 %v10379
      %v10381 = vlaneseq
      %v10382 = vshrl.u32 %v10381, 7
      %v10383 = vsub.s32 %v10380, %v10382
      %v10384 = vrot.slane %v9508, %v10383
      %v10386 = vunpack.c.l.s4 1935823168
      %v10387 = vunpack.c.0.s8 %v10386
      %v10388 = vlaneseq
      %v10389 = vshrl.u32 %v10388, 7
      %v10390 = vsub.s32 %v10387, %v10389
      %v10391 = vrot.slane %v10384, %v10390
      %v10393 = vunpack.c.l.s4 1935823168
      %v10394 = vunpack.c.0.s8 %v10393
      %v10395 = vlaneseq
      %v10396 = vshrl.u32 %v10395, 7
      %v10397 = vsub.s32 %v10394, %v10396
      %v10398 = vrot.slane %v9509, %v10397
      %v10400 = vunpack.c.l.s4 1935823168
      %v10401 = vunpack.c.0.s8 %v10400
      %v10402 = vlaneseq
      %v10403 = vshrl.u32 %v10402, 7
      %v10404 = vsub.s32 %v10401, %v10403
      %v10405 = vrot.slane %v10398, %v10404
      %v10406 = vunpack.c.l.b16 %v9523
      %v10407 = vunpack.c.l.b16 %v9537
      %v10408 = vunpack.c.l.b16 %v9551
      %v10409 = vunpack.c.l.b16 %v9565
      %v10410 = vunpack.c.l.b16 %v9579
      %v10411 = vunpack.c.l.b16 %v9593
      %v10412 = vunpack.c.l.b16 %v9607
      %v10413 = vunpack.c.l.b16 %v9621
      %v10414 = vunpack.c.l.b16 %v9635
      %v10415 = vunpack.c.l.b16 %v9649
      %v10416 = vunpack.c.l.b16 %v9663
      %v10417 = vunpack.c.l.b16 %v9677
      %v10418 = vunpack.c.l.b16 %v9691
      %v10419 = vunpack.c.l.b16 %v9705
      %v10420 = vunpack.c.l.b16 %v9719
      %v10421 = vunpack.c.l.b16 %v9733
      %v10422 = vunpack.c.l.b16 %v9747
      %v10423 = vunpack.c.l.b16 %v9761
      %v10424 = vunpack.c.l.b16 %v9775
      %v10425 = vunpack.c.l.b16 %v9789
      %v10426 = vunpack.c.l.b16 %v9803
      %v10427 = vunpack.c.l.b16 %v9817
      %v10428 = vunpack.c.l.b16 %v9831
      %v10429 = vunpack.c.l.b16 %v9845
      %v10430 = vunpack.c.l.b16 %v9859
      %v10431 = vunpack.c.l.b16 %v9873
      %v10432 = vunpack.c.l.b16 %v9887
      %v10433 = vunpack.c.l.b16 %v9901
      %v10434 = vunpack.c.l.b16 %v9915
      %v10435 = vunpack.c.l.b16 %v9929
      %v10436 = vunpack.c.l.b16 %v9943
      %v10437 = vunpack.c.l.b16 %v9957
      %v10438 = vunpack.c.l.b16 %v9971
      %v10439 = vunpack.c.l.b16 %v9985
      %v10440 = vunpack.c.l.b16 %v9999
      %v10441 = vunpack.c.l.b16 %v10013
      %v10442 = vunpack.c.l.b16 %v10027
      %v10443 = vunpack.c.l.b16 %v10041
      %v10444 = vunpack.c.l.b16 %v10055
      %v10445 = vunpack.c.l.b16 %v10069
      %v10446 = vunpack.c.l.b16 %v10083
      %v10447 = vunpack.c.l.b16 %v10097
      %v10448 = vunpack.c.l.b16 %v10111
      %v10449 = vunpack.c.l.b16 %v10125
      %v10450 = vunpack.c.l.b16 %v10139
      %v10451 = vunpack.c.l.b16 %v10153
      %v10452 = vunpack.c.l.b16 %v10167
      %v10453 = vunpack.c.l.b16 %v10181
      %v10454 = vunpack.c.l.b16 %v10195
      %v10455 = vunpack.c.l.b16 %v10209
      %v10456 = vunpack.c.l.b16 %v10223
      %v10457 = vunpack.c.l.b16 %v10237
      %v10458 = vunpack.c.l.b16 %v10251
      %v10459 = vunpack.c.l.b16 %v10265
      %v10460 = vunpack.c.l.b16 %v10279
      %v10461 = vunpack.c.l.b16 %v10293
      %v10462 = vunpack.c.l.b16 %v10307
      %v10463 = vunpack.c.l.b16 %v10321
      %v10464 = vunpack.c.l.b16 %v10335
      %v10465 = vunpack.c.l.b16 %v10349
      %v10466 = vunpack.c.l.b16 %v10363
      %v10467 = vunpack.c.l.b16 %v10377
      %v10468 = vunpack.c.l.b16 %v10391
      %v10469 = vunpack.c.l.b16 %v10405
      %v10470 = vrot.slane %v10407, 7
      %vm10471 = vcmask 1041409
      %v10472 = vsel %vm10471, %v10470, %v10406
      %v10473 = vrot.slane %v10408, 6
      %vm10474 = vcmask 1042434
      %v10475 = vsel %vm10474, %v10473, %v10472
      %v10476 = vrot.slane %v10409, 5
      %vm10477 = vcmask 1043459
      %v10478 = vsel %vm10477, %v10476, %v10475
      %v10479 = vrot.slane %v10410, 4
      %vm10480 = vcmask 1044484
      %v10481 = vsel %vm10480, %v10479, %v10478
      %v10482 = vrot.slane %v10411, 3
      %vm10483 = vcmask 1045509
      %v10484 = vsel %vm10483, %v10482, %v10481
      %v10485 = vrot.slane %v10412, 2
      %vm10486 = vcmask 1046534
      %v10487 = vsel %vm10486, %v10485, %v10484
      %v10488 = vrot.slane %v10413, 1
      %vm10489 = vcmask 1047559
      %v10490 = vsel %vm10489, %v10488, %v10487
      %v10491 = vrot.slane %v10415, 7
      %v10492 = vsel %vm10471, %v10491, %v10414
      %v10493 = vrot.slane %v10416, 6
      %v10494 = vsel %vm10474, %v10493, %v10492
      %v10495 = vrot.slane %v10417, 5
      %v10496 = vsel %vm10477, %v10495, %v10494
      %v10497 = vrot.slane %v10418, 4
      %v10498 = vsel %vm10480, %v10497, %v10496
      %v10499 = vrot.slane %v10419, 3
      %v10500 = vsel %vm10483, %v10499, %v10498
      %v10501 = vrot.slane %v10420, 2
      %v10502 = vsel %vm10486, %v10501, %v10500
      %v10503 = vrot.slane %v10421, 1
      %v10504 = vsel %vm10489, %v10503, %v10502
      %v10505 = vrot.slane %v10423, 7
      %v10506 = vsel %vm10471, %v10505, %v10422
      %v10507 = vrot.slane %v10424, 6
      %v10508 = vsel %vm10474, %v10507, %v10506
      %v10509 = vrot.slane %v10425, 5
      %v10510 = vsel %vm10477, %v10509, %v10508
      %v10511 = vrot.slane %v10426, 4
      %v10512 = vsel %vm10480, %v10511, %v10510
      %v10513 = vrot.slane %v10427, 3
      %v10514 = vsel %vm10483, %v10513, %v10512
      %v10515 = vrot.slane %v10428, 2
      %v10516 = vsel %vm10486, %v10515, %v10514
      %v10517 = vrot.slane %v10429, 1
      %v10518 = vsel %vm10489, %v10517, %v10516
      %v10519 = vrot.slane %v10431, 7
      %v10520 = vsel %vm10471, %v10519, %v10430
      %v10521 = vrot.slane %v10432, 6
      %v10522 = vsel %vm10474, %v10521, %v10520
      %v10523 = vrot.slane %v10433, 5
      %v10524 = vsel %vm10477, %v10523, %v10522
      %v10525 = vrot.slane %v10434, 4
      %v10526 = vsel %vm10480, %v10525, %v10524
      %v10527 = vrot.slane %v10435, 3
      %v10528 = vsel %vm10483, %v10527, %v10526
      %v10529 = vrot.slane %v10436, 2
      %v10530 = vsel %vm10486, %v10529, %v10528
      %v10531 = vrot.slane %v10437, 1
      %v10532 = vsel %vm10489, %v10531, %v10530
      %v10533 = vrot.slane %v10439, 7
      %v10534 = vsel %vm10471, %v10533, %v10438
      %v10535 = vrot.slane %v10440, 6
      %v10536 = vsel %vm10474, %v10535, %v10534
      %v10537 = vrot.slane %v10441, 5
      %v10538 = vsel %vm10477, %v10537, %v10536
      %v10539 = vrot.slane %v10442, 4
      %v10540 = vsel %vm10480, %v10539, %v10538
      %v10541 = vrot.slane %v10443, 3
      %v10542 = vsel %vm10483, %v10541, %v10540
      %v10543 = vrot.slane %v10444, 2
      %v10544 = vsel %vm10486, %v10543, %v10542
      %v10545 = vrot.slane %v10445, 1
      %v10546 = vsel %vm10489, %v10545, %v10544
      %v10547 = vrot.slane %v10447, 7
      %v10548 = vsel %vm10471, %v10547, %v10446
      %v10549 = vrot.slane %v10448, 6
      %v10550 = vsel %vm10474, %v10549, %v10548
      %v10551 = vrot.slane %v10449, 5
      %v10552 = vsel %vm10477, %v10551, %v10550
      %v10553 = vrot.slane %v10450, 4
      %v10554 = vsel %vm10480, %v10553, %v10552
      %v10555 = vrot.slane %v10451, 3
      %v10556 = vsel %vm10483, %v10555, %v10554
      %v10557 = vrot.slane %v10452, 2
      %v10558 = vsel %vm10486, %v10557, %v10556
      %v10559 = vrot.slane %v10453, 1
      %v10560 = vsel %vm10489, %v10559, %v10558
      %v10561 = vrot.slane %v10455, 7
      %v10562 = vsel %vm10471, %v10561, %v10454
      %v10563 = vrot.slane %v10456, 6
      %v10564 = vsel %vm10474, %v10563, %v10562
      %v10565 = vrot.slane %v10457, 5
      %v10566 = vsel %vm10477, %v10565, %v10564
      %v10567 = vrot.slane %v10458, 4
      %v10568 = vsel %vm10480, %v10567, %v10566
      %v10569 = vrot.slane %v10459, 3
      %v10570 = vsel %vm10483, %v10569, %v10568
      %v10571 = vrot.slane %v10460, 2
      %v10572 = vsel %vm10486, %v10571, %v10570
      %v10573 = vrot.slane %v10461, 1
      %v10574 = vsel %vm10489, %v10573, %v10572
      %v10575 = vrot.slane %v10463, 7
      %v10576 = vsel %vm10471, %v10575, %v10462
      %v10577 = vrot.slane %v10464, 6
      %v10578 = vsel %vm10474, %v10577, %v10576
      %v10579 = vrot.slane %v10465, 5
      %v10580 = vsel %vm10477, %v10579, %v10578
      %v10581 = vrot.slane %v10466, 4
      %v10582 = vsel %vm10480, %v10581, %v10580
      %v10583 = vrot.slane %v10467, 3
      %v10584 = vsel %vm10483, %v10583, %v10582
      %v10585 = vrot.slane %v10468, 2
      %v10586 = vsel %vm10486, %v10585, %v10584
      %v10587 = vrot.slane %v10469, 1
      %v10588 = vsel %vm10489, %v10587, %v10586
      %v10589 = vpack.c.b16 %v10490, %v10490
      %v10590 = vpack.c.b16 %v10504, %v10504
      %v10591 = vpack.c.b16 %v10518, %v10518
      %v10592 = vpack.c.b16 %v10532, %v10532
      %v10593 = vpack.c.b16 %v10546, %v10546
      %v10594 = vpack.c.b16 %v10560, %v10560
      %v10595 = vpack.c.b16 %v10574, %v10574
      %v10596 = vpack.c.b16 %v10588, %v10588
      %10605 = vst [vmem:[%s264] sm:$0xf] %v10589
      %10606 = vst [vmem:[%s264 + $0x4] sm:$0xf] %v10590
      %10607 = vst [vmem:[%s264 + $0x8] sm:$0xf] %v10591
      %10608 = vst [vmem:[%s264 + $0xc] sm:$0xf] %v10592
      %10609 = vst [vmem:[%s264 + $0x10] sm:$0xf] %v10593
      %10610 = vst [vmem:[%s264 + $0x14] sm:$0xf] %v10594
      %10611 = vst [vmem:[%s264 + $0x18] sm:$0xf] %v10595
      %10612 = vst [vmem:[%s264 + $0x1c] sm:$0xf] %v10596
      %p10613 = scmp.lt.s32.totalorder %s18, 1
      %s10614 = scalar_select %p10613, %s18, 1
      %s10615 = smul.addr %s10614, 32
      %s10616 = smul.addr %s10615, 4
      %s10617 = scalar_lea.vmem %s5, %s10616
      %p10618 = scmp.lt.s32.totalorder %s18, 1
      %s10619 = scalar_select %p10618, %s18, 1
      %s10620 = smul.addr %s10619, 8
      %s10621 = smul.addr %s10620, 4
      %s10622 = scalar_lea.vmem %s6, %s10621
      // Predicated region
      $region41: #{downsample_forward.1} parent=39 // pred_check
        %p10623 = pneg %p146
      $region42: #{downsample_forward.1} parent=39 // pred_check_branch
        %10625 = sbr.rel (%p10623) target = $region44
      $region43: #{downsample_forward.1} parent=39 // pred_region
        _
      $region44: #{downsample_forward.1} parent=39 // pred_fallthru
        _
      // Predicated region
      $region45: #{downsample_forward.1} parent=39 // pred_check
        %p10626 = pneg %p172
      $region46: #{downsample_forward.1} parent=39 // pred_check_branch
        %10628 = sbr.rel (%p10626) target = $region48
      $region47: #{downsample_forward.1} parent=39 // pred_region
        _
      $region48: #{downsample_forward.1} parent=39 // pred_fallthru
        _
    $region40: #{downsample_forward.1} parent=5 // pred_fallthru
      _
    %p10629 = scmp.le.s32.totalorder 2, %s13
    // Predicated region
    $region49: #{downsample_forward.1} parent=5 // pred_check
      %p10630 = pneg %p10629
    $region50: #{downsample_forward.1} parent=5 // pred_check_branch
      %10632 = sbr.rel (%p10630) target = $region52
    $region51: #{downsample_forward.1} parent=5 // pred_region
      %s10633 = ssub.s32 %s13, 2
      // Predicated region
      $region53: #{downsample_forward.1} parent=51 // pred_check
        %p10634 = pneg %p152
      $region54: #{downsample_forward.1} parent=51 // pred_check_branch
        %10636 = sbr.rel (%p10634) target = $region56
      $region55: #{downsample_forward.1} parent=51 // pred_region
        %p10637 = scmp.lt.s32.totalorder %s19, 1
        %s10638 = scalar_select %p10637, %s19, 1
        %s10639 = smul.addr %s10638, 32
        %s10640 = smul.addr %s10639, 4
        %s10641 = scalar_lea.vmem %s5, %s10640
      $region56: #{downsample_forward.1} parent=51 // pred_fallthru
        _
      // Predicated region
      $region57: #{downsample_forward.1} parent=51 // pred_check
        %p10642 = pneg %p178
      $region58: #{downsample_forward.1} parent=51 // pred_check_branch
        %10644 = sbr.rel (%p10642) target = $region60
      $region59: #{downsample_forward.1} parent=51 // pred_region
        %p10645 = scmp.lt.s32.totalorder %s19, 1
        %s10646 = scalar_select %p10645, %s19, 1
        %s10647 = smul.addr %s10646, 8
        %s10648 = smul.addr %s10647, 4
        %s10649 = scalar_lea.vmem %s6, %s10648
      $region60: #{downsample_forward.1} parent=51 // pred_fallthru
        _
    $region52: #{downsample_forward.1} parent=5 // pred_fallthru
      _
  $region6: #{downsample_forward.1} parent=0 // loop_footer
    %s17 = sadd.s32 1, %s13
  $region7: #{downsample_forward.1} parent=0 // loop_footer_branch
    %12 = sbr.rel target = $region3
  $region8: #{downsample_forward.1} parent=0 // loop_exit
    _

</llo_original>
